<compile_context>
chip_gen: v6e
topology: v6e:2x2x1
jax: 0.10.0
libtpu: 0.0.40
codegen_flags: <defaults>
</compile_context>

<pallas_src>
import functools

import jax
import jax.numpy as jnp
from jax.experimental import pallas as pl
from jax.experimental.pallas import tpu as pltpu


def _round_up(x, m):
    return (x + m - 1) // m * m


# ---------------------------------------------------------------------------
# Fused BasicBlock kernel (one image per grid step)
# ---------------------------------------------------------------------------
def _basic_block_kernel(x_ref, w1_ref, w2_ref, s1_ref, b1_ref, s2_ref, b2_ref,
                        mask_ref, o_ref, h_ref, *, wp, dil, mh, my, q0, tm, cp):
    """Refs:
      x_ref   : (Mx, Cp)  f32  zero-padded (pad=P=1+dil) image, rows flattened
                               as p = i*Wp + j  (Mx = Hp*Wp)
      w*_ref  : (9, Cp, Cp) bf16 per-tap weights, tap t = dy*3 + dx
      s*/b*   : (1, Cp)   f32  folded BatchNorm scale / bias
      mask_ref: (Mh, 1)   f32  1.0 where h corresponds to a true conv1 output
                               pixel, 0.0 on the halo ring / wrap columns
      o_ref   : (My, Cp)  f32  flattened conv2 + residual + relu output
      h_ref   : (Mh, Cp)  f32  VMEM scratch: relu(bn1(conv1(x))) * mask
    """
    s1 = s1_ref[...]
    b1 = b1_ref[...]
    s2 = s2_ref[...]
    b2 = b2_ref[...]

    # ---- conv1 -> bn1 -> relu -> zero the halo ring (chunked over rows) ----
    for m0 in range(0, mh, tm):
        cur = min(tm, mh - m0)
        acc = jnp.zeros((cur, cp), jnp.float32)
        for t in range(9):
            off = (t // 3) * wp + (t % 3)
            a = x_ref[m0 + off:m0 + off + cur, :].astype(jnp.bfloat16)
            acc = acc + jnp.dot(a, w1_ref[t],
                                preferred_element_type=jnp.float32)
        h = jnp.maximum(acc * s1 + b1, 0.0)
        h_ref[m0:m0 + cur, :] = h * mask_ref[m0:m0 + cur, :]

    # ---- conv2 -> bn2 -> +residual -> relu (chunked over rows) ----
    for m0 in range(0, my, tm):
        cur = min(tm, my - m0)
        acc = jnp.zeros((cur, cp), jnp.float32)
        for t in range(9):
            off = dil * ((t // 3) * wp + (t % 3))
            a = h_ref[m0 + off:m0 + off + cur, :].astype(jnp.bfloat16)
            acc = acc + jnp.dot(a, w2_ref[t],
                                preferred_element_type=jnp.float32)
        res = x_ref[q0 + m0:q0 + m0 + cur, :]           # exact f32 residual
        o_ref[m0:m0 + cur, :] = jnp.maximum(acc * s2 + b2 + res, 0.0)


# ---------------------------------------------------------------------------
# Parameter preparation (BN folding, weight tap layout, channel padding)
# ---------------------------------------------------------------------------
def _fold_bn(gamma, beta, mean, var, cp, eps=1e-5):
    scale = gamma / jnp.sqrt(var + eps)
    bias = beta - mean * scale
    pad = (0, cp - scale.shape[0])
    scale = jnp.pad(scale, pad).reshape(1, cp).astype(jnp.float32)
    bias = jnp.pad(bias, pad).reshape(1, cp).astype(jnp.float32)
    return scale, bias


def _w_to_taps(w_oihw, cp):
    """(Cout, Cin, 3, 3) -> (9, Cp, Cp) bf16, tap index = dy*3 + dx."""
    cout, cin = w_oihw.shape[0], w_oihw.shape[1]
    w = jnp.transpose(w_oihw, (2, 3, 1, 0)).reshape(9, cin, cout)
    w = jnp.pad(w, ((0, 0), (0, cp - cin), (0, cp - cout)))
    return w.astype(jnp.bfloat16)


# ---------------------------------------------------------------------------
# Forward wrapper
# ---------------------------------------------------------------------------
def basic_block_forward(x_nchw, params, dilation=1, tm=256):
    """BasicBlock forward (stride=1, downsample=None). Input/output NCHW f32."""
    N, C, H, W = x_nchw.shape
    planes = params["conv1_w"].shape[0]
    inplanes = params["conv1_w"].shape[1]
    # downsample=None / stride=1 contract: residual add needs matching shapes.
    assert inplanes == C and planes == C, (
        "BasicBlock with downsample=None requires inplanes == planes == C")
    # TODO(synk): stride > 1 and the optional downsample path not implemented.

    d = int(dilation)
    P = 1 + d                        # conv1 halo (1) + conv2 halo (d)
    Hp, Wp = H + 2 * P, W + 2 * P
    Mx = Hp * Wp
    Mh = Mx - 2 * (Wp + 1)           # rows of h computed by conv1
    My = Mh - 2 * d * (Wp + 1)       # rows of conv2 output (= H*Wp - 2P)
    Q0 = P * (Wp + 1)                # flat offset of output pixel (0,0) in x
    Cp = _round_up(max(C, 1), 128)   # lane-dense channel padding

    # NCHW -> NHWC, zero-pad spatially by P and channels to Cp, flatten rows.
    x_nhwc = jnp.transpose(x_nchw, (0, 2, 3, 1)).astype(jnp.float32)
    x_pad = jnp.pad(x_nhwc, ((0, 0), (P, P), (P, P), (0, Cp - C)))
    x_flat = x_pad.reshape(N, Mx, Cp)
    # TODO(synk): feed x_flat as bf16 to halve activation HBM traffic once the
    # residual path may tolerate bf16 rounding.

    w1 = _w_to_taps(params["conv1_w"], Cp)
    w2 = _w_to_taps(params["conv2_w"], Cp)
    s1, b1 = _fold_bn(params["bn1_g"], params["bn1_b"],
                      params["bn1_mean"], params["bn1_var"], Cp)
    s2, b2 = _fold_bn(params["bn2_g"], params["bn2_b"],
                      params["bn2_mean"], params["bn2_var"], Cp)

    # mask = 1 exactly where h_flat is a true conv1 output pixel; conv2 then
    # sees zeros elsewhere, matching its zero padding.
    q = jnp.arange(Mh, dtype=jnp.int32) + (Wp + 1)
    qi, qj = q // Wp, q % Wp
    mask = (((qi >= P) & (qi < P + H) & (qj >= P) & (qj < P + W))
            .astype(jnp.float32).reshape(Mh, 1))

    kernel = functools.partial(_basic_block_kernel, wp=Wp, dil=d, mh=Mh,
                               my=My, q0=Q0, tm=tm, cp=Cp)

    y = pl.pallas_call(
        kernel,
        out_shape=jax.ShapeDtypeStruct((N, My, Cp), jnp.float32),
        grid=(N,),
        in_specs=[
            pl.BlockSpec((None, Mx, Cp), lambda n: (n, 0, 0)),   # x (flattened)
            pl.BlockSpec((9, Cp, Cp), lambda n: (0, 0, 0)),      # W1 taps
            pl.BlockSpec((9, Cp, Cp), lambda n: (0, 0, 0)),      # W2 taps
            pl.BlockSpec((1, Cp), lambda n: (0, 0)),             # bn1 scale
            pl.BlockSpec((1, Cp), lambda n: (0, 0)),             # bn1 bias
            pl.BlockSpec((1, Cp), lambda n: (0, 0)),             # bn2 scale
            pl.BlockSpec((1, Cp), lambda n: (0, 0)),             # bn2 bias
            pl.BlockSpec((Mh, 1), lambda n: (0, 0)),             # h mask
        ],
        out_specs=pl.BlockSpec((None, My, Cp), lambda n: (n, 0, 0)),
        scratch_shapes=[pltpu.VMEM((Mh, Cp), jnp.float32)],      # h scratch
        compiler_params=pltpu.CompilerParams(
            dimension_semantics=("parallel",)),
    )(x_flat, w1, w2, s1, b1, s2, b2, mask)

    # Un-flatten: output row q2 = a*Wp + b for pixel (a, b); pad the 2P missing
    # trailing rows, reshape, and drop junk columns / padded channels.
    y = jnp.pad(y, ((0, 0), (0, H * Wp - My), (0, 0)))
    y = y.reshape(N, H, Wp, Cp)[:, :, :W, :C]
    return jnp.transpose(y, (0, 3, 1, 2))                        # -> NCHW


# ---------------------------------------------------------------------------
# Pure-JAX reference (for validation)
# ---------------------------------------------------------------------------
def _conv3x3_ref(x_nhwc, w_oihw, dilation=1):
    p = dilation
    return jax.lax.conv_general_dilated(
        x_nhwc, jnp.transpose(w_oihw, (2, 3, 1, 0)),             # HWIO
        window_strides=(1, 1),
        padding=((p, p), (p, p)),
        rhs_dilation=(dilation, dilation),
        dimension_numbers=("NHWC", "HWIO", "NHWC"))


def _bn_ref(x_nhwc, g, b, mean, var, eps=1e-5):
    return (x_nhwc - mean) / jnp.sqrt(var + eps) * g + b


def basic_block_reference(x_nchw, params, dilation=1):
    x = jnp.transpose(x_nchw, (0, 2, 3, 1)).astype(jnp.float32)
    out = _conv3x3_ref(x, params["conv1_w"], dilation=1)
    out = _bn_ref(out, params["bn1_g"], params["bn1_b"],
                  params["bn1_mean"], params["bn1_var"])
    out = jnp.maximum(out, 0.0)
    out = _conv3x3_ref(out, params["conv2_w"], dilation=dilation)
    out = _bn_ref(out, params["bn2_g"], params["bn2_b"],
                  params["bn2_mean"], params["bn2_var"])
    out = jnp.maximum(out + x, 0.0)
    return jnp.transpose(out, (0, 3, 1, 2))


# ---------------------------------------------------------------------------
if __name__ == "__main__":
    key = jax.random.PRNGKey(0)
    N, C, H, W = 2, 4, 16, 16            # inplanes = planes = 4
    planes = C

    k = jax.random.split(key, 6)
    params = {
        "conv1_w": jax.random.normal(k[0], (planes, C, 3, 3), jnp.float32)
                   / jnp.sqrt(C * 9),
        "conv2_w": jax.random.normal(k[1], (planes, planes, 3, 3), jnp.float32)
                   / jnp.sqrt(planes * 9),
        # BatchNorm (affine=True), inference mode with default running stats.
        "bn1_g": 1.0 + 0.1 * jax.random.normal(k[2], (planes,), jnp.float32),
        "bn1_b": 0.1 * jax.random.normal(k[3], (planes,), jnp.float32),
        "bn1_mean": jnp.zeros((planes,), jnp.float32),
        "bn1_var": jnp.ones((planes,), jnp.float32),
        "bn2_g": 1.0 + 0.1 * jax.random.normal(k[4], (planes,), jnp.float32),
        "bn2_b": 0.1 * jax.random.normal(k[5], (planes,), jnp.float32),
        "bn2_mean": jnp.zeros((planes,), jnp.float32),
        "bn2_var": jnp.ones((planes,), jnp.float32),
    }

    x = jax.random.normal(jax.random.PRNGKey(42), (N, C, H, W), jnp.float32)

    # Check the default (dilation=1) and a dilated (dilation=2) BasicBlock.
    for d in (1, 2):
        out = jax.block_until_ready(basic_block_forward(x, params, dilation=d))
        ref = jax.block_until_ready(basic_block_reference(x, params, dilation=d))
        assert out.shape == (N, planes, H, W)
        err = jnp.abs(out - ref)
        # bf16 matmul operands (f32 accumulation / f32 epilogue) -> loosened
        # tolerance vs. the pure-f32 reference.
        assert float(jnp.mean(err)) < 1e-2, float(jnp.mean(err))
        assert bool(jnp.all(err <= 5e-2 + 5e-2 * jnp.abs(ref))), (
            float(jnp.max(err)))

    print("KERNEL_OK")
</pallas_src>

<mosaic_0001>
module attributes {stable_mosaic.version = 11 : i64} {
  func.func @_basic_block_kernel(%arg0: i32, %arg1: memref<1x400x128xf32, #tpu.memory_space<vmem>>, %arg2: memref<9x128x128xbf16, #tpu.memory_space<vmem>>, %arg3: memref<9x128x128xbf16, #tpu.memory_space<vmem>>, %arg4: memref<1x128xf32, #tpu.memory_space<vmem>>, %arg5: memref<1x128xf32, #tpu.memory_space<vmem>>, %arg6: memref<1x128xf32, #tpu.memory_space<vmem>>, %arg7: memref<1x128xf32, #tpu.memory_space<vmem>>, %arg8: memref<358x1xf32, #tpu.memory_space<vmem>>, %arg9: memref<1x316x128xf32, #tpu.memory_space<vmem>>, %arg10: memref<358x128xf32, #tpu.memory_space<vmem>>) attributes {dimension_semantics = [#tpu.dimension_semantics<parallel>], iteration_bounds = array<i64: 2>, scalar_prefetch = 0 : i64, scratch_operands = 1 : i64, tpu.core_type = #tpu.core_type<tc>, window_params = [{transform_indices = @transform_0, window_bounds = array<i64: 1, 400, 128>}, {pipeline_mode = #tpu.pipeline_mode<synchronous>, transform_indices = @transform_1, window_bounds = array<i64: 9, 128, 128>}, {pipeline_mode = #tpu.pipeline_mode<synchronous>, transform_indices = @transform_2, window_bounds = array<i64: 9, 128, 128>}, {pipeline_mode = #tpu.pipeline_mode<synchronous>, transform_indices = @transform_3, window_bounds = array<i64: 1, 128>}, {pipeline_mode = #tpu.pipeline_mode<synchronous>, transform_indices = @transform_4, window_bounds = array<i64: 1, 128>}, {pipeline_mode = #tpu.pipeline_mode<synchronous>, transform_indices = @transform_5, window_bounds = array<i64: 1, 128>}, {pipeline_mode = #tpu.pipeline_mode<synchronous>, transform_indices = @transform_6, window_bounds = array<i64: 1, 128>}, {pipeline_mode = #tpu.pipeline_mode<synchronous>, transform_indices = @transform_7, window_bounds = array<i64: 358, 1>}, {transform_indices = @transform_8, window_bounds = array<i64: 1, 316, 128>}]} {
    %c0 = arith.constant 0 : index
    %c0_0 = arith.constant 0 : index
    %0 = vector.load %arg4[%c0, %c0_0] : memref<1x128xf32, #tpu.memory_space<vmem>>, vector<1x128xf32>
    %c0_1 = arith.constant 0 : index
    %c0_2 = arith.constant 0 : index
    %1 = vector.load %arg5[%c0_1, %c0_2] : memref<1x128xf32, #tpu.memory_space<vmem>>, vector<1x128xf32>
    %c0_3 = arith.constant 0 : index
    %c0_4 = arith.constant 0 : index
    %2 = vector.load %arg6[%c0_3, %c0_4] : memref<1x128xf32, #tpu.memory_space<vmem>>, vector<1x128xf32>
    %c0_5 = arith.constant 0 : index
    %c0_6 = arith.constant 0 : index
    %3 = vector.load %arg7[%c0_5, %c0_6] : memref<1x128xf32, #tpu.memory_space<vmem>>, vector<1x128xf32>
    %cst = arith.constant 0.000000e+00 : f32
    %4 = vector.broadcast %cst : f32 to vector<256x128xf32>
    %c0_7 = arith.constant 0 : index
    %c0_8 = arith.constant 0 : index
    %c0_9 = arith.constant 0 : index
    %5 = vector.load %arg1[%c0_7, %c0_8, %c0_9] : memref<1x400x128xf32, #tpu.memory_space<vmem>>, vector<1x256x128xf32>
    %6 = vector.shape_cast %5 : vector<1x256x128xf32> to vector<256x128xf32>
    %7 = arith.truncf %6 : vector<256x128xf32> to vector<256x128xbf16>
    %c0_10 = arith.constant 0 : index
    %c0_11 = arith.constant 0 : index
    %c0_12 = arith.constant 0 : index
    %8 = vector.load %arg2[%c0_10, %c0_11, %c0_12] : memref<9x128x128xbf16, #tpu.memory_space<vmem>>, vector<1x128x128xbf16>
    %9 = vector.shape_cast %8 : vector<1x128x128xbf16> to vector<128x128xbf16>
    %cst_13 = arith.constant dense<0.000000e+00> : vector<256x128xf32>
    %10 = tpu.matmul %7, %9, %cst_13 {dimension_numbers = #tpu.dot_dimension_numbers<[1], [0], [0], [1], [0, 0, 1, 1], [], []>} : vector<256x128xbf16>, vector<128x128xbf16>, vector<256x128xf32> -> vector<256x128xf32>
    %11 = arith.addf %4, %10 : vector<256x128xf32>
    %c0_14 = arith.constant 0 : index
    %c1 = arith.constant 1 : index
    %c0_15 = arith.constant 0 : index
    %12 = vector.load %arg1[%c0_14, %c1, %c0_15] : memref<1x400x128xf32, #tpu.memory_space<vmem>>, vector<1x256x128xf32>
    %13 = vector.shape_cast %12 : vector<1x256x128xf32> to vector<256x128xf32>
    %14 = arith.truncf %13 : vector<256x128xf32> to vector<256x128xbf16>
    %c1_16 = arith.constant 1 : index
    %c0_17 = arith.constant 0 : index
    %c0_18 = arith.constant 0 : index
    %15 = vector.load %arg2[%c1_16, %c0_17, %c0_18] : memref<9x128x128xbf16, #tpu.memory_space<vmem>>, vector<1x128x128xbf16>
    %16 = vector.shape_cast %15 : vector<1x128x128xbf16> to vector<128x128xbf16>
    %cst_19 = arith.constant dense<0.000000e+00> : vector<256x128xf32>
    %17 = tpu.matmul %14, %16, %cst_19 {dimension_numbers = #tpu.dot_dimension_numbers<[1], [0], [0], [1], [0, 0, 1, 1], [], []>} : vector<256x128xbf16>, vector<128x128xbf16>, vector<256x128xf32> -> vector<256x128xf32>
    %18 = arith.addf %11, %17 : vector<256x128xf32>
    %c0_20 = arith.constant 0 : index
    %c2 = arith.constant 2 : index
    %c0_21 = arith.constant 0 : index
    %19 = vector.load %arg1[%c0_20, %c2, %c0_21] : memref<1x400x128xf32, #tpu.memory_space<vmem>>, vector<1x256x128xf32>
    %20 = vector.shape_cast %19 : vector<1x256x128xf32> to vector<256x128xf32>
    %21 = arith.truncf %20 : vector<256x128xf32> to vector<256x128xbf16>
    %c2_22 = arith.constant 2 : index
    %c0_23 = arith.constant 0 : index
    %c0_24 = arith.constant 0 : index
    %22 = vector.load %arg2[%c2_22, %c0_23, %c0_24] : memref<9x128x128xbf16, #tpu.memory_space<vmem>>, vector<1x128x128xbf16>
    %23 = vector.shape_cast %22 : vector<1x128x128xbf16> to vector<128x128xbf16>
    %cst_25 = arith.constant dense<0.000000e+00> : vector<256x128xf32>
    %24 = tpu.matmul %21, %23, %cst_25 {dimension_numbers = #tpu.dot_dimension_numbers<[1], [0], [0], [1], [0, 0, 1, 1], [], []>} : vector<256x128xbf16>, vector<128x128xbf16>, vector<256x128xf32> -> vector<256x128xf32>
    %25 = arith.addf %18, %24 : vector<256x128xf32>
    %c0_26 = arith.constant 0 : index
    %c20 = arith.constant 20 : index
    %c0_27 = arith.constant 0 : index
    %26 = vector.load %arg1[%c0_26, %c20, %c0_27] : memref<1x400x128xf32, #tpu.memory_space<vmem>>, vector<1x256x128xf32>
    %27 = vector.shape_cast %26 : vector<1x256x128xf32> to vector<256x128xf32>
    %28 = arith.truncf %27 : vector<256x128xf32> to vector<256x128xbf16>
    %c3 = arith.constant 3 : index
    %c0_28 = arith.constant 0 : index
    %c0_29 = arith.constant 0 : index
    %29 = vector.load %arg2[%c3, %c0_28, %c0_29] : memref<9x128x128xbf16, #tpu.memory_space<vmem>>, vector<1x128x128xbf16>
    %30 = vector.shape_cast %29 : vector<1x128x128xbf16> to vector<128x128xbf16>
    %cst_30 = arith.constant dense<0.000000e+00> : vector<256x128xf32>
    %31 = tpu.matmul %28, %30, %cst_30 {dimension_numbers = #tpu.dot_dimension_numbers<[1], [0], [0], [1], [0, 0, 1, 1], [], []>} : vector<256x128xbf16>, vector<128x128xbf16>, vector<256x128xf32> -> vector<256x128xf32>
    %32 = arith.addf %25, %31 : vector<256x128xf32>
    %c0_31 = arith.constant 0 : index
    %c21 = arith.constant 21 : index
    %c0_32 = arith.constant 0 : index
    %33 = vector.load %arg1[%c0_31, %c21, %c0_32] : memref<1x400x128xf32, #tpu.memory_space<vmem>>, vector<1x256x128xf32>
    %34 = vector.shape_cast %33 : vector<1x256x128xf32> to vector<256x128xf32>
    %35 = arith.truncf %34 : vector<256x128xf32> to vector<256x128xbf16>
    %c4 = arith.constant 4 : index
    %c0_33 = arith.constant 0 : index
    %c0_34 = arith.constant 0 : index
    %36 = vector.load %arg2[%c4, %c0_33, %c0_34] : memref<9x128x128xbf16, #tpu.memory_space<vmem>>, vector<1x128x128xbf16>
    %37 = vector.shape_cast %36 : vector<1x128x128xbf16> to vector<128x128xbf16>
    %cst_35 = arith.constant dense<0.000000e+00> : vector<256x128xf32>
    %38 = tpu.matmul %35, %37, %cst_35 {dimension_numbers = #tpu.dot_dimension_numbers<[1], [0], [0], [1], [0, 0, 1, 1], [], []>} : vector<256x128xbf16>, vector<128x128xbf16>, vector<256x128xf32> -> vector<256x128xf32>
    %39 = arith.addf %32, %38 : vector<256x128xf32>
    %c0_36 = arith.constant 0 : index
    %c22 = arith.constant 22 : index
    %c0_37 = arith.constant 0 : index
    %40 = vector.load %arg1[%c0_36, %c22, %c0_37] : memref<1x400x128xf32, #tpu.memory_space<vmem>>, vector<1x256x128xf32>
    %41 = vector.shape_cast %40 : vector<1x256x128xf32> to vector<256x128xf32>
    %42 = arith.truncf %41 : vector<256x128xf32> to vector<256x128xbf16>
    %c5 = arith.constant 5 : index
    %c0_38 = arith.constant 0 : index
    %c0_39 = arith.constant 0 : index
    %43 = vector.load %arg2[%c5, %c0_38, %c0_39] : memref<9x128x128xbf16, #tpu.memory_space<vmem>>, vector<1x128x128xbf16>
    %44 = vector.shape_cast %43 : vector<1x128x128xbf16> to vector<128x128xbf16>
    %cst_40 = arith.constant dense<0.000000e+00> : vector<256x128xf32>
    %45 = tpu.matmul %42, %44, %cst_40 {dimension_numbers = #tpu.dot_dimension_numbers<[1], [0], [0], [1], [0, 0, 1, 1], [], []>} : vector<256x128xbf16>, vector<128x128xbf16>, vector<256x128xf32> -> vector<256x128xf32>
    %46 = arith.addf %39, %45 : vector<256x128xf32>
    %c0_41 = arith.constant 0 : index
    %c40 = arith.constant 40 : index
    %c0_42 = arith.constant 0 : index
    %47 = vector.load %arg1[%c0_41, %c40, %c0_42] : memref<1x400x128xf32, #tpu.memory_space<vmem>>, vector<1x256x128xf32>
    %48 = vector.shape_cast %47 : vector<1x256x128xf32> to vector<256x128xf32>
    %49 = arith.truncf %48 : vector<256x128xf32> to vector<256x128xbf16>
    %c6 = arith.constant 6 : index
    %c0_43 = arith.constant 0 : index
    %c0_44 = arith.constant 0 : index
    %50 = vector.load %arg2[%c6, %c0_43, %c0_44] : memref<9x128x128xbf16, #tpu.memory_space<vmem>>, vector<1x128x128xbf16>
    %51 = vector.shape_cast %50 : vector<1x128x128xbf16> to vector<128x128xbf16>
    %cst_45 = arith.constant dense<0.000000e+00> : vector<256x128xf32>
    %52 = tpu.matmul %49, %51, %cst_45 {dimension_numbers = #tpu.dot_dimension_numbers<[1], [0], [0], [1], [0, 0, 1, 1], [], []>} : vector<256x128xbf16>, vector<128x128xbf16>, vector<256x128xf32> -> vector<256x128xf32>
    %53 = arith.addf %46, %52 : vector<256x128xf32>
    %c0_46 = arith.constant 0 : index
    %c41 = arith.constant 41 : index
    %c0_47 = arith.constant 0 : index
    %54 = vector.load %arg1[%c0_46, %c41, %c0_47] : memref<1x400x128xf32, #tpu.memory_space<vmem>>, vector<1x256x128xf32>
    %55 = vector.shape_cast %54 : vector<1x256x128xf32> to vector<256x128xf32>
    %56 = arith.truncf %55 : vector<256x128xf32> to vector<256x128xbf16>
    %c7 = arith.constant 7 : index
    %c0_48 = arith.constant 0 : index
    %c0_49 = arith.constant 0 : index
    %57 = vector.load %arg2[%c7, %c0_48, %c0_49] : memref<9x128x128xbf16, #tpu.memory_space<vmem>>, vector<1x128x128xbf16>
    %58 = vector.shape_cast %57 : vector<1x128x128xbf16> to vector<128x128xbf16>
    %cst_50 = arith.constant dense<0.000000e+00> : vector<256x128xf32>
    %59 = tpu.matmul %56, %58, %cst_50 {dimension_numbers = #tpu.dot_dimension_numbers<[1], [0], [0], [1], [0, 0, 1, 1], [], []>} : vector<256x128xbf16>, vector<128x128xbf16>, vector<256x128xf32> -> vector<256x128xf32>
    %60 = arith.addf %53, %59 : vector<256x128xf32>
    %c0_51 = arith.constant 0 : index
    %c42 = arith.constant 42 : index
    %c0_52 = arith.constant 0 : index
    %61 = vector.load %arg1[%c0_51, %c42, %c0_52] : memref<1x400x128xf32, #tpu.memory_space<vmem>>, vector<1x256x128xf32>
    %62 = vector.shape_cast %61 : vector<1x256x128xf32> to vector<256x128xf32>
    %63 = arith.truncf %62 : vector<256x128xf32> to vector<256x128xbf16>
    %c8 = arith.constant 8 : index
    %c0_53 = arith.constant 0 : index
    %c0_54 = arith.constant 0 : index
    %64 = vector.load %arg2[%c8, %c0_53, %c0_54] : memref<9x128x128xbf16, #tpu.memory_space<vmem>>, vector<1x128x128xbf16>
    %65 = vector.shape_cast %64 : vector<1x128x128xbf16> to vector<128x128xbf16>
    %cst_55 = arith.constant dense<0.000000e+00> : vector<256x128xf32>
    %66 = tpu.matmul %63, %65, %cst_55 {dimension_numbers = #tpu.dot_dimension_numbers<[1], [0], [0], [1], [0, 0, 1, 1], [], []>} : vector<256x128xbf16>, vector<128x128xbf16>, vector<256x128xf32> -> vector<256x128xf32>
    %67 = arith.addf %60, %66 : vector<256x128xf32>
    %68 = vector.broadcast %0 : vector<1x128xf32> to vector<256x128xf32>
    %69 = arith.mulf %67, %68 : vector<256x128xf32>
    %70 = vector.broadcast %1 : vector<1x128xf32> to vector<256x128xf32>
    %71 = arith.addf %69, %70 : vector<256x128xf32>
    %cst_56 = arith.constant 0.000000e+00 : f32
    %72 = vector.broadcast %cst_56 : f32 to vector<256x128xf32>
    %73 = arith.maximumf %71, %72 : vector<256x128xf32>
    %c0_57 = arith.constant 0 : index
    %c0_58 = arith.constant 0 : index
    %74 = vector.load %arg8[%c0_57, %c0_58] : memref<358x1xf32, #tpu.memory_space<vmem>>, vector<256x1xf32>
    %75 = vector.broadcast %74 : vector<256x1xf32> to vector<256x128xf32>
    %76 = arith.mulf %73, %75 : vector<256x128xf32>
    %c0_59 = arith.constant 0 : index
    %c0_60 = arith.constant 0 : index
    %77 = vector.load %arg10[%c0_59, %c0_60] : memref<358x128xf32, #tpu.memory_space<vmem>>, vector<256x128xf32>
    tpu.vector_store %arg10[%c0_59, %c0_60], %76 {strides = array<i32>} : memref<358x128xf32, #tpu.memory_space<vmem>>, vector<256x128xf32>,
    %cst_61 = arith.constant 0.000000e+00 : f32
    %78 = vector.broadcast %cst_61 : f32 to vector<102x128xf32>
    %c0_62 = arith.constant 0 : index
    %c256 = arith.constant 256 : index
    %c0_63 = arith.constant 0 : index
    %79 = vector.load %arg1[%c0_62, %c256, %c0_63] : memref<1x400x128xf32, #tpu.memory_space<vmem>>, vector<1x102x128xf32>
    %80 = vector.shape_cast %79 : vector<1x102x128xf32> to vector<102x128xf32>
    %81 = arith.truncf %80 : vector<102x128xf32> to vector<102x128xbf16>
    %c0_64 = arith.constant 0 : index
    %c0_65 = arith.constant 0 : index
    %c0_66 = arith.constant 0 : index
    %82 = vector.load %arg2[%c0_64, %c0_65, %c0_66] : memref<9x128x128xbf16, #tpu.memory_space<vmem>>, vector<1x128x128xbf16>
    %83 = vector.shape_cast %82 : vector<1x128x128xbf16> to vector<128x128xbf16>
    %cst_67 = arith.constant dense<0.000000e+00> : vector<102x128xf32>
    %84 = tpu.matmul %81, %83, %cst_67 {dimension_numbers = #tpu.dot_dimension_numbers<[1], [0], [0], [1], [0, 0, 1, 1], [], []>} : vector<102x128xbf16>, vector<128x128xbf16>, vector<102x128xf32> -> vector<102x128xf32>
    %85 = arith.addf %78, %84 : vector<102x128xf32>
    %c0_68 = arith.constant 0 : index
    %c257 = arith.constant 257 : index
    %c0_69 = arith.constant 0 : index
    %86 = vector.load %arg1[%c0_68, %c257, %c0_69] : memref<1x400x128xf32, #tpu.memory_space<vmem>>, vector<1x102x128xf32>
    %87 = vector.shape_cast %86 : vector<1x102x128xf32> to vector<102x128xf32>
    %88 = arith.truncf %87 : vector<102x128xf32> to vector<102x128xbf16>
    %c1_70 = arith.constant 1 : index
    %c0_71 = arith.constant 0 : index
    %c0_72 = arith.constant 0 : index
    %89 = vector.load %arg2[%c1_70, %c0_71, %c0_72] : memref<9x128x128xbf16, #tpu.memory_space<vmem>>, vector<1x128x128xbf16>
    %90 = vector.shape_cast %89 : vector<1x128x128xbf16> to vector<128x128xbf16>
    %cst_73 = arith.constant dense<0.000000e+00> : vector<102x128xf32>
    %91 = tpu.matmul %88, %90, %cst_73 {dimension_numbers = #tpu.dot_dimension_numbers<[1], [0], [0], [1], [0, 0, 1, 1], [], []>} : vector<102x128xbf16>, vector<128x128xbf16>, vector<102x128xf32> -> vector<102x128xf32>
    %92 = arith.addf %85, %91 : vector<102x128xf32>
    %c0_74 = arith.constant 0 : index
    %c258 = arith.constant 258 : index
    %c0_75 = arith.constant 0 : index
    %93 = vector.load %arg1[%c0_74, %c258, %c0_75] : memref<1x400x128xf32, #tpu.memory_space<vmem>>, vector<1x102x128xf32>
    %94 = vector.shape_cast %93 : vector<1x102x128xf32> to vector<102x128xf32>
    %95 = arith.truncf %94 : vector<102x128xf32> to vector<102x128xbf16>
    %c2_76 = arith.constant 2 : index
    %c0_77 = arith.constant 0 : index
    %c0_78 = arith.constant 0 : index
    %96 = vector.load %arg2[%c2_76, %c0_77, %c0_78] : memref<9x128x128xbf16, #tpu.memory_space<vmem>>, vector<1x128x128xbf16>
    %97 = vector.shape_cast %96 : vector<1x128x128xbf16> to vector<128x128xbf16>
    %cst_79 = arith.constant dense<0.000000e+00> : vector<102x128xf32>
    %98 = tpu.matmul %95, %97, %cst_79 {dimension_numbers = #tpu.dot_dimension_numbers<[1], [0], [0], [1], [0, 0, 1, 1], [], []>} : vector<102x128xbf16>, vector<128x128xbf16>, vector<102x128xf32> -> vector<102x128xf32>
    %99 = arith.addf %92, %98 : vector<102x128xf32>
    %c0_80 = arith.constant 0 : index
    %c276 = arith.constant 276 : index
    %c0_81 = arith.constant 0 : index
    %100 = vector.load %arg1[%c0_80, %c276, %c0_81] : memref<1x400x128xf32, #tpu.memory_space<vmem>>, vector<1x102x128xf32>
    %101 = vector.shape_cast %100 : vector<1x102x128xf32> to vector<102x128xf32>
    %102 = arith.truncf %101 : vector<102x128xf32> to vector<102x128xbf16>
    %c3_82 = arith.constant 3 : index
    %c0_83 = arith.constant 0 : index
    %c0_84 = arith.constant 0 : index
    %103 = vector.load %arg2[%c3_82, %c0_83, %c0_84] : memref<9x128x128xbf16, #tpu.memory_space<vmem>>, vector<1x128x128xbf16>
    %104 = vector.shape_cast %103 : vector<1x128x128xbf16> to vector<128x128xbf16>
    %cst_85 = arith.constant dense<0.000000e+00> : vector<102x128xf32>
    %105 = tpu.matmul %102, %104, %cst_85 {dimension_numbers = #tpu.dot_dimension_numbers<[1], [0], [0], [1], [0, 0, 1, 1], [], []>} : vector<102x128xbf16>, vector<128x128xbf16>, vector<102x128xf32> -> vector<102x128xf32>
    %106 = arith.addf %99, %105 : vector<102x128xf32>
    %c0_86 = arith.constant 0 : index
    %c277 = arith.constant 277 : index
    %c0_87 = arith.constant 0 : index
    %107 = vector.load %arg1[%c0_86, %c277, %c0_87] : memref<1x400x128xf32, #tpu.memory_space<vmem>>, vector<1x102x128xf32>
    %108 = vector.shape_cast %107 : vector<1x102x128xf32> to vector<102x128xf32>
    %109 = arith.truncf %108 : vector<102x128xf32> to vector<102x128xbf16>
    %c4_88 = arith.constant 4 : index
    %c0_89 = arith.constant 0 : index
    %c0_90 = arith.constant 0 : index
    %110 = vector.load %arg2[%c4_88, %c0_89, %c0_90] : memref<9x128x128xbf16, #tpu.memory_space<vmem>>, vector<1x128x128xbf16>
    %111 = vector.shape_cast %110 : vector<1x128x128xbf16> to vector<128x128xbf16>
    %cst_91 = arith.constant dense<0.000000e+00> : vector<102x128xf32>
    %112 = tpu.matmul %109, %111, %cst_91 {dimension_numbers = #tpu.dot_dimension_numbers<[1], [0], [0], [1], [0, 0, 1, 1], [], []>} : vector<102x128xbf16>, vector<128x128xbf16>, vector<102x128xf32> -> vector<102x128xf32>
    %113 = arith.addf %106, %112 : vector<102x128xf32>
    %c0_92 = arith.constant 0 : index
    %c278 = arith.constant 278 : index
    %c0_93 = arith.constant 0 : index
    %114 = vector.load %arg1[%c0_92, %c278, %c0_93] : memref<1x400x128xf32, #tpu.memory_space<vmem>>, vector<1x102x128xf32>
    %115 = vector.shape_cast %114 : vector<1x102x128xf32> to vector<102x128xf32>
    %116 = arith.truncf %115 : vector<102x128xf32> to vector<102x128xbf16>
    %c5_94 = arith.constant 5 : index
    %c0_95 = arith.constant 0 : index
    %c0_96 = arith.constant 0 : index
    %117 = vector.load %arg2[%c5_94, %c0_95, %c0_96] : memref<9x128x128xbf16, #tpu.memory_space<vmem>>, vector<1x128x128xbf16>
    %118 = vector.shape_cast %117 : vector<1x128x128xbf16> to vector<128x128xbf16>
    %cst_97 = arith.constant dense<0.000000e+00> : vector<102x128xf32>
    %119 = tpu.matmul %116, %118, %cst_97 {dimension_numbers = #tpu.dot_dimension_numbers<[1], [0], [0], [1], [0, 0, 1, 1], [], []>} : vector<102x128xbf16>, vector<128x128xbf16>, vector<102x128xf32> -> vector<102x128xf32>
    %120 = arith.addf %113, %119 : vector<102x128xf32>
    %c0_98 = arith.constant 0 : index
    %c296 = arith.constant 296 : index
    %c0_99 = arith.constant 0 : index
    %121 = vector.load %arg1[%c0_98, %c296, %c0_99] : memref<1x400x128xf32, #tpu.memory_space<vmem>>, vector<1x102x128xf32>
    %122 = vector.shape_cast %121 : vector<1x102x128xf32> to vector<102x128xf32>
    %123 = arith.truncf %122 : vector<102x128xf32> to vector<102x128xbf16>
    %c6_100 = arith.constant 6 : index
    %c0_101 = arith.constant 0 : index
    %c0_102 = arith.constant 0 : index
    %124 = vector.load %arg2[%c6_100, %c0_101, %c0_102] : memref<9x128x128xbf16, #tpu.memory_space<vmem>>, vector<1x128x128xbf16>
    %125 = vector.shape_cast %124 : vector<1x128x128xbf16> to vector<128x128xbf16>
    %cst_103 = arith.constant dense<0.000000e+00> : vector<102x128xf32>
    %126 = tpu.matmul %123, %125, %cst_103 {dimension_numbers = #tpu.dot_dimension_numbers<[1], [0], [0], [1], [0, 0, 1, 1], [], []>} : vector<102x128xbf16>, vector<128x128xbf16>, vector<102x128xf32> -> vector<102x128xf32>
    %127 = arith.addf %120, %126 : vector<102x128xf32>
    %c0_104 = arith.constant 0 : index
    %c297 = arith.constant 297 : index
    %c0_105 = arith.constant 0 : index
    %128 = vector.load %arg1[%c0_104, %c297, %c0_105] : memref<1x400x128xf32, #tpu.memory_space<vmem>>, vector<1x102x128xf32>
    %129 = vector.shape_cast %128 : vector<1x102x128xf32> to vector<102x128xf32>
    %130 = arith.truncf %129 : vector<102x128xf32> to vector<102x128xbf16>
    %c7_106 = arith.constant 7 : index
    %c0_107 = arith.constant 0 : index
    %c0_108 = arith.constant 0 : index
    %131 = vector.load %arg2[%c7_106, %c0_107, %c0_108] : memref<9x128x128xbf16, #tpu.memory_space<vmem>>, vector<1x128x128xbf16>
    %132 = vector.shape_cast %131 : vector<1x128x128xbf16> to vector<128x128xbf16>
    %cst_109 = arith.constant dense<0.000000e+00> : vector<102x128xf32>
    %133 = tpu.matmul %130, %132, %cst_109 {dimension_numbers = #tpu.dot_dimension_numbers<[1], [0], [0], [1], [0, 0, 1, 1], [], []>} : vector<102x128xbf16>, vector<128x128xbf16>, vector<102x128xf32> -> vector<102x128xf32>
    %134 = arith.addf %127, %133 : vector<102x128xf32>
    %c0_110 = arith.constant 0 : index
    %c298 = arith.constant 298 : index
    %c0_111 = arith.constant 0 : index
    %135 = vector.load %arg1[%c0_110, %c298, %c0_111] : memref<1x400x128xf32, #tpu.memory_space<vmem>>, vector<1x102x128xf32>
    %136 = vector.shape_cast %135 : vector<1x102x128xf32> to vector<102x128xf32>
    %137 = arith.truncf %136 : vector<102x128xf32> to vector<102x128xbf16>
    %c8_112 = arith.constant 8 : index
    %c0_113 = arith.constant 0 : index
    %c0_114 = arith.constant 0 : index
    %138 = vector.load %arg2[%c8_112, %c0_113, %c0_114] : memref<9x128x128xbf16, #tpu.memory_space<vmem>>, vector<1x128x128xbf16>
    %139 = vector.shape_cast %138 : vector<1x128x128xbf16> to vector<128x128xbf16>
    %cst_115 = arith.constant dense<0.000000e+00> : vector<102x128xf32>
    %140 = tpu.matmul %137, %139, %cst_115 {dimension_numbers = #tpu.dot_dimension_numbers<[1], [0], [0], [1], [0, 0, 1, 1], [], []>} : vector<102x128xbf16>, vector<128x128xbf16>, vector<102x128xf32> -> vector<102x128xf32>
    %141 = arith.addf %134, %140 : vector<102x128xf32>
    %142 = vector.broadcast %0 : vector<1x128xf32> to vector<102x128xf32>
    %143 = arith.mulf %141, %142 : vector<102x128xf32>
    %144 = vector.broadcast %1 : vector<1x128xf32> to vector<102x128xf32>
    %145 = arith.addf %143, %144 : vector<102x128xf32>
    %cst_116 = arith.constant 0.000000e+00 : f32
    %146 = vector.broadcast %cst_116 : f32 to vector<102x128xf32>
    %147 = arith.maximumf %145, %146 : vector<102x128xf32>
    %c256_117 = arith.constant 256 : index
    %c0_118 = arith.constant 0 : index
    %148 = vector.load %arg8[%c256_117, %c0_118] : memref<358x1xf32, #tpu.memory_space<vmem>>, vector<102x1xf32>
    %149 = vector.broadcast %148 : vector<102x1xf32> to vector<102x128xf32>
    %150 = arith.mulf %147, %149 : vector<102x128xf32>
    %c256_119 = arith.constant 256 : index
    %c0_120 = arith.constant 0 : index
    %151 = vector.load %arg10[%c256_119, %c0_120] : memref<358x128xf32, #tpu.memory_space<vmem>>, vector<102x128xf32>
    tpu.vector_store %arg10[%c256_119, %c0_120], %150 {strides = array<i32>} : memref<358x128xf32, #tpu.memory_space<vmem>>, vector<102x128xf32>,
    %cst_121 = arith.constant 0.000000e+00 : f32
    %152 = vector.broadcast %cst_121 : f32 to vector<256x128xf32>
    %c0_122 = arith.constant 0 : index
    %c0_123 = arith.constant 0 : index
    %153 = vector.load %arg10[%c0_122, %c0_123] : memref<358x128xf32, #tpu.memory_space<vmem>>, vector<256x128xf32>
    %154 = arith.truncf %153 : vector<256x128xf32> to vector<256x128xbf16>
    %c0_124 = arith.constant 0 : index
    %c0_125 = arith.constant 0 : index
    %c0_126 = arith.constant 0 : index
    %155 = vector.load %arg3[%c0_124, %c0_125, %c0_126] : memref<9x128x128xbf16, #tpu.memory_space<vmem>>, vector<1x128x128xbf16>
    %156 = vector.shape_cast %155 : vector<1x128x128xbf16> to vector<128x128xbf16>
    %cst_127 = arith.constant dense<0.000000e+00> : vector<256x128xf32>
    %157 = tpu.matmul %154, %156, %cst_127 {dimension_numbers = #tpu.dot_dimension_numbers<[1], [0], [0], [1], [0, 0, 1, 1], [], []>} : vector<256x128xbf16>, vector<128x128xbf16>, vector<256x128xf32> -> vector<256x128xf32>
    %158 = arith.addf %152, %157 : vector<256x128xf32>
    %c1_128 = arith.constant 1 : index
    %c0_129 = arith.constant 0 : index
    %159 = vector.load %arg10[%c1_128, %c0_129] : memref<358x128xf32, #tpu.memory_space<vmem>>, vector<256x128xf32>
    %160 = arith.truncf %159 : vector<256x128xf32> to vector<256x128xbf16>
    %c1_130 = arith.constant 1 : index
    %c0_131 = arith.constant 0 : index
    %c0_132 = arith.constant 0 : index
    %161 = vector.load %arg3[%c1_130, %c0_131, %c0_132] : memref<9x128x128xbf16, #tpu.memory_space<vmem>>, vector<1x128x128xbf16>
    %162 = vector.shape_cast %161 : vector<1x128x128xbf16> to vector<128x128xbf16>
    %cst_133 = arith.constant dense<0.000000e+00> : vector<256x128xf32>
    %163 = tpu.matmul %160, %162, %cst_133 {dimension_numbers = #tpu.dot_dimension_numbers<[1], [0], [0], [1], [0, 0, 1, 1], [], []>} : vector<256x128xbf16>, vector<128x128xbf16>, vector<256x128xf32> -> vector<256x128xf32>
    %164 = arith.addf %158, %163 : vector<256x128xf32>
    %c2_134 = arith.constant 2 : index
    %c0_135 = arith.constant 0 : index
    %165 = vector.load %arg10[%c2_134, %c0_135] : memref<358x128xf32, #tpu.memory_space<vmem>>, vector<256x128xf32>
    %166 = arith.truncf %165 : vector<256x128xf32> to vector<256x128xbf16>
    %c2_136 = arith.constant 2 : index
    %c0_137 = arith.constant 0 : index
    %c0_138 = arith.constant 0 : index
    %167 = vector.load %arg3[%c2_136, %c0_137, %c0_138] : memref<9x128x128xbf16, #tpu.memory_space<vmem>>, vector<1x128x128xbf16>
    %168 = vector.shape_cast %167 : vector<1x128x128xbf16> to vector<128x128xbf16>
    %cst_139 = arith.constant dense<0.000000e+00> : vector<256x128xf32>
    %169 = tpu.matmul %166, %168, %cst_139 {dimension_numbers = #tpu.dot_dimension_numbers<[1], [0], [0], [1], [0, 0, 1, 1], [], []>} : vector<256x128xbf16>, vector<128x128xbf16>, vector<256x128xf32> -> vector<256x128xf32>
    %170 = arith.addf %164, %169 : vector<256x128xf32>
    %c20_140 = arith.constant 20 : index
    %c0_141 = arith.constant 0 : index
    %171 = vector.load %arg10[%c20_140, %c0_141] : memref<358x128xf32, #tpu.memory_space<vmem>>, vector<256x128xf32>
    %172 = arith.truncf %171 : vector<256x128xf32> to vector<256x128xbf16>
    %c3_142 = arith.constant 3 : index
    %c0_143 = arith.constant 0 : index
    %c0_144 = arith.constant 0 : index
    %173 = vector.load %arg3[%c3_142, %c0_143, %c0_144] : memref<9x128x128xbf16, #tpu.memory_space<vmem>>, vector<1x128x128xbf16>
    %174 = vector.shape_cast %173 : vector<1x128x128xbf16> to vector<128x128xbf16>
    %cst_145 = arith.constant dense<0.000000e+00> : vector<256x128xf32>
    %175 = tpu.matmul %172, %174, %cst_145 {dimension_numbers = #tpu.dot_dimension_numbers<[1], [0], [0], [1], [0, 0, 1, 1], [], []>} : vector<256x128xbf16>, vector<128x128xbf16>, vector<256x128xf32> -> vector<256x128xf32>
    %176 = arith.addf %170, %175 : vector<256x128xf32>
    %c21_146 = arith.constant 21 : index
    %c0_147 = arith.constant 0 : index
    %177 = vector.load %arg10[%c21_146, %c0_147] : memref<358x128xf32, #tpu.memory_space<vmem>>, vector<256x128xf32>
    %178 = arith.truncf %177 : vector<256x128xf32> to vector<256x128xbf16>
    %c4_148 = arith.constant 4 : index
    %c0_149 = arith.constant 0 : index
    %c0_150 = arith.constant 0 : index
    %179 = vector.load %arg3[%c4_148, %c0_149, %c0_150] : memref<9x128x128xbf16, #tpu.memory_space<vmem>>, vector<1x128x128xbf16>
    %180 = vector.shape_cast %179 : vector<1x128x128xbf16> to vector<128x128xbf16>
    %cst_151 = arith.constant dense<0.000000e+00> : vector<256x128xf32>
    %181 = tpu.matmul %178, %180, %cst_151 {dimension_numbers = #tpu.dot_dimension_numbers<[1], [0], [0], [1], [0, 0, 1, 1], [], []>} : vector<256x128xbf16>, vector<128x128xbf16>, vector<256x128xf32> -> vector<256x128xf32>
    %182 = arith.addf %176, %181 : vector<256x128xf32>
    %c22_152 = arith.constant 22 : index
    %c0_153 = arith.constant 0 : index
    %183 = vector.load %arg10[%c22_152, %c0_153] : memref<358x128xf32, #tpu.memory_space<vmem>>, vector<256x128xf32>
    %184 = arith.truncf %183 : vector<256x128xf32> to vector<256x128xbf16>
    %c5_154 = arith.constant 5 : index
    %c0_155 = arith.constant 0 : index
    %c0_156 = arith.constant 0 : index
    %185 = vector.load %arg3[%c5_154, %c0_155, %c0_156] : memref<9x128x128xbf16, #tpu.memory_space<vmem>>, vector<1x128x128xbf16>
    %186 = vector.shape_cast %185 : vector<1x128x128xbf16> to vector<128x128xbf16>
    %cst_157 = arith.constant dense<0.000000e+00> : vector<256x128xf32>
    %187 = tpu.matmul %184, %186, %cst_157 {dimension_numbers = #tpu.dot_dimension_numbers<[1], [0], [0], [1], [0, 0, 1, 1], [], []>} : vector<256x128xbf16>, vector<128x128xbf16>, vector<256x128xf32> -> vector<256x128xf32>
    %188 = arith.addf %182, %187 : vector<256x128xf32>
    %c40_158 = arith.constant 40 : index
    %c0_159 = arith.constant 0 : index
    %189 = vector.load %arg10[%c40_158, %c0_159] : memref<358x128xf32, #tpu.memory_space<vmem>>, vector<256x128xf32>
    %190 = arith.truncf %189 : vector<256x128xf32> to vector<256x128xbf16>
    %c6_160 = arith.constant 6 : index
    %c0_161 = arith.constant 0 : index
    %c0_162 = arith.constant 0 : index
    %191 = vector.load %arg3[%c6_160, %c0_161, %c0_162] : memref<9x128x128xbf16, #tpu.memory_space<vmem>>, vector<1x128x128xbf16>
    %192 = vector.shape_cast %191 : vector<1x128x128xbf16> to vector<128x128xbf16>
    %cst_163 = arith.constant dense<0.000000e+00> : vector<256x128xf32>
    %193 = tpu.matmul %190, %192, %cst_163 {dimension_numbers = #tpu.dot_dimension_numbers<[1], [0], [0], [1], [0, 0, 1, 1], [], []>} : vector<256x128xbf16>, vector<128x128xbf16>, vector<256x128xf32> -> vector<256x128xf32>
    %194 = arith.addf %188, %193 : vector<256x128xf32>
    %c41_164 = arith.constant 41 : index
    %c0_165 = arith.constant 0 : index
    %195 = vector.load %arg10[%c41_164, %c0_165] : memref<358x128xf32, #tpu.memory_space<vmem>>, vector<256x128xf32>
    %196 = arith.truncf %195 : vector<256x128xf32> to vector<256x128xbf16>
    %c7_166 = arith.constant 7 : index
    %c0_167 = arith.constant 0 : index
    %c0_168 = arith.constant 0 : index
    %197 = vector.load %arg3[%c7_166, %c0_167, %c0_168] : memref<9x128x128xbf16, #tpu.memory_space<vmem>>, vector<1x128x128xbf16>
    %198 = vector.shape_cast %197 : vector<1x128x128xbf16> to vector<128x128xbf16>
    %cst_169 = arith.constant dense<0.000000e+00> : vector<256x128xf32>
    %199 = tpu.matmul %196, %198, %cst_169 {dimension_numbers = #tpu.dot_dimension_numbers<[1], [0], [0], [1], [0, 0, 1, 1], [], []>} : vector<256x128xbf16>, vector<128x128xbf16>, vector<256x128xf32> -> vector<256x128xf32>
    %200 = arith.addf %194, %199 : vector<256x128xf32>
    %c42_170 = arith.constant 42 : index
    %c0_171 = arith.constant 0 : index
    %201 = vector.load %arg10[%c42_170, %c0_171] : memref<358x128xf32, #tpu.memory_space<vmem>>, vector<256x128xf32>
    %202 = arith.truncf %201 : vector<256x128xf32> to vector<256x128xbf16>
    %c8_172 = arith.constant 8 : index
    %c0_173 = arith.constant 0 : index
    %c0_174 = arith.constant 0 : index
    %203 = vector.load %arg3[%c8_172, %c0_173, %c0_174] : memref<9x128x128xbf16, #tpu.memory_space<vmem>>, vector<1x128x128xbf16>
    %204 = vector.shape_cast %203 : vector<1x128x128xbf16> to vector<128x128xbf16>
    %cst_175 = arith.constant dense<0.000000e+00> : vector<256x128xf32>
    %205 = tpu.matmul %202, %204, %cst_175 {dimension_numbers = #tpu.dot_dimension_numbers<[1], [0], [0], [1], [0, 0, 1, 1], [], []>} : vector<256x128xbf16>, vector<128x128xbf16>, vector<256x128xf32> -> vector<256x128xf32>
    %206 = arith.addf %200, %205 : vector<256x128xf32>
    %c0_176 = arith.constant 0 : index
    %c42_177 = arith.constant 42 : index
    %c0_178 = arith.constant 0 : index
    %207 = vector.load %arg1[%c0_176, %c42_177, %c0_178] : memref<1x400x128xf32, #tpu.memory_space<vmem>>, vector<1x256x128xf32>
    %208 = vector.shape_cast %207 : vector<1x256x128xf32> to vector<256x128xf32>
    %209 = vector.broadcast %2 : vector<1x128xf32> to vector<256x128xf32>
    %210 = arith.mulf %206, %209 : vector<256x128xf32>
    %211 = vector.broadcast %3 : vector<1x128xf32> to vector<256x128xf32>
    %212 = arith.addf %210, %211 : vector<256x128xf32>
    %213 = arith.addf %212, %208 : vector<256x128xf32>
    %cst_179 = arith.constant 0.000000e+00 : f32
    %214 = vector.broadcast %cst_179 : f32 to vector<256x128xf32>
    %215 = arith.maximumf %213, %214 : vector<256x128xf32>
    %c0_180 = arith.constant 0 : index
    %c0_181 = arith.constant 0 : index
    %c0_182 = arith.constant 0 : index
    %216 = vector.load %arg9[%c0_180, %c0_181, %c0_182] : memref<1x316x128xf32, #tpu.memory_space<vmem>>, vector<1x256x128xf32>
    %217 = vector.shape_cast %216 : vector<1x256x128xf32> to vector<256x128xf32>
    %218 = vector.shape_cast %215 : vector<256x128xf32> to vector<1x256x128xf32>
    tpu.vector_store %arg9[%c0_180, %c0_181, %c0_182], %218 {strides = array<i32>} : memref<1x316x128xf32, #tpu.memory_space<vmem>>, vector<1x256x128xf32>,
    %cst_183 = arith.constant 0.000000e+00 : f32
    %219 = vector.broadcast %cst_183 : f32 to vector<60x128xf32>
    %c256_184 = arith.constant 256 : index
    %c0_185 = arith.constant 0 : index
    %220 = vector.load %arg10[%c256_184, %c0_185] : memref<358x128xf32, #tpu.memory_space<vmem>>, vector<60x128xf32>
    %221 = arith.truncf %220 : vector<60x128xf32> to vector<60x128xbf16>
    %c0_186 = arith.constant 0 : index
    %c0_187 = arith.constant 0 : index
    %c0_188 = arith.constant 0 : index
    %222 = vector.load %arg3[%c0_186, %c0_187, %c0_188] : memref<9x128x128xbf16, #tpu.memory_space<vmem>>, vector<1x128x128xbf16>
    %223 = vector.shape_cast %222 : vector<1x128x128xbf16> to vector<128x128xbf16>
    %cst_189 = arith.constant dense<0.000000e+00> : vector<60x128xf32>
    %224 = tpu.matmul %221, %223, %cst_189 {dimension_numbers = #tpu.dot_dimension_numbers<[1], [0], [0], [1], [0, 0, 1, 1], [], []>} : vector<60x128xbf16>, vector<128x128xbf16>, vector<60x128xf32> -> vector<60x128xf32>
    %225 = arith.addf %219, %224 : vector<60x128xf32>
    %c257_190 = arith.constant 257 : index
    %c0_191 = arith.constant 0 : index
    %226 = vector.load %arg10[%c257_190, %c0_191] : memref<358x128xf32, #tpu.memory_space<vmem>>, vector<60x128xf32>
    %227 = arith.truncf %226 : vector<60x128xf32> to vector<60x128xbf16>
    %c1_192 = arith.constant 1 : index
    %c0_193 = arith.constant 0 : index
    %c0_194 = arith.constant 0 : index
    %228 = vector.load %arg3[%c1_192, %c0_193, %c0_194] : memref<9x128x128xbf16, #tpu.memory_space<vmem>>, vector<1x128x128xbf16>
    %229 = vector.shape_cast %228 : vector<1x128x128xbf16> to vector<128x128xbf16>
    %cst_195 = arith.constant dense<0.000000e+00> : vector<60x128xf32>
    %230 = tpu.matmul %227, %229, %cst_195 {dimension_numbers = #tpu.dot_dimension_numbers<[1], [0], [0], [1], [0, 0, 1, 1], [], []>} : vector<60x128xbf16>, vector<128x128xbf16>, vector<60x128xf32> -> vector<60x128xf32>
    %231 = arith.addf %225, %230 : vector<60x128xf32>
    %c258_196 = arith.constant 258 : index
    %c0_197 = arith.constant 0 : index
    %232 = vector.load %arg10[%c258_196, %c0_197] : memref<358x128xf32, #tpu.memory_space<vmem>>, vector<60x128xf32>
    %233 = arith.truncf %232 : vector<60x128xf32> to vector<60x128xbf16>
    %c2_198 = arith.constant 2 : index
    %c0_199 = arith.constant 0 : index
    %c0_200 = arith.constant 0 : index
    %234 = vector.load %arg3[%c2_198, %c0_199, %c0_200] : memref<9x128x128xbf16, #tpu.memory_space<vmem>>, vector<1x128x128xbf16>
    %235 = vector.shape_cast %234 : vector<1x128x128xbf16> to vector<128x128xbf16>
    %cst_201 = arith.constant dense<0.000000e+00> : vector<60x128xf32>
    %236 = tpu.matmul %233, %235, %cst_201 {dimension_numbers = #tpu.dot_dimension_numbers<[1], [0], [0], [1], [0, 0, 1, 1], [], []>} : vector<60x128xbf16>, vector<128x128xbf16>, vector<60x128xf32> -> vector<60x128xf32>
    %237 = arith.addf %231, %236 : vector<60x128xf32>
    %c276_202 = arith.constant 276 : index
    %c0_203 = arith.constant 0 : index
    %238 = vector.load %arg10[%c276_202, %c0_203] : memref<358x128xf32, #tpu.memory_space<vmem>>, vector<60x128xf32>
    %239 = arith.truncf %238 : vector<60x128xf32> to vector<60x128xbf16>
    %c3_204 = arith.constant 3 : index
    %c0_205 = arith.constant 0 : index
    %c0_206 = arith.constant 0 : index
    %240 = vector.load %arg3[%c3_204, %c0_205, %c0_206] : memref<9x128x128xbf16, #tpu.memory_space<vmem>>, vector<1x128x128xbf16>
    %241 = vector.shape_cast %240 : vector<1x128x128xbf16> to vector<128x128xbf16>
    %cst_207 = arith.constant dense<0.000000e+00> : vector<60x128xf32>
    %242 = tpu.matmul %239, %241, %cst_207 {dimension_numbers = #tpu.dot_dimension_numbers<[1], [0], [0], [1], [0, 0, 1, 1], [], []>} : vector<60x128xbf16>, vector<128x128xbf16>, vector<60x128xf32> -> vector<60x128xf32>
    %243 = arith.addf %237, %242 : vector<60x128xf32>
    %c277_208 = arith.constant 277 : index
    %c0_209 = arith.constant 0 : index
    %244 = vector.load %arg10[%c277_208, %c0_209] : memref<358x128xf32, #tpu.memory_space<vmem>>, vector<60x128xf32>
    %245 = arith.truncf %244 : vector<60x128xf32> to vector<60x128xbf16>
    %c4_210 = arith.constant 4 : index
    %c0_211 = arith.constant 0 : index
    %c0_212 = arith.constant 0 : index
    %246 = vector.load %arg3[%c4_210, %c0_211, %c0_212] : memref<9x128x128xbf16, #tpu.memory_space<vmem>>, vector<1x128x128xbf16>
    %247 = vector.shape_cast %246 : vector<1x128x128xbf16> to vector<128x128xbf16>
    %cst_213 = arith.constant dense<0.000000e+00> : vector<60x128xf32>
    %248 = tpu.matmul %245, %247, %cst_213 {dimension_numbers = #tpu.dot_dimension_numbers<[1], [0], [0], [1], [0, 0, 1, 1], [], []>} : vector<60x128xbf16>, vector<128x128xbf16>, vector<60x128xf32> -> vector<60x128xf32>
    %249 = arith.addf %243, %248 : vector<60x128xf32>
    %c278_214 = arith.constant 278 : index
    %c0_215 = arith.constant 0 : index
    %250 = vector.load %arg10[%c278_214, %c0_215] : memref<358x128xf32, #tpu.memory_space<vmem>>, vector<60x128xf32>
    %251 = arith.truncf %250 : vector<60x128xf32> to vector<60x128xbf16>
    %c5_216 = arith.constant 5 : index
    %c0_217 = arith.constant 0 : index
    %c0_218 = arith.constant 0 : index
    %252 = vector.load %arg3[%c5_216, %c0_217, %c0_218] : memref<9x128x128xbf16, #tpu.memory_space<vmem>>, vector<1x128x128xbf16>
    %253 = vector.shape_cast %252 : vector<1x128x128xbf16> to vector<128x128xbf16>
    %cst_219 = arith.constant dense<0.000000e+00> : vector<60x128xf32>
    %254 = tpu.matmul %251, %253, %cst_219 {dimension_numbers = #tpu.dot_dimension_numbers<[1], [0], [0], [1], [0, 0, 1, 1], [], []>} : vector<60x128xbf16>, vector<128x128xbf16>, vector<60x128xf32> -> vector<60x128xf32>
    %255 = arith.addf %249, %254 : vector<60x128xf32>
    %c296_220 = arith.constant 296 : index
    %c0_221 = arith.constant 0 : index
    %256 = vector.load %arg10[%c296_220, %c0_221] : memref<358x128xf32, #tpu.memory_space<vmem>>, vector<60x128xf32>
    %257 = arith.truncf %256 : vector<60x128xf32> to vector<60x128xbf16>
    %c6_222 = arith.constant 6 : index
    %c0_223 = arith.constant 0 : index
    %c0_224 = arith.constant 0 : index
    %258 = vector.load %arg3[%c6_222, %c0_223, %c0_224] : memref<9x128x128xbf16, #tpu.memory_space<vmem>>, vector<1x128x128xbf16>
    %259 = vector.shape_cast %258 : vector<1x128x128xbf16> to vector<128x128xbf16>
    %cst_225 = arith.constant dense<0.000000e+00> : vector<60x128xf32>
    %260 = tpu.matmul %257, %259, %cst_225 {dimension_numbers = #tpu.dot_dimension_numbers<[1], [0], [0], [1], [0, 0, 1, 1], [], []>} : vector<60x128xbf16>, vector<128x128xbf16>, vector<60x128xf32> -> vector<60x128xf32>
    %261 = arith.addf %255, %260 : vector<60x128xf32>
    %c297_226 = arith.constant 297 : index
    %c0_227 = arith.constant 0 : index
    %262 = vector.load %arg10[%c297_226, %c0_227] : memref<358x128xf32, #tpu.memory_space<vmem>>, vector<60x128xf32>
    %263 = arith.truncf %262 : vector<60x128xf32> to vector<60x128xbf16>
    %c7_228 = arith.constant 7 : index
    %c0_229 = arith.constant 0 : index
    %c0_230 = arith.constant 0 : index
    %264 = vector.load %arg3[%c7_228, %c0_229, %c0_230] : memref<9x128x128xbf16, #tpu.memory_space<vmem>>, vector<1x128x128xbf16>
    %265 = vector.shape_cast %264 : vector<1x128x128xbf16> to vector<128x128xbf16>
    %cst_231 = arith.constant dense<0.000000e+00> : vector<60x128xf32>
    %266 = tpu.matmul %263, %265, %cst_231 {dimension_numbers = #tpu.dot_dimension_numbers<[1], [0], [0], [1], [0, 0, 1, 1], [], []>} : vector<60x128xbf16>, vector<128x128xbf16>, vector<60x128xf32> -> vector<60x128xf32>
    %267 = arith.addf %261, %266 : vector<60x128xf32>
    %c298_232 = arith.constant 298 : index
    %c0_233 = arith.constant 0 : index
    %268 = vector.load %arg10[%c298_232, %c0_233] : memref<358x128xf32, #tpu.memory_space<vmem>>, vector<60x128xf32>
    %269 = arith.truncf %268 : vector<60x128xf32> to vector<60x128xbf16>
    %c8_234 = arith.constant 8 : index
    %c0_235 = arith.constant 0 : index
    %c0_236 = arith.constant 0 : index
    %270 = vector.load %arg3[%c8_234, %c0_235, %c0_236] : memref<9x128x128xbf16, #tpu.memory_space<vmem>>, vector<1x128x128xbf16>
    %271 = vector.shape_cast %270 : vector<1x128x128xbf16> to vector<128x128xbf16>
    %cst_237 = arith.constant dense<0.000000e+00> : vector<60x128xf32>
    %272 = tpu.matmul %269, %271, %cst_237 {dimension_numbers = #tpu.dot_dimension_numbers<[1], [0], [0], [1], [0, 0, 1, 1], [], []>} : vector<60x128xbf16>, vector<128x128xbf16>, vector<60x128xf32> -> vector<60x128xf32>
    %273 = arith.addf %267, %272 : vector<60x128xf32>
    %c0_238 = arith.constant 0 : index
    %c298_239 = arith.constant 298 : index
    %c0_240 = arith.constant 0 : index
    %274 = vector.load %arg1[%c0_238, %c298_239, %c0_240] : memref<1x400x128xf32, #tpu.memory_space<vmem>>, vector<1x60x128xf32>
    %275 = vector.shape_cast %274 : vector<1x60x128xf32> to vector<60x128xf32>
    %276 = vector.broadcast %2 : vector<1x128xf32> to vector<60x128xf32>
    %277 = arith.mulf %273, %276 : vector<60x128xf32>
    %278 = vector.broadcast %3 : vector<1x128xf32> to vector<60x128xf32>
    %279 = arith.addf %277, %278 : vector<60x128xf32>
    %280 = arith.addf %279, %275 : vector<60x128xf32>
    %cst_241 = arith.constant 0.000000e+00 : f32
    %281 = vector.broadcast %cst_241 : f32 to vector<60x128xf32>
    %282 = arith.maximumf %280, %281 : vector<60x128xf32>
    %c0_242 = arith.constant 0 : index
    %c256_243 = arith.constant 256 : index
    %c0_244 = arith.constant 0 : index
    %283 = vector.load %arg9[%c0_242, %c256_243, %c0_244] : memref<1x316x128xf32, #tpu.memory_space<vmem>>, vector<1x60x128xf32>
    %284 = vector.shape_cast %283 : vector<1x60x128xf32> to vector<60x128xf32>
    %285 = vector.shape_cast %282 : vector<60x128xf32> to vector<1x60x128xf32>
    tpu.vector_store %arg9[%c0_242, %c256_243, %c0_244], %285 {strides = array<i32>} : memref<1x316x128xf32, #tpu.memory_space<vmem>>, vector<1x60x128xf32>,
    return
  }
  func.func @transform_0(%arg0: i32) -> (i32, i32, i32) {
    %c0_i32 = arith.constant 0 : i32
    %c0_i32_0 = arith.constant 0 : i32
    %c0_i32_1 = arith.constant 0 : i32
    return %arg0, %c0_i32, %c0_i32_0 : i32, i32, i32
  }
  func.func @transform_1(%arg0: i32) -> (i32, i32, i32) {
    %c0_i32 = arith.constant 0 : i32
    %c0_i32_0 = arith.constant 0 : i32
    %c0_i32_1 = arith.constant 0 : i32
    %c0_i32_2 = arith.constant 0 : i32
    return %c0_i32, %c0_i32_0, %c0_i32_1 : i32, i32, i32
  }
  func.func @transform_2(%arg0: i32) -> (i32, i32, i32) {
    %c0_i32 = arith.constant 0 : i32
    %c0_i32_0 = arith.constant 0 : i32
    %c0_i32_1 = arith.constant 0 : i32
    %c0_i32_2 = arith.constant 0 : i32
    return %c0_i32, %c0_i32_0, %c0_i32_1 : i32, i32, i32
  }
  func.func @transform_3(%arg0: i32) -> (i32, i32) {
    %c0_i32 = arith.constant 0 : i32
    %c0_i32_0 = arith.constant 0 : i32
    %c0_i32_1 = arith.constant 0 : i32
    return %c0_i32, %c0_i32_0 : i32, i32
  }
  func.func @transform_4(%arg0: i32) -> (i32, i32) {
    %c0_i32 = arith.constant 0 : i32
    %c0_i32_0 = arith.constant 0 : i32
    %c0_i32_1 = arith.constant 0 : i32
    return %c0_i32, %c0_i32_0 : i32, i32
  }
  func.func @transform_5(%arg0: i32) -> (i32, i32) {
    %c0_i32 = arith.constant 0 : i32
    %c0_i32_0 = arith.constant 0 : i32
    %c0_i32_1 = arith.constant 0 : i32
    return %c0_i32, %c0_i32_0 : i32, i32
  }
  func.func @transform_6(%arg0: i32) -> (i32, i32) {
    %c0_i32 = arith.constant 0 : i32
    %c0_i32_0 = arith.constant 0 : i32
    %c0_i32_1 = arith.constant 0 : i32
    return %c0_i32, %c0_i32_0 : i32, i32
  }
  func.func @transform_7(%arg0: i32) -> (i32, i32) {
    %c0_i32 = arith.constant 0 : i32
    %c0_i32_0 = arith.constant 0 : i32
    %c0_i32_1 = arith.constant 0 : i32
    return %c0_i32, %c0_i32_0 : i32, i32
  }
  func.func @transform_8(%arg0: i32) -> (i32, i32, i32) {
    %c0_i32 = arith.constant 0 : i32
    %c0_i32_0 = arith.constant 0 : i32
    %c0_i32_1 = arith.constant 0 : i32
    return %arg0, %c0_i32, %c0_i32_0 : i32, i32, i32
  }
}

</mosaic_0001>

<llo_original>
// kernel: tpu_custom_call.1
$region0: #{tpu_custom_call.1}
  #allocation0 [shape = 'u32[]', space=smem, size = 0x4, offset = 0x4, fixed_abs, tag = 'smem constant byte address 0x4 - core index']
  #allocation1 [shape = 'u32[144,128]{1,0:T(1,128)}', space=vmem, size = 0x12000, scoped, tag = 'internal scratch']
  #allocation2 [shape = 'f32[358,128]{1,0:T(8,128)}', space=vmem, size = 0x2d000, scoped, tag = 'scratch operand']
  %s0 = inlined_call_operand.hbm [shape: f32[2,400,128], index: 0, kind: input, shape index: {}]
  %s1 = inlined_call_operand.hbm [shape: bf16[9,128,128], index: 1, kind: input, shape index: {}]
  %s2 = inlined_call_operand.hbm [shape: bf16[9,128,128], index: 2, kind: input, shape index: {}]
  %s3 = inlined_call_operand.vmem [shape: f32[1,128], index: 3, kind: input, shape index: {}]
  %s4 = inlined_call_operand.vmem [shape: f32[1,128], index: 4, kind: input, shape index: {}]
  %s5 = inlined_call_operand.vmem [shape: f32[1,128], index: 5, kind: input, shape index: {}]
  %s6 = inlined_call_operand.vmem [shape: f32[1,128], index: 6, kind: input, shape index: {}]
  %s7 = inlined_call_operand.vmem [shape: f32[358,1], index: 7, kind: input, shape index: {}]
  %s8 = inlined_call_operand.vmem [shape: f32[2,316,128], index: 8, kind: output, shape index: {}]
  %s9 = sld [smem:[#allocation0]]
  $region77: #{tpu_custom_call.1} parent=0
    _
  %s11 = ssub.s32 1, %s9
  %s12 = scalar_select 0, %s11, %s9
  $region1: #{tpu_custom_call.1} parent=0
    #allocation3 [shape = 'u8[409600]{0}', space=vmem, size = 0x64000, scoped, tag = 'input window, operand 0']
    #allocation4 [shape = 's32[2]{0}', space=sflag, size = 0x8, scoped, tag = 'scoped memory for tpu_custom_call.1']
    #allocation5 [shape = 'u8[294912]{0}', space=vmem, size = 0x48000, scoped, tag = 'input window, operand 1, single buffered']
    #allocation6 [shape = 's32[1]{0}', space=sflag, size = 0x4, scoped, tag = 'scoped memory for tpu_custom_call.1']
    #allocation7 [shape = 'u8[294912]{0}', space=vmem, size = 0x48000, scoped, tag = 'input window, operand 2, single buffered']
    %13 = vsyncpa [#allocation4], 0
    %s14 = scalar_lea.sflag [#allocation4], 1
    %15 = vsyncpa %s14, 0
    %16 = vsyncpa [#allocation6], 0
    loop: start=0, step=1, limit=4
    $region2: #{tpu_custom_call.1} parent=1 // loop_pre_header
      _
    $region3: #{tpu_custom_call.1} parent=1 // loop_header
      %s18 = sphi 0, %s22
      %p19 = scmp.ge.s32.totalorder %s18, 4
      %s28 = sphi 0, %s30
      %s31 = sphi 0, %s28
      %s32 = sphi 0, %s31
      %s48 = sphi 0, %s32
      %s52 = sphi 0, %s52
      %s54 = sphi 0, %s52
      %s55 = sphi 0, %s54
      %s69 = sphi 0, %s55
      %s73 = sphi 0, %s73
      %s75 = sphi 0, %s73
      %s76 = sphi 0, %s75
      %s90 = sphi 0, %s76
      %s94 = sphi 0, %s94
      %s96 = sphi 0, %s94
      %s97 = sphi 0, %s96
      %s111 = sphi 0, %s97
      %s115 = sphi 0, %s115
      %s117 = sphi 0, %s115
      %s118 = sphi 0, %s117
      %s132 = sphi 0, %s118
      %s136 = sphi 0, %s136
      %s138 = sphi 0, %s136
      %s139 = sphi 0, %s138
      %s153 = sphi 0, %s139
      %s157 = sphi 0, %s157
      %s159 = sphi 0, %s157
      %s160 = sphi 0, %s159
      %s174 = sphi 0, %s160
      %s178 = sphi 0, %s178
      %s180 = sphi 0, %s178
      %s181 = sphi 0, %s180
      %s195 = sphi 0, %s181
      %s201 = sphi 0, %s203
      %s204 = sphi 0, %s201
      %s205 = sphi 0, %s204
      %s221 = sphi 0, %s205
    $region4: #{tpu_custom_call.1} parent=1 // loop_header_branch
      %21 = sbr.rel (%p19) target = $region8
    $region5: #{tpu_custom_call.1} parent=1 // loop_body
      %s23 = ssub.s32 %s18, 1
      %s24 = ssub.s32 %s18, 2
      %s25 = sadd.s32 %s18, 1
      %s26 = ssub.s32 %s18, %s25
      %p27 = scmp.eq.s32.totalorder %s26, 0
      %s29 = sadd.s32 %s28, 1
      %s30 = scalar_select %p27, %s28, %s29
      %p33 = pneg %p27
      %p34 = scmp.eq.s32.totalorder %s18, 1
      %p35 = por %p33, %p34
      %p36 = scmp.ne.s32.totalorder %s28, %s31
      %p37 = scmp.eq.s32.totalorder %s18, 0
      %p38 = por %p36, %p37
      %p39 = scmp.ne.s32.totalorder %s28, %s31
      %p40 = scmp.eq.s32.totalorder %s23, 1
      %p41 = por %p39, %p40
      %p42 = scmp.ne.s32.totalorder %s31, %s32
      %p43 = scmp.eq.s32.totalorder %s23, 0
      %p44 = por %p42, %p43
      %p45 = scmp.ne.s32.totalorder %s31, %s32
      %p46 = scmp.eq.s32.totalorder %s24, 1
      %p47 = por %p45, %p46
      %p49 = scmp.ne.s32.totalorder %s32, %s48
      %p50 = scmp.eq.s32.totalorder %s24, 0
      %p51 = por %p49, %p50
      %s53 = sadd.s32 %s52, 1
      %p56 = scmp.eq.s32.totalorder %s18, 1
      %p57 = scmp.ne.s32.totalorder %s52, %s54
      %p58 = scmp.eq.s32.totalorder %s18, 0
      %p59 = por %p57, %p58
      %p60 = scmp.ne.s32.totalorder %s52, %s54
      %p61 = scmp.eq.s32.totalorder %s23, 1
      %p62 = por %p60, %p61
      %p63 = scmp.ne.s32.totalorder %s54, %s55
      %p64 = scmp.eq.s32.totalorder %s23, 0
      %p65 = por %p63, %p64
      %p66 = scmp.ne.s32.totalorder %s54, %s55
      %p67 = scmp.eq.s32.totalorder %s24, 1
      %p68 = por %p66, %p67
      %p70 = scmp.ne.s32.totalorder %s55, %s69
      %p71 = scmp.eq.s32.totalorder %s24, 0
      %p72 = por %p70, %p71
      %s74 = sadd.s32 %s73, 1
      %p77 = scmp.eq.s32.totalorder %s18, 1
      %p78 = scmp.ne.s32.totalorder %s73, %s75
      %p79 = scmp.eq.s32.totalorder %s18, 0
      %p80 = por %p78, %p79
      %p81 = scmp.ne.s32.totalorder %s73, %s75
      %p82 = scmp.eq.s32.totalorder %s23, 1
      %p83 = por %p81, %p82
      %p84 = scmp.ne.s32.totalorder %s75, %s76
      %p85 = scmp.eq.s32.totalorder %s23, 0
      %p86 = por %p84, %p85
      %p87 = scmp.ne.s32.totalorder %s75, %s76
      %p88 = scmp.eq.s32.totalorder %s24, 1
      %p89 = por %p87, %p88
      %p91 = scmp.ne.s32.totalorder %s76, %s90
      %p92 = scmp.eq.s32.totalorder %s24, 0
      %p93 = por %p91, %p92
      %s95 = sadd.s32 %s94, 1
      %p98 = scmp.eq.s32.totalorder %s18, 1
      %p99 = scmp.ne.s32.totalorder %s94, %s96
      %p100 = scmp.eq.s32.totalorder %s18, 0
      %p101 = por %p99, %p100
      %p102 = scmp.ne.s32.totalorder %s94, %s96
      %p103 = scmp.eq.s32.totalorder %s23, 1
      %p104 = por %p102, %p103
      %p105 = scmp.ne.s32.totalorder %s96, %s97
      %p106 = scmp.eq.s32.totalorder %s23, 0
      %p107 = por %p105, %p106
      %p108 = scmp.ne.s32.totalorder %s96, %s97
      %p109 = scmp.eq.s32.totalorder %s24, 1
      %p110 = por %p108, %p109
      %p112 = scmp.ne.s32.totalorder %s97, %s111
      %p113 = scmp.eq.s32.totalorder %s24, 0
      %p114 = por %p112, %p113
      %s116 = sadd.s32 %s115, 1
      %p119 = scmp.eq.s32.totalorder %s18, 1
      %p120 = scmp.ne.s32.totalorder %s115, %s117
      %p121 = scmp.eq.s32.totalorder %s18, 0
      %p122 = por %p120, %p121
      %p123 = scmp.ne.s32.totalorder %s115, %s117
      %p124 = scmp.eq.s32.totalorder %s23, 1
      %p125 = por %p123, %p124
      %p126 = scmp.ne.s32.totalorder %s117, %s118
      %p127 = scmp.eq.s32.totalorder %s23, 0
      %p128 = por %p126, %p127
      %p129 = scmp.ne.s32.totalorder %s117, %s118
      %p130 = scmp.eq.s32.totalorder %s24, 1
      %p131 = por %p129, %p130
      %p133 = scmp.ne.s32.totalorder %s118, %s132
      %p134 = scmp.eq.s32.totalorder %s24, 0
      %p135 = por %p133, %p134
      %s137 = sadd.s32 %s136, 1
      %p140 = scmp.eq.s32.totalorder %s18, 1
      %p141 = scmp.ne.s32.totalorder %s136, %s138
      %p142 = scmp.eq.s32.totalorder %s18, 0
      %p143 = por %p141, %p142
      %p144 = scmp.ne.s32.totalorder %s136, %s138
      %p145 = scmp.eq.s32.totalorder %s23, 1
      %p146 = por %p144, %p145
      %p147 = scmp.ne.s32.totalorder %s138, %s139
      %p148 = scmp.eq.s32.totalorder %s23, 0
      %p149 = por %p147, %p148
      %p150 = scmp.ne.s32.totalorder %s138, %s139
      %p151 = scmp.eq.s32.totalorder %s24, 1
      %p152 = por %p150, %p151
      %p154 = scmp.ne.s32.totalorder %s139, %s153
      %p155 = scmp.eq.s32.totalorder %s24, 0
      %p156 = por %p154, %p155
      %s158 = sadd.s32 %s157, 1
      %p161 = scmp.eq.s32.totalorder %s18, 1
      %p162 = scmp.ne.s32.totalorder %s157, %s159
      %p163 = scmp.eq.s32.totalorder %s18, 0
      %p164 = por %p162, %p163
      %p165 = scmp.ne.s32.totalorder %s157, %s159
      %p166 = scmp.eq.s32.totalorder %s23, 1
      %p167 = por %p165, %p166
      %p168 = scmp.ne.s32.totalorder %s159, %s160
      %p169 = scmp.eq.s32.totalorder %s23, 0
      %p170 = por %p168, %p169
      %p171 = scmp.ne.s32.totalorder %s159, %s160
      %p172 = scmp.eq.s32.totalorder %s24, 1
      %p173 = por %p171, %p172
      %p175 = scmp.ne.s32.totalorder %s160, %s174
      %p176 = scmp.eq.s32.totalorder %s24, 0
      %p177 = por %p175, %p176
      %s179 = sadd.s32 %s178, 1
      %p182 = scmp.eq.s32.totalorder %s18, 1
      %p183 = scmp.ne.s32.totalorder %s178, %s180
      %p184 = scmp.eq.s32.totalorder %s18, 0
      %p185 = por %p183, %p184
      %p186 = scmp.ne.s32.totalorder %s178, %s180
      %p187 = scmp.eq.s32.totalorder %s23, 1
      %p188 = por %p186, %p187
      %p189 = scmp.ne.s32.totalorder %s180, %s181
      %p190 = scmp.eq.s32.totalorder %s23, 0
      %p191 = por %p189, %p190
      %p192 = scmp.ne.s32.totalorder %s180, %s181
      %p193 = scmp.eq.s32.totalorder %s24, 1
      %p194 = por %p192, %p193
      %p196 = scmp.ne.s32.totalorder %s181, %s195
      %p197 = scmp.eq.s32.totalorder %s24, 0
      %p198 = por %p196, %p197
      %s199 = ssub.s32 %s18, %s25
      %p200 = scmp.eq.s32.totalorder %s199, 0
      %s202 = sadd.s32 %s201, 1
      %s203 = scalar_select %p200, %s201, %s202
      %p206 = pneg %p200
      %p207 = scmp.eq.s32.totalorder %s18, 1
      %p208 = por %p206, %p207
      %p209 = scmp.ne.s32.totalorder %s201, %s204
      %p210 = scmp.eq.s32.totalorder %s18, 0
      %p211 = por %p209, %p210
      %p212 = scmp.ne.s32.totalorder %s201, %s204
      %p213 = scmp.eq.s32.totalorder %s23, 1
      %p214 = por %p212, %p213
      %p215 = scmp.ne.s32.totalorder %s204, %s205
      %p216 = scmp.eq.s32.totalorder %s23, 0
      %p217 = por %p215, %p216
      %p218 = scmp.ne.s32.totalorder %s204, %s205
      %p219 = scmp.eq.s32.totalorder %s24, 1
      %p220 = por %p218, %p219
      %p222 = scmp.ne.s32.totalorder %s205, %s221
      %p223 = scmp.eq.s32.totalorder %s24, 0
      %p224 = por %p222, %p223
      %p225 = scmp.le.s32.totalorder 1, %s18
      %p226 = scmp.lt.s32.totalorder %s18, 3
      %p227 = pnand %p225, %p226
      %p228 = pneg %p227
      // Predicated region
      $region9: #{tpu_custom_call.1} parent=5 // pred_check
        _
      $region10: #{tpu_custom_call.1} parent=5 // pred_check_branch
        %230 = sbr.rel (%p227) target = $region12
      $region11: #{tpu_custom_call.1} parent=5 // pred_region
        %s231 = ssub.s32 %s18, 1
        // Predicated region
        $region13: #{tpu_custom_call.1} parent=11 // pred_check
          %p232 = pneg %p65
        $region14: #{tpu_custom_call.1} parent=11 // pred_check_branch
          %234 = sbr.rel (%p232) target = $region16
        $region15: #{tpu_custom_call.1} parent=11 // pred_region
          %s236 = ssub.s32 9216, 9216
          %237 = vsyncadd [#allocation6], %s236
          %s238 = sshll.u32 [#allocation5], 4
          %s239 = int_to_ptr.vmem [resolvable:$true] %s238
          %244 = dma.hbm_to_vmem [thread:$0]  %s1, 9216, %s239, [#allocation6], 64, 64, 4
        $region16: #{tpu_custom_call.1} parent=11 // pred_fallthru
          _
        // Predicated region
        $region17: #{tpu_custom_call.1} parent=11 // pred_check
          %p245 = pneg %p86
        $region18: #{tpu_custom_call.1} parent=11 // pred_check_branch
          %247 = sbr.rel (%p245) target = $region20
        $region19: #{tpu_custom_call.1} parent=11 // pred_region
          %s249 = ssub.s32 9216, 9216
          %250 = vsyncadd [#allocation6], %s249
          %s251 = sshll.u32 [#allocation7], 4
          %s252 = int_to_ptr.vmem [resolvable:$true] %s251
          %257 = dma.hbm_to_vmem [thread:$0]  %s2, 9216, %s252, [#allocation6], 64, 64, 4
        $region20: #{tpu_custom_call.1} parent=11 // pred_fallthru
          _
        // Predicated region
        $region21: #{tpu_custom_call.1} parent=11 // pred_check
          %p258 = pneg %p107
        $region22: #{tpu_custom_call.1} parent=11 // pred_check_branch
          %260 = sbr.rel (%p258) target = $region24
        $region23: #{tpu_custom_call.1} parent=11 // pred_region
          _
        $region24: #{tpu_custom_call.1} parent=11 // pred_fallthru
          _
        // Predicated region
        $region25: #{tpu_custom_call.1} parent=11 // pred_check
          %p261 = pneg %p128
        $region26: #{tpu_custom_call.1} parent=11 // pred_check_branch
          %263 = sbr.rel (%p261) target = $region28
        $region27: #{tpu_custom_call.1} parent=11 // pred_region
          _
        $region28: #{tpu_custom_call.1} parent=11 // pred_fallthru
          _
        // Predicated region
        $region29: #{tpu_custom_call.1} parent=11 // pred_check
          %p264 = pneg %p149
        $region30: #{tpu_custom_call.1} parent=11 // pred_check_branch
          %266 = sbr.rel (%p264) target = $region32
        $region31: #{tpu_custom_call.1} parent=11 // pred_region
          _
        $region32: #{tpu_custom_call.1} parent=11 // pred_fallthru
          _
        // Predicated region
        $region33: #{tpu_custom_call.1} parent=11 // pred_check
          %p267 = pneg %p170
        $region34: #{tpu_custom_call.1} parent=11 // pred_check_branch
          %269 = sbr.rel (%p267) target = $region36
        $region35: #{tpu_custom_call.1} parent=11 // pred_region
          _
        $region36: #{tpu_custom_call.1} parent=11 // pred_fallthru
          _
        // Predicated region
        $region37: #{tpu_custom_call.1} parent=11 // pred_check
          %p270 = pneg %p191
        $region38: #{tpu_custom_call.1} parent=11 // pred_check_branch
          %272 = sbr.rel (%p270) target = $region40
        $region39: #{tpu_custom_call.1} parent=11 // pred_region
          _
        $region40: #{tpu_custom_call.1} parent=11 // pred_fallthru
          _
      $region12: #{tpu_custom_call.1} parent=5 // pred_fallthru
        _
      %p273 = scmp.lt.s32.totalorder %s18, 2
      // Predicated region
      $region41: #{tpu_custom_call.1} parent=5 // pred_check
        %p274 = pneg %p273
      $region42: #{tpu_custom_call.1} parent=5 // pred_check_branch
        %276 = sbr.rel (%p274) target = $region44
      $region43: #{tpu_custom_call.1} parent=5 // pred_region
        // Predicated region
        $region45: #{tpu_custom_call.1} parent=43 // pred_check
          %p277 = pneg %p38
        $region46: #{tpu_custom_call.1} parent=43 // pred_check_branch
          %279 = sbr.rel (%p277) target = $region48
        $region47: #{tpu_custom_call.1} parent=43 // pred_region
          %s280 = sand.u32 %s28, 1
          %s281 = scalar_lea.sflag [#allocation4], %s280
          %s282 = sand.u32 %s28, 1
          %s283 = smul.addr %s282, 400
          %s284 = scalar_lea.vmem [#allocation3], %s283
          %s286 = ssub.s32 6400, 6400
          %287 = vsyncadd %s281, %s286
          %s288 = smul.addr %s18, 50
          %s289 = smul.addr %s288, 128
          %s290 = scalar_lea.hbm %s0, %s289
          %s291 = sshll.u32 %s284, 4
          %s292 = int_to_ptr.vmem [resolvable:$true] %s291
          %297 = dma.hbm_to_vmem [thread:$0]  %s290, 6400, %s292, %s281, 128, 128, 8
        $region48: #{tpu_custom_call.1} parent=43 // pred_fallthru
          _
      $region44: #{tpu_custom_call.1} parent=5 // pred_fallthru
        _
      %p298 = scmp.le.s32.totalorder 1, %s18
      %p299 = scmp.lt.s32.totalorder %s18, 3
      %p300 = pnand %p298, %p299
      %p301 = pneg %p300
      // Predicated region
      $region49: #{tpu_custom_call.1} parent=5 // pred_check
        _
      $region50: #{tpu_custom_call.1} parent=5 // pred_check_branch
        %303 = sbr.rel (%p300) target = $region52
      $region51: #{tpu_custom_call.1} parent=5 // pred_region
        %s304 = ssub.s32 %s18, 1
        %s305 = sand.u32 %s31, 1
        %s306 = scalar_lea.sflag [#allocation4], %s305
        %s307 = sand.u32 %s31, 1
        %s308 = smul.addr %s307, 400
        %s309 = scalar_lea.vmem [#allocation3], %s308
        // Predicated region
        $region53: #{tpu_custom_call.1} parent=51 // pred_check
          %p310 = pneg %p44
        $region54: #{tpu_custom_call.1} parent=51 // pred_check_branch
          %312 = sbr.rel (%p310) target = $region56
        $region55: #{tpu_custom_call.1} parent=51 // pred_region
          %313 = dma.done %s306, 6400
        $region56: #{tpu_custom_call.1} parent=51 // pred_fallthru
          _
        // Predicated region
        $region57: #{tpu_custom_call.1} parent=51 // pred_check
          %p314 = pneg %p65
        $region58: #{tpu_custom_call.1} parent=51 // pred_check_branch
          %316 = sbr.rel (%p314) target = $region60
        $region59: #{tpu_custom_call.1} parent=51 // pred_region
          %317 = dma.done [#allocation6], 9216
        $region60: #{tpu_custom_call.1} parent=51 // pred_fallthru
          _
        // Predicated region
        $region61: #{tpu_custom_call.1} parent=51 // pred_check
          %p318 = pneg %p86
        $region62: #{tpu_custom_call.1} parent=51 // pred_check_branch
          %320 = sbr.rel (%p318) target = $region64
        $region63: #{tpu_custom_call.1} parent=51 // pred_region
          %321 = dma.done [#allocation6], 9216
        $region64: #{tpu_custom_call.1} parent=51 // pred_fallthru
          _
        %s322 = sand.u32 %s31, 1
        %s323 = scalar_lea.sflag [#allocation4], %s322
        %s324 = sand.u32 %s31, 1
        %s325 = smul.addr %s324, 400
        %s326 = scalar_lea.vmem [#allocation3], %s325
        %p327 = pneg %p44
        %p328 = pneg %p41
        %p329 = pneg %p65
        %p330 = pneg %p62
        %p331 = pneg %p86
        %p332 = pneg %p83
        %p333 = pneg %p107
        %p334 = pneg %p104
        %p335 = pneg %p128
        %p336 = pneg %p125
        %p337 = pneg %p149
        %p338 = pneg %p146
        %p339 = pneg %p170
        %p340 = pneg %p167
        %p341 = pneg %p191
        %p342 = pneg %p188
        %p343 = pneg %p217
        %p344 = pneg %p214
        %p345 = scmp.lt.s32.totalorder %s23, 1
        %s346 = scalar_select %p345, %s23, 1
        %s347 = smul.addr %s346, 40
        %s348 = smul.addr %s347, 8
        %s349 = scalar_lea.vmem %s8, %s348
        %p350 = scmp.lt.s32.totalorder %s23, 1
        %s351 = scalar_select %p350, %s23, 1
        %s352 = smul.addr %s351, 40
        %s353 = smul.addr %s352, 8
        %s354 = scalar_lea.vmem %s8, %s353
        %v356 = vld [vmem:[%s3] sm:$0x1]
        %v357 = vld [vmem:[%s4] sm:$0x1]
        %v358 = vld [vmem:[%s5] sm:$0x1]
        %v359 = vld [vmem:[%s6] sm:$0x1]
        %v360 = vld [vmem:[%s309] sm:$0xff]
        %v361 = vld [vmem:[%s309 + $0x8] sm:$0xff]
        %v362 = vld [vmem:[%s309 + $0x10] sm:$0xff]
        %v363 = vld [vmem:[%s309 + $0x18] sm:$0xff]
        %v364 = vld [vmem:[%s309 + $0x20] sm:$0xff]
        %v365 = vld [vmem:[%s309 + $0x28] sm:$0xff]
        %v366 = vld [vmem:[%s309 + $0x30] sm:$0xff]
        %v367 = vld [vmem:[%s309 + $0x38] sm:$0xff]
        %v368 = vld [vmem:[%s309 + $0x40] sm:$0xff]
        %v369 = vld [vmem:[%s309 + $0x48] sm:$0xff]
        %v370 = vld [vmem:[%s309 + $0x50] sm:$0xff]
        %v371 = vld [vmem:[%s309 + $0x58] sm:$0xff]
        %v372 = vld [vmem:[%s309 + $0x60] sm:$0xff]
        %v373 = vld [vmem:[%s309 + $0x68] sm:$0xff]
        %v374 = vld [vmem:[%s309 + $0x70] sm:$0xff]
        %v375 = vld [vmem:[%s309 + $0x78] sm:$0xff]
        %v376 = vld [vmem:[%s309 + $0x80] sm:$0xff]
        %v377 = vld [vmem:[%s309 + $0x88] sm:$0xff]
        %v378 = vld [vmem:[%s309 + $0x90] sm:$0xff]
        %v379 = vld [vmem:[%s309 + $0x98] sm:$0xff]
        %v380 = vld [vmem:[%s309 + $0xa0] sm:$0xff]
        %v381 = vld [vmem:[%s309 + $0xa8] sm:$0xff]
        %v382 = vld [vmem:[%s309 + $0xb0] sm:$0xff]
        %v383 = vld [vmem:[%s309 + $0xb8] sm:$0xff]
        %v384 = vld [vmem:[%s309 + $0xc0] sm:$0xff]
        %v385 = vld [vmem:[%s309 + $0xc8] sm:$0xff]
        %v386 = vld [vmem:[%s309 + $0xd0] sm:$0xff]
        %v387 = vld [vmem:[%s309 + $0xd8] sm:$0xff]
        %v388 = vld [vmem:[%s309 + $0xe0] sm:$0xff]
        %v389 = vld [vmem:[%s309 + $0xe8] sm:$0xff]
        %v390 = vld [vmem:[%s309 + $0xf0] sm:$0xff]
        %v391 = vld [vmem:[%s309 + $0xf8] sm:$0xff]
        %v392 = vpack.c.bf16 %v361, %v360
        %v393 = vpack.c.bf16 %v363, %v362
        %v394 = vpack.c.bf16 %v365, %v364
        %v395 = vpack.c.bf16 %v367, %v366
        %v396 = vpack.c.bf16 %v369, %v368
        %v397 = vpack.c.bf16 %v371, %v370
        %v398 = vpack.c.bf16 %v373, %v372
        %v399 = vpack.c.bf16 %v375, %v374
        %v400 = vpack.c.bf16 %v377, %v376
        %v401 = vpack.c.bf16 %v379, %v378
        %v402 = vpack.c.bf16 %v381, %v380
        %v403 = vpack.c.bf16 %v383, %v382
        %v404 = vpack.c.bf16 %v385, %v384
        %v405 = vpack.c.bf16 %v387, %v386
        %v406 = vpack.c.bf16 %v389, %v388
        %v407 = vpack.c.bf16 %v391, %v390
        %v408 = vld [vmem:[#allocation5] sm:$0xf]
        %v409 = vld [vmem:[#allocation5 + $0x4] sm:$0xf]
        %v410 = vld [vmem:[#allocation5 + $0x8] sm:$0xf]
        %v411 = vld [vmem:[#allocation5 + $0xc] sm:$0xf]
        %v412 = vld [vmem:[#allocation5 + $0x10] sm:$0xf]
        %v413 = vld [vmem:[#allocation5 + $0x14] sm:$0xf]
        %v414 = vld [vmem:[#allocation5 + $0x18] sm:$0xf]
        %v415 = vld [vmem:[#allocation5 + $0x1c] sm:$0xf]
        %v416 = vld [vmem:[#allocation5 + $0x20] sm:$0xf]
        %v417 = vld [vmem:[#allocation5 + $0x24] sm:$0xf]
        %v418 = vld [vmem:[#allocation5 + $0x28] sm:$0xf]
        %v419 = vld [vmem:[#allocation5 + $0x2c] sm:$0xf]
        %v420 = vld [vmem:[#allocation5 + $0x30] sm:$0xf]
        %v421 = vld [vmem:[#allocation5 + $0x34] sm:$0xf]
        %v422 = vld [vmem:[#allocation5 + $0x38] sm:$0xf]
        %v423 = vld [vmem:[#allocation5 + $0x3c] sm:$0xf]
        %v424 = vld [vmem:[%s309 + $0x1] sm:$0xff]
        %v425 = vld [vmem:[%s309 + $0x9] sm:$0xff]
        %v426 = vld [vmem:[%s309 + $0x11] sm:$0xff]
        %v427 = vld [vmem:[%s309 + $0x19] sm:$0xff]
        %v428 = vld [vmem:[%s309 + $0x21] sm:$0xff]
        %v429 = vld [vmem:[%s309 + $0x29] sm:$0xff]
        %v430 = vld [vmem:[%s309 + $0x31] sm:$0xff]
        %v431 = vld [vmem:[%s309 + $0x39] sm:$0xff]
        %v432 = vld [vmem:[%s309 + $0x41] sm:$0xff]
        %v433 = vld [vmem:[%s309 + $0x49] sm:$0xff]
        %v434 = vld [vmem:[%s309 + $0x51] sm:$0xff]
        %v435 = vld [vmem:[%s309 + $0x59] sm:$0xff]
        %v436 = vld [vmem:[%s309 + $0x61] sm:$0xff]
        %v437 = vld [vmem:[%s309 + $0x69] sm:$0xff]
        %v438 = vld [vmem:[%s309 + $0x71] sm:$0xff]
        %v439 = vld [vmem:[%s309 + $0x79] sm:$0xff]
        %v440 = vld [vmem:[%s309 + $0x81] sm:$0xff]
        %v441 = vld [vmem:[%s309 + $0x89] sm:$0xff]
        %v442 = vld [vmem:[%s309 + $0x91] sm:$0xff]
        %v443 = vld [vmem:[%s309 + $0x99] sm:$0xff]
        %v444 = vld [vmem:[%s309 + $0xa1] sm:$0xff]
        %v445 = vld [vmem:[%s309 + $0xa9] sm:$0xff]
        %v446 = vld [vmem:[%s309 + $0xb1] sm:$0xff]
        %v447 = vld [vmem:[%s309 + $0xb9] sm:$0xff]
        %v448 = vld [vmem:[%s309 + $0xc1] sm:$0xff]
        %v449 = vld [vmem:[%s309 + $0xc9] sm:$0xff]
        %v450 = vld [vmem:[%s309 + $0xd1] sm:$0xff]
        %v451 = vld [vmem:[%s309 + $0xd9] sm:$0xff]
        %v452 = vld [vmem:[%s309 + $0xe1] sm:$0xff]
        %v453 = vld [vmem:[%s309 + $0xe9] sm:$0xff]
        %v454 = vld [vmem:[%s309 + $0xf1] sm:$0xff]
        %v455 = vld [vmem:[%s309 + $0xf9] sm:$0xff]
        %v456 = vpack.c.bf16 %v425, %v424
        %v457 = vpack.c.bf16 %v427, %v426
        %v458 = vpack.c.bf16 %v429, %v428
        %v459 = vpack.c.bf16 %v431, %v430
        %v460 = vpack.c.bf16 %v433, %v432
        %v461 = vpack.c.bf16 %v435, %v434
        %v462 = vpack.c.bf16 %v437, %v436
        %v463 = vpack.c.bf16 %v439, %v438
        %v464 = vpack.c.bf16 %v441, %v440
        %v465 = vpack.c.bf16 %v443, %v442
        %v466 = vpack.c.bf16 %v445, %v444
        %v467 = vpack.c.bf16 %v447, %v446
        %v468 = vpack.c.bf16 %v449, %v448
        %v469 = vpack.c.bf16 %v451, %v450
        %v470 = vpack.c.bf16 %v453, %v452
        %v471 = vpack.c.bf16 %v455, %v454
        %s472 = scalar_lea.vmem [#allocation5], 64
        %v473 = vld [vmem:[%s472] sm:$0xf]
        %v474 = vld [vmem:[%s472 + $0x4] sm:$0xf]
        %v475 = vld [vmem:[%s472 + $0x8] sm:$0xf]
        %v476 = vld [vmem:[%s472 + $0xc] sm:$0xf]
        %v477 = vld [vmem:[%s472 + $0x10] sm:$0xf]
        %v478 = vld [vmem:[%s472 + $0x14] sm:$0xf]
        %v479 = vld [vmem:[%s472 + $0x18] sm:$0xf]
        %v480 = vld [vmem:[%s472 + $0x1c] sm:$0xf]
        %v481 = vld [vmem:[%s472 + $0x20] sm:$0xf]
        %v482 = vld [vmem:[%s472 + $0x24] sm:$0xf]
        %v483 = vld [vmem:[%s472 + $0x28] sm:$0xf]
        %v484 = vld [vmem:[%s472 + $0x2c] sm:$0xf]
        %v485 = vld [vmem:[%s472 + $0x30] sm:$0xf]
        %v486 = vld [vmem:[%s472 + $0x34] sm:$0xf]
        %v487 = vld [vmem:[%s472 + $0x38] sm:$0xf]
        %v488 = vld [vmem:[%s472 + $0x3c] sm:$0xf]
        %v505 = vunpack.c.l.b16 %v473
        %v506 = vunpack.c.l.b16 %v474
        %v507 = vunpack.c.l.b16 %v475
        %v508 = vunpack.c.l.b16 %v476
        %v509 = vunpack.c.l.b16 %v477
        %v510 = vunpack.c.l.b16 %v478
        %v511 = vunpack.c.l.b16 %v479
        %v512 = vunpack.c.l.b16 %v480
        %v513 = vunpack.c.l.b16 %v481
        %v514 = vunpack.c.l.b16 %v482
        %v515 = vunpack.c.l.b16 %v483
        %v516 = vunpack.c.l.b16 %v484
        %v517 = vunpack.c.l.b16 %v485
        %v518 = vunpack.c.l.b16 %v486
        %v519 = vunpack.c.l.b16 %v487
        %v520 = vunpack.c.l.b16 %v488
        %v521 = vpack.c.b16 %v506, %v505
        %v522 = vpack.c.b16 %v508, %v507
        %v523 = vpack.c.b16 %v510, %v509
        %v524 = vpack.c.b16 %v512, %v511
        %v525 = vpack.c.b16 %v514, %v513
        %v526 = vpack.c.b16 %v516, %v515
        %v527 = vpack.c.b16 %v518, %v517
        %v528 = vpack.c.b16 %v520, %v519
        %537 = vmatprep.subr.bf16.mxu0 0
        %538 = vmatpush1.bf16.msra.mxu0 %v528
        %539 = vmatprep.subr.bf16.mxu0 0
        %540 = vmatpush1.bf16.msra.mxu0 %v527
        %541 = vmatprep.subr.bf16.mxu0 0
        %542 = vmatpush1.bf16.msra.mxu0 %v526
        %543 = vmatprep.subr.bf16.mxu0 0
        %544 = vmatpush1.bf16.msra.mxu0 %v525
        %545 = vmatprep.subr.bf16.mxu0 0
        %546 = vmatpush1.bf16.msra.mxu0 %v524
        %547 = vmatprep.subr.bf16.mxu0 0
        %548 = vmatpush1.bf16.msra.mxu0 %v523
        %549 = vmatprep.subr.bf16.mxu0 0
        %550 = vmatpush1.bf16.msra.mxu0 %v522
        %551 = vmatprep.subr.bf16.mxu0 0
        %552 = vmatpush1.bf16.msra.mxu0 %v521
        %553 = vmatprep.subr.bf16.mxu0 0
        %554 = vmatpush2.bf16.msra.mxu0 0
        %555 = vmatprep.subr.bf16.mxu0 0
        %556 = vmatpush2.bf16.msra.mxu0 0
        %557 = vmatprep.subr.bf16.mxu0 0
        %558 = vmatpush2.bf16.msra.mxu0 0
        %559 = vmatprep.subr.bf16.mxu0 0
        %560 = vmatpush2.bf16.msra.mxu0 0
        %561 = vmatprep.subr.bf16.mxu0 0
        %562 = vmatpush2.bf16.msra.mxu0 0
        %563 = vmatprep.subr.bf16.mxu0 0
        %564 = vmatpush2.bf16.msra.mxu0 0
        %565 = vmatprep.subr.bf16.mxu0 0
        %566 = vmatpush2.bf16.msra.mxu0 0
        %567 = vmatprep.subr.bf16.mxu0 0
        %568 = vmatpush2.bf16.msra.mxu0 0
        %569 = vmatprep.mubr.bf16.mxu0 0
        %570 = vmatmul.mubr.bf16.gmra.mxu0 %v456
        %v571 = vpop.f32.mrf.mxu0
        %v572 = vadd.f32 0.0, %v571
        %v573 = vpop.f32.mrf.mxu0
        %v574 = vpop.f32.mrf.mxu0
        %v575 = vadd.f32 0.0, %v574
        %v576 = vpop.f32.mrf.mxu0
        %577 = vmatprep.mubr.bf16.mxu0 0
        %578 = vmatmul.mubr.bf16.gmra.mxu0 %v457
        %v579 = vpop.f32.mrf.mxu0
        %v580 = vadd.f32 0.0, %v579
        %v581 = vpop.f32.mrf.mxu0
        %v582 = vpop.f32.mrf.mxu0
        %v583 = vadd.f32 0.0, %v582
        %v584 = vpop.f32.mrf.mxu0
        %585 = vmatprep.mubr.bf16.mxu0 0
        %586 = vmatmul.mubr.bf16.gmra.mxu0 %v458
        %v587 = vpop.f32.mrf.mxu0
        %v588 = vadd.f32 0.0, %v587
        %v589 = vpop.f32.mrf.mxu0
        %v590 = vpop.f32.mrf.mxu0
        %v591 = vadd.f32 0.0, %v590
        %v592 = vpop.f32.mrf.mxu0
        %593 = vmatprep.mubr.bf16.mxu0 0
        %594 = vmatmul.mubr.bf16.gmra.mxu0 %v459
        %v595 = vpop.f32.mrf.mxu0
        %v596 = vadd.f32 0.0, %v595
        %v597 = vpop.f32.mrf.mxu0
        %v598 = vpop.f32.mrf.mxu0
        %v599 = vadd.f32 0.0, %v598
        %v600 = vpop.f32.mrf.mxu0
        %601 = vmatprep.mubr.bf16.mxu0 0
        %602 = vmatmul.mubr.bf16.gmra.mxu0 %v460
        %v603 = vpop.f32.mrf.mxu0
        %v604 = vadd.f32 0.0, %v603
        %v605 = vpop.f32.mrf.mxu0
        %v606 = vpop.f32.mrf.mxu0
        %v607 = vadd.f32 0.0, %v606
        %v608 = vpop.f32.mrf.mxu0
        %609 = vmatprep.mubr.bf16.mxu0 0
        %610 = vmatmul.mubr.bf16.gmra.mxu0 %v461
        %v611 = vpop.f32.mrf.mxu0
        %v612 = vadd.f32 0.0, %v611
        %v613 = vpop.f32.mrf.mxu0
        %v614 = vpop.f32.mrf.mxu0
        %v615 = vadd.f32 0.0, %v614
        %v616 = vpop.f32.mrf.mxu0
        %617 = vmatprep.mubr.bf16.mxu0 0
        %618 = vmatmul.mubr.bf16.gmra.mxu0 %v462
        %v619 = vpop.f32.mrf.mxu0
        %v620 = vadd.f32 0.0, %v619
        %v621 = vpop.f32.mrf.mxu0
        %v622 = vpop.f32.mrf.mxu0
        %v623 = vadd.f32 0.0, %v622
        %v624 = vpop.f32.mrf.mxu0
        %625 = vmatprep.mubr.bf16.mxu0 0
        %626 = vmatmul.mubr.bf16.gmra.mxu0 %v463
        %v627 = vpop.f32.mrf.mxu0
        %v628 = vadd.f32 0.0, %v627
        %v629 = vpop.f32.mrf.mxu0
        %v630 = vpop.f32.mrf.mxu0
        %v631 = vadd.f32 0.0, %v630
        %v632 = vpop.f32.mrf.mxu0
        %633 = vmatprep.mubr.bf16.mxu0 0
        %634 = vmatmul.mubr.bf16.gmra.mxu0 %v464
        %v635 = vpop.f32.mrf.mxu0
        %v636 = vadd.f32 0.0, %v635
        %v637 = vpop.f32.mrf.mxu0
        %v638 = vpop.f32.mrf.mxu0
        %v639 = vadd.f32 0.0, %v638
        %v640 = vpop.f32.mrf.mxu0
        %641 = vmatprep.mubr.bf16.mxu0 0
        %642 = vmatmul.mubr.bf16.gmra.mxu0 %v465
        %v643 = vpop.f32.mrf.mxu0
        %v644 = vadd.f32 0.0, %v643
        %v645 = vpop.f32.mrf.mxu0
        %v646 = vpop.f32.mrf.mxu0
        %v647 = vadd.f32 0.0, %v646
        %v648 = vpop.f32.mrf.mxu0
        %649 = vmatprep.mubr.bf16.mxu0 0
        %650 = vmatmul.mubr.bf16.gmra.mxu0 %v466
        %v651 = vpop.f32.mrf.mxu0
        %v652 = vadd.f32 0.0, %v651
        %v653 = vpop.f32.mrf.mxu0
        %v654 = vpop.f32.mrf.mxu0
        %v655 = vadd.f32 0.0, %v654
        %v656 = vpop.f32.mrf.mxu0
        %657 = vmatprep.mubr.bf16.mxu0 0
        %658 = vmatmul.mubr.bf16.gmra.mxu0 %v467
        %v659 = vpop.f32.mrf.mxu0
        %v660 = vadd.f32 0.0, %v659
        %v661 = vpop.f32.mrf.mxu0
        %v662 = vpop.f32.mrf.mxu0
        %v663 = vadd.f32 0.0, %v662
        %v664 = vpop.f32.mrf.mxu0
        %665 = vmatprep.mubr.bf16.mxu0 0
        %666 = vmatmul.mubr.bf16.gmra.mxu0 %v468
        %v667 = vpop.f32.mrf.mxu0
        %v668 = vadd.f32 0.0, %v667
        %v669 = vpop.f32.mrf.mxu0
        %v670 = vpop.f32.mrf.mxu0
        %v671 = vadd.f32 0.0, %v670
        %v672 = vpop.f32.mrf.mxu0
        %673 = vmatprep.mubr.bf16.mxu0 0
        %674 = vmatmul.mubr.bf16.gmra.mxu0 %v469
        %v675 = vpop.f32.mrf.mxu0
        %v676 = vadd.f32 0.0, %v675
        %v677 = vpop.f32.mrf.mxu0
        %v678 = vpop.f32.mrf.mxu0
        %v679 = vadd.f32 0.0, %v678
        %v680 = vpop.f32.mrf.mxu0
        %681 = vmatprep.mubr.bf16.mxu0 0
        %682 = vmatmul.mubr.bf16.gmra.mxu0 %v470
        %v683 = vpop.f32.mrf.mxu0
        %v684 = vadd.f32 0.0, %v683
        %v685 = vpop.f32.mrf.mxu0
        %v686 = vpop.f32.mrf.mxu0
        %v687 = vadd.f32 0.0, %v686
        %v688 = vpop.f32.mrf.mxu0
        %689 = vmatprep.mubr.bf16.mxu0 0
        %690 = vmatmul.mubr.bf16.gmra.mxu0 %v471
        %v691 = vpop.f32.mrf.mxu0
        %v692 = vadd.f32 0.0, %v691
        %v693 = vpop.f32.mrf.mxu0
        %v694 = vpop.f32.mrf.mxu0
        %v695 = vadd.f32 0.0, %v694
        %v696 = vpop.f32.mrf.mxu0
        %697 = vdwg.mxu0
        %v714 = vunpack.c.l.b16 %v408
        %v715 = vunpack.c.l.b16 %v409
        %v716 = vunpack.c.l.b16 %v410
        %v717 = vunpack.c.l.b16 %v411
        %v718 = vunpack.c.l.b16 %v412
        %v719 = vunpack.c.l.b16 %v413
        %v720 = vunpack.c.l.b16 %v414
        %v721 = vunpack.c.l.b16 %v415
        %v722 = vunpack.c.l.b16 %v416
        %v723 = vunpack.c.l.b16 %v417
        %v724 = vunpack.c.l.b16 %v418
        %v725 = vunpack.c.l.b16 %v419
        %v726 = vunpack.c.l.b16 %v420
        %v727 = vunpack.c.l.b16 %v421
        %v728 = vunpack.c.l.b16 %v422
        %v729 = vunpack.c.l.b16 %v423
        %v730 = vpack.c.b16 %v715, %v714
        %v731 = vpack.c.b16 %v717, %v716
        %v732 = vpack.c.b16 %v719, %v718
        %v733 = vpack.c.b16 %v721, %v720
        %v734 = vpack.c.b16 %v723, %v722
        %v735 = vpack.c.b16 %v725, %v724
        %v736 = vpack.c.b16 %v727, %v726
        %v737 = vpack.c.b16 %v729, %v728
        %746 = vmatprep.subr.bf16.mxu0 0
        %747 = vmatpush1.bf16.msra.mxu0 %v737
        %748 = vmatprep.subr.bf16.mxu0 0
        %749 = vmatpush1.bf16.msra.mxu0 %v736
        %750 = vmatprep.subr.bf16.mxu0 0
        %751 = vmatpush1.bf16.msra.mxu0 %v735
        %752 = vmatprep.subr.bf16.mxu0 0
        %753 = vmatpush1.bf16.msra.mxu0 %v734
        %754 = vmatprep.subr.bf16.mxu0 0
        %755 = vmatpush1.bf16.msra.mxu0 %v733
        %756 = vmatprep.subr.bf16.mxu0 0
        %757 = vmatpush1.bf16.msra.mxu0 %v732
        %758 = vmatprep.subr.bf16.mxu0 0
        %759 = vmatpush1.bf16.msra.mxu0 %v731
        %760 = vmatprep.subr.bf16.mxu0 0
        %761 = vmatpush1.bf16.msra.mxu0 %v730
        %762 = vmatprep.subr.bf16.mxu0 0
        %763 = vmatpush2.bf16.msra.mxu0 0
        %764 = vmatprep.subr.bf16.mxu0 0
        %765 = vmatpush2.bf16.msra.mxu0 0
        %766 = vmatprep.subr.bf16.mxu0 0
        %767 = vmatpush2.bf16.msra.mxu0 0
        %768 = vmatprep.subr.bf16.mxu0 0
        %769 = vmatpush2.bf16.msra.mxu0 0
        %770 = vmatprep.subr.bf16.mxu0 0
        %771 = vmatpush2.bf16.msra.mxu0 0
        %772 = vmatprep.subr.bf16.mxu0 0
        %773 = vmatpush2.bf16.msra.mxu0 0
        %774 = vmatprep.subr.bf16.mxu0 0
        %775 = vmatpush2.bf16.msra.mxu0 0
        %776 = vmatprep.subr.bf16.mxu0 0
        %777 = vmatpush2.bf16.msra.mxu0 0
        %778 = vmatprep.mubr.bf16.mxu0 0
        %779 = vmatmul.mubr.bf16.gmra.mxu0 %v392
        %v780 = vpop.f32.mrf.mxu0
        %v781 = vadd.f32 %v572, %v780
        %v782 = vpop.f32.mrf.mxu0
        %v783 = vpop.f32.mrf.mxu0
        %v784 = vadd.f32 %v575, %v783
        %v785 = vpop.f32.mrf.mxu0
        %786 = vmatprep.mubr.bf16.mxu0 0
        %787 = vmatmul.mubr.bf16.gmra.mxu0 %v393
        %v788 = vpop.f32.mrf.mxu0
        %v789 = vadd.f32 %v580, %v788
        %v790 = vpop.f32.mrf.mxu0
        %v791 = vpop.f32.mrf.mxu0
        %v792 = vadd.f32 %v583, %v791
        %v793 = vpop.f32.mrf.mxu0
        %794 = vmatprep.mubr.bf16.mxu0 0
        %795 = vmatmul.mubr.bf16.gmra.mxu0 %v394
        %v796 = vpop.f32.mrf.mxu0
        %v797 = vadd.f32 %v588, %v796
        %v798 = vpop.f32.mrf.mxu0
        %v799 = vpop.f32.mrf.mxu0
        %v800 = vadd.f32 %v591, %v799
        %v801 = vpop.f32.mrf.mxu0
        %802 = vmatprep.mubr.bf16.mxu0 0
        %803 = vmatmul.mubr.bf16.gmra.mxu0 %v395
        %v804 = vpop.f32.mrf.mxu0
        %v805 = vadd.f32 %v596, %v804
        %v806 = vpop.f32.mrf.mxu0
        %v807 = vpop.f32.mrf.mxu0
        %v808 = vadd.f32 %v599, %v807
        %v809 = vpop.f32.mrf.mxu0
        %810 = vmatprep.mubr.bf16.mxu0 0
        %811 = vmatmul.mubr.bf16.gmra.mxu0 %v396
        %v812 = vpop.f32.mrf.mxu0
        %v813 = vadd.f32 %v604, %v812
        %v814 = vpop.f32.mrf.mxu0
        %v815 = vpop.f32.mrf.mxu0
        %v816 = vadd.f32 %v607, %v815
        %v817 = vpop.f32.mrf.mxu0
        %818 = vmatprep.mubr.bf16.mxu0 0
        %819 = vmatmul.mubr.bf16.gmra.mxu0 %v397
        %v820 = vpop.f32.mrf.mxu0
        %v821 = vadd.f32 %v612, %v820
        %v822 = vpop.f32.mrf.mxu0
        %v823 = vpop.f32.mrf.mxu0
        %v824 = vadd.f32 %v615, %v823
        %v825 = vpop.f32.mrf.mxu0
        %826 = vmatprep.mubr.bf16.mxu0 0
        %827 = vmatmul.mubr.bf16.gmra.mxu0 %v398
        %v828 = vpop.f32.mrf.mxu0
        %v829 = vadd.f32 %v620, %v828
        %v830 = vpop.f32.mrf.mxu0
        %v831 = vpop.f32.mrf.mxu0
        %v832 = vadd.f32 %v623, %v831
        %v833 = vpop.f32.mrf.mxu0
        %834 = vmatprep.mubr.bf16.mxu0 0
        %835 = vmatmul.mubr.bf16.gmra.mxu0 %v399
        %v836 = vpop.f32.mrf.mxu0
        %v837 = vadd.f32 %v628, %v836
        %v838 = vpop.f32.mrf.mxu0
        %v839 = vpop.f32.mrf.mxu0
        %v840 = vadd.f32 %v631, %v839
        %v841 = vpop.f32.mrf.mxu0
        %842 = vmatprep.mubr.bf16.mxu0 0
        %843 = vmatmul.mubr.bf16.gmra.mxu0 %v400
        %v844 = vpop.f32.mrf.mxu0
        %v845 = vadd.f32 %v636, %v844
        %v846 = vpop.f32.mrf.mxu0
        %v847 = vpop.f32.mrf.mxu0
        %v848 = vadd.f32 %v639, %v847
        %v849 = vpop.f32.mrf.mxu0
        %850 = vmatprep.mubr.bf16.mxu0 0
        %851 = vmatmul.mubr.bf16.gmra.mxu0 %v401
        %v852 = vpop.f32.mrf.mxu0
        %v853 = vadd.f32 %v644, %v852
        %v854 = vpop.f32.mrf.mxu0
        %v855 = vpop.f32.mrf.mxu0
        %v856 = vadd.f32 %v647, %v855
        %v857 = vpop.f32.mrf.mxu0
        %858 = vmatprep.mubr.bf16.mxu0 0
        %859 = vmatmul.mubr.bf16.gmra.mxu0 %v402
        %v860 = vpop.f32.mrf.mxu0
        %v861 = vadd.f32 %v652, %v860
        %v862 = vpop.f32.mrf.mxu0
        %v863 = vpop.f32.mrf.mxu0
        %v864 = vadd.f32 %v655, %v863
        %v865 = vpop.f32.mrf.mxu0
        %866 = vmatprep.mubr.bf16.mxu0 0
        %867 = vmatmul.mubr.bf16.gmra.mxu0 %v403
        %v868 = vpop.f32.mrf.mxu0
        %v869 = vadd.f32 %v660, %v868
        %v870 = vpop.f32.mrf.mxu0
        %v871 = vpop.f32.mrf.mxu0
        %v872 = vadd.f32 %v663, %v871
        %v873 = vpop.f32.mrf.mxu0
        %874 = vmatprep.mubr.bf16.mxu0 0
        %875 = vmatmul.mubr.bf16.gmra.mxu0 %v404
        %v876 = vpop.f32.mrf.mxu0
        %v877 = vadd.f32 %v668, %v876
        %v878 = vpop.f32.mrf.mxu0
        %v879 = vpop.f32.mrf.mxu0
        %v880 = vadd.f32 %v671, %v879
        %v881 = vpop.f32.mrf.mxu0
        %882 = vmatprep.mubr.bf16.mxu0 0
        %883 = vmatmul.mubr.bf16.gmra.mxu0 %v405
        %v884 = vpop.f32.mrf.mxu0
        %v885 = vadd.f32 %v676, %v884
        %v886 = vpop.f32.mrf.mxu0
        %v887 = vpop.f32.mrf.mxu0
        %v888 = vadd.f32 %v679, %v887
        %v889 = vpop.f32.mrf.mxu0
        %890 = vmatprep.mubr.bf16.mxu0 0
        %891 = vmatmul.mubr.bf16.gmra.mxu0 %v406
        %v892 = vpop.f32.mrf.mxu0
        %v893 = vadd.f32 %v684, %v892
        %v894 = vpop.f32.mrf.mxu0
        %v895 = vpop.f32.mrf.mxu0
        %v896 = vadd.f32 %v687, %v895
        %v897 = vpop.f32.mrf.mxu0
        %898 = vmatprep.mubr.bf16.mxu0 0
        %899 = vmatmul.mubr.bf16.gmra.mxu0 %v407
        %v900 = vpop.f32.mrf.mxu0
        %v901 = vadd.f32 %v692, %v900
        %v902 = vpop.f32.mrf.mxu0
        %v903 = vpop.f32.mrf.mxu0
        %v904 = vadd.f32 %v695, %v903
        %v905 = vpop.f32.mrf.mxu0
        %906 = vdwg.mxu0
        %v907 = vld [vmem:[%s309 + $0x2] sm:$0xff]
        %v908 = vld [vmem:[%s309 + $0xa] sm:$0xff]
        %v909 = vld [vmem:[%s309 + $0x12] sm:$0xff]
        %v910 = vld [vmem:[%s309 + $0x1a] sm:$0xff]
        %v911 = vld [vmem:[%s309 + $0x22] sm:$0xff]
        %v912 = vld [vmem:[%s309 + $0x2a] sm:$0xff]
        %v913 = vld [vmem:[%s309 + $0x32] sm:$0xff]
        %v914 = vld [vmem:[%s309 + $0x3a] sm:$0xff]
        %v915 = vld [vmem:[%s309 + $0x42] sm:$0xff]
        %v916 = vld [vmem:[%s309 + $0x4a] sm:$0xff]
        %v917 = vld [vmem:[%s309 + $0x52] sm:$0xff]
        %v918 = vld [vmem:[%s309 + $0x5a] sm:$0xff]
        %v919 = vld [vmem:[%s309 + $0x62] sm:$0xff]
        %v920 = vld [vmem:[%s309 + $0x6a] sm:$0xff]
        %v921 = vld [vmem:[%s309 + $0x72] sm:$0xff]
        %v922 = vld [vmem:[%s309 + $0x7a] sm:$0xff]
        %v923 = vld [vmem:[%s309 + $0x82] sm:$0xff]
        %v924 = vld [vmem:[%s309 + $0x8a] sm:$0xff]
        %v925 = vld [vmem:[%s309 + $0x92] sm:$0xff]
        %v926 = vld [vmem:[%s309 + $0x9a] sm:$0xff]
        %v927 = vld [vmem:[%s309 + $0xa2] sm:$0xff]
        %v928 = vld [vmem:[%s309 + $0xaa] sm:$0xff]
        %v929 = vld [vmem:[%s309 + $0xb2] sm:$0xff]
        %v930 = vld [vmem:[%s309 + $0xba] sm:$0xff]
        %v931 = vld [vmem:[%s309 + $0xc2] sm:$0xff]
        %v932 = vld [vmem:[%s309 + $0xca] sm:$0xff]
        %v933 = vld [vmem:[%s309 + $0xd2] sm:$0xff]
        %v934 = vld [vmem:[%s309 + $0xda] sm:$0xff]
        %v935 = vld [vmem:[%s309 + $0xe2] sm:$0xff]
        %v936 = vld [vmem:[%s309 + $0xea] sm:$0xff]
        %v937 = vld [vmem:[%s309 + $0xf2] sm:$0xff]
        %v938 = vld [vmem:[%s309 + $0xfa] sm:$0xff]
        %v939 = vpack.c.bf16 %v908, %v907
        %v940 = vpack.c.bf16 %v910, %v909
        %v941 = vpack.c.bf16 %v912, %v911
        %v942 = vpack.c.bf16 %v914, %v913
        %v943 = vpack.c.bf16 %v916, %v915
        %v944 = vpack.c.bf16 %v918, %v917
        %v945 = vpack.c.bf16 %v920, %v919
        %v946 = vpack.c.bf16 %v922, %v921
        %v947 = vpack.c.bf16 %v924, %v923
        %v948 = vpack.c.bf16 %v926, %v925
        %v949 = vpack.c.bf16 %v928, %v927
        %v950 = vpack.c.bf16 %v930, %v929
        %v951 = vpack.c.bf16 %v932, %v931
        %v952 = vpack.c.bf16 %v934, %v933
        %v953 = vpack.c.bf16 %v936, %v935
        %v954 = vpack.c.bf16 %v938, %v937
        %s955 = scalar_lea.vmem [#allocation5], 128
        %v956 = vld [vmem:[%s955] sm:$0xf]
        %v957 = vld [vmem:[%s955 + $0x4] sm:$0xf]
        %v958 = vld [vmem:[%s955 + $0x8] sm:$0xf]
        %v959 = vld [vmem:[%s955 + $0xc] sm:$0xf]
        %v960 = vld [vmem:[%s955 + $0x10] sm:$0xf]
        %v961 = vld [vmem:[%s955 + $0x14] sm:$0xf]
        %v962 = vld [vmem:[%s955 + $0x18] sm:$0xf]
        %v963 = vld [vmem:[%s955 + $0x1c] sm:$0xf]
        %v964 = vld [vmem:[%s955 + $0x20] sm:$0xf]
        %v965 = vld [vmem:[%s955 + $0x24] sm:$0xf]
        %v966 = vld [vmem:[%s955 + $0x28] sm:$0xf]
        %v967 = vld [vmem:[%s955 + $0x2c] sm:$0xf]
        %v968 = vld [vmem:[%s955 + $0x30] sm:$0xf]
        %v969 = vld [vmem:[%s955 + $0x34] sm:$0xf]
        %v970 = vld [vmem:[%s955 + $0x38] sm:$0xf]
        %v971 = vld [vmem:[%s955 + $0x3c] sm:$0xf]
        %v988 = vunpack.c.l.b16 %v956
        %v989 = vunpack.c.l.b16 %v957
        %v990 = vunpack.c.l.b16 %v958
        %v991 = vunpack.c.l.b16 %v959
        %v992 = vunpack.c.l.b16 %v960
        %v993 = vunpack.c.l.b16 %v961
        %v994 = vunpack.c.l.b16 %v962
        %v995 = vunpack.c.l.b16 %v963
        %v996 = vunpack.c.l.b16 %v964
        %v997 = vunpack.c.l.b16 %v965
        %v998 = vunpack.c.l.b16 %v966
        %v999 = vunpack.c.l.b16 %v967
        %v1000 = vunpack.c.l.b16 %v968
        %v1001 = vunpack.c.l.b16 %v969
        %v1002 = vunpack.c.l.b16 %v970
        %v1003 = vunpack.c.l.b16 %v971
        %v1004 = vpack.c.b16 %v989, %v988
        %v1005 = vpack.c.b16 %v991, %v990
        %v1006 = vpack.c.b16 %v993, %v992
        %v1007 = vpack.c.b16 %v995, %v994
        %v1008 = vpack.c.b16 %v997, %v996
        %v1009 = vpack.c.b16 %v999, %v998
        %v1010 = vpack.c.b16 %v1001, %v1000
        %v1011 = vpack.c.b16 %v1003, %v1002
        %1020 = vmatprep.subr.bf16.mxu0 0
        %1021 = vmatpush1.bf16.msra.mxu0 %v1011
        %1022 = vmatprep.subr.bf16.mxu0 0
        %1023 = vmatpush1.bf16.msra.mxu0 %v1010
        %1024 = vmatprep.subr.bf16.mxu0 0
        %1025 = vmatpush1.bf16.msra.mxu0 %v1009
        %1026 = vmatprep.subr.bf16.mxu0 0
        %1027 = vmatpush1.bf16.msra.mxu0 %v1008
        %1028 = vmatprep.subr.bf16.mxu0 0
        %1029 = vmatpush1.bf16.msra.mxu0 %v1007
        %1030 = vmatprep.subr.bf16.mxu0 0
        %1031 = vmatpush1.bf16.msra.mxu0 %v1006
        %1032 = vmatprep.subr.bf16.mxu0 0
        %1033 = vmatpush1.bf16.msra.mxu0 %v1005
        %1034 = vmatprep.subr.bf16.mxu0 0
        %1035 = vmatpush1.bf16.msra.mxu0 %v1004
        %1036 = vmatprep.subr.bf16.mxu0 0
        %1037 = vmatpush2.bf16.msra.mxu0 0
        %1038 = vmatprep.subr.bf16.mxu0 0
        %1039 = vmatpush2.bf16.msra.mxu0 0
        %1040 = vmatprep.subr.bf16.mxu0 0
        %1041 = vmatpush2.bf16.msra.mxu0 0
        %1042 = vmatprep.subr.bf16.mxu0 0
        %1043 = vmatpush2.bf16.msra.mxu0 0
        %1044 = vmatprep.subr.bf16.mxu0 0
        %1045 = vmatpush2.bf16.msra.mxu0 0
        %1046 = vmatprep.subr.bf16.mxu0 0
        %1047 = vmatpush2.bf16.msra.mxu0 0
        %1048 = vmatprep.subr.bf16.mxu0 0
        %1049 = vmatpush2.bf16.msra.mxu0 0
        %1050 = vmatprep.subr.bf16.mxu0 0
        %1051 = vmatpush2.bf16.msra.mxu0 0
        %1052 = vmatprep.mubr.bf16.mxu0 0
        %1053 = vmatmul.mubr.bf16.gmra.mxu0 %v939
        %v1054 = vpop.f32.mrf.mxu0
        %v1055 = vadd.f32 0.0, %v1054
        %v1056 = vpop.f32.mrf.mxu0
        %v1057 = vpop.f32.mrf.mxu0
        %v1058 = vadd.f32 0.0, %v1057
        %v1059 = vpop.f32.mrf.mxu0
        %1060 = vmatprep.mubr.bf16.mxu0 0
        %1061 = vmatmul.mubr.bf16.gmra.mxu0 %v940
        %v1062 = vpop.f32.mrf.mxu0
        %v1063 = vadd.f32 0.0, %v1062
        %v1064 = vpop.f32.mrf.mxu0
        %v1065 = vpop.f32.mrf.mxu0
        %v1066 = vadd.f32 0.0, %v1065
        %v1067 = vpop.f32.mrf.mxu0
        %1068 = vmatprep.mubr.bf16.mxu0 0
        %1069 = vmatmul.mubr.bf16.gmra.mxu0 %v941
        %v1070 = vpop.f32.mrf.mxu0
        %v1071 = vadd.f32 0.0, %v1070
        %v1072 = vpop.f32.mrf.mxu0
        %v1073 = vpop.f32.mrf.mxu0
        %v1074 = vadd.f32 0.0, %v1073
        %v1075 = vpop.f32.mrf.mxu0
        %1076 = vmatprep.mubr.bf16.mxu0 0
        %1077 = vmatmul.mubr.bf16.gmra.mxu0 %v942
        %v1078 = vpop.f32.mrf.mxu0
        %v1079 = vadd.f32 0.0, %v1078
        %v1080 = vpop.f32.mrf.mxu0
        %v1081 = vpop.f32.mrf.mxu0
        %v1082 = vadd.f32 0.0, %v1081
        %v1083 = vpop.f32.mrf.mxu0
        %1084 = vmatprep.mubr.bf16.mxu0 0
        %1085 = vmatmul.mubr.bf16.gmra.mxu0 %v943
        %v1086 = vpop.f32.mrf.mxu0
        %v1087 = vadd.f32 0.0, %v1086
        %v1088 = vpop.f32.mrf.mxu0
        %v1089 = vpop.f32.mrf.mxu0
        %v1090 = vadd.f32 0.0, %v1089
        %v1091 = vpop.f32.mrf.mxu0
        %1092 = vmatprep.mubr.bf16.mxu0 0
        %1093 = vmatmul.mubr.bf16.gmra.mxu0 %v944
        %v1094 = vpop.f32.mrf.mxu0
        %v1095 = vadd.f32 0.0, %v1094
        %v1096 = vpop.f32.mrf.mxu0
        %v1097 = vpop.f32.mrf.mxu0
        %v1098 = vadd.f32 0.0, %v1097
        %v1099 = vpop.f32.mrf.mxu0
        %1100 = vmatprep.mubr.bf16.mxu0 0
        %1101 = vmatmul.mubr.bf16.gmra.mxu0 %v945
        %v1102 = vpop.f32.mrf.mxu0
        %v1103 = vadd.f32 0.0, %v1102
        %v1104 = vpop.f32.mrf.mxu0
        %v1105 = vpop.f32.mrf.mxu0
        %v1106 = vadd.f32 0.0, %v1105
        %v1107 = vpop.f32.mrf.mxu0
        %1108 = vmatprep.mubr.bf16.mxu0 0
        %1109 = vmatmul.mubr.bf16.gmra.mxu0 %v946
        %v1110 = vpop.f32.mrf.mxu0
        %v1111 = vadd.f32 0.0, %v1110
        %v1112 = vpop.f32.mrf.mxu0
        %v1113 = vpop.f32.mrf.mxu0
        %v1114 = vadd.f32 0.0, %v1113
        %v1115 = vpop.f32.mrf.mxu0
        %1116 = vmatprep.mubr.bf16.mxu0 0
        %1117 = vmatmul.mubr.bf16.gmra.mxu0 %v947
        %v1118 = vpop.f32.mrf.mxu0
        %v1119 = vadd.f32 0.0, %v1118
        %v1120 = vpop.f32.mrf.mxu0
        %v1121 = vpop.f32.mrf.mxu0
        %v1122 = vadd.f32 0.0, %v1121
        %v1123 = vpop.f32.mrf.mxu0
        %1124 = vmatprep.mubr.bf16.mxu0 0
        %1125 = vmatmul.mubr.bf16.gmra.mxu0 %v948
        %v1126 = vpop.f32.mrf.mxu0
        %v1127 = vadd.f32 0.0, %v1126
        %v1128 = vpop.f32.mrf.mxu0
        %v1129 = vpop.f32.mrf.mxu0
        %v1130 = vadd.f32 0.0, %v1129
        %v1131 = vpop.f32.mrf.mxu0
        %1132 = vmatprep.mubr.bf16.mxu0 0
        %1133 = vmatmul.mubr.bf16.gmra.mxu0 %v949
        %v1134 = vpop.f32.mrf.mxu0
        %v1135 = vadd.f32 0.0, %v1134
        %v1136 = vpop.f32.mrf.mxu0
        %v1137 = vpop.f32.mrf.mxu0
        %v1138 = vadd.f32 0.0, %v1137
        %v1139 = vpop.f32.mrf.mxu0
        %1140 = vmatprep.mubr.bf16.mxu0 0
        %1141 = vmatmul.mubr.bf16.gmra.mxu0 %v950
        %v1142 = vpop.f32.mrf.mxu0
        %v1143 = vadd.f32 0.0, %v1142
        %v1144 = vpop.f32.mrf.mxu0
        %v1145 = vpop.f32.mrf.mxu0
        %v1146 = vadd.f32 0.0, %v1145
        %v1147 = vpop.f32.mrf.mxu0
        %1148 = vmatprep.mubr.bf16.mxu0 0
        %1149 = vmatmul.mubr.bf16.gmra.mxu0 %v951
        %v1150 = vpop.f32.mrf.mxu0
        %v1151 = vadd.f32 0.0, %v1150
        %v1152 = vpop.f32.mrf.mxu0
        %v1153 = vpop.f32.mrf.mxu0
        %v1154 = vadd.f32 0.0, %v1153
        %v1155 = vpop.f32.mrf.mxu0
        %1156 = vmatprep.mubr.bf16.mxu0 0
        %1157 = vmatmul.mubr.bf16.gmra.mxu0 %v952
        %v1158 = vpop.f32.mrf.mxu0
        %v1159 = vadd.f32 0.0, %v1158
        %v1160 = vpop.f32.mrf.mxu0
        %v1161 = vpop.f32.mrf.mxu0
        %v1162 = vadd.f32 0.0, %v1161
        %v1163 = vpop.f32.mrf.mxu0
        %1164 = vmatprep.mubr.bf16.mxu0 0
        %1165 = vmatmul.mubr.bf16.gmra.mxu0 %v953
        %v1166 = vpop.f32.mrf.mxu0
        %v1167 = vadd.f32 0.0, %v1166
        %v1168 = vpop.f32.mrf.mxu0
        %v1169 = vpop.f32.mrf.mxu0
        %v1170 = vadd.f32 0.0, %v1169
        %v1171 = vpop.f32.mrf.mxu0
        %1172 = vmatprep.mubr.bf16.mxu0 0
        %1173 = vmatmul.mubr.bf16.gmra.mxu0 %v954
        %v1174 = vpop.f32.mrf.mxu0
        %v1175 = vadd.f32 0.0, %v1174
        %v1176 = vpop.f32.mrf.mxu0
        %v1177 = vpop.f32.mrf.mxu0
        %v1178 = vadd.f32 0.0, %v1177
        %v1179 = vpop.f32.mrf.mxu0
        %1180 = vdwg.mxu0
        %v1181 = vadd.f32 %v781, %v1055
        %v1182 = vadd.f32 %v784, %v1058
        %v1183 = vadd.f32 %v789, %v1063
        %v1184 = vadd.f32 %v792, %v1066
        %v1185 = vadd.f32 %v797, %v1071
        %v1186 = vadd.f32 %v800, %v1074
        %v1187 = vadd.f32 %v805, %v1079
        %v1188 = vadd.f32 %v808, %v1082
        %v1189 = vadd.f32 %v813, %v1087
        %v1190 = vadd.f32 %v816, %v1090
        %v1191 = vadd.f32 %v821, %v1095
        %v1192 = vadd.f32 %v824, %v1098
        %v1193 = vadd.f32 %v829, %v1103
        %v1194 = vadd.f32 %v832, %v1106
        %v1195 = vadd.f32 %v837, %v1111
        %v1196 = vadd.f32 %v840, %v1114
        %v1197 = vadd.f32 %v845, %v1119
        %v1198 = vadd.f32 %v848, %v1122
        %v1199 = vadd.f32 %v853, %v1127
        %v1200 = vadd.f32 %v856, %v1130
        %v1201 = vadd.f32 %v861, %v1135
        %v1202 = vadd.f32 %v864, %v1138
        %v1203 = vadd.f32 %v869, %v1143
        %v1204 = vadd.f32 %v872, %v1146
        %v1205 = vadd.f32 %v877, %v1151
        %v1206 = vadd.f32 %v880, %v1154
        %v1207 = vadd.f32 %v885, %v1159
        %v1208 = vadd.f32 %v888, %v1162
        %v1209 = vadd.f32 %v893, %v1167
        %v1210 = vadd.f32 %v896, %v1170
        %v1211 = vadd.f32 %v901, %v1175
        %v1212 = vadd.f32 %v904, %v1178
        %v1213 = vld [vmem:[%s309 + $0x14] sm:$0xff]
        %v1214 = vld [vmem:[%s309 + $0x1c] sm:$0xff]
        %v1215 = vld [vmem:[%s309 + $0x24] sm:$0xff]
        %v1216 = vld [vmem:[%s309 + $0x2c] sm:$0xff]
        %v1217 = vld [vmem:[%s309 + $0x34] sm:$0xff]
        %v1218 = vld [vmem:[%s309 + $0x3c] sm:$0xff]
        %v1219 = vld [vmem:[%s309 + $0x44] sm:$0xff]
        %v1220 = vld [vmem:[%s309 + $0x4c] sm:$0xff]
        %v1221 = vld [vmem:[%s309 + $0x54] sm:$0xff]
        %v1222 = vld [vmem:[%s309 + $0x5c] sm:$0xff]
        %v1223 = vld [vmem:[%s309 + $0x64] sm:$0xff]
        %v1224 = vld [vmem:[%s309 + $0x6c] sm:$0xff]
        %v1225 = vld [vmem:[%s309 + $0x74] sm:$0xff]
        %v1226 = vld [vmem:[%s309 + $0x7c] sm:$0xff]
        %v1227 = vld [vmem:[%s309 + $0x84] sm:$0xff]
        %v1228 = vld [vmem:[%s309 + $0x8c] sm:$0xff]
        %v1229 = vld [vmem:[%s309 + $0x94] sm:$0xff]
        %v1230 = vld [vmem:[%s309 + $0x9c] sm:$0xff]
        %v1231 = vld [vmem:[%s309 + $0xa4] sm:$0xff]
        %v1232 = vld [vmem:[%s309 + $0xac] sm:$0xff]
        %v1233 = vld [vmem:[%s309 + $0xb4] sm:$0xff]
        %v1234 = vld [vmem:[%s309 + $0xbc] sm:$0xff]
        %v1235 = vld [vmem:[%s309 + $0xc4] sm:$0xff]
        %v1236 = vld [vmem:[%s309 + $0xcc] sm:$0xff]
        %v1237 = vld [vmem:[%s309 + $0xd4] sm:$0xff]
        %v1238 = vld [vmem:[%s309 + $0xdc] sm:$0xff]
        %v1239 = vld [vmem:[%s309 + $0xe4] sm:$0xff]
        %v1240 = vld [vmem:[%s309 + $0xec] sm:$0xff]
        %v1241 = vld [vmem:[%s309 + $0xf4] sm:$0xff]
        %v1242 = vld [vmem:[%s309 + $0xfc] sm:$0xff]
        %v1243 = vld [vmem:[%s309 + $0x104] sm:$0xff]
        %v1244 = vld [vmem:[%s309 + $0x10c] sm:$0xff]
        %v1245 = vpack.c.bf16 %v1214, %v1213
        %v1246 = vpack.c.bf16 %v1216, %v1215
        %v1247 = vpack.c.bf16 %v1218, %v1217
        %v1248 = vpack.c.bf16 %v1220, %v1219
        %v1249 = vpack.c.bf16 %v1222, %v1221
        %v1250 = vpack.c.bf16 %v1224, %v1223
        %v1251 = vpack.c.bf16 %v1226, %v1225
        %v1252 = vpack.c.bf16 %v1228, %v1227
        %v1253 = vpack.c.bf16 %v1230, %v1229
        %v1254 = vpack.c.bf16 %v1232, %v1231
        %v1255 = vpack.c.bf16 %v1234, %v1233
        %v1256 = vpack.c.bf16 %v1236, %v1235
        %v1257 = vpack.c.bf16 %v1238, %v1237
        %v1258 = vpack.c.bf16 %v1240, %v1239
        %v1259 = vpack.c.bf16 %v1242, %v1241
        %v1260 = vpack.c.bf16 %v1244, %v1243
        %s1261 = scalar_lea.vmem [#allocation5], 192
        %v1262 = vld [vmem:[%s1261] sm:$0xf]
        %v1263 = vld [vmem:[%s1261 + $0x4] sm:$0xf]
        %v1264 = vld [vmem:[%s1261 + $0x8] sm:$0xf]
        %v1265 = vld [vmem:[%s1261 + $0xc] sm:$0xf]
        %v1266 = vld [vmem:[%s1261 + $0x10] sm:$0xf]
        %v1267 = vld [vmem:[%s1261 + $0x14] sm:$0xf]
        %v1268 = vld [vmem:[%s1261 + $0x18] sm:$0xf]
        %v1269 = vld [vmem:[%s1261 + $0x1c] sm:$0xf]
        %v1270 = vld [vmem:[%s1261 + $0x20] sm:$0xf]
        %v1271 = vld [vmem:[%s1261 + $0x24] sm:$0xf]
        %v1272 = vld [vmem:[%s1261 + $0x28] sm:$0xf]
        %v1273 = vld [vmem:[%s1261 + $0x2c] sm:$0xf]
        %v1274 = vld [vmem:[%s1261 + $0x30] sm:$0xf]
        %v1275 = vld [vmem:[%s1261 + $0x34] sm:$0xf]
        %v1276 = vld [vmem:[%s1261 + $0x38] sm:$0xf]
        %v1277 = vld [vmem:[%s1261 + $0x3c] sm:$0xf]
        %v1294 = vunpack.c.l.b16 %v1262
        %v1295 = vunpack.c.l.b16 %v1263
        %v1296 = vunpack.c.l.b16 %v1264
        %v1297 = vunpack.c.l.b16 %v1265
        %v1298 = vunpack.c.l.b16 %v1266
        %v1299 = vunpack.c.l.b16 %v1267
        %v1300 = vunpack.c.l.b16 %v1268
        %v1301 = vunpack.c.l.b16 %v1269
        %v1302 = vunpack.c.l.b16 %v1270
        %v1303 = vunpack.c.l.b16 %v1271
        %v1304 = vunpack.c.l.b16 %v1272
        %v1305 = vunpack.c.l.b16 %v1273
        %v1306 = vunpack.c.l.b16 %v1274
        %v1307 = vunpack.c.l.b16 %v1275
        %v1308 = vunpack.c.l.b16 %v1276
        %v1309 = vunpack.c.l.b16 %v1277
        %v1310 = vpack.c.b16 %v1295, %v1294
        %v1311 = vpack.c.b16 %v1297, %v1296
        %v1312 = vpack.c.b16 %v1299, %v1298
        %v1313 = vpack.c.b16 %v1301, %v1300
        %v1314 = vpack.c.b16 %v1303, %v1302
        %v1315 = vpack.c.b16 %v1305, %v1304
        %v1316 = vpack.c.b16 %v1307, %v1306
        %v1317 = vpack.c.b16 %v1309, %v1308
        %1326 = vmatprep.subr.bf16.mxu0 0
        %1327 = vmatpush1.bf16.msra.mxu0 %v1317
        %1328 = vmatprep.subr.bf16.mxu0 0
        %1329 = vmatpush1.bf16.msra.mxu0 %v1316
        %1330 = vmatprep.subr.bf16.mxu0 0
        %1331 = vmatpush1.bf16.msra.mxu0 %v1315
        %1332 = vmatprep.subr.bf16.mxu0 0
        %1333 = vmatpush1.bf16.msra.mxu0 %v1314
        %1334 = vmatprep.subr.bf16.mxu0 0
        %1335 = vmatpush1.bf16.msra.mxu0 %v1313
        %1336 = vmatprep.subr.bf16.mxu0 0
        %1337 = vmatpush1.bf16.msra.mxu0 %v1312
        %1338 = vmatprep.subr.bf16.mxu0 0
        %1339 = vmatpush1.bf16.msra.mxu0 %v1311
        %1340 = vmatprep.subr.bf16.mxu0 0
        %1341 = vmatpush1.bf16.msra.mxu0 %v1310
        %1342 = vmatprep.subr.bf16.mxu0 0
        %1343 = vmatpush2.bf16.msra.mxu0 0
        %1344 = vmatprep.subr.bf16.mxu0 0
        %1345 = vmatpush2.bf16.msra.mxu0 0
        %1346 = vmatprep.subr.bf16.mxu0 0
        %1347 = vmatpush2.bf16.msra.mxu0 0
        %1348 = vmatprep.subr.bf16.mxu0 0
        %1349 = vmatpush2.bf16.msra.mxu0 0
        %1350 = vmatprep.subr.bf16.mxu0 0
        %1351 = vmatpush2.bf16.msra.mxu0 0
        %1352 = vmatprep.subr.bf16.mxu0 0
        %1353 = vmatpush2.bf16.msra.mxu0 0
        %1354 = vmatprep.subr.bf16.mxu0 0
        %1355 = vmatpush2.bf16.msra.mxu0 0
        %1356 = vmatprep.subr.bf16.mxu0 0
        %1357 = vmatpush2.bf16.msra.mxu0 0
        %1358 = vmatprep.mubr.bf16.mxu0 0
        %1359 = vmatmul.mubr.bf16.gmra.mxu0 %v1245
        %v1360 = vpop.f32.mrf.mxu0
        %v1361 = vadd.f32 0.0, %v1360
        %v1362 = vpop.f32.mrf.mxu0
        %v1363 = vpop.f32.mrf.mxu0
        %v1364 = vadd.f32 0.0, %v1363
        %v1365 = vpop.f32.mrf.mxu0
        %1366 = vmatprep.mubr.bf16.mxu0 0
        %1367 = vmatmul.mubr.bf16.gmra.mxu0 %v1246
        %v1368 = vpop.f32.mrf.mxu0
        %v1369 = vadd.f32 0.0, %v1368
        %v1370 = vpop.f32.mrf.mxu0
        %v1371 = vpop.f32.mrf.mxu0
        %v1372 = vadd.f32 0.0, %v1371
        %v1373 = vpop.f32.mrf.mxu0
        %1374 = vmatprep.mubr.bf16.mxu0 0
        %1375 = vmatmul.mubr.bf16.gmra.mxu0 %v1247
        %v1376 = vpop.f32.mrf.mxu0
        %v1377 = vadd.f32 0.0, %v1376
        %v1378 = vpop.f32.mrf.mxu0
        %v1379 = vpop.f32.mrf.mxu0
        %v1380 = vadd.f32 0.0, %v1379
        %v1381 = vpop.f32.mrf.mxu0
        %1382 = vmatprep.mubr.bf16.mxu0 0
        %1383 = vmatmul.mubr.bf16.gmra.mxu0 %v1248
        %v1384 = vpop.f32.mrf.mxu0
        %v1385 = vadd.f32 0.0, %v1384
        %v1386 = vpop.f32.mrf.mxu0
        %v1387 = vpop.f32.mrf.mxu0
        %v1388 = vadd.f32 0.0, %v1387
        %v1389 = vpop.f32.mrf.mxu0
        %1390 = vmatprep.mubr.bf16.mxu0 0
        %1391 = vmatmul.mubr.bf16.gmra.mxu0 %v1249
        %v1392 = vpop.f32.mrf.mxu0
        %v1393 = vadd.f32 0.0, %v1392
        %v1394 = vpop.f32.mrf.mxu0
        %v1395 = vpop.f32.mrf.mxu0
        %v1396 = vadd.f32 0.0, %v1395
        %v1397 = vpop.f32.mrf.mxu0
        %1398 = vmatprep.mubr.bf16.mxu0 0
        %1399 = vmatmul.mubr.bf16.gmra.mxu0 %v1250
        %v1400 = vpop.f32.mrf.mxu0
        %v1401 = vadd.f32 0.0, %v1400
        %v1402 = vpop.f32.mrf.mxu0
        %v1403 = vpop.f32.mrf.mxu0
        %v1404 = vadd.f32 0.0, %v1403
        %v1405 = vpop.f32.mrf.mxu0
        %1406 = vmatprep.mubr.bf16.mxu0 0
        %1407 = vmatmul.mubr.bf16.gmra.mxu0 %v1251
        %v1408 = vpop.f32.mrf.mxu0
        %v1409 = vadd.f32 0.0, %v1408
        %v1410 = vpop.f32.mrf.mxu0
        %v1411 = vpop.f32.mrf.mxu0
        %v1412 = vadd.f32 0.0, %v1411
        %v1413 = vpop.f32.mrf.mxu0
        %1414 = vmatprep.mubr.bf16.mxu0 0
        %1415 = vmatmul.mubr.bf16.gmra.mxu0 %v1252
        %v1416 = vpop.f32.mrf.mxu0
        %v1417 = vadd.f32 0.0, %v1416
        %v1418 = vpop.f32.mrf.mxu0
        %v1419 = vpop.f32.mrf.mxu0
        %v1420 = vadd.f32 0.0, %v1419
        %v1421 = vpop.f32.mrf.mxu0
        %1422 = vmatprep.mubr.bf16.mxu0 0
        %1423 = vmatmul.mubr.bf16.gmra.mxu0 %v1253
        %v1424 = vpop.f32.mrf.mxu0
        %v1425 = vadd.f32 0.0, %v1424
        %v1426 = vpop.f32.mrf.mxu0
        %v1427 = vpop.f32.mrf.mxu0
        %v1428 = vadd.f32 0.0, %v1427
        %v1429 = vpop.f32.mrf.mxu0
        %1430 = vmatprep.mubr.bf16.mxu0 0
        %1431 = vmatmul.mubr.bf16.gmra.mxu0 %v1254
        %v1432 = vpop.f32.mrf.mxu0
        %v1433 = vadd.f32 0.0, %v1432
        %v1434 = vpop.f32.mrf.mxu0
        %v1435 = vpop.f32.mrf.mxu0
        %v1436 = vadd.f32 0.0, %v1435
        %v1437 = vpop.f32.mrf.mxu0
        %1438 = vmatprep.mubr.bf16.mxu0 0
        %1439 = vmatmul.mubr.bf16.gmra.mxu0 %v1255
        %v1440 = vpop.f32.mrf.mxu0
        %v1441 = vadd.f32 0.0, %v1440
        %v1442 = vpop.f32.mrf.mxu0
        %v1443 = vpop.f32.mrf.mxu0
        %v1444 = vadd.f32 0.0, %v1443
        %v1445 = vpop.f32.mrf.mxu0
        %1446 = vmatprep.mubr.bf16.mxu0 0
        %1447 = vmatmul.mubr.bf16.gmra.mxu0 %v1256
        %v1448 = vpop.f32.mrf.mxu0
        %v1449 = vadd.f32 0.0, %v1448
        %v1450 = vpop.f32.mrf.mxu0
        %v1451 = vpop.f32.mrf.mxu0
        %v1452 = vadd.f32 0.0, %v1451
        %v1453 = vpop.f32.mrf.mxu0
        %1454 = vmatprep.mubr.bf16.mxu0 0
        %1455 = vmatmul.mubr.bf16.gmra.mxu0 %v1257
        %v1456 = vpop.f32.mrf.mxu0
        %v1457 = vadd.f32 0.0, %v1456
        %v1458 = vpop.f32.mrf.mxu0
        %v1459 = vpop.f32.mrf.mxu0
        %v1460 = vadd.f32 0.0, %v1459
        %v1461 = vpop.f32.mrf.mxu0
        %1462 = vmatprep.mubr.bf16.mxu0 0
        %1463 = vmatmul.mubr.bf16.gmra.mxu0 %v1258
        %v1464 = vpop.f32.mrf.mxu0
        %v1465 = vadd.f32 0.0, %v1464
        %v1466 = vpop.f32.mrf.mxu0
        %v1467 = vpop.f32.mrf.mxu0
        %v1468 = vadd.f32 0.0, %v1467
        %v1469 = vpop.f32.mrf.mxu0
        %1470 = vmatprep.mubr.bf16.mxu0 0
        %1471 = vmatmul.mubr.bf16.gmra.mxu0 %v1259
        %v1472 = vpop.f32.mrf.mxu0
        %v1473 = vadd.f32 0.0, %v1472
        %v1474 = vpop.f32.mrf.mxu0
        %v1475 = vpop.f32.mrf.mxu0
        %v1476 = vadd.f32 0.0, %v1475
        %v1477 = vpop.f32.mrf.mxu0
        %1478 = vmatprep.mubr.bf16.mxu0 0
        %1479 = vmatmul.mubr.bf16.gmra.mxu0 %v1260
        %v1480 = vpop.f32.mrf.mxu0
        %v1481 = vadd.f32 0.0, %v1480
        %v1482 = vpop.f32.mrf.mxu0
        %v1483 = vpop.f32.mrf.mxu0
        %v1484 = vadd.f32 0.0, %v1483
        %v1485 = vpop.f32.mrf.mxu0
        %1486 = vdwg.mxu0
        %v1487 = vadd.f32 %v1181, %v1361
        %v1488 = vadd.f32 %v1182, %v1364
        %v1489 = vadd.f32 %v1183, %v1369
        %v1490 = vadd.f32 %v1184, %v1372
        %v1491 = vadd.f32 %v1185, %v1377
        %v1492 = vadd.f32 %v1186, %v1380
        %v1493 = vadd.f32 %v1187, %v1385
        %v1494 = vadd.f32 %v1188, %v1388
        %v1495 = vadd.f32 %v1189, %v1393
        %v1496 = vadd.f32 %v1190, %v1396
        %v1497 = vadd.f32 %v1191, %v1401
        %v1498 = vadd.f32 %v1192, %v1404
        %v1499 = vadd.f32 %v1193, %v1409
        %v1500 = vadd.f32 %v1194, %v1412
        %v1501 = vadd.f32 %v1195, %v1417
        %v1502 = vadd.f32 %v1196, %v1420
        %v1503 = vadd.f32 %v1197, %v1425
        %v1504 = vadd.f32 %v1198, %v1428
        %v1505 = vadd.f32 %v1199, %v1433
        %v1506 = vadd.f32 %v1200, %v1436
        %v1507 = vadd.f32 %v1201, %v1441
        %v1508 = vadd.f32 %v1202, %v1444
        %v1509 = vadd.f32 %v1203, %v1449
        %v1510 = vadd.f32 %v1204, %v1452
        %v1511 = vadd.f32 %v1205, %v1457
        %v1512 = vadd.f32 %v1206, %v1460
        %v1513 = vadd.f32 %v1207, %v1465
        %v1514 = vadd.f32 %v1208, %v1468
        %v1515 = vadd.f32 %v1209, %v1473
        %v1516 = vadd.f32 %v1210, %v1476
        %v1517 = vadd.f32 %v1211, %v1481
        %v1518 = vadd.f32 %v1212, %v1484
        %v1519 = vld [vmem:[%s309 + $0x15] sm:$0xff]
        %v1520 = vld [vmem:[%s309 + $0x1d] sm:$0xff]
        %v1521 = vld [vmem:[%s309 + $0x25] sm:$0xff]
        %v1522 = vld [vmem:[%s309 + $0x2d] sm:$0xff]
        %v1523 = vld [vmem:[%s309 + $0x35] sm:$0xff]
        %v1524 = vld [vmem:[%s309 + $0x3d] sm:$0xff]
        %v1525 = vld [vmem:[%s309 + $0x45] sm:$0xff]
        %v1526 = vld [vmem:[%s309 + $0x4d] sm:$0xff]
        %v1527 = vld [vmem:[%s309 + $0x55] sm:$0xff]
        %v1528 = vld [vmem:[%s309 + $0x5d] sm:$0xff]
        %v1529 = vld [vmem:[%s309 + $0x65] sm:$0xff]
        %v1530 = vld [vmem:[%s309 + $0x6d] sm:$0xff]
        %v1531 = vld [vmem:[%s309 + $0x75] sm:$0xff]
        %v1532 = vld [vmem:[%s309 + $0x7d] sm:$0xff]
        %v1533 = vld [vmem:[%s309 + $0x85] sm:$0xff]
        %v1534 = vld [vmem:[%s309 + $0x8d] sm:$0xff]
        %v1535 = vld [vmem:[%s309 + $0x95] sm:$0xff]
        %v1536 = vld [vmem:[%s309 + $0x9d] sm:$0xff]
        %v1537 = vld [vmem:[%s309 + $0xa5] sm:$0xff]
        %v1538 = vld [vmem:[%s309 + $0xad] sm:$0xff]
        %v1539 = vld [vmem:[%s309 + $0xb5] sm:$0xff]
        %v1540 = vld [vmem:[%s309 + $0xbd] sm:$0xff]
        %v1541 = vld [vmem:[%s309 + $0xc5] sm:$0xff]
        %v1542 = vld [vmem:[%s309 + $0xcd] sm:$0xff]
        %v1543 = vld [vmem:[%s309 + $0xd5] sm:$0xff]
        %v1544 = vld [vmem:[%s309 + $0xdd] sm:$0xff]
        %v1545 = vld [vmem:[%s309 + $0xe5] sm:$0xff]
        %v1546 = vld [vmem:[%s309 + $0xed] sm:$0xff]
        %v1547 = vld [vmem:[%s309 + $0xf5] sm:$0xff]
        %v1548 = vld [vmem:[%s309 + $0xfd] sm:$0xff]
        %v1549 = vld [vmem:[%s309 + $0x105] sm:$0xff]
        %v1550 = vld [vmem:[%s309 + $0x10d] sm:$0xff]
        %v1551 = vpack.c.bf16 %v1520, %v1519
        %v1552 = vpack.c.bf16 %v1522, %v1521
        %v1553 = vpack.c.bf16 %v1524, %v1523
        %v1554 = vpack.c.bf16 %v1526, %v1525
        %v1555 = vpack.c.bf16 %v1528, %v1527
        %v1556 = vpack.c.bf16 %v1530, %v1529
        %v1557 = vpack.c.bf16 %v1532, %v1531
        %v1558 = vpack.c.bf16 %v1534, %v1533
        %v1559 = vpack.c.bf16 %v1536, %v1535
        %v1560 = vpack.c.bf16 %v1538, %v1537
        %v1561 = vpack.c.bf16 %v1540, %v1539
        %v1562 = vpack.c.bf16 %v1542, %v1541
        %v1563 = vpack.c.bf16 %v1544, %v1543
        %v1564 = vpack.c.bf16 %v1546, %v1545
        %v1565 = vpack.c.bf16 %v1548, %v1547
        %v1566 = vpack.c.bf16 %v1550, %v1549
        %s1567 = scalar_lea.vmem [#allocation5], 256
        %v1568 = vld [vmem:[%s1567] sm:$0xf]
        %v1569 = vld [vmem:[%s1567 + $0x4] sm:$0xf]
        %v1570 = vld [vmem:[%s1567 + $0x8] sm:$0xf]
        %v1571 = vld [vmem:[%s1567 + $0xc] sm:$0xf]
        %v1572 = vld [vmem:[%s1567 + $0x10] sm:$0xf]
        %v1573 = vld [vmem:[%s1567 + $0x14] sm:$0xf]
        %v1574 = vld [vmem:[%s1567 + $0x18] sm:$0xf]
        %v1575 = vld [vmem:[%s1567 + $0x1c] sm:$0xf]
        %v1576 = vld [vmem:[%s1567 + $0x20] sm:$0xf]
        %v1577 = vld [vmem:[%s1567 + $0x24] sm:$0xf]
        %v1578 = vld [vmem:[%s1567 + $0x28] sm:$0xf]
        %v1579 = vld [vmem:[%s1567 + $0x2c] sm:$0xf]
        %v1580 = vld [vmem:[%s1567 + $0x30] sm:$0xf]
        %v1581 = vld [vmem:[%s1567 + $0x34] sm:$0xf]
        %v1582 = vld [vmem:[%s1567 + $0x38] sm:$0xf]
        %v1583 = vld [vmem:[%s1567 + $0x3c] sm:$0xf]
        %v1600 = vunpack.c.l.b16 %v1568
        %v1601 = vunpack.c.l.b16 %v1569
        %v1602 = vunpack.c.l.b16 %v1570
        %v1603 = vunpack.c.l.b16 %v1571
        %v1604 = vunpack.c.l.b16 %v1572
        %v1605 = vunpack.c.l.b16 %v1573
        %v1606 = vunpack.c.l.b16 %v1574
        %v1607 = vunpack.c.l.b16 %v1575
        %v1608 = vunpack.c.l.b16 %v1576
        %v1609 = vunpack.c.l.b16 %v1577
        %v1610 = vunpack.c.l.b16 %v1578
        %v1611 = vunpack.c.l.b16 %v1579
        %v1612 = vunpack.c.l.b16 %v1580
        %v1613 = vunpack.c.l.b16 %v1581
        %v1614 = vunpack.c.l.b16 %v1582
        %v1615 = vunpack.c.l.b16 %v1583
        %v1616 = vpack.c.b16 %v1601, %v1600
        %v1617 = vpack.c.b16 %v1603, %v1602
        %v1618 = vpack.c.b16 %v1605, %v1604
        %v1619 = vpack.c.b16 %v1607, %v1606
        %v1620 = vpack.c.b16 %v1609, %v1608
        %v1621 = vpack.c.b16 %v1611, %v1610
        %v1622 = vpack.c.b16 %v1613, %v1612
        %v1623 = vpack.c.b16 %v1615, %v1614
        %1632 = vmatprep.subr.bf16.mxu0 0
        %1633 = vmatpush1.bf16.msra.mxu0 %v1623
        %1634 = vmatprep.subr.bf16.mxu0 0
        %1635 = vmatpush1.bf16.msra.mxu0 %v1622
        %1636 = vmatprep.subr.bf16.mxu0 0
        %1637 = vmatpush1.bf16.msra.mxu0 %v1621
        %1638 = vmatprep.subr.bf16.mxu0 0
        %1639 = vmatpush1.bf16.msra.mxu0 %v1620
        %1640 = vmatprep.subr.bf16.mxu0 0
        %1641 = vmatpush1.bf16.msra.mxu0 %v1619
        %1642 = vmatprep.subr.bf16.mxu0 0
        %1643 = vmatpush1.bf16.msra.mxu0 %v1618
        %1644 = vmatprep.subr.bf16.mxu0 0
        %1645 = vmatpush1.bf16.msra.mxu0 %v1617
        %1646 = vmatprep.subr.bf16.mxu0 0
        %1647 = vmatpush1.bf16.msra.mxu0 %v1616
        %1648 = vmatprep.subr.bf16.mxu0 0
        %1649 = vmatpush2.bf16.msra.mxu0 0
        %1650 = vmatprep.subr.bf16.mxu0 0
        %1651 = vmatpush2.bf16.msra.mxu0 0
        %1652 = vmatprep.subr.bf16.mxu0 0
        %1653 = vmatpush2.bf16.msra.mxu0 0
        %1654 = vmatprep.subr.bf16.mxu0 0
        %1655 = vmatpush2.bf16.msra.mxu0 0
        %1656 = vmatprep.subr.bf16.mxu0 0
        %1657 = vmatpush2.bf16.msra.mxu0 0
        %1658 = vmatprep.subr.bf16.mxu0 0
        %1659 = vmatpush2.bf16.msra.mxu0 0
        %1660 = vmatprep.subr.bf16.mxu0 0
        %1661 = vmatpush2.bf16.msra.mxu0 0
        %1662 = vmatprep.subr.bf16.mxu0 0
        %1663 = vmatpush2.bf16.msra.mxu0 0
        %1664 = vmatprep.mubr.bf16.mxu0 0
        %1665 = vmatmul.mubr.bf16.gmra.mxu0 %v1551
        %v1666 = vpop.f32.mrf.mxu0
        %v1667 = vadd.f32 0.0, %v1666
        %v1668 = vpop.f32.mrf.mxu0
        %v1669 = vpop.f32.mrf.mxu0
        %v1670 = vadd.f32 0.0, %v1669
        %v1671 = vpop.f32.mrf.mxu0
        %1672 = vmatprep.mubr.bf16.mxu0 0
        %1673 = vmatmul.mubr.bf16.gmra.mxu0 %v1552
        %v1674 = vpop.f32.mrf.mxu0
        %v1675 = vadd.f32 0.0, %v1674
        %v1676 = vpop.f32.mrf.mxu0
        %v1677 = vpop.f32.mrf.mxu0
        %v1678 = vadd.f32 0.0, %v1677
        %v1679 = vpop.f32.mrf.mxu0
        %1680 = vmatprep.mubr.bf16.mxu0 0
        %1681 = vmatmul.mubr.bf16.gmra.mxu0 %v1553
        %v1682 = vpop.f32.mrf.mxu0
        %v1683 = vadd.f32 0.0, %v1682
        %v1684 = vpop.f32.mrf.mxu0
        %v1685 = vpop.f32.mrf.mxu0
        %v1686 = vadd.f32 0.0, %v1685
        %v1687 = vpop.f32.mrf.mxu0
        %1688 = vmatprep.mubr.bf16.mxu0 0
        %1689 = vmatmul.mubr.bf16.gmra.mxu0 %v1554
        %v1690 = vpop.f32.mrf.mxu0
        %v1691 = vadd.f32 0.0, %v1690
        %v1692 = vpop.f32.mrf.mxu0
        %v1693 = vpop.f32.mrf.mxu0
        %v1694 = vadd.f32 0.0, %v1693
        %v1695 = vpop.f32.mrf.mxu0
        %1696 = vmatprep.mubr.bf16.mxu0 0
        %1697 = vmatmul.mubr.bf16.gmra.mxu0 %v1555
        %v1698 = vpop.f32.mrf.mxu0
        %v1699 = vadd.f32 0.0, %v1698
        %v1700 = vpop.f32.mrf.mxu0
        %v1701 = vpop.f32.mrf.mxu0
        %v1702 = vadd.f32 0.0, %v1701
        %v1703 = vpop.f32.mrf.mxu0
        %1704 = vmatprep.mubr.bf16.mxu0 0
        %1705 = vmatmul.mubr.bf16.gmra.mxu0 %v1556
        %v1706 = vpop.f32.mrf.mxu0
        %v1707 = vadd.f32 0.0, %v1706
        %v1708 = vpop.f32.mrf.mxu0
        %v1709 = vpop.f32.mrf.mxu0
        %v1710 = vadd.f32 0.0, %v1709
        %v1711 = vpop.f32.mrf.mxu0
        %1712 = vmatprep.mubr.bf16.mxu0 0
        %1713 = vmatmul.mubr.bf16.gmra.mxu0 %v1557
        %v1714 = vpop.f32.mrf.mxu0
        %v1715 = vadd.f32 0.0, %v1714
        %v1716 = vpop.f32.mrf.mxu0
        %v1717 = vpop.f32.mrf.mxu0
        %v1718 = vadd.f32 0.0, %v1717
        %v1719 = vpop.f32.mrf.mxu0
        %1720 = vmatprep.mubr.bf16.mxu0 0
        %1721 = vmatmul.mubr.bf16.gmra.mxu0 %v1558
        %v1722 = vpop.f32.mrf.mxu0
        %v1723 = vadd.f32 0.0, %v1722
        %v1724 = vpop.f32.mrf.mxu0
        %v1725 = vpop.f32.mrf.mxu0
        %v1726 = vadd.f32 0.0, %v1725
        %v1727 = vpop.f32.mrf.mxu0
        %1728 = vmatprep.mubr.bf16.mxu0 0
        %1729 = vmatmul.mubr.bf16.gmra.mxu0 %v1559
        %v1730 = vpop.f32.mrf.mxu0
        %v1731 = vadd.f32 0.0, %v1730
        %v1732 = vpop.f32.mrf.mxu0
        %v1733 = vpop.f32.mrf.mxu0
        %v1734 = vadd.f32 0.0, %v1733
        %v1735 = vpop.f32.mrf.mxu0
        %1736 = vmatprep.mubr.bf16.mxu0 0
        %1737 = vmatmul.mubr.bf16.gmra.mxu0 %v1560
        %v1738 = vpop.f32.mrf.mxu0
        %v1739 = vadd.f32 0.0, %v1738
        %v1740 = vpop.f32.mrf.mxu0
        %v1741 = vpop.f32.mrf.mxu0
        %v1742 = vadd.f32 0.0, %v1741
        %v1743 = vpop.f32.mrf.mxu0
        %1744 = vmatprep.mubr.bf16.mxu0 0
        %1745 = vmatmul.mubr.bf16.gmra.mxu0 %v1561
        %v1746 = vpop.f32.mrf.mxu0
        %v1747 = vadd.f32 0.0, %v1746
        %v1748 = vpop.f32.mrf.mxu0
        %v1749 = vpop.f32.mrf.mxu0
        %v1750 = vadd.f32 0.0, %v1749
        %v1751 = vpop.f32.mrf.mxu0
        %1752 = vmatprep.mubr.bf16.mxu0 0
        %1753 = vmatmul.mubr.bf16.gmra.mxu0 %v1562
        %v1754 = vpop.f32.mrf.mxu0
        %v1755 = vadd.f32 0.0, %v1754
        %v1756 = vpop.f32.mrf.mxu0
        %v1757 = vpop.f32.mrf.mxu0
        %v1758 = vadd.f32 0.0, %v1757
        %v1759 = vpop.f32.mrf.mxu0
        %1760 = vmatprep.mubr.bf16.mxu0 0
        %1761 = vmatmul.mubr.bf16.gmra.mxu0 %v1563
        %v1762 = vpop.f32.mrf.mxu0
        %v1763 = vadd.f32 0.0, %v1762
        %v1764 = vpop.f32.mrf.mxu0
        %v1765 = vpop.f32.mrf.mxu0
        %v1766 = vadd.f32 0.0, %v1765
        %v1767 = vpop.f32.mrf.mxu0
        %1768 = vmatprep.mubr.bf16.mxu0 0
        %1769 = vmatmul.mubr.bf16.gmra.mxu0 %v1564
        %v1770 = vpop.f32.mrf.mxu0
        %v1771 = vadd.f32 0.0, %v1770
        %v1772 = vpop.f32.mrf.mxu0
        %v1773 = vpop.f32.mrf.mxu0
        %v1774 = vadd.f32 0.0, %v1773
        %v1775 = vpop.f32.mrf.mxu0
        %1776 = vmatprep.mubr.bf16.mxu0 0
        %1777 = vmatmul.mubr.bf16.gmra.mxu0 %v1565
        %v1778 = vpop.f32.mrf.mxu0
        %v1779 = vadd.f32 0.0, %v1778
        %v1780 = vpop.f32.mrf.mxu0
        %v1781 = vpop.f32.mrf.mxu0
        %v1782 = vadd.f32 0.0, %v1781
        %v1783 = vpop.f32.mrf.mxu0
        %1784 = vmatprep.mubr.bf16.mxu0 0
        %1785 = vmatmul.mubr.bf16.gmra.mxu0 %v1566
        %v1786 = vpop.f32.mrf.mxu0
        %v1787 = vadd.f32 0.0, %v1786
        %v1788 = vpop.f32.mrf.mxu0
        %v1789 = vpop.f32.mrf.mxu0
        %v1790 = vadd.f32 0.0, %v1789
        %v1791 = vpop.f32.mrf.mxu0
        %1792 = vdwg.mxu0
        %v1793 = vadd.f32 %v1487, %v1667
        %v1794 = vadd.f32 %v1488, %v1670
        %v1795 = vadd.f32 %v1489, %v1675
        %v1796 = vadd.f32 %v1490, %v1678
        %v1797 = vadd.f32 %v1491, %v1683
        %v1798 = vadd.f32 %v1492, %v1686
        %v1799 = vadd.f32 %v1493, %v1691
        %v1800 = vadd.f32 %v1494, %v1694
        %v1801 = vadd.f32 %v1495, %v1699
        %v1802 = vadd.f32 %v1496, %v1702
        %v1803 = vadd.f32 %v1497, %v1707
        %v1804 = vadd.f32 %v1498, %v1710
        %v1805 = vadd.f32 %v1499, %v1715
        %v1806 = vadd.f32 %v1500, %v1718
        %v1807 = vadd.f32 %v1501, %v1723
        %v1808 = vadd.f32 %v1502, %v1726
        %v1809 = vadd.f32 %v1503, %v1731
        %v1810 = vadd.f32 %v1504, %v1734
        %v1811 = vadd.f32 %v1505, %v1739
        %v1812 = vadd.f32 %v1506, %v1742
        %v1813 = vadd.f32 %v1507, %v1747
        %v1814 = vadd.f32 %v1508, %v1750
        %v1815 = vadd.f32 %v1509, %v1755
        %v1816 = vadd.f32 %v1510, %v1758
        %v1817 = vadd.f32 %v1511, %v1763
        %v1818 = vadd.f32 %v1512, %v1766
        %v1819 = vadd.f32 %v1513, %v1771
        %v1820 = vadd.f32 %v1514, %v1774
        %v1821 = vadd.f32 %v1515, %v1779
        %v1822 = vadd.f32 %v1516, %v1782
        %v1823 = vadd.f32 %v1517, %v1787
        %v1824 = vadd.f32 %v1518, %v1790
        %v1825 = vld [vmem:[%s309 + $0x16] sm:$0xff]
        %v1826 = vld [vmem:[%s309 + $0x1e] sm:$0xff]
        %v1827 = vld [vmem:[%s309 + $0x26] sm:$0xff]
        %v1828 = vld [vmem:[%s309 + $0x2e] sm:$0xff]
        %v1829 = vld [vmem:[%s309 + $0x36] sm:$0xff]
        %v1830 = vld [vmem:[%s309 + $0x3e] sm:$0xff]
        %v1831 = vld [vmem:[%s309 + $0x46] sm:$0xff]
        %v1832 = vld [vmem:[%s309 + $0x4e] sm:$0xff]
        %v1833 = vld [vmem:[%s309 + $0x56] sm:$0xff]
        %v1834 = vld [vmem:[%s309 + $0x5e] sm:$0xff]
        %v1835 = vld [vmem:[%s309 + $0x66] sm:$0xff]
        %v1836 = vld [vmem:[%s309 + $0x6e] sm:$0xff]
        %v1837 = vld [vmem:[%s309 + $0x76] sm:$0xff]
        %v1838 = vld [vmem:[%s309 + $0x7e] sm:$0xff]
        %v1839 = vld [vmem:[%s309 + $0x86] sm:$0xff]
        %v1840 = vld [vmem:[%s309 + $0x8e] sm:$0xff]
        %v1841 = vld [vmem:[%s309 + $0x96] sm:$0xff]
        %v1842 = vld [vmem:[%s309 + $0x9e] sm:$0xff]
        %v1843 = vld [vmem:[%s309 + $0xa6] sm:$0xff]
        %v1844 = vld [vmem:[%s309 + $0xae] sm:$0xff]
        %v1845 = vld [vmem:[%s309 + $0xb6] sm:$0xff]
        %v1846 = vld [vmem:[%s309 + $0xbe] sm:$0xff]
        %v1847 = vld [vmem:[%s309 + $0xc6] sm:$0xff]
        %v1848 = vld [vmem:[%s309 + $0xce] sm:$0xff]
        %v1849 = vld [vmem:[%s309 + $0xd6] sm:$0xff]
        %v1850 = vld [vmem:[%s309 + $0xde] sm:$0xff]
        %v1851 = vld [vmem:[%s309 + $0xe6] sm:$0xff]
        %v1852 = vld [vmem:[%s309 + $0xee] sm:$0xff]
        %v1853 = vld [vmem:[%s309 + $0xf6] sm:$0xff]
        %v1854 = vld [vmem:[%s309 + $0xfe] sm:$0xff]
        %v1855 = vld [vmem:[%s309 + $0x106] sm:$0xff]
        %v1856 = vld [vmem:[%s309 + $0x10e] sm:$0xff]
        %v1857 = vpack.c.bf16 %v1826, %v1825
        %v1858 = vpack.c.bf16 %v1828, %v1827
        %v1859 = vpack.c.bf16 %v1830, %v1829
        %v1860 = vpack.c.bf16 %v1832, %v1831
        %v1861 = vpack.c.bf16 %v1834, %v1833
        %v1862 = vpack.c.bf16 %v1836, %v1835
        %v1863 = vpack.c.bf16 %v1838, %v1837
        %v1864 = vpack.c.bf16 %v1840, %v1839
        %v1865 = vpack.c.bf16 %v1842, %v1841
        %v1866 = vpack.c.bf16 %v1844, %v1843
        %v1867 = vpack.c.bf16 %v1846, %v1845
        %v1868 = vpack.c.bf16 %v1848, %v1847
        %v1869 = vpack.c.bf16 %v1850, %v1849
        %v1870 = vpack.c.bf16 %v1852, %v1851
        %v1871 = vpack.c.bf16 %v1854, %v1853
        %v1872 = vpack.c.bf16 %v1856, %v1855
        %s1873 = scalar_lea.vmem [#allocation5], 320
        %v1874 = vld [vmem:[%s1873] sm:$0xf]
        %v1875 = vld [vmem:[%s1873 + $0x4] sm:$0xf]
        %v1876 = vld [vmem:[%s1873 + $0x8] sm:$0xf]
        %v1877 = vld [vmem:[%s1873 + $0xc] sm:$0xf]
        %v1878 = vld [vmem:[%s1873 + $0x10] sm:$0xf]
        %v1879 = vld [vmem:[%s1873 + $0x14] sm:$0xf]
        %v1880 = vld [vmem:[%s1873 + $0x18] sm:$0xf]
        %v1881 = vld [vmem:[%s1873 + $0x1c] sm:$0xf]
        %v1882 = vld [vmem:[%s1873 + $0x20] sm:$0xf]
        %v1883 = vld [vmem:[%s1873 + $0x24] sm:$0xf]
        %v1884 = vld [vmem:[%s1873 + $0x28] sm:$0xf]
        %v1885 = vld [vmem:[%s1873 + $0x2c] sm:$0xf]
        %v1886 = vld [vmem:[%s1873 + $0x30] sm:$0xf]
        %v1887 = vld [vmem:[%s1873 + $0x34] sm:$0xf]
        %v1888 = vld [vmem:[%s1873 + $0x38] sm:$0xf]
        %v1889 = vld [vmem:[%s1873 + $0x3c] sm:$0xf]
        %v1906 = vunpack.c.l.b16 %v1874
        %v1907 = vunpack.c.l.b16 %v1875
        %v1908 = vunpack.c.l.b16 %v1876
        %v1909 = vunpack.c.l.b16 %v1877
        %v1910 = vunpack.c.l.b16 %v1878
        %v1911 = vunpack.c.l.b16 %v1879
        %v1912 = vunpack.c.l.b16 %v1880
        %v1913 = vunpack.c.l.b16 %v1881
        %v1914 = vunpack.c.l.b16 %v1882
        %v1915 = vunpack.c.l.b16 %v1883
        %v1916 = vunpack.c.l.b16 %v1884
        %v1917 = vunpack.c.l.b16 %v1885
        %v1918 = vunpack.c.l.b16 %v1886
        %v1919 = vunpack.c.l.b16 %v1887
        %v1920 = vunpack.c.l.b16 %v1888
        %v1921 = vunpack.c.l.b16 %v1889
        %v1922 = vpack.c.b16 %v1907, %v1906
        %v1923 = vpack.c.b16 %v1909, %v1908
        %v1924 = vpack.c.b16 %v1911, %v1910
        %v1925 = vpack.c.b16 %v1913, %v1912
        %v1926 = vpack.c.b16 %v1915, %v1914
        %v1927 = vpack.c.b16 %v1917, %v1916
        %v1928 = vpack.c.b16 %v1919, %v1918
        %v1929 = vpack.c.b16 %v1921, %v1920
        %1938 = vmatprep.subr.bf16.mxu0 0
        %1939 = vmatpush1.bf16.msra.mxu0 %v1929
        %1940 = vmatprep.subr.bf16.mxu0 0
        %1941 = vmatpush1.bf16.msra.mxu0 %v1928
        %1942 = vmatprep.subr.bf16.mxu0 0
        %1943 = vmatpush1.bf16.msra.mxu0 %v1927
        %1944 = vmatprep.subr.bf16.mxu0 0
        %1945 = vmatpush1.bf16.msra.mxu0 %v1926
        %1946 = vmatprep.subr.bf16.mxu0 0
        %1947 = vmatpush1.bf16.msra.mxu0 %v1925
        %1948 = vmatprep.subr.bf16.mxu0 0
        %1949 = vmatpush1.bf16.msra.mxu0 %v1924
        %1950 = vmatprep.subr.bf16.mxu0 0
        %1951 = vmatpush1.bf16.msra.mxu0 %v1923
        %1952 = vmatprep.subr.bf16.mxu0 0
        %1953 = vmatpush1.bf16.msra.mxu0 %v1922
        %1954 = vmatprep.subr.bf16.mxu0 0
        %1955 = vmatpush2.bf16.msra.mxu0 0
        %1956 = vmatprep.subr.bf16.mxu0 0
        %1957 = vmatpush2.bf16.msra.mxu0 0
        %1958 = vmatprep.subr.bf16.mxu0 0
        %1959 = vmatpush2.bf16.msra.mxu0 0
        %1960 = vmatprep.subr.bf16.mxu0 0
        %1961 = vmatpush2.bf16.msra.mxu0 0
        %1962 = vmatprep.subr.bf16.mxu0 0
        %1963 = vmatpush2.bf16.msra.mxu0 0
        %1964 = vmatprep.subr.bf16.mxu0 0
        %1965 = vmatpush2.bf16.msra.mxu0 0
        %1966 = vmatprep.subr.bf16.mxu0 0
        %1967 = vmatpush2.bf16.msra.mxu0 0
        %1968 = vmatprep.subr.bf16.mxu0 0
        %1969 = vmatpush2.bf16.msra.mxu0 0
        %1970 = vmatprep.mubr.bf16.mxu0 0
        %1971 = vmatmul.mubr.bf16.gmra.mxu0 %v1857
        %v1972 = vpop.f32.mrf.mxu0
        %v1973 = vadd.f32 0.0, %v1972
        %v1974 = vpop.f32.mrf.mxu0
        %v1975 = vpop.f32.mrf.mxu0
        %v1976 = vadd.f32 0.0, %v1975
        %v1977 = vpop.f32.mrf.mxu0
        %1978 = vmatprep.mubr.bf16.mxu0 0
        %1979 = vmatmul.mubr.bf16.gmra.mxu0 %v1858
        %v1980 = vpop.f32.mrf.mxu0
        %v1981 = vadd.f32 0.0, %v1980
        %v1982 = vpop.f32.mrf.mxu0
        %v1983 = vpop.f32.mrf.mxu0
        %v1984 = vadd.f32 0.0, %v1983
        %v1985 = vpop.f32.mrf.mxu0
        %1986 = vmatprep.mubr.bf16.mxu0 0
        %1987 = vmatmul.mubr.bf16.gmra.mxu0 %v1859
        %v1988 = vpop.f32.mrf.mxu0
        %v1989 = vadd.f32 0.0, %v1988
        %v1990 = vpop.f32.mrf.mxu0
        %v1991 = vpop.f32.mrf.mxu0
        %v1992 = vadd.f32 0.0, %v1991
        %v1993 = vpop.f32.mrf.mxu0
        %1994 = vmatprep.mubr.bf16.mxu0 0
        %1995 = vmatmul.mubr.bf16.gmra.mxu0 %v1860
        %v1996 = vpop.f32.mrf.mxu0
        %v1997 = vadd.f32 0.0, %v1996
        %v1998 = vpop.f32.mrf.mxu0
        %v1999 = vpop.f32.mrf.mxu0
        %v2000 = vadd.f32 0.0, %v1999
        %v2001 = vpop.f32.mrf.mxu0
        %2002 = vmatprep.mubr.bf16.mxu0 0
        %2003 = vmatmul.mubr.bf16.gmra.mxu0 %v1861
        %v2004 = vpop.f32.mrf.mxu0
        %v2005 = vadd.f32 0.0, %v2004
        %v2006 = vpop.f32.mrf.mxu0
        %v2007 = vpop.f32.mrf.mxu0
        %v2008 = vadd.f32 0.0, %v2007
        %v2009 = vpop.f32.mrf.mxu0
        %2010 = vmatprep.mubr.bf16.mxu0 0
        %2011 = vmatmul.mubr.bf16.gmra.mxu0 %v1862
        %v2012 = vpop.f32.mrf.mxu0
        %v2013 = vadd.f32 0.0, %v2012
        %v2014 = vpop.f32.mrf.mxu0
        %v2015 = vpop.f32.mrf.mxu0
        %v2016 = vadd.f32 0.0, %v2015
        %v2017 = vpop.f32.mrf.mxu0
        %2018 = vmatprep.mubr.bf16.mxu0 0
        %2019 = vmatmul.mubr.bf16.gmra.mxu0 %v1863
        %v2020 = vpop.f32.mrf.mxu0
        %v2021 = vadd.f32 0.0, %v2020
        %v2022 = vpop.f32.mrf.mxu0
        %v2023 = vpop.f32.mrf.mxu0
        %v2024 = vadd.f32 0.0, %v2023
        %v2025 = vpop.f32.mrf.mxu0
        %2026 = vmatprep.mubr.bf16.mxu0 0
        %2027 = vmatmul.mubr.bf16.gmra.mxu0 %v1864
        %v2028 = vpop.f32.mrf.mxu0
        %v2029 = vadd.f32 0.0, %v2028
        %v2030 = vpop.f32.mrf.mxu0
        %v2031 = vpop.f32.mrf.mxu0
        %v2032 = vadd.f32 0.0, %v2031
        %v2033 = vpop.f32.mrf.mxu0
        %2034 = vmatprep.mubr.bf16.mxu0 0
        %2035 = vmatmul.mubr.bf16.gmra.mxu0 %v1865
        %v2036 = vpop.f32.mrf.mxu0
        %v2037 = vadd.f32 0.0, %v2036
        %v2038 = vpop.f32.mrf.mxu0
        %v2039 = vpop.f32.mrf.mxu0
        %v2040 = vadd.f32 0.0, %v2039
        %v2041 = vpop.f32.mrf.mxu0
        %2042 = vmatprep.mubr.bf16.mxu0 0
        %2043 = vmatmul.mubr.bf16.gmra.mxu0 %v1866
        %v2044 = vpop.f32.mrf.mxu0
        %v2045 = vadd.f32 0.0, %v2044
        %v2046 = vpop.f32.mrf.mxu0
        %v2047 = vpop.f32.mrf.mxu0
        %v2048 = vadd.f32 0.0, %v2047
        %v2049 = vpop.f32.mrf.mxu0
        %2050 = vmatprep.mubr.bf16.mxu0 0
        %2051 = vmatmul.mubr.bf16.gmra.mxu0 %v1867
        %v2052 = vpop.f32.mrf.mxu0
        %v2053 = vadd.f32 0.0, %v2052
        %v2054 = vpop.f32.mrf.mxu0
        %v2055 = vpop.f32.mrf.mxu0
        %v2056 = vadd.f32 0.0, %v2055
        %v2057 = vpop.f32.mrf.mxu0
        %2058 = vmatprep.mubr.bf16.mxu0 0
        %2059 = vmatmul.mubr.bf16.gmra.mxu0 %v1868
        %v2060 = vpop.f32.mrf.mxu0
        %v2061 = vadd.f32 0.0, %v2060
        %v2062 = vpop.f32.mrf.mxu0
        %v2063 = vpop.f32.mrf.mxu0
        %v2064 = vadd.f32 0.0, %v2063
        %v2065 = vpop.f32.mrf.mxu0
        %2066 = vmatprep.mubr.bf16.mxu0 0
        %2067 = vmatmul.mubr.bf16.gmra.mxu0 %v1869
        %v2068 = vpop.f32.mrf.mxu0
        %v2069 = vadd.f32 0.0, %v2068
        %v2070 = vpop.f32.mrf.mxu0
        %v2071 = vpop.f32.mrf.mxu0
        %v2072 = vadd.f32 0.0, %v2071
        %v2073 = vpop.f32.mrf.mxu0
        %2074 = vmatprep.mubr.bf16.mxu0 0
        %2075 = vmatmul.mubr.bf16.gmra.mxu0 %v1870
        %v2076 = vpop.f32.mrf.mxu0
        %v2077 = vadd.f32 0.0, %v2076
        %v2078 = vpop.f32.mrf.mxu0
        %v2079 = vpop.f32.mrf.mxu0
        %v2080 = vadd.f32 0.0, %v2079
        %v2081 = vpop.f32.mrf.mxu0
        %2082 = vmatprep.mubr.bf16.mxu0 0
        %2083 = vmatmul.mubr.bf16.gmra.mxu0 %v1871
        %v2084 = vpop.f32.mrf.mxu0
        %v2085 = vadd.f32 0.0, %v2084
        %v2086 = vpop.f32.mrf.mxu0
        %v2087 = vpop.f32.mrf.mxu0
        %v2088 = vadd.f32 0.0, %v2087
        %v2089 = vpop.f32.mrf.mxu0
        %2090 = vmatprep.mubr.bf16.mxu0 0
        %2091 = vmatmul.mubr.bf16.gmra.mxu0 %v1872
        %v2092 = vpop.f32.mrf.mxu0
        %v2093 = vadd.f32 0.0, %v2092
        %v2094 = vpop.f32.mrf.mxu0
        %v2095 = vpop.f32.mrf.mxu0
        %v2096 = vadd.f32 0.0, %v2095
        %v2097 = vpop.f32.mrf.mxu0
        %2098 = vdwg.mxu0
        %v2099 = vadd.f32 %v1793, %v1973
        %v2100 = vadd.f32 %v1794, %v1976
        %v2101 = vadd.f32 %v1795, %v1981
        %v2102 = vadd.f32 %v1796, %v1984
        %v2103 = vadd.f32 %v1797, %v1989
        %v2104 = vadd.f32 %v1798, %v1992
        %v2105 = vadd.f32 %v1799, %v1997
        %v2106 = vadd.f32 %v1800, %v2000
        %v2107 = vadd.f32 %v1801, %v2005
        %v2108 = vadd.f32 %v1802, %v2008
        %v2109 = vadd.f32 %v1803, %v2013
        %v2110 = vadd.f32 %v1804, %v2016
        %v2111 = vadd.f32 %v1805, %v2021
        %v2112 = vadd.f32 %v1806, %v2024
        %v2113 = vadd.f32 %v1807, %v2029
        %v2114 = vadd.f32 %v1808, %v2032
        %v2115 = vadd.f32 %v1809, %v2037
        %v2116 = vadd.f32 %v1810, %v2040
        %v2117 = vadd.f32 %v1811, %v2045
        %v2118 = vadd.f32 %v1812, %v2048
        %v2119 = vadd.f32 %v1813, %v2053
        %v2120 = vadd.f32 %v1814, %v2056
        %v2121 = vadd.f32 %v1815, %v2061
        %v2122 = vadd.f32 %v1816, %v2064
        %v2123 = vadd.f32 %v1817, %v2069
        %v2124 = vadd.f32 %v1818, %v2072
        %v2125 = vadd.f32 %v1819, %v2077
        %v2126 = vadd.f32 %v1820, %v2080
        %v2127 = vadd.f32 %v1821, %v2085
        %v2128 = vadd.f32 %v1822, %v2088
        %v2129 = vadd.f32 %v1823, %v2093
        %v2130 = vadd.f32 %v1824, %v2096
        %v2131 = vld [vmem:[%s309 + $0x28] sm:$0xff]
        %v2132 = vld [vmem:[%s309 + $0x30] sm:$0xff]
        %v2133 = vld [vmem:[%s309 + $0x38] sm:$0xff]
        %v2134 = vld [vmem:[%s309 + $0x40] sm:$0xff]
        %v2135 = vld [vmem:[%s309 + $0x48] sm:$0xff]
        %v2136 = vld [vmem:[%s309 + $0x50] sm:$0xff]
        %v2137 = vld [vmem:[%s309 + $0x58] sm:$0xff]
        %v2138 = vld [vmem:[%s309 + $0x60] sm:$0xff]
        %v2139 = vld [vmem:[%s309 + $0x68] sm:$0xff]
        %v2140 = vld [vmem:[%s309 + $0x70] sm:$0xff]
        %v2141 = vld [vmem:[%s309 + $0x78] sm:$0xff]
        %v2142 = vld [vmem:[%s309 + $0x80] sm:$0xff]
        %v2143 = vld [vmem:[%s309 + $0x88] sm:$0xff]
        %v2144 = vld [vmem:[%s309 + $0x90] sm:$0xff]
        %v2145 = vld [vmem:[%s309 + $0x98] sm:$0xff]
        %v2146 = vld [vmem:[%s309 + $0xa0] sm:$0xff]
        %v2147 = vld [vmem:[%s309 + $0xa8] sm:$0xff]
        %v2148 = vld [vmem:[%s309 + $0xb0] sm:$0xff]
        %v2149 = vld [vmem:[%s309 + $0xb8] sm:$0xff]
        %v2150 = vld [vmem:[%s309 + $0xc0] sm:$0xff]
        %v2151 = vld [vmem:[%s309 + $0xc8] sm:$0xff]
        %v2152 = vld [vmem:[%s309 + $0xd0] sm:$0xff]
        %v2153 = vld [vmem:[%s309 + $0xd8] sm:$0xff]
        %v2154 = vld [vmem:[%s309 + $0xe0] sm:$0xff]
        %v2155 = vld [vmem:[%s309 + $0xe8] sm:$0xff]
        %v2156 = vld [vmem:[%s309 + $0xf0] sm:$0xff]
        %v2157 = vld [vmem:[%s309 + $0xf8] sm:$0xff]
        %v2158 = vld [vmem:[%s309 + $0x100] sm:$0xff]
        %v2159 = vld [vmem:[%s309 + $0x108] sm:$0xff]
        %v2160 = vld [vmem:[%s309 + $0x110] sm:$0xff]
        %v2161 = vld [vmem:[%s309 + $0x118] sm:$0xff]
        %v2162 = vld [vmem:[%s309 + $0x120] sm:$0xff]
        %v2163 = vpack.c.bf16 %v2132, %v2131
        %v2164 = vpack.c.bf16 %v2134, %v2133
        %v2165 = vpack.c.bf16 %v2136, %v2135
        %v2166 = vpack.c.bf16 %v2138, %v2137
        %v2167 = vpack.c.bf16 %v2140, %v2139
        %v2168 = vpack.c.bf16 %v2142, %v2141
        %v2169 = vpack.c.bf16 %v2144, %v2143
        %v2170 = vpack.c.bf16 %v2146, %v2145
        %v2171 = vpack.c.bf16 %v2148, %v2147
        %v2172 = vpack.c.bf16 %v2150, %v2149
        %v2173 = vpack.c.bf16 %v2152, %v2151
        %v2174 = vpack.c.bf16 %v2154, %v2153
        %v2175 = vpack.c.bf16 %v2156, %v2155
        %v2176 = vpack.c.bf16 %v2158, %v2157
        %v2177 = vpack.c.bf16 %v2160, %v2159
        %v2178 = vpack.c.bf16 %v2162, %v2161
        %s2179 = scalar_lea.vmem [#allocation5], 384
        %v2180 = vld [vmem:[%s2179] sm:$0xf]
        %v2181 = vld [vmem:[%s2179 + $0x4] sm:$0xf]
        %v2182 = vld [vmem:[%s2179 + $0x8] sm:$0xf]
        %v2183 = vld [vmem:[%s2179 + $0xc] sm:$0xf]
        %v2184 = vld [vmem:[%s2179 + $0x10] sm:$0xf]
        %v2185 = vld [vmem:[%s2179 + $0x14] sm:$0xf]
        %v2186 = vld [vmem:[%s2179 + $0x18] sm:$0xf]
        %v2187 = vld [vmem:[%s2179 + $0x1c] sm:$0xf]
        %v2188 = vld [vmem:[%s2179 + $0x20] sm:$0xf]
        %v2189 = vld [vmem:[%s2179 + $0x24] sm:$0xf]
        %v2190 = vld [vmem:[%s2179 + $0x28] sm:$0xf]
        %v2191 = vld [vmem:[%s2179 + $0x2c] sm:$0xf]
        %v2192 = vld [vmem:[%s2179 + $0x30] sm:$0xf]
        %v2193 = vld [vmem:[%s2179 + $0x34] sm:$0xf]
        %v2194 = vld [vmem:[%s2179 + $0x38] sm:$0xf]
        %v2195 = vld [vmem:[%s2179 + $0x3c] sm:$0xf]
        %v2212 = vunpack.c.l.b16 %v2180
        %v2213 = vunpack.c.l.b16 %v2181
        %v2214 = vunpack.c.l.b16 %v2182
        %v2215 = vunpack.c.l.b16 %v2183
        %v2216 = vunpack.c.l.b16 %v2184
        %v2217 = vunpack.c.l.b16 %v2185
        %v2218 = vunpack.c.l.b16 %v2186
        %v2219 = vunpack.c.l.b16 %v2187
        %v2220 = vunpack.c.l.b16 %v2188
        %v2221 = vunpack.c.l.b16 %v2189
        %v2222 = vunpack.c.l.b16 %v2190
        %v2223 = vunpack.c.l.b16 %v2191
        %v2224 = vunpack.c.l.b16 %v2192
        %v2225 = vunpack.c.l.b16 %v2193
        %v2226 = vunpack.c.l.b16 %v2194
        %v2227 = vunpack.c.l.b16 %v2195
        %v2228 = vpack.c.b16 %v2213, %v2212
        %v2229 = vpack.c.b16 %v2215, %v2214
        %v2230 = vpack.c.b16 %v2217, %v2216
        %v2231 = vpack.c.b16 %v2219, %v2218
        %v2232 = vpack.c.b16 %v2221, %v2220
        %v2233 = vpack.c.b16 %v2223, %v2222
        %v2234 = vpack.c.b16 %v2225, %v2224
        %v2235 = vpack.c.b16 %v2227, %v2226
        %2244 = vmatprep.subr.bf16.mxu0 0
        %2245 = vmatpush1.bf16.msra.mxu0 %v2235
        %2246 = vmatprep.subr.bf16.mxu0 0
        %2247 = vmatpush1.bf16.msra.mxu0 %v2234
        %2248 = vmatprep.subr.bf16.mxu0 0
        %2249 = vmatpush1.bf16.msra.mxu0 %v2233
        %2250 = vmatprep.subr.bf16.mxu0 0
        %2251 = vmatpush1.bf16.msra.mxu0 %v2232
        %2252 = vmatprep.subr.bf16.mxu0 0
        %2253 = vmatpush1.bf16.msra.mxu0 %v2231
        %2254 = vmatprep.subr.bf16.mxu0 0
        %2255 = vmatpush1.bf16.msra.mxu0 %v2230
        %2256 = vmatprep.subr.bf16.mxu0 0
        %2257 = vmatpush1.bf16.msra.mxu0 %v2229
        %2258 = vmatprep.subr.bf16.mxu0 0
        %2259 = vmatpush1.bf16.msra.mxu0 %v2228
        %2260 = vmatprep.subr.bf16.mxu0 0
        %2261 = vmatpush2.bf16.msra.mxu0 0
        %2262 = vmatprep.subr.bf16.mxu0 0
        %2263 = vmatpush2.bf16.msra.mxu0 0
        %2264 = vmatprep.subr.bf16.mxu0 0
        %2265 = vmatpush2.bf16.msra.mxu0 0
        %2266 = vmatprep.subr.bf16.mxu0 0
        %2267 = vmatpush2.bf16.msra.mxu0 0
        %2268 = vmatprep.subr.bf16.mxu0 0
        %2269 = vmatpush2.bf16.msra.mxu0 0
        %2270 = vmatprep.subr.bf16.mxu0 0
        %2271 = vmatpush2.bf16.msra.mxu0 0
        %2272 = vmatprep.subr.bf16.mxu0 0
        %2273 = vmatpush2.bf16.msra.mxu0 0
        %2274 = vmatprep.subr.bf16.mxu0 0
        %2275 = vmatpush2.bf16.msra.mxu0 0
        %2276 = vmatprep.mubr.bf16.mxu0 0
        %2277 = vmatmul.mubr.bf16.gmra.mxu0 %v2163
        %v2278 = vpop.f32.mrf.mxu0
        %v2279 = vadd.f32 0.0, %v2278
        %v2280 = vpop.f32.mrf.mxu0
        %v2281 = vpop.f32.mrf.mxu0
        %v2282 = vadd.f32 0.0, %v2281
        %v2283 = vpop.f32.mrf.mxu0
        %2284 = vmatprep.mubr.bf16.mxu0 0
        %2285 = vmatmul.mubr.bf16.gmra.mxu0 %v2164
        %v2286 = vpop.f32.mrf.mxu0
        %v2287 = vadd.f32 0.0, %v2286
        %v2288 = vpop.f32.mrf.mxu0
        %v2289 = vpop.f32.mrf.mxu0
        %v2290 = vadd.f32 0.0, %v2289
        %v2291 = vpop.f32.mrf.mxu0
        %2292 = vmatprep.mubr.bf16.mxu0 0
        %2293 = vmatmul.mubr.bf16.gmra.mxu0 %v2165
        %v2294 = vpop.f32.mrf.mxu0
        %v2295 = vadd.f32 0.0, %v2294
        %v2296 = vpop.f32.mrf.mxu0
        %v2297 = vpop.f32.mrf.mxu0
        %v2298 = vadd.f32 0.0, %v2297
        %v2299 = vpop.f32.mrf.mxu0
        %2300 = vmatprep.mubr.bf16.mxu0 0
        %2301 = vmatmul.mubr.bf16.gmra.mxu0 %v2166
        %v2302 = vpop.f32.mrf.mxu0
        %v2303 = vadd.f32 0.0, %v2302
        %v2304 = vpop.f32.mrf.mxu0
        %v2305 = vpop.f32.mrf.mxu0
        %v2306 = vadd.f32 0.0, %v2305
        %v2307 = vpop.f32.mrf.mxu0
        %2308 = vmatprep.mubr.bf16.mxu0 0
        %2309 = vmatmul.mubr.bf16.gmra.mxu0 %v2167
        %v2310 = vpop.f32.mrf.mxu0
        %v2311 = vadd.f32 0.0, %v2310
        %v2312 = vpop.f32.mrf.mxu0
        %v2313 = vpop.f32.mrf.mxu0
        %v2314 = vadd.f32 0.0, %v2313
        %v2315 = vpop.f32.mrf.mxu0
        %2316 = vmatprep.mubr.bf16.mxu0 0
        %2317 = vmatmul.mubr.bf16.gmra.mxu0 %v2168
        %v2318 = vpop.f32.mrf.mxu0
        %v2319 = vadd.f32 0.0, %v2318
        %v2320 = vpop.f32.mrf.mxu0
        %v2321 = vpop.f32.mrf.mxu0
        %v2322 = vadd.f32 0.0, %v2321
        %v2323 = vpop.f32.mrf.mxu0
        %2324 = vmatprep.mubr.bf16.mxu0 0
        %2325 = vmatmul.mubr.bf16.gmra.mxu0 %v2169
        %v2326 = vpop.f32.mrf.mxu0
        %v2327 = vadd.f32 0.0, %v2326
        %v2328 = vpop.f32.mrf.mxu0
        %v2329 = vpop.f32.mrf.mxu0
        %v2330 = vadd.f32 0.0, %v2329
        %v2331 = vpop.f32.mrf.mxu0
        %2332 = vmatprep.mubr.bf16.mxu0 0
        %2333 = vmatmul.mubr.bf16.gmra.mxu0 %v2170
        %v2334 = vpop.f32.mrf.mxu0
        %v2335 = vadd.f32 0.0, %v2334
        %v2336 = vpop.f32.mrf.mxu0
        %v2337 = vpop.f32.mrf.mxu0
        %v2338 = vadd.f32 0.0, %v2337
        %v2339 = vpop.f32.mrf.mxu0
        %2340 = vmatprep.mubr.bf16.mxu0 0
        %2341 = vmatmul.mubr.bf16.gmra.mxu0 %v2171
        %v2342 = vpop.f32.mrf.mxu0
        %v2343 = vadd.f32 0.0, %v2342
        %v2344 = vpop.f32.mrf.mxu0
        %v2345 = vpop.f32.mrf.mxu0
        %v2346 = vadd.f32 0.0, %v2345
        %v2347 = vpop.f32.mrf.mxu0
        %2348 = vmatprep.mubr.bf16.mxu0 0
        %2349 = vmatmul.mubr.bf16.gmra.mxu0 %v2172
        %v2350 = vpop.f32.mrf.mxu0
        %v2351 = vadd.f32 0.0, %v2350
        %v2352 = vpop.f32.mrf.mxu0
        %v2353 = vpop.f32.mrf.mxu0
        %v2354 = vadd.f32 0.0, %v2353
        %v2355 = vpop.f32.mrf.mxu0
        %2356 = vmatprep.mubr.bf16.mxu0 0
        %2357 = vmatmul.mubr.bf16.gmra.mxu0 %v2173
        %v2358 = vpop.f32.mrf.mxu0
        %v2359 = vadd.f32 0.0, %v2358
        %v2360 = vpop.f32.mrf.mxu0
        %v2361 = vpop.f32.mrf.mxu0
        %v2362 = vadd.f32 0.0, %v2361
        %v2363 = vpop.f32.mrf.mxu0
        %2364 = vmatprep.mubr.bf16.mxu0 0
        %2365 = vmatmul.mubr.bf16.gmra.mxu0 %v2174
        %v2366 = vpop.f32.mrf.mxu0
        %v2367 = vadd.f32 0.0, %v2366
        %v2368 = vpop.f32.mrf.mxu0
        %v2369 = vpop.f32.mrf.mxu0
        %v2370 = vadd.f32 0.0, %v2369
        %v2371 = vpop.f32.mrf.mxu0
        %2372 = vmatprep.mubr.bf16.mxu0 0
        %2373 = vmatmul.mubr.bf16.gmra.mxu0 %v2175
        %v2374 = vpop.f32.mrf.mxu0
        %v2375 = vadd.f32 0.0, %v2374
        %v2376 = vpop.f32.mrf.mxu0
        %v2377 = vpop.f32.mrf.mxu0
        %v2378 = vadd.f32 0.0, %v2377
        %v2379 = vpop.f32.mrf.mxu0
        %2380 = vmatprep.mubr.bf16.mxu0 0
        %2381 = vmatmul.mubr.bf16.gmra.mxu0 %v2176
        %v2382 = vpop.f32.mrf.mxu0
        %v2383 = vadd.f32 0.0, %v2382
        %v2384 = vpop.f32.mrf.mxu0
        %v2385 = vpop.f32.mrf.mxu0
        %v2386 = vadd.f32 0.0, %v2385
        %v2387 = vpop.f32.mrf.mxu0
        %2388 = vmatprep.mubr.bf16.mxu0 0
        %2389 = vmatmul.mubr.bf16.gmra.mxu0 %v2177
        %v2390 = vpop.f32.mrf.mxu0
        %v2391 = vadd.f32 0.0, %v2390
        %v2392 = vpop.f32.mrf.mxu0
        %v2393 = vpop.f32.mrf.mxu0
        %v2394 = vadd.f32 0.0, %v2393
        %v2395 = vpop.f32.mrf.mxu0
        %2396 = vmatprep.mubr.bf16.mxu0 0
        %2397 = vmatmul.mubr.bf16.gmra.mxu0 %v2178
        %v2398 = vpop.f32.mrf.mxu0
        %v2399 = vadd.f32 0.0, %v2398
        %v2400 = vpop.f32.mrf.mxu0
        %v2401 = vpop.f32.mrf.mxu0
        %v2402 = vadd.f32 0.0, %v2401
        %v2403 = vpop.f32.mrf.mxu0
        %2404 = vdwg.mxu0
        %v2405 = vadd.f32 %v2099, %v2279
        %v2406 = vadd.f32 %v2100, %v2282
        %v2407 = vadd.f32 %v2101, %v2287
        %v2408 = vadd.f32 %v2102, %v2290
        %v2409 = vadd.f32 %v2103, %v2295
        %v2410 = vadd.f32 %v2104, %v2298
        %v2411 = vadd.f32 %v2105, %v2303
        %v2412 = vadd.f32 %v2106, %v2306
        %v2413 = vadd.f32 %v2107, %v2311
        %v2414 = vadd.f32 %v2108, %v2314
        %v2415 = vadd.f32 %v2109, %v2319
        %v2416 = vadd.f32 %v2110, %v2322
        %v2417 = vadd.f32 %v2111, %v2327
        %v2418 = vadd.f32 %v2112, %v2330
        %v2419 = vadd.f32 %v2113, %v2335
        %v2420 = vadd.f32 %v2114, %v2338
        %v2421 = vadd.f32 %v2115, %v2343
        %v2422 = vadd.f32 %v2116, %v2346
        %v2423 = vadd.f32 %v2117, %v2351
        %v2424 = vadd.f32 %v2118, %v2354
        %v2425 = vadd.f32 %v2119, %v2359
        %v2426 = vadd.f32 %v2120, %v2362
        %v2427 = vadd.f32 %v2121, %v2367
        %v2428 = vadd.f32 %v2122, %v2370
        %v2429 = vadd.f32 %v2123, %v2375
        %v2430 = vadd.f32 %v2124, %v2378
        %v2431 = vadd.f32 %v2125, %v2383
        %v2432 = vadd.f32 %v2126, %v2386
        %v2433 = vadd.f32 %v2127, %v2391
        %v2434 = vadd.f32 %v2128, %v2394
        %v2435 = vadd.f32 %v2129, %v2399
        %v2436 = vadd.f32 %v2130, %v2402
        %v2437 = vld [vmem:[%s309 + $0x29] sm:$0xff]
        %v2438 = vld [vmem:[%s309 + $0x31] sm:$0xff]
        %v2439 = vld [vmem:[%s309 + $0x39] sm:$0xff]
        %v2440 = vld [vmem:[%s309 + $0x41] sm:$0xff]
        %v2441 = vld [vmem:[%s309 + $0x49] sm:$0xff]
        %v2442 = vld [vmem:[%s309 + $0x51] sm:$0xff]
        %v2443 = vld [vmem:[%s309 + $0x59] sm:$0xff]
        %v2444 = vld [vmem:[%s309 + $0x61] sm:$0xff]
        %v2445 = vld [vmem:[%s309 + $0x69] sm:$0xff]
        %v2446 = vld [vmem:[%s309 + $0x71] sm:$0xff]
        %v2447 = vld [vmem:[%s309 + $0x79] sm:$0xff]
        %v2448 = vld [vmem:[%s309 + $0x81] sm:$0xff]
        %v2449 = vld [vmem:[%s309 + $0x89] sm:$0xff]
        %v2450 = vld [vmem:[%s309 + $0x91] sm:$0xff]
        %v2451 = vld [vmem:[%s309 + $0x99] sm:$0xff]
        %v2452 = vld [vmem:[%s309 + $0xa1] sm:$0xff]
        %v2453 = vld [vmem:[%s309 + $0xa9] sm:$0xff]
        %v2454 = vld [vmem:[%s309 + $0xb1] sm:$0xff]
        %v2455 = vld [vmem:[%s309 + $0xb9] sm:$0xff]
        %v2456 = vld [vmem:[%s309 + $0xc1] sm:$0xff]
        %v2457 = vld [vmem:[%s309 + $0xc9] sm:$0xff]
        %v2458 = vld [vmem:[%s309 + $0xd1] sm:$0xff]
        %v2459 = vld [vmem:[%s309 + $0xd9] sm:$0xff]
        %v2460 = vld [vmem:[%s309 + $0xe1] sm:$0xff]
        %v2461 = vld [vmem:[%s309 + $0xe9] sm:$0xff]
        %v2462 = vld [vmem:[%s309 + $0xf1] sm:$0xff]
        %v2463 = vld [vmem:[%s309 + $0xf9] sm:$0xff]
        %v2464 = vld [vmem:[%s309 + $0x101] sm:$0xff]
        %v2465 = vld [vmem:[%s309 + $0x109] sm:$0xff]
        %v2466 = vld [vmem:[%s309 + $0x111] sm:$0xff]
        %v2467 = vld [vmem:[%s309 + $0x119] sm:$0xff]
        %v2468 = vld [vmem:[%s309 + $0x121] sm:$0xff]
        %v2469 = vpack.c.bf16 %v2438, %v2437
        %v2470 = vpack.c.bf16 %v2440, %v2439
        %v2471 = vpack.c.bf16 %v2442, %v2441
        %v2472 = vpack.c.bf16 %v2444, %v2443
        %v2473 = vpack.c.bf16 %v2446, %v2445
        %v2474 = vpack.c.bf16 %v2448, %v2447
        %v2475 = vpack.c.bf16 %v2450, %v2449
        %v2476 = vpack.c.bf16 %v2452, %v2451
        %v2477 = vpack.c.bf16 %v2454, %v2453
        %v2478 = vpack.c.bf16 %v2456, %v2455
        %v2479 = vpack.c.bf16 %v2458, %v2457
        %v2480 = vpack.c.bf16 %v2460, %v2459
        %v2481 = vpack.c.bf16 %v2462, %v2461
        %v2482 = vpack.c.bf16 %v2464, %v2463
        %v2483 = vpack.c.bf16 %v2466, %v2465
        %v2484 = vpack.c.bf16 %v2468, %v2467
        %s2485 = scalar_lea.vmem [#allocation5], 448
        %v2486 = vld [vmem:[%s2485] sm:$0xf]
        %v2487 = vld [vmem:[%s2485 + $0x4] sm:$0xf]
        %v2488 = vld [vmem:[%s2485 + $0x8] sm:$0xf]
        %v2489 = vld [vmem:[%s2485 + $0xc] sm:$0xf]
        %v2490 = vld [vmem:[%s2485 + $0x10] sm:$0xf]
        %v2491 = vld [vmem:[%s2485 + $0x14] sm:$0xf]
        %v2492 = vld [vmem:[%s2485 + $0x18] sm:$0xf]
        %v2493 = vld [vmem:[%s2485 + $0x1c] sm:$0xf]
        %v2494 = vld [vmem:[%s2485 + $0x20] sm:$0xf]
        %v2495 = vld [vmem:[%s2485 + $0x24] sm:$0xf]
        %v2496 = vld [vmem:[%s2485 + $0x28] sm:$0xf]
        %v2497 = vld [vmem:[%s2485 + $0x2c] sm:$0xf]
        %v2498 = vld [vmem:[%s2485 + $0x30] sm:$0xf]
        %v2499 = vld [vmem:[%s2485 + $0x34] sm:$0xf]
        %v2500 = vld [vmem:[%s2485 + $0x38] sm:$0xf]
        %v2501 = vld [vmem:[%s2485 + $0x3c] sm:$0xf]
        %v2518 = vunpack.c.l.b16 %v2486
        %v2519 = vunpack.c.l.b16 %v2487
        %v2520 = vunpack.c.l.b16 %v2488
        %v2521 = vunpack.c.l.b16 %v2489
        %v2522 = vunpack.c.l.b16 %v2490
        %v2523 = vunpack.c.l.b16 %v2491
        %v2524 = vunpack.c.l.b16 %v2492
        %v2525 = vunpack.c.l.b16 %v2493
        %v2526 = vunpack.c.l.b16 %v2494
        %v2527 = vunpack.c.l.b16 %v2495
        %v2528 = vunpack.c.l.b16 %v2496
        %v2529 = vunpack.c.l.b16 %v2497
        %v2530 = vunpack.c.l.b16 %v2498
        %v2531 = vunpack.c.l.b16 %v2499
        %v2532 = vunpack.c.l.b16 %v2500
        %v2533 = vunpack.c.l.b16 %v2501
        %v2534 = vpack.c.b16 %v2519, %v2518
        %v2535 = vpack.c.b16 %v2521, %v2520
        %v2536 = vpack.c.b16 %v2523, %v2522
        %v2537 = vpack.c.b16 %v2525, %v2524
        %v2538 = vpack.c.b16 %v2527, %v2526
        %v2539 = vpack.c.b16 %v2529, %v2528
        %v2540 = vpack.c.b16 %v2531, %v2530
        %v2541 = vpack.c.b16 %v2533, %v2532
        %2550 = vmatprep.subr.bf16.mxu0 0
        %2551 = vmatpush1.bf16.msra.mxu0 %v2541
        %2552 = vmatprep.subr.bf16.mxu0 0
        %2553 = vmatpush1.bf16.msra.mxu0 %v2540
        %2554 = vmatprep.subr.bf16.mxu0 0
        %2555 = vmatpush1.bf16.msra.mxu0 %v2539
        %2556 = vmatprep.subr.bf16.mxu0 0
        %2557 = vmatpush1.bf16.msra.mxu0 %v2538
        %2558 = vmatprep.subr.bf16.mxu0 0
        %2559 = vmatpush1.bf16.msra.mxu0 %v2537
        %2560 = vmatprep.subr.bf16.mxu0 0
        %2561 = vmatpush1.bf16.msra.mxu0 %v2536
        %2562 = vmatprep.subr.bf16.mxu0 0
        %2563 = vmatpush1.bf16.msra.mxu0 %v2535
        %2564 = vmatprep.subr.bf16.mxu0 0
        %2565 = vmatpush1.bf16.msra.mxu0 %v2534
        %2566 = vmatprep.subr.bf16.mxu0 0
        %2567 = vmatpush2.bf16.msra.mxu0 0
        %2568 = vmatprep.subr.bf16.mxu0 0
        %2569 = vmatpush2.bf16.msra.mxu0 0
        %2570 = vmatprep.subr.bf16.mxu0 0
        %2571 = vmatpush2.bf16.msra.mxu0 0
        %2572 = vmatprep.subr.bf16.mxu0 0
        %2573 = vmatpush2.bf16.msra.mxu0 0
        %2574 = vmatprep.subr.bf16.mxu0 0
        %2575 = vmatpush2.bf16.msra.mxu0 0
        %2576 = vmatprep.subr.bf16.mxu0 0
        %2577 = vmatpush2.bf16.msra.mxu0 0
        %2578 = vmatprep.subr.bf16.mxu0 0
        %2579 = vmatpush2.bf16.msra.mxu0 0
        %2580 = vmatprep.subr.bf16.mxu0 0
        %2581 = vmatpush2.bf16.msra.mxu0 0
        %2582 = vmatprep.mubr.bf16.mxu0 0
        %2583 = vmatmul.mubr.bf16.gmra.mxu0 %v2469
        %v2584 = vpop.f32.mrf.mxu0
        %v2585 = vadd.f32 0.0, %v2584
        %v2586 = vpop.f32.mrf.mxu0
        %v2587 = vpop.f32.mrf.mxu0
        %v2588 = vadd.f32 0.0, %v2587
        %v2589 = vpop.f32.mrf.mxu0
        %2590 = vmatprep.mubr.bf16.mxu0 0
        %2591 = vmatmul.mubr.bf16.gmra.mxu0 %v2470
        %v2592 = vpop.f32.mrf.mxu0
        %v2593 = vadd.f32 0.0, %v2592
        %v2594 = vpop.f32.mrf.mxu0
        %v2595 = vpop.f32.mrf.mxu0
        %v2596 = vadd.f32 0.0, %v2595
        %v2597 = vpop.f32.mrf.mxu0
        %2598 = vmatprep.mubr.bf16.mxu0 0
        %2599 = vmatmul.mubr.bf16.gmra.mxu0 %v2471
        %v2600 = vpop.f32.mrf.mxu0
        %v2601 = vadd.f32 0.0, %v2600
        %v2602 = vpop.f32.mrf.mxu0
        %v2603 = vpop.f32.mrf.mxu0
        %v2604 = vadd.f32 0.0, %v2603
        %v2605 = vpop.f32.mrf.mxu0
        %2606 = vmatprep.mubr.bf16.mxu0 0
        %2607 = vmatmul.mubr.bf16.gmra.mxu0 %v2472
        %v2608 = vpop.f32.mrf.mxu0
        %v2609 = vadd.f32 0.0, %v2608
        %v2610 = vpop.f32.mrf.mxu0
        %v2611 = vpop.f32.mrf.mxu0
        %v2612 = vadd.f32 0.0, %v2611
        %v2613 = vpop.f32.mrf.mxu0
        %2614 = vmatprep.mubr.bf16.mxu0 0
        %2615 = vmatmul.mubr.bf16.gmra.mxu0 %v2473
        %v2616 = vpop.f32.mrf.mxu0
        %v2617 = vadd.f32 0.0, %v2616
        %v2618 = vpop.f32.mrf.mxu0
        %v2619 = vpop.f32.mrf.mxu0
        %v2620 = vadd.f32 0.0, %v2619
        %v2621 = vpop.f32.mrf.mxu0
        %2622 = vmatprep.mubr.bf16.mxu0 0
        %2623 = vmatmul.mubr.bf16.gmra.mxu0 %v2474
        %v2624 = vpop.f32.mrf.mxu0
        %v2625 = vadd.f32 0.0, %v2624
        %v2626 = vpop.f32.mrf.mxu0
        %v2627 = vpop.f32.mrf.mxu0
        %v2628 = vadd.f32 0.0, %v2627
        %v2629 = vpop.f32.mrf.mxu0
        %2630 = vmatprep.mubr.bf16.mxu0 0
        %2631 = vmatmul.mubr.bf16.gmra.mxu0 %v2475
        %v2632 = vpop.f32.mrf.mxu0
        %v2633 = vadd.f32 0.0, %v2632
        %v2634 = vpop.f32.mrf.mxu0
        %v2635 = vpop.f32.mrf.mxu0
        %v2636 = vadd.f32 0.0, %v2635
        %v2637 = vpop.f32.mrf.mxu0
        %2638 = vmatprep.mubr.bf16.mxu0 0
        %2639 = vmatmul.mubr.bf16.gmra.mxu0 %v2476
        %v2640 = vpop.f32.mrf.mxu0
        %v2641 = vadd.f32 0.0, %v2640
        %v2642 = vpop.f32.mrf.mxu0
        %v2643 = vpop.f32.mrf.mxu0
        %v2644 = vadd.f32 0.0, %v2643
        %v2645 = vpop.f32.mrf.mxu0
        %2646 = vmatprep.mubr.bf16.mxu0 0
        %2647 = vmatmul.mubr.bf16.gmra.mxu0 %v2477
        %v2648 = vpop.f32.mrf.mxu0
        %v2649 = vadd.f32 0.0, %v2648
        %v2650 = vpop.f32.mrf.mxu0
        %v2651 = vpop.f32.mrf.mxu0
        %v2652 = vadd.f32 0.0, %v2651
        %v2653 = vpop.f32.mrf.mxu0
        %2654 = vmatprep.mubr.bf16.mxu0 0
        %2655 = vmatmul.mubr.bf16.gmra.mxu0 %v2478
        %v2656 = vpop.f32.mrf.mxu0
        %v2657 = vadd.f32 0.0, %v2656
        %v2658 = vpop.f32.mrf.mxu0
        %v2659 = vpop.f32.mrf.mxu0
        %v2660 = vadd.f32 0.0, %v2659
        %v2661 = vpop.f32.mrf.mxu0
        %2662 = vmatprep.mubr.bf16.mxu0 0
        %2663 = vmatmul.mubr.bf16.gmra.mxu0 %v2479
        %v2664 = vpop.f32.mrf.mxu0
        %v2665 = vadd.f32 0.0, %v2664
        %v2666 = vpop.f32.mrf.mxu0
        %v2667 = vpop.f32.mrf.mxu0
        %v2668 = vadd.f32 0.0, %v2667
        %v2669 = vpop.f32.mrf.mxu0
        %2670 = vmatprep.mubr.bf16.mxu0 0
        %2671 = vmatmul.mubr.bf16.gmra.mxu0 %v2480
        %v2672 = vpop.f32.mrf.mxu0
        %v2673 = vadd.f32 0.0, %v2672
        %v2674 = vpop.f32.mrf.mxu0
        %v2675 = vpop.f32.mrf.mxu0
        %v2676 = vadd.f32 0.0, %v2675
        %v2677 = vpop.f32.mrf.mxu0
        %2678 = vmatprep.mubr.bf16.mxu0 0
        %2679 = vmatmul.mubr.bf16.gmra.mxu0 %v2481
        %v2680 = vpop.f32.mrf.mxu0
        %v2681 = vadd.f32 0.0, %v2680
        %v2682 = vpop.f32.mrf.mxu0
        %v2683 = vpop.f32.mrf.mxu0
        %v2684 = vadd.f32 0.0, %v2683
        %v2685 = vpop.f32.mrf.mxu0
        %2686 = vmatprep.mubr.bf16.mxu0 0
        %2687 = vmatmul.mubr.bf16.gmra.mxu0 %v2482
        %v2688 = vpop.f32.mrf.mxu0
        %v2689 = vadd.f32 0.0, %v2688
        %v2690 = vpop.f32.mrf.mxu0
        %v2691 = vpop.f32.mrf.mxu0
        %v2692 = vadd.f32 0.0, %v2691
        %v2693 = vpop.f32.mrf.mxu0
        %2694 = vmatprep.mubr.bf16.mxu0 0
        %2695 = vmatmul.mubr.bf16.gmra.mxu0 %v2483
        %v2696 = vpop.f32.mrf.mxu0
        %v2697 = vadd.f32 0.0, %v2696
        %v2698 = vpop.f32.mrf.mxu0
        %v2699 = vpop.f32.mrf.mxu0
        %v2700 = vadd.f32 0.0, %v2699
        %v2701 = vpop.f32.mrf.mxu0
        %2702 = vmatprep.mubr.bf16.mxu0 0
        %2703 = vmatmul.mubr.bf16.gmra.mxu0 %v2484
        %v2704 = vpop.f32.mrf.mxu0
        %v2705 = vadd.f32 0.0, %v2704
        %v2706 = vpop.f32.mrf.mxu0
        %v2707 = vpop.f32.mrf.mxu0
        %v2708 = vadd.f32 0.0, %v2707
        %v2709 = vpop.f32.mrf.mxu0
        %2710 = vdwg.mxu0
        %v2711 = vadd.f32 %v2405, %v2585
        %v2712 = vadd.f32 %v2406, %v2588
        %v2713 = vadd.f32 %v2407, %v2593
        %v2714 = vadd.f32 %v2408, %v2596
        %v2715 = vadd.f32 %v2409, %v2601
        %v2716 = vadd.f32 %v2410, %v2604
        %v2717 = vadd.f32 %v2411, %v2609
        %v2718 = vadd.f32 %v2412, %v2612
        %v2719 = vadd.f32 %v2413, %v2617
        %v2720 = vadd.f32 %v2414, %v2620
        %v2721 = vadd.f32 %v2415, %v2625
        %v2722 = vadd.f32 %v2416, %v2628
        %v2723 = vadd.f32 %v2417, %v2633
        %v2724 = vadd.f32 %v2418, %v2636
        %v2725 = vadd.f32 %v2419, %v2641
        %v2726 = vadd.f32 %v2420, %v2644
        %v2727 = vadd.f32 %v2421, %v2649
        %v2728 = vadd.f32 %v2422, %v2652
        %v2729 = vadd.f32 %v2423, %v2657
        %v2730 = vadd.f32 %v2424, %v2660
        %v2731 = vadd.f32 %v2425, %v2665
        %v2732 = vadd.f32 %v2426, %v2668
        %v2733 = vadd.f32 %v2427, %v2673
        %v2734 = vadd.f32 %v2428, %v2676
        %v2735 = vadd.f32 %v2429, %v2681
        %v2736 = vadd.f32 %v2430, %v2684
        %v2737 = vadd.f32 %v2431, %v2689
        %v2738 = vadd.f32 %v2432, %v2692
        %v2739 = vadd.f32 %v2433, %v2697
        %v2740 = vadd.f32 %v2434, %v2700
        %v2741 = vadd.f32 %v2435, %v2705
        %v2742 = vadd.f32 %v2436, %v2708
        %v2743 = vld [vmem:[%s309 + $0x2a] sm:$0xff]
        %v2744 = vld [vmem:[%s309 + $0x32] sm:$0xff]
        %v2745 = vld [vmem:[%s309 + $0x3a] sm:$0xff]
        %v2746 = vld [vmem:[%s309 + $0x42] sm:$0xff]
        %v2747 = vld [vmem:[%s309 + $0x4a] sm:$0xff]
        %v2748 = vld [vmem:[%s309 + $0x52] sm:$0xff]
        %v2749 = vld [vmem:[%s309 + $0x5a] sm:$0xff]
        %v2750 = vld [vmem:[%s309 + $0x62] sm:$0xff]
        %v2751 = vld [vmem:[%s309 + $0x6a] sm:$0xff]
        %v2752 = vld [vmem:[%s309 + $0x72] sm:$0xff]
        %v2753 = vld [vmem:[%s309 + $0x7a] sm:$0xff]
        %v2754 = vld [vmem:[%s309 + $0x82] sm:$0xff]
        %v2755 = vld [vmem:[%s309 + $0x8a] sm:$0xff]
        %v2756 = vld [vmem:[%s309 + $0x92] sm:$0xff]
        %v2757 = vld [vmem:[%s309 + $0x9a] sm:$0xff]
        %v2758 = vld [vmem:[%s309 + $0xa2] sm:$0xff]
        %v2759 = vld [vmem:[%s309 + $0xaa] sm:$0xff]
        %v2760 = vld [vmem:[%s309 + $0xb2] sm:$0xff]
        %v2761 = vld [vmem:[%s309 + $0xba] sm:$0xff]
        %v2762 = vld [vmem:[%s309 + $0xc2] sm:$0xff]
        %v2763 = vld [vmem:[%s309 + $0xca] sm:$0xff]
        %v2764 = vld [vmem:[%s309 + $0xd2] sm:$0xff]
        %v2765 = vld [vmem:[%s309 + $0xda] sm:$0xff]
        %v2766 = vld [vmem:[%s309 + $0xe2] sm:$0xff]
        %v2767 = vld [vmem:[%s309 + $0xea] sm:$0xff]
        %v2768 = vld [vmem:[%s309 + $0xf2] sm:$0xff]
        %v2769 = vld [vmem:[%s309 + $0xfa] sm:$0xff]
        %v2770 = vld [vmem:[%s309 + $0x102] sm:$0xff]
        %v2771 = vld [vmem:[%s309 + $0x10a] sm:$0xff]
        %v2772 = vld [vmem:[%s309 + $0x112] sm:$0xff]
        %v2773 = vld [vmem:[%s309 + $0x11a] sm:$0xff]
        %v2774 = vld [vmem:[%s309 + $0x122] sm:$0xff]
        %v2775 = vpack.c.bf16 %v2744, %v2743
        %v2776 = vpack.c.bf16 %v2746, %v2745
        %v2777 = vpack.c.bf16 %v2748, %v2747
        %v2778 = vpack.c.bf16 %v2750, %v2749
        %v2779 = vpack.c.bf16 %v2752, %v2751
        %v2780 = vpack.c.bf16 %v2754, %v2753
        %v2781 = vpack.c.bf16 %v2756, %v2755
        %v2782 = vpack.c.bf16 %v2758, %v2757
        %v2783 = vpack.c.bf16 %v2760, %v2759
        %v2784 = vpack.c.bf16 %v2762, %v2761
        %v2785 = vpack.c.bf16 %v2764, %v2763
        %v2786 = vpack.c.bf16 %v2766, %v2765
        %v2787 = vpack.c.bf16 %v2768, %v2767
        %v2788 = vpack.c.bf16 %v2770, %v2769
        %v2789 = vpack.c.bf16 %v2772, %v2771
        %v2790 = vpack.c.bf16 %v2774, %v2773
        %s2791 = scalar_lea.vmem [#allocation5], 512
        %v2792 = vld [vmem:[%s2791] sm:$0xf]
        %v2793 = vld [vmem:[%s2791 + $0x4] sm:$0xf]
        %v2794 = vld [vmem:[%s2791 + $0x8] sm:$0xf]
        %v2795 = vld [vmem:[%s2791 + $0xc] sm:$0xf]
        %v2796 = vld [vmem:[%s2791 + $0x10] sm:$0xf]
        %v2797 = vld [vmem:[%s2791 + $0x14] sm:$0xf]
        %v2798 = vld [vmem:[%s2791 + $0x18] sm:$0xf]
        %v2799 = vld [vmem:[%s2791 + $0x1c] sm:$0xf]
        %v2800 = vld [vmem:[%s2791 + $0x20] sm:$0xf]
        %v2801 = vld [vmem:[%s2791 + $0x24] sm:$0xf]
        %v2802 = vld [vmem:[%s2791 + $0x28] sm:$0xf]
        %v2803 = vld [vmem:[%s2791 + $0x2c] sm:$0xf]
        %v2804 = vld [vmem:[%s2791 + $0x30] sm:$0xf]
        %v2805 = vld [vmem:[%s2791 + $0x34] sm:$0xf]
        %v2806 = vld [vmem:[%s2791 + $0x38] sm:$0xf]
        %v2807 = vld [vmem:[%s2791 + $0x3c] sm:$0xf]
        %v2824 = vunpack.c.l.b16 %v2792
        %v2825 = vunpack.c.l.b16 %v2793
        %v2826 = vunpack.c.l.b16 %v2794
        %v2827 = vunpack.c.l.b16 %v2795
        %v2828 = vunpack.c.l.b16 %v2796
        %v2829 = vunpack.c.l.b16 %v2797
        %v2830 = vunpack.c.l.b16 %v2798
        %v2831 = vunpack.c.l.b16 %v2799
        %v2832 = vunpack.c.l.b16 %v2800
        %v2833 = vunpack.c.l.b16 %v2801
        %v2834 = vunpack.c.l.b16 %v2802
        %v2835 = vunpack.c.l.b16 %v2803
        %v2836 = vunpack.c.l.b16 %v2804
        %v2837 = vunpack.c.l.b16 %v2805
        %v2838 = vunpack.c.l.b16 %v2806
        %v2839 = vunpack.c.l.b16 %v2807
        %v2840 = vpack.c.b16 %v2825, %v2824
        %v2841 = vpack.c.b16 %v2827, %v2826
        %v2842 = vpack.c.b16 %v2829, %v2828
        %v2843 = vpack.c.b16 %v2831, %v2830
        %v2844 = vpack.c.b16 %v2833, %v2832
        %v2845 = vpack.c.b16 %v2835, %v2834
        %v2846 = vpack.c.b16 %v2837, %v2836
        %v2847 = vpack.c.b16 %v2839, %v2838
        %2856 = vmatprep.subr.bf16.mxu0 0
        %2857 = vmatpush1.bf16.msra.mxu0 %v2847
        %2858 = vmatprep.subr.bf16.mxu0 0
        %2859 = vmatpush1.bf16.msra.mxu0 %v2846
        %2860 = vmatprep.subr.bf16.mxu0 0
        %2861 = vmatpush1.bf16.msra.mxu0 %v2845
        %2862 = vmatprep.subr.bf16.mxu0 0
        %2863 = vmatpush1.bf16.msra.mxu0 %v2844
        %2864 = vmatprep.subr.bf16.mxu0 0
        %2865 = vmatpush1.bf16.msra.mxu0 %v2843
        %2866 = vmatprep.subr.bf16.mxu0 0
        %2867 = vmatpush1.bf16.msra.mxu0 %v2842
        %2868 = vmatprep.subr.bf16.mxu0 0
        %2869 = vmatpush1.bf16.msra.mxu0 %v2841
        %2870 = vmatprep.subr.bf16.mxu0 0
        %2871 = vmatpush1.bf16.msra.mxu0 %v2840
        %2872 = vmatprep.subr.bf16.mxu0 0
        %2873 = vmatpush2.bf16.msra.mxu0 0
        %2874 = vmatprep.subr.bf16.mxu0 0
        %2875 = vmatpush2.bf16.msra.mxu0 0
        %2876 = vmatprep.subr.bf16.mxu0 0
        %2877 = vmatpush2.bf16.msra.mxu0 0
        %2878 = vmatprep.subr.bf16.mxu0 0
        %2879 = vmatpush2.bf16.msra.mxu0 0
        %2880 = vmatprep.subr.bf16.mxu0 0
        %2881 = vmatpush2.bf16.msra.mxu0 0
        %2882 = vmatprep.subr.bf16.mxu0 0
        %2883 = vmatpush2.bf16.msra.mxu0 0
        %2884 = vmatprep.subr.bf16.mxu0 0
        %2885 = vmatpush2.bf16.msra.mxu0 0
        %2886 = vmatprep.subr.bf16.mxu0 0
        %2887 = vmatpush2.bf16.msra.mxu0 0
        %2888 = vmatprep.mubr.bf16.mxu0 0
        %2889 = vmatmul.mubr.bf16.gmra.mxu0 %v2775
        %v2890 = vpop.f32.mrf.mxu0
        %v2891 = vadd.f32 0.0, %v2890
        %v2892 = vpop.f32.mrf.mxu0
        %v2893 = vpop.f32.mrf.mxu0
        %v2894 = vadd.f32 0.0, %v2893
        %v2895 = vpop.f32.mrf.mxu0
        %2896 = vmatprep.mubr.bf16.mxu0 0
        %2897 = vmatmul.mubr.bf16.gmra.mxu0 %v2776
        %v2898 = vpop.f32.mrf.mxu0
        %v2899 = vadd.f32 0.0, %v2898
        %v2900 = vpop.f32.mrf.mxu0
        %v2901 = vpop.f32.mrf.mxu0
        %v2902 = vadd.f32 0.0, %v2901
        %v2903 = vpop.f32.mrf.mxu0
        %2904 = vmatprep.mubr.bf16.mxu0 0
        %2905 = vmatmul.mubr.bf16.gmra.mxu0 %v2777
        %v2906 = vpop.f32.mrf.mxu0
        %v2907 = vadd.f32 0.0, %v2906
        %v2908 = vpop.f32.mrf.mxu0
        %v2909 = vpop.f32.mrf.mxu0
        %v2910 = vadd.f32 0.0, %v2909
        %v2911 = vpop.f32.mrf.mxu0
        %2912 = vmatprep.mubr.bf16.mxu0 0
        %2913 = vmatmul.mubr.bf16.gmra.mxu0 %v2778
        %v2914 = vpop.f32.mrf.mxu0
        %v2915 = vadd.f32 0.0, %v2914
        %v2916 = vpop.f32.mrf.mxu0
        %v2917 = vpop.f32.mrf.mxu0
        %v2918 = vadd.f32 0.0, %v2917
        %v2919 = vpop.f32.mrf.mxu0
        %2920 = vmatprep.mubr.bf16.mxu0 0
        %2921 = vmatmul.mubr.bf16.gmra.mxu0 %v2779
        %v2922 = vpop.f32.mrf.mxu0
        %v2923 = vadd.f32 0.0, %v2922
        %v2924 = vpop.f32.mrf.mxu0
        %v2925 = vpop.f32.mrf.mxu0
        %v2926 = vadd.f32 0.0, %v2925
        %v2927 = vpop.f32.mrf.mxu0
        %2928 = vmatprep.mubr.bf16.mxu0 0
        %2929 = vmatmul.mubr.bf16.gmra.mxu0 %v2780
        %v2930 = vpop.f32.mrf.mxu0
        %v2931 = vadd.f32 0.0, %v2930
        %v2932 = vpop.f32.mrf.mxu0
        %v2933 = vpop.f32.mrf.mxu0
        %v2934 = vadd.f32 0.0, %v2933
        %v2935 = vpop.f32.mrf.mxu0
        %2936 = vmatprep.mubr.bf16.mxu0 0
        %2937 = vmatmul.mubr.bf16.gmra.mxu0 %v2781
        %v2938 = vpop.f32.mrf.mxu0
        %v2939 = vadd.f32 0.0, %v2938
        %v2940 = vpop.f32.mrf.mxu0
        %v2941 = vpop.f32.mrf.mxu0
        %v2942 = vadd.f32 0.0, %v2941
        %v2943 = vpop.f32.mrf.mxu0
        %2944 = vmatprep.mubr.bf16.mxu0 0
        %2945 = vmatmul.mubr.bf16.gmra.mxu0 %v2782
        %v2946 = vpop.f32.mrf.mxu0
        %v2947 = vadd.f32 0.0, %v2946
        %v2948 = vpop.f32.mrf.mxu0
        %v2949 = vpop.f32.mrf.mxu0
        %v2950 = vadd.f32 0.0, %v2949
        %v2951 = vpop.f32.mrf.mxu0
        %2952 = vmatprep.mubr.bf16.mxu0 0
        %2953 = vmatmul.mubr.bf16.gmra.mxu0 %v2783
        %v2954 = vpop.f32.mrf.mxu0
        %v2955 = vadd.f32 0.0, %v2954
        %v2956 = vpop.f32.mrf.mxu0
        %v2957 = vpop.f32.mrf.mxu0
        %v2958 = vadd.f32 0.0, %v2957
        %v2959 = vpop.f32.mrf.mxu0
        %2960 = vmatprep.mubr.bf16.mxu0 0
        %2961 = vmatmul.mubr.bf16.gmra.mxu0 %v2784
        %v2962 = vpop.f32.mrf.mxu0
        %v2963 = vadd.f32 0.0, %v2962
        %v2964 = vpop.f32.mrf.mxu0
        %v2965 = vpop.f32.mrf.mxu0
        %v2966 = vadd.f32 0.0, %v2965
        %v2967 = vpop.f32.mrf.mxu0
        %2968 = vmatprep.mubr.bf16.mxu0 0
        %2969 = vmatmul.mubr.bf16.gmra.mxu0 %v2785
        %v2970 = vpop.f32.mrf.mxu0
        %v2971 = vadd.f32 0.0, %v2970
        %v2972 = vpop.f32.mrf.mxu0
        %v2973 = vpop.f32.mrf.mxu0
        %v2974 = vadd.f32 0.0, %v2973
        %v2975 = vpop.f32.mrf.mxu0
        %2976 = vmatprep.mubr.bf16.mxu0 0
        %2977 = vmatmul.mubr.bf16.gmra.mxu0 %v2786
        %v2978 = vpop.f32.mrf.mxu0
        %v2979 = vadd.f32 0.0, %v2978
        %v2980 = vpop.f32.mrf.mxu0
        %v2981 = vpop.f32.mrf.mxu0
        %v2982 = vadd.f32 0.0, %v2981
        %v2983 = vpop.f32.mrf.mxu0
        %2984 = vmatprep.mubr.bf16.mxu0 0
        %2985 = vmatmul.mubr.bf16.gmra.mxu0 %v2787
        %v2986 = vpop.f32.mrf.mxu0
        %v2987 = vadd.f32 0.0, %v2986
        %v2988 = vpop.f32.mrf.mxu0
        %v2989 = vpop.f32.mrf.mxu0
        %v2990 = vadd.f32 0.0, %v2989
        %v2991 = vpop.f32.mrf.mxu0
        %2992 = vmatprep.mubr.bf16.mxu0 0
        %2993 = vmatmul.mubr.bf16.gmra.mxu0 %v2788
        %v2994 = vpop.f32.mrf.mxu0
        %v2995 = vadd.f32 0.0, %v2994
        %v2996 = vpop.f32.mrf.mxu0
        %v2997 = vpop.f32.mrf.mxu0
        %v2998 = vadd.f32 0.0, %v2997
        %v2999 = vpop.f32.mrf.mxu0
        %3000 = vmatprep.mubr.bf16.mxu0 0
        %3001 = vmatmul.mubr.bf16.gmra.mxu0 %v2789
        %v3002 = vpop.f32.mrf.mxu0
        %v3003 = vadd.f32 0.0, %v3002
        %v3004 = vpop.f32.mrf.mxu0
        %v3005 = vpop.f32.mrf.mxu0
        %v3006 = vadd.f32 0.0, %v3005
        %v3007 = vpop.f32.mrf.mxu0
        %3008 = vmatprep.mubr.bf16.mxu0 0
        %3009 = vmatmul.mubr.bf16.gmra.mxu0 %v2790
        %v3010 = vpop.f32.mrf.mxu0
        %v3011 = vadd.f32 0.0, %v3010
        %v3012 = vpop.f32.mrf.mxu0
        %v3013 = vpop.f32.mrf.mxu0
        %v3014 = vadd.f32 0.0, %v3013
        %v3015 = vpop.f32.mrf.mxu0
        %3016 = vdwg.mxu0
        %v3017 = vadd.f32 %v2711, %v2891
        %v3018 = vadd.f32 %v2712, %v2894
        %v3019 = vadd.f32 %v2713, %v2899
        %v3020 = vadd.f32 %v2714, %v2902
        %v3021 = vadd.f32 %v2715, %v2907
        %v3022 = vadd.f32 %v2716, %v2910
        %v3023 = vadd.f32 %v2717, %v2915
        %v3024 = vadd.f32 %v2718, %v2918
        %v3025 = vadd.f32 %v2719, %v2923
        %v3026 = vadd.f32 %v2720, %v2926
        %v3027 = vadd.f32 %v2721, %v2931
        %v3028 = vadd.f32 %v2722, %v2934
        %v3029 = vadd.f32 %v2723, %v2939
        %v3030 = vadd.f32 %v2724, %v2942
        %v3031 = vadd.f32 %v2725, %v2947
        %v3032 = vadd.f32 %v2726, %v2950
        %v3033 = vadd.f32 %v2727, %v2955
        %v3034 = vadd.f32 %v2728, %v2958
        %v3035 = vadd.f32 %v2729, %v2963
        %v3036 = vadd.f32 %v2730, %v2966
        %v3037 = vadd.f32 %v2731, %v2971
        %v3038 = vadd.f32 %v2732, %v2974
        %v3039 = vadd.f32 %v2733, %v2979
        %v3040 = vadd.f32 %v2734, %v2982
        %v3041 = vadd.f32 %v2735, %v2987
        %v3042 = vadd.f32 %v2736, %v2990
        %v3043 = vadd.f32 %v2737, %v2995
        %v3044 = vadd.f32 %v2738, %v2998
        %v3045 = vadd.f32 %v2739, %v3003
        %v3046 = vadd.f32 %v2740, %v3006
        %v3047 = vadd.f32 %v2741, %v3011
        %v3048 = vadd.f32 %v2742, %v3014
        %v3050 = vlaneseq
        %v3051 = vshrl.u32 %v3050, 7
        %v3052 = vsub.s32 0, %v3051
        %v3053 = vrot.slane %v356, %v3052
        %v3055 = vmul.f32 %v3017, %v3053
        %v3056 = vmul.f32 %v3018, %v3053
        %v3057 = vmul.f32 %v3019, %v3053
        %v3058 = vmul.f32 %v3020, %v3053
        %v3059 = vmul.f32 %v3021, %v3053
        %v3060 = vmul.f32 %v3022, %v3053
        %v3061 = vmul.f32 %v3023, %v3053
        %v3062 = vmul.f32 %v3024, %v3053
        %v3063 = vmul.f32 %v3025, %v3053
        %v3064 = vmul.f32 %v3026, %v3053
        %v3065 = vmul.f32 %v3027, %v3053
        %v3066 = vmul.f32 %v3028, %v3053
        %v3067 = vmul.f32 %v3029, %v3053
        %v3068 = vmul.f32 %v3030, %v3053
        %v3069 = vmul.f32 %v3031, %v3053
        %v3070 = vmul.f32 %v3032, %v3053
        %v3071 = vmul.f32 %v3033, %v3053
        %v3072 = vmul.f32 %v3034, %v3053
        %v3073 = vmul.f32 %v3035, %v3053
        %v3074 = vmul.f32 %v3036, %v3053
        %v3075 = vmul.f32 %v3037, %v3053
        %v3076 = vmul.f32 %v3038, %v3053
        %v3077 = vmul.f32 %v3039, %v3053
        %v3078 = vmul.f32 %v3040, %v3053
        %v3079 = vmul.f32 %v3041, %v3053
        %v3080 = vmul.f32 %v3042, %v3053
        %v3081 = vmul.f32 %v3043, %v3053
        %v3082 = vmul.f32 %v3044, %v3053
        %v3083 = vmul.f32 %v3045, %v3053
        %v3084 = vmul.f32 %v3046, %v3053
        %v3085 = vmul.f32 %v3047, %v3053
        %v3086 = vmul.f32 %v3048, %v3053
        %v3088 = vlaneseq
        %v3089 = vshrl.u32 %v3088, 7
        %v3090 = vsub.s32 0, %v3089
        %v3091 = vrot.slane %v357, %v3090
        %v3093 = vadd.f32 %v3055, %v3091
        %v3094 = vadd.f32 %v3056, %v3091
        %v3095 = vadd.f32 %v3057, %v3091
        %v3096 = vadd.f32 %v3058, %v3091
        %v3097 = vadd.f32 %v3059, %v3091
        %v3098 = vadd.f32 %v3060, %v3091
        %v3099 = vadd.f32 %v3061, %v3091
        %v3100 = vadd.f32 %v3062, %v3091
        %v3101 = vadd.f32 %v3063, %v3091
        %v3102 = vadd.f32 %v3064, %v3091
        %v3103 = vadd.f32 %v3065, %v3091
        %v3104 = vadd.f32 %v3066, %v3091
        %v3105 = vadd.f32 %v3067, %v3091
        %v3106 = vadd.f32 %v3068, %v3091
        %v3107 = vadd.f32 %v3069, %v3091
        %v3108 = vadd.f32 %v3070, %v3091
        %v3109 = vadd.f32 %v3071, %v3091
        %v3110 = vadd.f32 %v3072, %v3091
        %v3111 = vadd.f32 %v3073, %v3091
        %v3112 = vadd.f32 %v3074, %v3091
        %v3113 = vadd.f32 %v3075, %v3091
        %v3114 = vadd.f32 %v3076, %v3091
        %v3115 = vadd.f32 %v3077, %v3091
        %v3116 = vadd.f32 %v3078, %v3091
        %v3117 = vadd.f32 %v3079, %v3091
        %v3118 = vadd.f32 %v3080, %v3091
        %v3119 = vadd.f32 %v3081, %v3091
        %v3120 = vadd.f32 %v3082, %v3091
        %v3121 = vadd.f32 %v3083, %v3091
        %v3122 = vadd.f32 %v3084, %v3091
        %v3123 = vadd.f32 %v3085, %v3091
        %v3124 = vadd.f32 %v3086, %v3091
        %v3125 = vmax.f32 %v3093, 0.0
        %v3126 = vmax.f32 %v3094, 0.0
        %v3127 = vmax.f32 %v3095, 0.0
        %v3128 = vmax.f32 %v3096, 0.0
        %v3129 = vmax.f32 %v3097, 0.0
        %v3130 = vmax.f32 %v3098, 0.0
        %v3131 = vmax.f32 %v3099, 0.0
        %v3132 = vmax.f32 %v3100, 0.0
        %v3133 = vmax.f32 %v3101, 0.0
        %v3134 = vmax.f32 %v3102, 0.0
        %v3135 = vmax.f32 %v3103, 0.0
        %v3136 = vmax.f32 %v3104, 0.0
        %v3137 = vmax.f32 %v3105, 0.0
        %v3138 = vmax.f32 %v3106, 0.0
        %v3139 = vmax.f32 %v3107, 0.0
        %v3140 = vmax.f32 %v3108, 0.0
        %v3141 = vmax.f32 %v3109, 0.0
        %v3142 = vmax.f32 %v3110, 0.0
        %v3143 = vmax.f32 %v3111, 0.0
        %v3144 = vmax.f32 %v3112, 0.0
        %v3145 = vmax.f32 %v3113, 0.0
        %v3146 = vmax.f32 %v3114, 0.0
        %v3147 = vmax.f32 %v3115, 0.0
        %v3148 = vmax.f32 %v3116, 0.0
        %v3149 = vmax.f32 %v3117, 0.0
        %v3150 = vmax.f32 %v3118, 0.0
        %v3151 = vmax.f32 %v3119, 0.0
        %v3152 = vmax.f32 %v3120, 0.0
        %v3153 = vmax.f32 %v3121, 0.0
        %v3154 = vmax.f32 %v3122, 0.0
        %v3155 = vmax.f32 %v3123, 0.0
        %v3156 = vmax.f32 %v3124, 0.0
        %v3157 = vld [vmem:[%s7] sm:$0xff]
        %v3158 = vld [vmem:[%s7 + $0x8] sm:$0xff]
        %v3159 = vld [vmem:[%s7 + $0x10] sm:$0xff]
        %v3160 = vld [vmem:[%s7 + $0x18] sm:$0xff]
        %v3161 = vld [vmem:[%s7 + $0x20] sm:$0xff]
        %v3162 = vld [vmem:[%s7 + $0x28] sm:$0xff]
        %v3163 = vld [vmem:[%s7 + $0x30] sm:$0xff]
        %v3164 = vld [vmem:[%s7 + $0x38] sm:$0xff]
        %v3165 = vld [vmem:[%s7 + $0x40] sm:$0xff]
        %v3166 = vld [vmem:[%s7 + $0x48] sm:$0xff]
        %v3167 = vld [vmem:[%s7 + $0x50] sm:$0xff]
        %v3168 = vld [vmem:[%s7 + $0x58] sm:$0xff]
        %v3169 = vld [vmem:[%s7 + $0x60] sm:$0xff]
        %v3170 = vld [vmem:[%s7 + $0x68] sm:$0xff]
        %v3171 = vld [vmem:[%s7 + $0x70] sm:$0xff]
        %v3172 = vld [vmem:[%s7 + $0x78] sm:$0xff]
        %v3173 = vld [vmem:[%s7 + $0x80] sm:$0xff]
        %v3174 = vld [vmem:[%s7 + $0x88] sm:$0xff]
        %v3175 = vld [vmem:[%s7 + $0x90] sm:$0xff]
        %v3176 = vld [vmem:[%s7 + $0x98] sm:$0xff]
        %v3177 = vld [vmem:[%s7 + $0xa0] sm:$0xff]
        %v3178 = vld [vmem:[%s7 + $0xa8] sm:$0xff]
        %v3179 = vld [vmem:[%s7 + $0xb0] sm:$0xff]
        %v3180 = vld [vmem:[%s7 + $0xb8] sm:$0xff]
        %v3181 = vld [vmem:[%s7 + $0xc0] sm:$0xff]
        %v3182 = vld [vmem:[%s7 + $0xc8] sm:$0xff]
        %v3183 = vld [vmem:[%s7 + $0xd0] sm:$0xff]
        %v3184 = vld [vmem:[%s7 + $0xd8] sm:$0xff]
        %v3185 = vld [vmem:[%s7 + $0xe0] sm:$0xff]
        %v3186 = vld [vmem:[%s7 + $0xe8] sm:$0xff]
        %v3187 = vld [vmem:[%s7 + $0xf0] sm:$0xff]
        %v3188 = vld [vmem:[%s7 + $0xf8] sm:$0xff]
        %3190 = vset.pattern.permute.xlu0 0
        %3191 = vperm.xlu0 %3190, %v3157
        %v3192 = vpop.permute.xlu0 %3191
        %3195 = vset.pattern.permute.xlu0 0
        %3196 = vperm.xlu0 %3195, %v3158
        %v3197 = vpop.permute.xlu0 %3196
        %3200 = vset.pattern.permute.xlu0 0
        %3201 = vperm.xlu0 %3200, %v3159
        %v3202 = vpop.permute.xlu0 %3201
        %3205 = vset.pattern.permute.xlu0 0
        %3206 = vperm.xlu0 %3205, %v3160
        %v3207 = vpop.permute.xlu0 %3206
        %3210 = vset.pattern.permute.xlu0 0
        %3211 = vperm.xlu0 %3210, %v3161
        %v3212 = vpop.permute.xlu0 %3211
        %3215 = vset.pattern.permute.xlu0 0
        %3216 = vperm.xlu0 %3215, %v3162
        %v3217 = vpop.permute.xlu0 %3216
        %3220 = vset.pattern.permute.xlu0 0
        %3221 = vperm.xlu0 %3220, %v3163
        %v3222 = vpop.permute.xlu0 %3221
        %3225 = vset.pattern.permute.xlu0 0
        %3226 = vperm.xlu0 %3225, %v3164
        %v3227 = vpop.permute.xlu0 %3226
        %3230 = vset.pattern.permute.xlu0 0
        %3231 = vperm.xlu0 %3230, %v3165
        %v3232 = vpop.permute.xlu0 %3231
        %3235 = vset.pattern.permute.xlu0 0
        %3236 = vperm.xlu0 %3235, %v3166
        %v3237 = vpop.permute.xlu0 %3236
        %3240 = vset.pattern.permute.xlu0 0
        %3241 = vperm.xlu0 %3240, %v3167
        %v3242 = vpop.permute.xlu0 %3241
        %3245 = vset.pattern.permute.xlu0 0
        %3246 = vperm.xlu0 %3245, %v3168
        %v3247 = vpop.permute.xlu0 %3246
        %3250 = vset.pattern.permute.xlu0 0
        %3251 = vperm.xlu0 %3250, %v3169
        %v3252 = vpop.permute.xlu0 %3251
        %3255 = vset.pattern.permute.xlu0 0
        %3256 = vperm.xlu0 %3255, %v3170
        %v3257 = vpop.permute.xlu0 %3256
        %3260 = vset.pattern.permute.xlu0 0
        %3261 = vperm.xlu0 %3260, %v3171
        %v3262 = vpop.permute.xlu0 %3261
        %3265 = vset.pattern.permute.xlu0 0
        %3266 = vperm.xlu0 %3265, %v3172
        %v3267 = vpop.permute.xlu0 %3266
        %3270 = vset.pattern.permute.xlu0 0
        %3271 = vperm.xlu0 %3270, %v3173
        %v3272 = vpop.permute.xlu0 %3271
        %3275 = vset.pattern.permute.xlu0 0
        %3276 = vperm.xlu0 %3275, %v3174
        %v3277 = vpop.permute.xlu0 %3276
        %3280 = vset.pattern.permute.xlu0 0
        %3281 = vperm.xlu0 %3280, %v3175
        %v3282 = vpop.permute.xlu0 %3281
        %3285 = vset.pattern.permute.xlu0 0
        %3286 = vperm.xlu0 %3285, %v3176
        %v3287 = vpop.permute.xlu0 %3286
        %3290 = vset.pattern.permute.xlu0 0
        %3291 = vperm.xlu0 %3290, %v3177
        %v3292 = vpop.permute.xlu0 %3291
        %3295 = vset.pattern.permute.xlu0 0
        %3296 = vperm.xlu0 %3295, %v3178
        %v3297 = vpop.permute.xlu0 %3296
        %3300 = vset.pattern.permute.xlu0 0
        %3301 = vperm.xlu0 %3300, %v3179
        %v3302 = vpop.permute.xlu0 %3301
        %3305 = vset.pattern.permute.xlu0 0
        %3306 = vperm.xlu0 %3305, %v3180
        %v3307 = vpop.permute.xlu0 %3306
        %3310 = vset.pattern.permute.xlu0 0
        %3311 = vperm.xlu0 %3310, %v3181
        %v3312 = vpop.permute.xlu0 %3311
        %3315 = vset.pattern.permute.xlu0 0
        %3316 = vperm.xlu0 %3315, %v3182
        %v3317 = vpop.permute.xlu0 %3316
        %3320 = vset.pattern.permute.xlu0 0
        %3321 = vperm.xlu0 %3320, %v3183
        %v3322 = vpop.permute.xlu0 %3321
        %3325 = vset.pattern.permute.xlu0 0
        %3326 = vperm.xlu0 %3325, %v3184
        %v3327 = vpop.permute.xlu0 %3326
        %3330 = vset.pattern.permute.xlu0 0
        %3331 = vperm.xlu0 %3330, %v3185
        %v3332 = vpop.permute.xlu0 %3331
        %3335 = vset.pattern.permute.xlu0 0
        %3336 = vperm.xlu0 %3335, %v3186
        %v3337 = vpop.permute.xlu0 %3336
        %3340 = vset.pattern.permute.xlu0 0
        %3341 = vperm.xlu0 %3340, %v3187
        %v3342 = vpop.permute.xlu0 %3341
        %3345 = vset.pattern.permute.xlu0 0
        %3346 = vperm.xlu0 %3345, %v3188
        %v3347 = vpop.permute.xlu0 %3346
        %v3349 = vmul.f32 %v3125, %v3192
        %v3350 = vmul.f32 %v3126, %v3197
        %v3351 = vmul.f32 %v3127, %v3202
        %v3352 = vmul.f32 %v3128, %v3207
        %v3353 = vmul.f32 %v3129, %v3212
        %v3354 = vmul.f32 %v3130, %v3217
        %v3355 = vmul.f32 %v3131, %v3222
        %v3356 = vmul.f32 %v3132, %v3227
        %v3357 = vmul.f32 %v3133, %v3232
        %v3358 = vmul.f32 %v3134, %v3237
        %v3359 = vmul.f32 %v3135, %v3242
        %v3360 = vmul.f32 %v3136, %v3247
        %v3361 = vmul.f32 %v3137, %v3252
        %v3362 = vmul.f32 %v3138, %v3257
        %v3363 = vmul.f32 %v3139, %v3262
        %v3364 = vmul.f32 %v3140, %v3267
        %v3365 = vmul.f32 %v3141, %v3272
        %v3366 = vmul.f32 %v3142, %v3277
        %v3367 = vmul.f32 %v3143, %v3282
        %v3368 = vmul.f32 %v3144, %v3287
        %v3369 = vmul.f32 %v3145, %v3292
        %v3370 = vmul.f32 %v3146, %v3297
        %v3371 = vmul.f32 %v3147, %v3302
        %v3372 = vmul.f32 %v3148, %v3307
        %v3373 = vmul.f32 %v3149, %v3312
        %v3374 = vmul.f32 %v3150, %v3317
        %v3375 = vmul.f32 %v3151, %v3322
        %v3376 = vmul.f32 %v3152, %v3327
        %v3377 = vmul.f32 %v3153, %v3332
        %v3378 = vmul.f32 %v3154, %v3337
        %v3379 = vmul.f32 %v3155, %v3342
        %v3380 = vmul.f32 %v3156, %v3347
        %3381 = vst [vmem:[#allocation2] sm:$0xff] %v3349
        %3382 = vst [vmem:[#allocation2 + $0x8] sm:$0xff] %v3350
        %3383 = vst [vmem:[#allocation2 + $0x10] sm:$0xff] %v3351
        %3384 = vst [vmem:[#allocation2 + $0x18] sm:$0xff] %v3352
        %3385 = vst [vmem:[#allocation2 + $0x20] sm:$0xff] %v3353
        %3386 = vst [vmem:[#allocation2 + $0x28] sm:$0xff] %v3354
        %3387 = vst [vmem:[#allocation2 + $0x30] sm:$0xff] %v3355
        %3388 = vst [vmem:[#allocation2 + $0x38] sm:$0xff] %v3356
        %3389 = vst [vmem:[#allocation2 + $0x40] sm:$0xff] %v3357
        %3390 = vst [vmem:[#allocation2 + $0x48] sm:$0xff] %v3358
        %3391 = vst [vmem:[#allocation2 + $0x50] sm:$0xff] %v3359
        %3392 = vst [vmem:[#allocation2 + $0x58] sm:$0xff] %v3360
        %3393 = vst [vmem:[#allocation2 + $0x60] sm:$0xff] %v3361
        %3394 = vst [vmem:[#allocation2 + $0x68] sm:$0xff] %v3362
        %3395 = vst [vmem:[#allocation2 + $0x70] sm:$0xff] %v3363
        %3396 = vst [vmem:[#allocation2 + $0x78] sm:$0xff] %v3364
        %3397 = vst [vmem:[#allocation2 + $0x80] sm:$0xff] %v3365
        %3398 = vst [vmem:[#allocation2 + $0x88] sm:$0xff] %v3366
        %3399 = vst [vmem:[#allocation2 + $0x90] sm:$0xff] %v3367
        %3400 = vst [vmem:[#allocation2 + $0x98] sm:$0xff] %v3368
        %3401 = vst [vmem:[#allocation2 + $0xa0] sm:$0xff] %v3369
        %3402 = vst [vmem:[#allocation2 + $0xa8] sm:$0xff] %v3370
        %3403 = vst [vmem:[#allocation2 + $0xb0] sm:$0xff] %v3371
        %3404 = vst [vmem:[#allocation2 + $0xb8] sm:$0xff] %v3372
        %3405 = vst [vmem:[#allocation2 + $0xc0] sm:$0xff] %v3373
        %3406 = vst [vmem:[#allocation2 + $0xc8] sm:$0xff] %v3374
        %3407 = vst [vmem:[#allocation2 + $0xd0] sm:$0xff] %v3375
        %3408 = vst [vmem:[#allocation2 + $0xd8] sm:$0xff] %v3376
        %3409 = vst [vmem:[#allocation2 + $0xe0] sm:$0xff] %v3377
        %3410 = vst [vmem:[#allocation2 + $0xe8] sm:$0xff] %v3378
        %3411 = vst [vmem:[#allocation2 + $0xf0] sm:$0xff] %v3379
        %3412 = vst [vmem:[#allocation2 + $0xf8] sm:$0xff] %v3380
        %v3413 = vld [vmem:[%s309 + $0x100] sm:$0xff]
        %v3414 = vld [vmem:[%s309 + $0x108] sm:$0xff]
        %v3415 = vld [vmem:[%s309 + $0x110] sm:$0xff]
        %v3416 = vld [vmem:[%s309 + $0x118] sm:$0xff]
        %v3417 = vld [vmem:[%s309 + $0x120] sm:$0xff]
        %v3418 = vld [vmem:[%s309 + $0x128] sm:$0xff]
        %v3419 = vld [vmem:[%s309 + $0x130] sm:$0xff]
        %v3420 = vld [vmem:[%s309 + $0x138] sm:$0xff]
        %v3421 = vld [vmem:[%s309 + $0x140] sm:$0xff]
        %v3422 = vld [vmem:[%s309 + $0x148] sm:$0xff]
        %v3423 = vld [vmem:[%s309 + $0x150] sm:$0xff]
        %v3424 = vld [vmem:[%s309 + $0x158] sm:$0xff]
        %v3425 = vld [vmem:[%s309 + $0x160] sm:$0x3f]
        %v3426 = vpack.c.bf16 %v3414, %v3413
        %v3427 = vpack.c.bf16 %v3416, %v3415
        %v3428 = vpack.c.bf16 %v3418, %v3417
        %v3429 = vpack.c.bf16 %v3420, %v3419
        %v3430 = vpack.c.bf16 %v3422, %v3421
        %v3431 = vpack.c.bf16 %v3424, %v3423
        %v3432 = vpack.c.bf16 %v3425, %v3425
        %v3433 = vld [vmem:[#allocation5] sm:$0xf]
        %v3434 = vld [vmem:[#allocation5 + $0x4] sm:$0xf]
        %v3435 = vld [vmem:[#allocation5 + $0x8] sm:$0xf]
        %v3436 = vld [vmem:[#allocation5 + $0xc] sm:$0xf]
        %v3437 = vld [vmem:[#allocation5 + $0x10] sm:$0xf]
        %v3438 = vld [vmem:[#allocation5 + $0x14] sm:$0xf]
        %v3439 = vld [vmem:[#allocation5 + $0x18] sm:$0xf]
        %v3440 = vld [vmem:[#allocation5 + $0x1c] sm:$0xf]
        %v3441 = vld [vmem:[#allocation5 + $0x20] sm:$0xf]
        %v3442 = vld [vmem:[#allocation5 + $0x24] sm:$0xf]
        %v3443 = vld [vmem:[#allocation5 + $0x28] sm:$0xf]
        %v3444 = vld [vmem:[#allocation5 + $0x2c] sm:$0xf]
        %v3445 = vld [vmem:[#allocation5 + $0x30] sm:$0xf]
        %v3446 = vld [vmem:[#allocation5 + $0x34] sm:$0xf]
        %v3447 = vld [vmem:[#allocation5 + $0x38] sm:$0xf]
        %v3448 = vld [vmem:[#allocation5 + $0x3c] sm:$0xf]
        %v3449 = vld [vmem:[%s309 + $0x101] sm:$0xff]
        %v3450 = vld [vmem:[%s309 + $0x109] sm:$0xff]
        %v3451 = vld [vmem:[%s309 + $0x111] sm:$0xff]
        %v3452 = vld [vmem:[%s309 + $0x119] sm:$0xff]
        %v3453 = vld [vmem:[%s309 + $0x121] sm:$0xff]
        %v3454 = vld [vmem:[%s309 + $0x129] sm:$0xff]
        %v3455 = vld [vmem:[%s309 + $0x131] sm:$0xff]
        %v3456 = vld [vmem:[%s309 + $0x139] sm:$0xff]
        %v3457 = vld [vmem:[%s309 + $0x141] sm:$0xff]
        %v3458 = vld [vmem:[%s309 + $0x149] sm:$0xff]
        %v3459 = vld [vmem:[%s309 + $0x151] sm:$0xff]
        %v3460 = vld [vmem:[%s309 + $0x159] sm:$0xff]
        %v3461 = vld [vmem:[%s309 + $0x161] sm:$0x3f]
        %v3462 = vpack.c.bf16 %v3450, %v3449
        %v3463 = vpack.c.bf16 %v3452, %v3451
        %v3464 = vpack.c.bf16 %v3454, %v3453
        %v3465 = vpack.c.bf16 %v3456, %v3455
        %v3466 = vpack.c.bf16 %v3458, %v3457
        %v3467 = vpack.c.bf16 %v3460, %v3459
        %v3468 = vpack.c.bf16 %v3461, %v3461
        %v3469 = vld [vmem:[%s472] sm:$0xf]
        %v3470 = vld [vmem:[%s472 + $0x4] sm:$0xf]
        %v3471 = vld [vmem:[%s472 + $0x8] sm:$0xf]
        %v3472 = vld [vmem:[%s472 + $0xc] sm:$0xf]
        %v3473 = vld [vmem:[%s472 + $0x10] sm:$0xf]
        %v3474 = vld [vmem:[%s472 + $0x14] sm:$0xf]
        %v3475 = vld [vmem:[%s472 + $0x18] sm:$0xf]
        %v3476 = vld [vmem:[%s472 + $0x1c] sm:$0xf]
        %v3477 = vld [vmem:[%s472 + $0x20] sm:$0xf]
        %v3478 = vld [vmem:[%s472 + $0x24] sm:$0xf]
        %v3479 = vld [vmem:[%s472 + $0x28] sm:$0xf]
        %v3480 = vld [vmem:[%s472 + $0x2c] sm:$0xf]
        %v3481 = vld [vmem:[%s472 + $0x30] sm:$0xf]
        %v3482 = vld [vmem:[%s472 + $0x34] sm:$0xf]
        %v3483 = vld [vmem:[%s472 + $0x38] sm:$0xf]
        %v3484 = vld [vmem:[%s472 + $0x3c] sm:$0xf]
        %v3501 = vunpack.c.l.b16 %v3469
        %v3502 = vunpack.c.l.b16 %v3470
        %v3503 = vunpack.c.l.b16 %v3471
        %v3504 = vunpack.c.l.b16 %v3472
        %v3505 = vunpack.c.l.b16 %v3473
        %v3506 = vunpack.c.l.b16 %v3474
        %v3507 = vunpack.c.l.b16 %v3475
        %v3508 = vunpack.c.l.b16 %v3476
        %v3509 = vunpack.c.l.b16 %v3477
        %v3510 = vunpack.c.l.b16 %v3478
        %v3511 = vunpack.c.l.b16 %v3479
        %v3512 = vunpack.c.l.b16 %v3480
        %v3513 = vunpack.c.l.b16 %v3481
        %v3514 = vunpack.c.l.b16 %v3482
        %v3515 = vunpack.c.l.b16 %v3483
        %v3516 = vunpack.c.l.b16 %v3484
        %v3517 = vpack.c.b16 %v3502, %v3501
        %v3518 = vpack.c.b16 %v3504, %v3503
        %v3519 = vpack.c.b16 %v3506, %v3505
        %v3520 = vpack.c.b16 %v3508, %v3507
        %v3521 = vpack.c.b16 %v3510, %v3509
        %v3522 = vpack.c.b16 %v3512, %v3511
        %v3523 = vpack.c.b16 %v3514, %v3513
        %v3524 = vpack.c.b16 %v3516, %v3515
        %3533 = vmatprep.subr.bf16.mxu0 0
        %3534 = vmatpush1.bf16.msra.mxu0 %v3524
        %3535 = vmatprep.subr.bf16.mxu0 0
        %3536 = vmatpush1.bf16.msra.mxu0 %v3523
        %3537 = vmatprep.subr.bf16.mxu0 0
        %3538 = vmatpush1.bf16.msra.mxu0 %v3522
        %3539 = vmatprep.subr.bf16.mxu0 0
        %3540 = vmatpush1.bf16.msra.mxu0 %v3521
        %3541 = vmatprep.subr.bf16.mxu0 0
        %3542 = vmatpush1.bf16.msra.mxu0 %v3520
        %3543 = vmatprep.subr.bf16.mxu0 0
        %3544 = vmatpush1.bf16.msra.mxu0 %v3519
        %3545 = vmatprep.subr.bf16.mxu0 0
        %3546 = vmatpush1.bf16.msra.mxu0 %v3518
        %3547 = vmatprep.subr.bf16.mxu0 0
        %3548 = vmatpush1.bf16.msra.mxu0 %v3517
        %3549 = vmatprep.subr.bf16.mxu0 0
        %3550 = vmatpush2.bf16.msra.mxu0 0
        %3551 = vmatprep.subr.bf16.mxu0 0
        %3552 = vmatpush2.bf16.msra.mxu0 0
        %3553 = vmatprep.subr.bf16.mxu0 0
        %3554 = vmatpush2.bf16.msra.mxu0 0
        %3555 = vmatprep.subr.bf16.mxu0 0
        %3556 = vmatpush2.bf16.msra.mxu0 0
        %3557 = vmatprep.subr.bf16.mxu0 0
        %3558 = vmatpush2.bf16.msra.mxu0 0
        %3559 = vmatprep.subr.bf16.mxu0 0
        %3560 = vmatpush2.bf16.msra.mxu0 0
        %3561 = vmatprep.subr.bf16.mxu0 0
        %3562 = vmatpush2.bf16.msra.mxu0 0
        %3563 = vmatprep.subr.bf16.mxu0 0
        %3564 = vmatpush2.bf16.msra.mxu0 0
        %3565 = vmatprep.mubr.bf16.mxu0 0
        %3566 = vmatmul.mubr.bf16.gmra.mxu0 %v3462
        %v3567 = vpop.f32.mrf.mxu0
        %v3568 = vadd.f32 0.0, %v3567
        %v3569 = vpop.f32.mrf.mxu0
        %v3570 = vpop.f32.mrf.mxu0
        %v3571 = vadd.f32 0.0, %v3570
        %v3572 = vpop.f32.mrf.mxu0
        %3573 = vmatprep.mubr.bf16.mxu0 0
        %3574 = vmatmul.mubr.bf16.gmra.mxu0 %v3463
        %v3575 = vpop.f32.mrf.mxu0
        %v3576 = vadd.f32 0.0, %v3575
        %v3577 = vpop.f32.mrf.mxu0
        %v3578 = vpop.f32.mrf.mxu0
        %v3579 = vadd.f32 0.0, %v3578
        %v3580 = vpop.f32.mrf.mxu0
        %3581 = vmatprep.mubr.bf16.mxu0 0
        %3582 = vmatmul.mubr.bf16.gmra.mxu0 %v3464
        %v3583 = vpop.f32.mrf.mxu0
        %v3584 = vadd.f32 0.0, %v3583
        %v3585 = vpop.f32.mrf.mxu0
        %v3586 = vpop.f32.mrf.mxu0
        %v3587 = vadd.f32 0.0, %v3586
        %v3588 = vpop.f32.mrf.mxu0
        %3589 = vmatprep.mubr.bf16.mxu0 0
        %3590 = vmatmul.mubr.bf16.gmra.mxu0 %v3465
        %v3591 = vpop.f32.mrf.mxu0
        %v3592 = vadd.f32 0.0, %v3591
        %v3593 = vpop.f32.mrf.mxu0
        %v3594 = vpop.f32.mrf.mxu0
        %v3595 = vadd.f32 0.0, %v3594
        %v3596 = vpop.f32.mrf.mxu0
        %3597 = vmatprep.mubr.bf16.mxu0 0
        %3598 = vmatmul.mubr.bf16.gmra.mxu0 %v3466
        %v3599 = vpop.f32.mrf.mxu0
        %v3600 = vadd.f32 0.0, %v3599
        %v3601 = vpop.f32.mrf.mxu0
        %v3602 = vpop.f32.mrf.mxu0
        %v3603 = vadd.f32 0.0, %v3602
        %v3604 = vpop.f32.mrf.mxu0
        %3605 = vmatprep.mubr.bf16.mxu0 0
        %3606 = vmatmul.mubr.bf16.gmra.mxu0 %v3467
        %v3607 = vpop.f32.mrf.mxu0
        %v3608 = vadd.f32 0.0, %v3607
        %v3609 = vpop.f32.mrf.mxu0
        %v3610 = vpop.f32.mrf.mxu0
        %v3611 = vadd.f32 0.0, %v3610
        %v3612 = vpop.f32.mrf.mxu0
        %3613 = vmatprep.mubr.bf16.mxu0 0
        %3614 = vmatmul.mubr.bf16.gmra.mxu0 %v3468
        %v3615 = vpop.f32.mrf.mxu0
        %v3616 = vadd.f32 0.0, %v3615
        %v3617 = vpop.f32.mrf.mxu0
        %v3618 = vpop.f32.mrf.mxu0
        %v3619 = vpop.f32.mrf.mxu0
        %3620 = vdwg.mxu0
        %v3637 = vunpack.c.l.b16 %v3433
        %v3638 = vunpack.c.l.b16 %v3434
        %v3639 = vunpack.c.l.b16 %v3435
        %v3640 = vunpack.c.l.b16 %v3436
        %v3641 = vunpack.c.l.b16 %v3437
        %v3642 = vunpack.c.l.b16 %v3438
        %v3643 = vunpack.c.l.b16 %v3439
        %v3644 = vunpack.c.l.b16 %v3440
        %v3645 = vunpack.c.l.b16 %v3441
        %v3646 = vunpack.c.l.b16 %v3442
        %v3647 = vunpack.c.l.b16 %v3443
        %v3648 = vunpack.c.l.b16 %v3444
        %v3649 = vunpack.c.l.b16 %v3445
        %v3650 = vunpack.c.l.b16 %v3446
        %v3651 = vunpack.c.l.b16 %v3447
        %v3652 = vunpack.c.l.b16 %v3448
        %v3653 = vpack.c.b16 %v3638, %v3637
        %v3654 = vpack.c.b16 %v3640, %v3639
        %v3655 = vpack.c.b16 %v3642, %v3641
        %v3656 = vpack.c.b16 %v3644, %v3643
        %v3657 = vpack.c.b16 %v3646, %v3645
        %v3658 = vpack.c.b16 %v3648, %v3647
        %v3659 = vpack.c.b16 %v3650, %v3649
        %v3660 = vpack.c.b16 %v3652, %v3651
        %3669 = vmatprep.subr.bf16.mxu0 0
        %3670 = vmatpush1.bf16.msra.mxu0 %v3660
        %3671 = vmatprep.subr.bf16.mxu0 0
        %3672 = vmatpush1.bf16.msra.mxu0 %v3659
        %3673 = vmatprep.subr.bf16.mxu0 0
        %3674 = vmatpush1.bf16.msra.mxu0 %v3658
        %3675 = vmatprep.subr.bf16.mxu0 0
        %3676 = vmatpush1.bf16.msra.mxu0 %v3657
        %3677 = vmatprep.subr.bf16.mxu0 0
        %3678 = vmatpush1.bf16.msra.mxu0 %v3656
        %3679 = vmatprep.subr.bf16.mxu0 0
        %3680 = vmatpush1.bf16.msra.mxu0 %v3655
        %3681 = vmatprep.subr.bf16.mxu0 0
        %3682 = vmatpush1.bf16.msra.mxu0 %v3654
        %3683 = vmatprep.subr.bf16.mxu0 0
        %3684 = vmatpush1.bf16.msra.mxu0 %v3653
        %3685 = vmatprep.subr.bf16.mxu0 0
        %3686 = vmatpush2.bf16.msra.mxu0 0
        %3687 = vmatprep.subr.bf16.mxu0 0
        %3688 = vmatpush2.bf16.msra.mxu0 0
        %3689 = vmatprep.subr.bf16.mxu0 0
        %3690 = vmatpush2.bf16.msra.mxu0 0
        %3691 = vmatprep.subr.bf16.mxu0 0
        %3692 = vmatpush2.bf16.msra.mxu0 0
        %3693 = vmatprep.subr.bf16.mxu0 0
        %3694 = vmatpush2.bf16.msra.mxu0 0
        %3695 = vmatprep.subr.bf16.mxu0 0
        %3696 = vmatpush2.bf16.msra.mxu0 0
        %3697 = vmatprep.subr.bf16.mxu0 0
        %3698 = vmatpush2.bf16.msra.mxu0 0
        %3699 = vmatprep.subr.bf16.mxu0 0
        %3700 = vmatpush2.bf16.msra.mxu0 0
        %3701 = vmatprep.mubr.bf16.mxu0 0
        %3702 = vmatmul.mubr.bf16.gmra.mxu0 %v3426
        %v3703 = vpop.f32.mrf.mxu0
        %v3704 = vadd.f32 %v3568, %v3703
        %v3705 = vpop.f32.mrf.mxu0
        %v3706 = vpop.f32.mrf.mxu0
        %v3707 = vadd.f32 %v3571, %v3706
        %v3708 = vpop.f32.mrf.mxu0
        %3709 = vmatprep.mubr.bf16.mxu0 0
        %3710 = vmatmul.mubr.bf16.gmra.mxu0 %v3427
        %v3711 = vpop.f32.mrf.mxu0
        %v3712 = vadd.f32 %v3576, %v3711
        %v3713 = vpop.f32.mrf.mxu0
        %v3714 = vpop.f32.mrf.mxu0
        %v3715 = vadd.f32 %v3579, %v3714
        %v3716 = vpop.f32.mrf.mxu0
        %3717 = vmatprep.mubr.bf16.mxu0 0
        %3718 = vmatmul.mubr.bf16.gmra.mxu0 %v3428
        %v3719 = vpop.f32.mrf.mxu0
        %v3720 = vadd.f32 %v3584, %v3719
        %v3721 = vpop.f32.mrf.mxu0
        %v3722 = vpop.f32.mrf.mxu0
        %v3723 = vadd.f32 %v3587, %v3722
        %v3724 = vpop.f32.mrf.mxu0
        %3725 = vmatprep.mubr.bf16.mxu0 0
        %3726 = vmatmul.mubr.bf16.gmra.mxu0 %v3429
        %v3727 = vpop.f32.mrf.mxu0
        %v3728 = vadd.f32 %v3592, %v3727
        %v3729 = vpop.f32.mrf.mxu0
        %v3730 = vpop.f32.mrf.mxu0
        %v3731 = vadd.f32 %v3595, %v3730
        %v3732 = vpop.f32.mrf.mxu0
        %3733 = vmatprep.mubr.bf16.mxu0 0
        %3734 = vmatmul.mubr.bf16.gmra.mxu0 %v3430
        %v3735 = vpop.f32.mrf.mxu0
        %v3736 = vadd.f32 %v3600, %v3735
        %v3737 = vpop.f32.mrf.mxu0
        %v3738 = vpop.f32.mrf.mxu0
        %v3739 = vadd.f32 %v3603, %v3738
        %v3740 = vpop.f32.mrf.mxu0
        %3741 = vmatprep.mubr.bf16.mxu0 0
        %3742 = vmatmul.mubr.bf16.gmra.mxu0 %v3431
        %v3743 = vpop.f32.mrf.mxu0
        %v3744 = vadd.f32 %v3608, %v3743
        %v3745 = vpop.f32.mrf.mxu0
        %v3746 = vpop.f32.mrf.mxu0
        %v3747 = vadd.f32 %v3611, %v3746
        %v3748 = vpop.f32.mrf.mxu0
        %3749 = vmatprep.mubr.bf16.mxu0 0
        %3750 = vmatmul.mubr.bf16.gmra.mxu0 %v3432
        %v3751 = vpop.f32.mrf.mxu0
        %v3752 = vadd.f32 %v3616, %v3751
        %v3753 = vpop.f32.mrf.mxu0
        %v3754 = vpop.f32.mrf.mxu0
        %v3755 = vpop.f32.mrf.mxu0
        %3756 = vdwg.mxu0
        %v3757 = vld [vmem:[%s309 + $0x102] sm:$0xff]
        %v3758 = vld [vmem:[%s309 + $0x10a] sm:$0xff]
        %v3759 = vld [vmem:[%s309 + $0x112] sm:$0xff]
        %v3760 = vld [vmem:[%s309 + $0x11a] sm:$0xff]
        %v3761 = vld [vmem:[%s309 + $0x122] sm:$0xff]
        %v3762 = vld [vmem:[%s309 + $0x12a] sm:$0xff]
        %v3763 = vld [vmem:[%s309 + $0x132] sm:$0xff]
        %v3764 = vld [vmem:[%s309 + $0x13a] sm:$0xff]
        %v3765 = vld [vmem:[%s309 + $0x142] sm:$0xff]
        %v3766 = vld [vmem:[%s309 + $0x14a] sm:$0xff]
        %v3767 = vld [vmem:[%s309 + $0x152] sm:$0xff]
        %v3768 = vld [vmem:[%s309 + $0x15a] sm:$0xff]
        %v3769 = vld [vmem:[%s309 + $0x162] sm:$0x3f]
        %v3770 = vpack.c.bf16 %v3758, %v3757
        %v3771 = vpack.c.bf16 %v3760, %v3759
        %v3772 = vpack.c.bf16 %v3762, %v3761
        %v3773 = vpack.c.bf16 %v3764, %v3763
        %v3774 = vpack.c.bf16 %v3766, %v3765
        %v3775 = vpack.c.bf16 %v3768, %v3767
        %v3776 = vpack.c.bf16 %v3769, %v3769
        %v3777 = vld [vmem:[%s955] sm:$0xf]
        %v3778 = vld [vmem:[%s955 + $0x4] sm:$0xf]
        %v3779 = vld [vmem:[%s955 + $0x8] sm:$0xf]
        %v3780 = vld [vmem:[%s955 + $0xc] sm:$0xf]
        %v3781 = vld [vmem:[%s955 + $0x10] sm:$0xf]
        %v3782 = vld [vmem:[%s955 + $0x14] sm:$0xf]
        %v3783 = vld [vmem:[%s955 + $0x18] sm:$0xf]
        %v3784 = vld [vmem:[%s955 + $0x1c] sm:$0xf]
        %v3785 = vld [vmem:[%s955 + $0x20] sm:$0xf]
        %v3786 = vld [vmem:[%s955 + $0x24] sm:$0xf]
        %v3787 = vld [vmem:[%s955 + $0x28] sm:$0xf]
        %v3788 = vld [vmem:[%s955 + $0x2c] sm:$0xf]
        %v3789 = vld [vmem:[%s955 + $0x30] sm:$0xf]
        %v3790 = vld [vmem:[%s955 + $0x34] sm:$0xf]
        %v3791 = vld [vmem:[%s955 + $0x38] sm:$0xf]
        %v3792 = vld [vmem:[%s955 + $0x3c] sm:$0xf]
        %v3809 = vunpack.c.l.b16 %v3777
        %v3810 = vunpack.c.l.b16 %v3778
        %v3811 = vunpack.c.l.b16 %v3779
        %v3812 = vunpack.c.l.b16 %v3780
        %v3813 = vunpack.c.l.b16 %v3781
        %v3814 = vunpack.c.l.b16 %v3782
        %v3815 = vunpack.c.l.b16 %v3783
        %v3816 = vunpack.c.l.b16 %v3784
        %v3817 = vunpack.c.l.b16 %v3785
        %v3818 = vunpack.c.l.b16 %v3786
        %v3819 = vunpack.c.l.b16 %v3787
        %v3820 = vunpack.c.l.b16 %v3788
        %v3821 = vunpack.c.l.b16 %v3789
        %v3822 = vunpack.c.l.b16 %v3790
        %v3823 = vunpack.c.l.b16 %v3791
        %v3824 = vunpack.c.l.b16 %v3792
        %v3825 = vpack.c.b16 %v3810, %v3809
        %v3826 = vpack.c.b16 %v3812, %v3811
        %v3827 = vpack.c.b16 %v3814, %v3813
        %v3828 = vpack.c.b16 %v3816, %v3815
        %v3829 = vpack.c.b16 %v3818, %v3817
        %v3830 = vpack.c.b16 %v3820, %v3819
        %v3831 = vpack.c.b16 %v3822, %v3821
        %v3832 = vpack.c.b16 %v3824, %v3823
        %3841 = vmatprep.subr.bf16.mxu0 0
        %3842 = vmatpush1.bf16.msra.mxu0 %v3832
        %3843 = vmatprep.subr.bf16.mxu0 0
        %3844 = vmatpush1.bf16.msra.mxu0 %v3831
        %3845 = vmatprep.subr.bf16.mxu0 0
        %3846 = vmatpush1.bf16.msra.mxu0 %v3830
        %3847 = vmatprep.subr.bf16.mxu0 0
        %3848 = vmatpush1.bf16.msra.mxu0 %v3829
        %3849 = vmatprep.subr.bf16.mxu0 0
        %3850 = vmatpush1.bf16.msra.mxu0 %v3828
        %3851 = vmatprep.subr.bf16.mxu0 0
        %3852 = vmatpush1.bf16.msra.mxu0 %v3827
        %3853 = vmatprep.subr.bf16.mxu0 0
        %3854 = vmatpush1.bf16.msra.mxu0 %v3826
        %3855 = vmatprep.subr.bf16.mxu0 0
        %3856 = vmatpush1.bf16.msra.mxu0 %v3825
        %3857 = vmatprep.subr.bf16.mxu0 0
        %3858 = vmatpush2.bf16.msra.mxu0 0
        %3859 = vmatprep.subr.bf16.mxu0 0
        %3860 = vmatpush2.bf16.msra.mxu0 0
        %3861 = vmatprep.subr.bf16.mxu0 0
        %3862 = vmatpush2.bf16.msra.mxu0 0
        %3863 = vmatprep.subr.bf16.mxu0 0
        %3864 = vmatpush2.bf16.msra.mxu0 0
        %3865 = vmatprep.subr.bf16.mxu0 0
        %3866 = vmatpush2.bf16.msra.mxu0 0
        %3867 = vmatprep.subr.bf16.mxu0 0
        %3868 = vmatpush2.bf16.msra.mxu0 0
        %3869 = vmatprep.subr.bf16.mxu0 0
        %3870 = vmatpush2.bf16.msra.mxu0 0
        %3871 = vmatprep.subr.bf16.mxu0 0
        %3872 = vmatpush2.bf16.msra.mxu0 0
        %3873 = vmatprep.mubr.bf16.mxu0 0
        %3874 = vmatmul.mubr.bf16.gmra.mxu0 %v3770
        %v3875 = vpop.f32.mrf.mxu0
        %v3876 = vadd.f32 0.0, %v3875
        %v3877 = vpop.f32.mrf.mxu0
        %v3878 = vpop.f32.mrf.mxu0
        %v3879 = vadd.f32 0.0, %v3878
        %v3880 = vpop.f32.mrf.mxu0
        %3881 = vmatprep.mubr.bf16.mxu0 0
        %3882 = vmatmul.mubr.bf16.gmra.mxu0 %v3771
        %v3883 = vpop.f32.mrf.mxu0
        %v3884 = vadd.f32 0.0, %v3883
        %v3885 = vpop.f32.mrf.mxu0
        %v3886 = vpop.f32.mrf.mxu0
        %v3887 = vadd.f32 0.0, %v3886
        %v3888 = vpop.f32.mrf.mxu0
        %3889 = vmatprep.mubr.bf16.mxu0 0
        %3890 = vmatmul.mubr.bf16.gmra.mxu0 %v3772
        %v3891 = vpop.f32.mrf.mxu0
        %v3892 = vadd.f32 0.0, %v3891
        %v3893 = vpop.f32.mrf.mxu0
        %v3894 = vpop.f32.mrf.mxu0
        %v3895 = vadd.f32 0.0, %v3894
        %v3896 = vpop.f32.mrf.mxu0
        %3897 = vmatprep.mubr.bf16.mxu0 0
        %3898 = vmatmul.mubr.bf16.gmra.mxu0 %v3773
        %v3899 = vpop.f32.mrf.mxu0
        %v3900 = vadd.f32 0.0, %v3899
        %v3901 = vpop.f32.mrf.mxu0
        %v3902 = vpop.f32.mrf.mxu0
        %v3903 = vadd.f32 0.0, %v3902
        %v3904 = vpop.f32.mrf.mxu0
        %3905 = vmatprep.mubr.bf16.mxu0 0
        %3906 = vmatmul.mubr.bf16.gmra.mxu0 %v3774
        %v3907 = vpop.f32.mrf.mxu0
        %v3908 = vadd.f32 0.0, %v3907
        %v3909 = vpop.f32.mrf.mxu0
        %v3910 = vpop.f32.mrf.mxu0
        %v3911 = vadd.f32 0.0, %v3910
        %v3912 = vpop.f32.mrf.mxu0
        %3913 = vmatprep.mubr.bf16.mxu0 0
        %3914 = vmatmul.mubr.bf16.gmra.mxu0 %v3775
        %v3915 = vpop.f32.mrf.mxu0
        %v3916 = vadd.f32 0.0, %v3915
        %v3917 = vpop.f32.mrf.mxu0
        %v3918 = vpop.f32.mrf.mxu0
        %v3919 = vadd.f32 0.0, %v3918
        %v3920 = vpop.f32.mrf.mxu0
        %3921 = vmatprep.mubr.bf16.mxu0 0
        %3922 = vmatmul.mubr.bf16.gmra.mxu0 %v3776
        %v3923 = vpop.f32.mrf.mxu0
        %v3924 = vadd.f32 0.0, %v3923
        %v3925 = vpop.f32.mrf.mxu0
        %v3926 = vpop.f32.mrf.mxu0
        %v3927 = vpop.f32.mrf.mxu0
        %3928 = vdwg.mxu0
        %v3929 = vadd.f32 %v3704, %v3876
        %v3930 = vadd.f32 %v3707, %v3879
        %v3931 = vadd.f32 %v3712, %v3884
        %v3932 = vadd.f32 %v3715, %v3887
        %v3933 = vadd.f32 %v3720, %v3892
        %v3934 = vadd.f32 %v3723, %v3895
        %v3935 = vadd.f32 %v3728, %v3900
        %v3936 = vadd.f32 %v3731, %v3903
        %v3937 = vadd.f32 %v3736, %v3908
        %v3938 = vadd.f32 %v3739, %v3911
        %v3939 = vadd.f32 %v3744, %v3916
        %v3940 = vadd.f32 %v3747, %v3919
        %v3941 = vadd.f32 %v3752, %v3924
        %v3942 = vld [vmem:[%s309 + $0x114] sm:$0xff]
        %v3943 = vld [vmem:[%s309 + $0x11c] sm:$0xff]
        %v3944 = vld [vmem:[%s309 + $0x124] sm:$0xff]
        %v3945 = vld [vmem:[%s309 + $0x12c] sm:$0xff]
        %v3946 = vld [vmem:[%s309 + $0x134] sm:$0xff]
        %v3947 = vld [vmem:[%s309 + $0x13c] sm:$0xff]
        %v3948 = vld [vmem:[%s309 + $0x144] sm:$0xff]
        %v3949 = vld [vmem:[%s309 + $0x14c] sm:$0xff]
        %v3950 = vld [vmem:[%s309 + $0x154] sm:$0xff]
        %v3951 = vld [vmem:[%s309 + $0x15c] sm:$0xff]
        %v3952 = vld [vmem:[%s309 + $0x164] sm:$0xff]
        %v3953 = vld [vmem:[%s309 + $0x16c] sm:$0xff]
        %v3954 = vld [vmem:[%s309 + $0x174] sm:$0x3f]
        %v3955 = vpack.c.bf16 %v3943, %v3942
        %v3956 = vpack.c.bf16 %v3945, %v3944
        %v3957 = vpack.c.bf16 %v3947, %v3946
        %v3958 = vpack.c.bf16 %v3949, %v3948
        %v3959 = vpack.c.bf16 %v3951, %v3950
        %v3960 = vpack.c.bf16 %v3953, %v3952
        %v3961 = vpack.c.bf16 %v3954, %v3954
        %v3962 = vld [vmem:[%s1261] sm:$0xf]
        %v3963 = vld [vmem:[%s1261 + $0x4] sm:$0xf]
        %v3964 = vld [vmem:[%s1261 + $0x8] sm:$0xf]
        %v3965 = vld [vmem:[%s1261 + $0xc] sm:$0xf]
        %v3966 = vld [vmem:[%s1261 + $0x10] sm:$0xf]
        %v3967 = vld [vmem:[%s1261 + $0x14] sm:$0xf]
        %v3968 = vld [vmem:[%s1261 + $0x18] sm:$0xf]
        %v3969 = vld [vmem:[%s1261 + $0x1c] sm:$0xf]
        %v3970 = vld [vmem:[%s1261 + $0x20] sm:$0xf]
        %v3971 = vld [vmem:[%s1261 + $0x24] sm:$0xf]
        %v3972 = vld [vmem:[%s1261 + $0x28] sm:$0xf]
        %v3973 = vld [vmem:[%s1261 + $0x2c] sm:$0xf]
        %v3974 = vld [vmem:[%s1261 + $0x30] sm:$0xf]
        %v3975 = vld [vmem:[%s1261 + $0x34] sm:$0xf]
        %v3976 = vld [vmem:[%s1261 + $0x38] sm:$0xf]
        %v3977 = vld [vmem:[%s1261 + $0x3c] sm:$0xf]
        %v3994 = vunpack.c.l.b16 %v3962
        %v3995 = vunpack.c.l.b16 %v3963
        %v3996 = vunpack.c.l.b16 %v3964
        %v3997 = vunpack.c.l.b16 %v3965
        %v3998 = vunpack.c.l.b16 %v3966
        %v3999 = vunpack.c.l.b16 %v3967
        %v4000 = vunpack.c.l.b16 %v3968
        %v4001 = vunpack.c.l.b16 %v3969
        %v4002 = vunpack.c.l.b16 %v3970
        %v4003 = vunpack.c.l.b16 %v3971
        %v4004 = vunpack.c.l.b16 %v3972
        %v4005 = vunpack.c.l.b16 %v3973
        %v4006 = vunpack.c.l.b16 %v3974
        %v4007 = vunpack.c.l.b16 %v3975
        %v4008 = vunpack.c.l.b16 %v3976
        %v4009 = vunpack.c.l.b16 %v3977
        %v4010 = vpack.c.b16 %v3995, %v3994
        %v4011 = vpack.c.b16 %v3997, %v3996
        %v4012 = vpack.c.b16 %v3999, %v3998
        %v4013 = vpack.c.b16 %v4001, %v4000
        %v4014 = vpack.c.b16 %v4003, %v4002
        %v4015 = vpack.c.b16 %v4005, %v4004
        %v4016 = vpack.c.b16 %v4007, %v4006
        %v4017 = vpack.c.b16 %v4009, %v4008
        %4026 = vmatprep.subr.bf16.mxu0 0
        %4027 = vmatpush1.bf16.msra.mxu0 %v4017
        %4028 = vmatprep.subr.bf16.mxu0 0
        %4029 = vmatpush1.bf16.msra.mxu0 %v4016
        %4030 = vmatprep.subr.bf16.mxu0 0
        %4031 = vmatpush1.bf16.msra.mxu0 %v4015
        %4032 = vmatprep.subr.bf16.mxu0 0
        %4033 = vmatpush1.bf16.msra.mxu0 %v4014
        %4034 = vmatprep.subr.bf16.mxu0 0
        %4035 = vmatpush1.bf16.msra.mxu0 %v4013
        %4036 = vmatprep.subr.bf16.mxu0 0
        %4037 = vmatpush1.bf16.msra.mxu0 %v4012
        %4038 = vmatprep.subr.bf16.mxu0 0
        %4039 = vmatpush1.bf16.msra.mxu0 %v4011
        %4040 = vmatprep.subr.bf16.mxu0 0
        %4041 = vmatpush1.bf16.msra.mxu0 %v4010
        %4042 = vmatprep.subr.bf16.mxu0 0
        %4043 = vmatpush2.bf16.msra.mxu0 0
        %4044 = vmatprep.subr.bf16.mxu0 0
        %4045 = vmatpush2.bf16.msra.mxu0 0
        %4046 = vmatprep.subr.bf16.mxu0 0
        %4047 = vmatpush2.bf16.msra.mxu0 0
        %4048 = vmatprep.subr.bf16.mxu0 0
        %4049 = vmatpush2.bf16.msra.mxu0 0
        %4050 = vmatprep.subr.bf16.mxu0 0
        %4051 = vmatpush2.bf16.msra.mxu0 0
        %4052 = vmatprep.subr.bf16.mxu0 0
        %4053 = vmatpush2.bf16.msra.mxu0 0
        %4054 = vmatprep.subr.bf16.mxu0 0
        %4055 = vmatpush2.bf16.msra.mxu0 0
        %4056 = vmatprep.subr.bf16.mxu0 0
        %4057 = vmatpush2.bf16.msra.mxu0 0
        %4058 = vmatprep.mubr.bf16.mxu0 0
        %4059 = vmatmul.mubr.bf16.gmra.mxu0 %v3955
        %v4060 = vpop.f32.mrf.mxu0
        %v4061 = vadd.f32 0.0, %v4060
        %v4062 = vpop.f32.mrf.mxu0
        %v4063 = vpop.f32.mrf.mxu0
        %v4064 = vadd.f32 0.0, %v4063
        %v4065 = vpop.f32.mrf.mxu0
        %4066 = vmatprep.mubr.bf16.mxu0 0
        %4067 = vmatmul.mubr.bf16.gmra.mxu0 %v3956
        %v4068 = vpop.f32.mrf.mxu0
        %v4069 = vadd.f32 0.0, %v4068
        %v4070 = vpop.f32.mrf.mxu0
        %v4071 = vpop.f32.mrf.mxu0
        %v4072 = vadd.f32 0.0, %v4071
        %v4073 = vpop.f32.mrf.mxu0
        %4074 = vmatprep.mubr.bf16.mxu0 0
        %4075 = vmatmul.mubr.bf16.gmra.mxu0 %v3957
        %v4076 = vpop.f32.mrf.mxu0
        %v4077 = vadd.f32 0.0, %v4076
        %v4078 = vpop.f32.mrf.mxu0
        %v4079 = vpop.f32.mrf.mxu0
        %v4080 = vadd.f32 0.0, %v4079
        %v4081 = vpop.f32.mrf.mxu0
        %4082 = vmatprep.mubr.bf16.mxu0 0
        %4083 = vmatmul.mubr.bf16.gmra.mxu0 %v3958
        %v4084 = vpop.f32.mrf.mxu0
        %v4085 = vadd.f32 0.0, %v4084
        %v4086 = vpop.f32.mrf.mxu0
        %v4087 = vpop.f32.mrf.mxu0
        %v4088 = vadd.f32 0.0, %v4087
        %v4089 = vpop.f32.mrf.mxu0
        %4090 = vmatprep.mubr.bf16.mxu0 0
        %4091 = vmatmul.mubr.bf16.gmra.mxu0 %v3959
        %v4092 = vpop.f32.mrf.mxu0
        %v4093 = vadd.f32 0.0, %v4092
        %v4094 = vpop.f32.mrf.mxu0
        %v4095 = vpop.f32.mrf.mxu0
        %v4096 = vadd.f32 0.0, %v4095
        %v4097 = vpop.f32.mrf.mxu0
        %4098 = vmatprep.mubr.bf16.mxu0 0
        %4099 = vmatmul.mubr.bf16.gmra.mxu0 %v3960
        %v4100 = vpop.f32.mrf.mxu0
        %v4101 = vadd.f32 0.0, %v4100
        %v4102 = vpop.f32.mrf.mxu0
        %v4103 = vpop.f32.mrf.mxu0
        %v4104 = vadd.f32 0.0, %v4103
        %v4105 = vpop.f32.mrf.mxu0
        %4106 = vmatprep.mubr.bf16.mxu0 0
        %4107 = vmatmul.mubr.bf16.gmra.mxu0 %v3961
        %v4108 = vpop.f32.mrf.mxu0
        %v4109 = vadd.f32 0.0, %v4108
        %v4110 = vpop.f32.mrf.mxu0
        %v4111 = vpop.f32.mrf.mxu0
        %v4112 = vpop.f32.mrf.mxu0
        %4113 = vdwg.mxu0
        %v4114 = vadd.f32 %v3929, %v4061
        %v4115 = vadd.f32 %v3930, %v4064
        %v4116 = vadd.f32 %v3931, %v4069
        %v4117 = vadd.f32 %v3932, %v4072
        %v4118 = vadd.f32 %v3933, %v4077
        %v4119 = vadd.f32 %v3934, %v4080
        %v4120 = vadd.f32 %v3935, %v4085
        %v4121 = vadd.f32 %v3936, %v4088
        %v4122 = vadd.f32 %v3937, %v4093
        %v4123 = vadd.f32 %v3938, %v4096
        %v4124 = vadd.f32 %v3939, %v4101
        %v4125 = vadd.f32 %v3940, %v4104
        %v4126 = vadd.f32 %v3941, %v4109
        %v4127 = vld [vmem:[%s309 + $0x115] sm:$0xff]
        %v4128 = vld [vmem:[%s309 + $0x11d] sm:$0xff]
        %v4129 = vld [vmem:[%s309 + $0x125] sm:$0xff]
        %v4130 = vld [vmem:[%s309 + $0x12d] sm:$0xff]
        %v4131 = vld [vmem:[%s309 + $0x135] sm:$0xff]
        %v4132 = vld [vmem:[%s309 + $0x13d] sm:$0xff]
        %v4133 = vld [vmem:[%s309 + $0x145] sm:$0xff]
        %v4134 = vld [vmem:[%s309 + $0x14d] sm:$0xff]
        %v4135 = vld [vmem:[%s309 + $0x155] sm:$0xff]
        %v4136 = vld [vmem:[%s309 + $0x15d] sm:$0xff]
        %v4137 = vld [vmem:[%s309 + $0x165] sm:$0xff]
        %v4138 = vld [vmem:[%s309 + $0x16d] sm:$0xff]
        %v4139 = vld [vmem:[%s309 + $0x175] sm:$0x3f]
        %v4140 = vpack.c.bf16 %v4128, %v4127
        %v4141 = vpack.c.bf16 %v4130, %v4129
        %v4142 = vpack.c.bf16 %v4132, %v4131
        %v4143 = vpack.c.bf16 %v4134, %v4133
        %v4144 = vpack.c.bf16 %v4136, %v4135
        %v4145 = vpack.c.bf16 %v4138, %v4137
        %v4146 = vpack.c.bf16 %v4139, %v4139
        %v4147 = vld [vmem:[%s1567] sm:$0xf]
        %v4148 = vld [vmem:[%s1567 + $0x4] sm:$0xf]
        %v4149 = vld [vmem:[%s1567 + $0x8] sm:$0xf]
        %v4150 = vld [vmem:[%s1567 + $0xc] sm:$0xf]
        %v4151 = vld [vmem:[%s1567 + $0x10] sm:$0xf]
        %v4152 = vld [vmem:[%s1567 + $0x14] sm:$0xf]
        %v4153 = vld [vmem:[%s1567 + $0x18] sm:$0xf]
        %v4154 = vld [vmem:[%s1567 + $0x1c] sm:$0xf]
        %v4155 = vld [vmem:[%s1567 + $0x20] sm:$0xf]
        %v4156 = vld [vmem:[%s1567 + $0x24] sm:$0xf]
        %v4157 = vld [vmem:[%s1567 + $0x28] sm:$0xf]
        %v4158 = vld [vmem:[%s1567 + $0x2c] sm:$0xf]
        %v4159 = vld [vmem:[%s1567 + $0x30] sm:$0xf]
        %v4160 = vld [vmem:[%s1567 + $0x34] sm:$0xf]
        %v4161 = vld [vmem:[%s1567 + $0x38] sm:$0xf]
        %v4162 = vld [vmem:[%s1567 + $0x3c] sm:$0xf]
        %v4179 = vunpack.c.l.b16 %v4147
        %v4180 = vunpack.c.l.b16 %v4148
        %v4181 = vunpack.c.l.b16 %v4149
        %v4182 = vunpack.c.l.b16 %v4150
        %v4183 = vunpack.c.l.b16 %v4151
        %v4184 = vunpack.c.l.b16 %v4152
        %v4185 = vunpack.c.l.b16 %v4153
        %v4186 = vunpack.c.l.b16 %v4154
        %v4187 = vunpack.c.l.b16 %v4155
        %v4188 = vunpack.c.l.b16 %v4156
        %v4189 = vunpack.c.l.b16 %v4157
        %v4190 = vunpack.c.l.b16 %v4158
        %v4191 = vunpack.c.l.b16 %v4159
        %v4192 = vunpack.c.l.b16 %v4160
        %v4193 = vunpack.c.l.b16 %v4161
        %v4194 = vunpack.c.l.b16 %v4162
        %v4195 = vpack.c.b16 %v4180, %v4179
        %v4196 = vpack.c.b16 %v4182, %v4181
        %v4197 = vpack.c.b16 %v4184, %v4183
        %v4198 = vpack.c.b16 %v4186, %v4185
        %v4199 = vpack.c.b16 %v4188, %v4187
        %v4200 = vpack.c.b16 %v4190, %v4189
        %v4201 = vpack.c.b16 %v4192, %v4191
        %v4202 = vpack.c.b16 %v4194, %v4193
        %4211 = vmatprep.subr.bf16.mxu0 0
        %4212 = vmatpush1.bf16.msra.mxu0 %v4202
        %4213 = vmatprep.subr.bf16.mxu0 0
        %4214 = vmatpush1.bf16.msra.mxu0 %v4201
        %4215 = vmatprep.subr.bf16.mxu0 0
        %4216 = vmatpush1.bf16.msra.mxu0 %v4200
        %4217 = vmatprep.subr.bf16.mxu0 0
        %4218 = vmatpush1.bf16.msra.mxu0 %v4199
        %4219 = vmatprep.subr.bf16.mxu0 0
        %4220 = vmatpush1.bf16.msra.mxu0 %v4198
        %4221 = vmatprep.subr.bf16.mxu0 0
        %4222 = vmatpush1.bf16.msra.mxu0 %v4197
        %4223 = vmatprep.subr.bf16.mxu0 0
        %4224 = vmatpush1.bf16.msra.mxu0 %v4196
        %4225 = vmatprep.subr.bf16.mxu0 0
        %4226 = vmatpush1.bf16.msra.mxu0 %v4195
        %4227 = vmatprep.subr.bf16.mxu0 0
        %4228 = vmatpush2.bf16.msra.mxu0 0
        %4229 = vmatprep.subr.bf16.mxu0 0
        %4230 = vmatpush2.bf16.msra.mxu0 0
        %4231 = vmatprep.subr.bf16.mxu0 0
        %4232 = vmatpush2.bf16.msra.mxu0 0
        %4233 = vmatprep.subr.bf16.mxu0 0
        %4234 = vmatpush2.bf16.msra.mxu0 0
        %4235 = vmatprep.subr.bf16.mxu0 0
        %4236 = vmatpush2.bf16.msra.mxu0 0
        %4237 = vmatprep.subr.bf16.mxu0 0
        %4238 = vmatpush2.bf16.msra.mxu0 0
        %4239 = vmatprep.subr.bf16.mxu0 0
        %4240 = vmatpush2.bf16.msra.mxu0 0
        %4241 = vmatprep.subr.bf16.mxu0 0
        %4242 = vmatpush2.bf16.msra.mxu0 0
        %4243 = vmatprep.mubr.bf16.mxu0 0
        %4244 = vmatmul.mubr.bf16.gmra.mxu0 %v4140
        %v4245 = vpop.f32.mrf.mxu0
        %v4246 = vadd.f32 0.0, %v4245
        %v4247 = vpop.f32.mrf.mxu0
        %v4248 = vpop.f32.mrf.mxu0
        %v4249 = vadd.f32 0.0, %v4248
        %v4250 = vpop.f32.mrf.mxu0
        %4251 = vmatprep.mubr.bf16.mxu0 0
        %4252 = vmatmul.mubr.bf16.gmra.mxu0 %v4141
        %v4253 = vpop.f32.mrf.mxu0
        %v4254 = vadd.f32 0.0, %v4253
        %v4255 = vpop.f32.mrf.mxu0
        %v4256 = vpop.f32.mrf.mxu0
        %v4257 = vadd.f32 0.0, %v4256
        %v4258 = vpop.f32.mrf.mxu0
        %4259 = vmatprep.mubr.bf16.mxu0 0
        %4260 = vmatmul.mubr.bf16.gmra.mxu0 %v4142
        %v4261 = vpop.f32.mrf.mxu0
        %v4262 = vadd.f32 0.0, %v4261
        %v4263 = vpop.f32.mrf.mxu0
        %v4264 = vpop.f32.mrf.mxu0
        %v4265 = vadd.f32 0.0, %v4264
        %v4266 = vpop.f32.mrf.mxu0
        %4267 = vmatprep.mubr.bf16.mxu0 0
        %4268 = vmatmul.mubr.bf16.gmra.mxu0 %v4143
        %v4269 = vpop.f32.mrf.mxu0
        %v4270 = vadd.f32 0.0, %v4269
        %v4271 = vpop.f32.mrf.mxu0
        %v4272 = vpop.f32.mrf.mxu0
        %v4273 = vadd.f32 0.0, %v4272
        %v4274 = vpop.f32.mrf.mxu0
        %4275 = vmatprep.mubr.bf16.mxu0 0
        %4276 = vmatmul.mubr.bf16.gmra.mxu0 %v4144
        %v4277 = vpop.f32.mrf.mxu0
        %v4278 = vadd.f32 0.0, %v4277
        %v4279 = vpop.f32.mrf.mxu0
        %v4280 = vpop.f32.mrf.mxu0
        %v4281 = vadd.f32 0.0, %v4280
        %v4282 = vpop.f32.mrf.mxu0
        %4283 = vmatprep.mubr.bf16.mxu0 0
        %4284 = vmatmul.mubr.bf16.gmra.mxu0 %v4145
        %v4285 = vpop.f32.mrf.mxu0
        %v4286 = vadd.f32 0.0, %v4285
        %v4287 = vpop.f32.mrf.mxu0
        %v4288 = vpop.f32.mrf.mxu0
        %v4289 = vadd.f32 0.0, %v4288
        %v4290 = vpop.f32.mrf.mxu0
        %4291 = vmatprep.mubr.bf16.mxu0 0
        %4292 = vmatmul.mubr.bf16.gmra.mxu0 %v4146
        %v4293 = vpop.f32.mrf.mxu0
        %v4294 = vadd.f32 0.0, %v4293
        %v4295 = vpop.f32.mrf.mxu0
        %v4296 = vpop.f32.mrf.mxu0
        %v4297 = vpop.f32.mrf.mxu0
        %4298 = vdwg.mxu0
        %v4299 = vadd.f32 %v4114, %v4246
        %v4300 = vadd.f32 %v4115, %v4249
        %v4301 = vadd.f32 %v4116, %v4254
        %v4302 = vadd.f32 %v4117, %v4257
        %v4303 = vadd.f32 %v4118, %v4262
        %v4304 = vadd.f32 %v4119, %v4265
        %v4305 = vadd.f32 %v4120, %v4270
        %v4306 = vadd.f32 %v4121, %v4273
        %v4307 = vadd.f32 %v4122, %v4278
        %v4308 = vadd.f32 %v4123, %v4281
        %v4309 = vadd.f32 %v4124, %v4286
        %v4310 = vadd.f32 %v4125, %v4289
        %v4311 = vadd.f32 %v4126, %v4294
        %v4312 = vld [vmem:[%s309 + $0x116] sm:$0xff]
        %v4313 = vld [vmem:[%s309 + $0x11e] sm:$0xff]
        %v4314 = vld [vmem:[%s309 + $0x126] sm:$0xff]
        %v4315 = vld [vmem:[%s309 + $0x12e] sm:$0xff]
        %v4316 = vld [vmem:[%s309 + $0x136] sm:$0xff]
        %v4317 = vld [vmem:[%s309 + $0x13e] sm:$0xff]
        %v4318 = vld [vmem:[%s309 + $0x146] sm:$0xff]
        %v4319 = vld [vmem:[%s309 + $0x14e] sm:$0xff]
        %v4320 = vld [vmem:[%s309 + $0x156] sm:$0xff]
        %v4321 = vld [vmem:[%s309 + $0x15e] sm:$0xff]
        %v4322 = vld [vmem:[%s309 + $0x166] sm:$0xff]
        %v4323 = vld [vmem:[%s309 + $0x16e] sm:$0xff]
        %v4324 = vld [vmem:[%s309 + $0x176] sm:$0x3f]
        %v4325 = vpack.c.bf16 %v4313, %v4312
        %v4326 = vpack.c.bf16 %v4315, %v4314
        %v4327 = vpack.c.bf16 %v4317, %v4316
        %v4328 = vpack.c.bf16 %v4319, %v4318
        %v4329 = vpack.c.bf16 %v4321, %v4320
        %v4330 = vpack.c.bf16 %v4323, %v4322
        %v4331 = vpack.c.bf16 %v4324, %v4324
        %v4332 = vld [vmem:[%s1873] sm:$0xf]
        %v4333 = vld [vmem:[%s1873 + $0x4] sm:$0xf]
        %v4334 = vld [vmem:[%s1873 + $0x8] sm:$0xf]
        %v4335 = vld [vmem:[%s1873 + $0xc] sm:$0xf]
        %v4336 = vld [vmem:[%s1873 + $0x10] sm:$0xf]
        %v4337 = vld [vmem:[%s1873 + $0x14] sm:$0xf]
        %v4338 = vld [vmem:[%s1873 + $0x18] sm:$0xf]
        %v4339 = vld [vmem:[%s1873 + $0x1c] sm:$0xf]
        %v4340 = vld [vmem:[%s1873 + $0x20] sm:$0xf]
        %v4341 = vld [vmem:[%s1873 + $0x24] sm:$0xf]
        %v4342 = vld [vmem:[%s1873 + $0x28] sm:$0xf]
        %v4343 = vld [vmem:[%s1873 + $0x2c] sm:$0xf]
        %v4344 = vld [vmem:[%s1873 + $0x30] sm:$0xf]
        %v4345 = vld [vmem:[%s1873 + $0x34] sm:$0xf]
        %v4346 = vld [vmem:[%s1873 + $0x38] sm:$0xf]
        %v4347 = vld [vmem:[%s1873 + $0x3c] sm:$0xf]
        %v4364 = vunpack.c.l.b16 %v4332
        %v4365 = vunpack.c.l.b16 %v4333
        %v4366 = vunpack.c.l.b16 %v4334
        %v4367 = vunpack.c.l.b16 %v4335
        %v4368 = vunpack.c.l.b16 %v4336
        %v4369 = vunpack.c.l.b16 %v4337
        %v4370 = vunpack.c.l.b16 %v4338
        %v4371 = vunpack.c.l.b16 %v4339
        %v4372 = vunpack.c.l.b16 %v4340
        %v4373 = vunpack.c.l.b16 %v4341
        %v4374 = vunpack.c.l.b16 %v4342
        %v4375 = vunpack.c.l.b16 %v4343
        %v4376 = vunpack.c.l.b16 %v4344
        %v4377 = vunpack.c.l.b16 %v4345
        %v4378 = vunpack.c.l.b16 %v4346
        %v4379 = vunpack.c.l.b16 %v4347
        %v4380 = vpack.c.b16 %v4365, %v4364
        %v4381 = vpack.c.b16 %v4367, %v4366
        %v4382 = vpack.c.b16 %v4369, %v4368
        %v4383 = vpack.c.b16 %v4371, %v4370
        %v4384 = vpack.c.b16 %v4373, %v4372
        %v4385 = vpack.c.b16 %v4375, %v4374
        %v4386 = vpack.c.b16 %v4377, %v4376
        %v4387 = vpack.c.b16 %v4379, %v4378
        %4396 = vmatprep.subr.bf16.mxu0 0
        %4397 = vmatpush1.bf16.msra.mxu0 %v4387
        %4398 = vmatprep.subr.bf16.mxu0 0
        %4399 = vmatpush1.bf16.msra.mxu0 %v4386
        %4400 = vmatprep.subr.bf16.mxu0 0
        %4401 = vmatpush1.bf16.msra.mxu0 %v4385
        %4402 = vmatprep.subr.bf16.mxu0 0
        %4403 = vmatpush1.bf16.msra.mxu0 %v4384
        %4404 = vmatprep.subr.bf16.mxu0 0
        %4405 = vmatpush1.bf16.msra.mxu0 %v4383
        %4406 = vmatprep.subr.bf16.mxu0 0
        %4407 = vmatpush1.bf16.msra.mxu0 %v4382
        %4408 = vmatprep.subr.bf16.mxu0 0
        %4409 = vmatpush1.bf16.msra.mxu0 %v4381
        %4410 = vmatprep.subr.bf16.mxu0 0
        %4411 = vmatpush1.bf16.msra.mxu0 %v4380
        %4412 = vmatprep.subr.bf16.mxu0 0
        %4413 = vmatpush2.bf16.msra.mxu0 0
        %4414 = vmatprep.subr.bf16.mxu0 0
        %4415 = vmatpush2.bf16.msra.mxu0 0
        %4416 = vmatprep.subr.bf16.mxu0 0
        %4417 = vmatpush2.bf16.msra.mxu0 0
        %4418 = vmatprep.subr.bf16.mxu0 0
        %4419 = vmatpush2.bf16.msra.mxu0 0
        %4420 = vmatprep.subr.bf16.mxu0 0
        %4421 = vmatpush2.bf16.msra.mxu0 0
        %4422 = vmatprep.subr.bf16.mxu0 0
        %4423 = vmatpush2.bf16.msra.mxu0 0
        %4424 = vmatprep.subr.bf16.mxu0 0
        %4425 = vmatpush2.bf16.msra.mxu0 0
        %4426 = vmatprep.subr.bf16.mxu0 0
        %4427 = vmatpush2.bf16.msra.mxu0 0
        %4428 = vmatprep.mubr.bf16.mxu0 0
        %4429 = vmatmul.mubr.bf16.gmra.mxu0 %v4325
        %v4430 = vpop.f32.mrf.mxu0
        %v4431 = vadd.f32 0.0, %v4430
        %v4432 = vpop.f32.mrf.mxu0
        %v4433 = vpop.f32.mrf.mxu0
        %v4434 = vadd.f32 0.0, %v4433
        %v4435 = vpop.f32.mrf.mxu0
        %4436 = vmatprep.mubr.bf16.mxu0 0
        %4437 = vmatmul.mubr.bf16.gmra.mxu0 %v4326
        %v4438 = vpop.f32.mrf.mxu0
        %v4439 = vadd.f32 0.0, %v4438
        %v4440 = vpop.f32.mrf.mxu0
        %v4441 = vpop.f32.mrf.mxu0
        %v4442 = vadd.f32 0.0, %v4441
        %v4443 = vpop.f32.mrf.mxu0
        %4444 = vmatprep.mubr.bf16.mxu0 0
        %4445 = vmatmul.mubr.bf16.gmra.mxu0 %v4327
        %v4446 = vpop.f32.mrf.mxu0
        %v4447 = vadd.f32 0.0, %v4446
        %v4448 = vpop.f32.mrf.mxu0
        %v4449 = vpop.f32.mrf.mxu0
        %v4450 = vadd.f32 0.0, %v4449
        %v4451 = vpop.f32.mrf.mxu0
        %4452 = vmatprep.mubr.bf16.mxu0 0
        %4453 = vmatmul.mubr.bf16.gmra.mxu0 %v4328
        %v4454 = vpop.f32.mrf.mxu0
        %v4455 = vadd.f32 0.0, %v4454
        %v4456 = vpop.f32.mrf.mxu0
        %v4457 = vpop.f32.mrf.mxu0
        %v4458 = vadd.f32 0.0, %v4457
        %v4459 = vpop.f32.mrf.mxu0
        %4460 = vmatprep.mubr.bf16.mxu0 0
        %4461 = vmatmul.mubr.bf16.gmra.mxu0 %v4329
        %v4462 = vpop.f32.mrf.mxu0
        %v4463 = vadd.f32 0.0, %v4462
        %v4464 = vpop.f32.mrf.mxu0
        %v4465 = vpop.f32.mrf.mxu0
        %v4466 = vadd.f32 0.0, %v4465
        %v4467 = vpop.f32.mrf.mxu0
        %4468 = vmatprep.mubr.bf16.mxu0 0
        %4469 = vmatmul.mubr.bf16.gmra.mxu0 %v4330
        %v4470 = vpop.f32.mrf.mxu0
        %v4471 = vadd.f32 0.0, %v4470
        %v4472 = vpop.f32.mrf.mxu0
        %v4473 = vpop.f32.mrf.mxu0
        %v4474 = vadd.f32 0.0, %v4473
        %v4475 = vpop.f32.mrf.mxu0
        %4476 = vmatprep.mubr.bf16.mxu0 0
        %4477 = vmatmul.mubr.bf16.gmra.mxu0 %v4331
        %v4478 = vpop.f32.mrf.mxu0
        %v4479 = vadd.f32 0.0, %v4478
        %v4480 = vpop.f32.mrf.mxu0
        %v4481 = vpop.f32.mrf.mxu0
        %v4482 = vpop.f32.mrf.mxu0
        %4483 = vdwg.mxu0
        %v4484 = vadd.f32 %v4299, %v4431
        %v4485 = vadd.f32 %v4300, %v4434
        %v4486 = vadd.f32 %v4301, %v4439
        %v4487 = vadd.f32 %v4302, %v4442
        %v4488 = vadd.f32 %v4303, %v4447
        %v4489 = vadd.f32 %v4304, %v4450
        %v4490 = vadd.f32 %v4305, %v4455
        %v4491 = vadd.f32 %v4306, %v4458
        %v4492 = vadd.f32 %v4307, %v4463
        %v4493 = vadd.f32 %v4308, %v4466
        %v4494 = vadd.f32 %v4309, %v4471
        %v4495 = vadd.f32 %v4310, %v4474
        %v4496 = vadd.f32 %v4311, %v4479
        %v4497 = vld [vmem:[%s309 + $0x128] sm:$0xff]
        %v4498 = vld [vmem:[%s309 + $0x130] sm:$0xff]
        %v4499 = vld [vmem:[%s309 + $0x138] sm:$0xff]
        %v4500 = vld [vmem:[%s309 + $0x140] sm:$0xff]
        %v4501 = vld [vmem:[%s309 + $0x148] sm:$0xff]
        %v4502 = vld [vmem:[%s309 + $0x150] sm:$0xff]
        %v4503 = vld [vmem:[%s309 + $0x158] sm:$0xff]
        %v4504 = vld [vmem:[%s309 + $0x160] sm:$0xff]
        %v4505 = vld [vmem:[%s309 + $0x168] sm:$0xff]
        %v4506 = vld [vmem:[%s309 + $0x170] sm:$0xff]
        %v4507 = vld [vmem:[%s309 + $0x178] sm:$0xff]
        %v4508 = vld [vmem:[%s309 + $0x180] sm:$0xff]
        %v4509 = vld [vmem:[%s309 + $0x188] sm:$0x3f]
        %v4510 = vpack.c.bf16 %v4498, %v4497
        %v4511 = vpack.c.bf16 %v4500, %v4499
        %v4512 = vpack.c.bf16 %v4502, %v4501
        %v4513 = vpack.c.bf16 %v4504, %v4503
        %v4514 = vpack.c.bf16 %v4506, %v4505
        %v4515 = vpack.c.bf16 %v4508, %v4507
        %v4516 = vpack.c.bf16 %v4509, %v4509
        %v4517 = vld [vmem:[%s2179] sm:$0xf]
        %v4518 = vld [vmem:[%s2179 + $0x4] sm:$0xf]
        %v4519 = vld [vmem:[%s2179 + $0x8] sm:$0xf]
        %v4520 = vld [vmem:[%s2179 + $0xc] sm:$0xf]
        %v4521 = vld [vmem:[%s2179 + $0x10] sm:$0xf]
        %v4522 = vld [vmem:[%s2179 + $0x14] sm:$0xf]
        %v4523 = vld [vmem:[%s2179 + $0x18] sm:$0xf]
        %v4524 = vld [vmem:[%s2179 + $0x1c] sm:$0xf]
        %v4525 = vld [vmem:[%s2179 + $0x20] sm:$0xf]
        %v4526 = vld [vmem:[%s2179 + $0x24] sm:$0xf]
        %v4527 = vld [vmem:[%s2179 + $0x28] sm:$0xf]
        %v4528 = vld [vmem:[%s2179 + $0x2c] sm:$0xf]
        %v4529 = vld [vmem:[%s2179 + $0x30] sm:$0xf]
        %v4530 = vld [vmem:[%s2179 + $0x34] sm:$0xf]
        %v4531 = vld [vmem:[%s2179 + $0x38] sm:$0xf]
        %v4532 = vld [vmem:[%s2179 + $0x3c] sm:$0xf]
        %v4549 = vunpack.c.l.b16 %v4517
        %v4550 = vunpack.c.l.b16 %v4518
        %v4551 = vunpack.c.l.b16 %v4519
        %v4552 = vunpack.c.l.b16 %v4520
        %v4553 = vunpack.c.l.b16 %v4521
        %v4554 = vunpack.c.l.b16 %v4522
        %v4555 = vunpack.c.l.b16 %v4523
        %v4556 = vunpack.c.l.b16 %v4524
        %v4557 = vunpack.c.l.b16 %v4525
        %v4558 = vunpack.c.l.b16 %v4526
        %v4559 = vunpack.c.l.b16 %v4527
        %v4560 = vunpack.c.l.b16 %v4528
        %v4561 = vunpack.c.l.b16 %v4529
        %v4562 = vunpack.c.l.b16 %v4530
        %v4563 = vunpack.c.l.b16 %v4531
        %v4564 = vunpack.c.l.b16 %v4532
        %v4565 = vpack.c.b16 %v4550, %v4549
        %v4566 = vpack.c.b16 %v4552, %v4551
        %v4567 = vpack.c.b16 %v4554, %v4553
        %v4568 = vpack.c.b16 %v4556, %v4555
        %v4569 = vpack.c.b16 %v4558, %v4557
        %v4570 = vpack.c.b16 %v4560, %v4559
        %v4571 = vpack.c.b16 %v4562, %v4561
        %v4572 = vpack.c.b16 %v4564, %v4563
        %4581 = vmatprep.subr.bf16.mxu0 0
        %4582 = vmatpush1.bf16.msra.mxu0 %v4572
        %4583 = vmatprep.subr.bf16.mxu0 0
        %4584 = vmatpush1.bf16.msra.mxu0 %v4571
        %4585 = vmatprep.subr.bf16.mxu0 0
        %4586 = vmatpush1.bf16.msra.mxu0 %v4570
        %4587 = vmatprep.subr.bf16.mxu0 0
        %4588 = vmatpush1.bf16.msra.mxu0 %v4569
        %4589 = vmatprep.subr.bf16.mxu0 0
        %4590 = vmatpush1.bf16.msra.mxu0 %v4568
        %4591 = vmatprep.subr.bf16.mxu0 0
        %4592 = vmatpush1.bf16.msra.mxu0 %v4567
        %4593 = vmatprep.subr.bf16.mxu0 0
        %4594 = vmatpush1.bf16.msra.mxu0 %v4566
        %4595 = vmatprep.subr.bf16.mxu0 0
        %4596 = vmatpush1.bf16.msra.mxu0 %v4565
        %4597 = vmatprep.subr.bf16.mxu0 0
        %4598 = vmatpush2.bf16.msra.mxu0 0
        %4599 = vmatprep.subr.bf16.mxu0 0
        %4600 = vmatpush2.bf16.msra.mxu0 0
        %4601 = vmatprep.subr.bf16.mxu0 0
        %4602 = vmatpush2.bf16.msra.mxu0 0
        %4603 = vmatprep.subr.bf16.mxu0 0
        %4604 = vmatpush2.bf16.msra.mxu0 0
        %4605 = vmatprep.subr.bf16.mxu0 0
        %4606 = vmatpush2.bf16.msra.mxu0 0
        %4607 = vmatprep.subr.bf16.mxu0 0
        %4608 = vmatpush2.bf16.msra.mxu0 0
        %4609 = vmatprep.subr.bf16.mxu0 0
        %4610 = vmatpush2.bf16.msra.mxu0 0
        %4611 = vmatprep.subr.bf16.mxu0 0
        %4612 = vmatpush2.bf16.msra.mxu0 0
        %4613 = vmatprep.mubr.bf16.mxu0 0
        %4614 = vmatmul.mubr.bf16.gmra.mxu0 %v4510
        %v4615 = vpop.f32.mrf.mxu0
        %v4616 = vadd.f32 0.0, %v4615
        %v4617 = vpop.f32.mrf.mxu0
        %v4618 = vpop.f32.mrf.mxu0
        %v4619 = vadd.f32 0.0, %v4618
        %v4620 = vpop.f32.mrf.mxu0
        %4621 = vmatprep.mubr.bf16.mxu0 0
        %4622 = vmatmul.mubr.bf16.gmra.mxu0 %v4511
        %v4623 = vpop.f32.mrf.mxu0
        %v4624 = vadd.f32 0.0, %v4623
        %v4625 = vpop.f32.mrf.mxu0
        %v4626 = vpop.f32.mrf.mxu0
        %v4627 = vadd.f32 0.0, %v4626
        %v4628 = vpop.f32.mrf.mxu0
        %4629 = vmatprep.mubr.bf16.mxu0 0
        %4630 = vmatmul.mubr.bf16.gmra.mxu0 %v4512
        %v4631 = vpop.f32.mrf.mxu0
        %v4632 = vadd.f32 0.0, %v4631
        %v4633 = vpop.f32.mrf.mxu0
        %v4634 = vpop.f32.mrf.mxu0
        %v4635 = vadd.f32 0.0, %v4634
        %v4636 = vpop.f32.mrf.mxu0
        %4637 = vmatprep.mubr.bf16.mxu0 0
        %4638 = vmatmul.mubr.bf16.gmra.mxu0 %v4513
        %v4639 = vpop.f32.mrf.mxu0
        %v4640 = vadd.f32 0.0, %v4639
        %v4641 = vpop.f32.mrf.mxu0
        %v4642 = vpop.f32.mrf.mxu0
        %v4643 = vadd.f32 0.0, %v4642
        %v4644 = vpop.f32.mrf.mxu0
        %4645 = vmatprep.mubr.bf16.mxu0 0
        %4646 = vmatmul.mubr.bf16.gmra.mxu0 %v4514
        %v4647 = vpop.f32.mrf.mxu0
        %v4648 = vadd.f32 0.0, %v4647
        %v4649 = vpop.f32.mrf.mxu0
        %v4650 = vpop.f32.mrf.mxu0
        %v4651 = vadd.f32 0.0, %v4650
        %v4652 = vpop.f32.mrf.mxu0
        %4653 = vmatprep.mubr.bf16.mxu0 0
        %4654 = vmatmul.mubr.bf16.gmra.mxu0 %v4515
        %v4655 = vpop.f32.mrf.mxu0
        %v4656 = vadd.f32 0.0, %v4655
        %v4657 = vpop.f32.mrf.mxu0
        %v4658 = vpop.f32.mrf.mxu0
        %v4659 = vadd.f32 0.0, %v4658
        %v4660 = vpop.f32.mrf.mxu0
        %4661 = vmatprep.mubr.bf16.mxu0 0
        %4662 = vmatmul.mubr.bf16.gmra.mxu0 %v4516
        %v4663 = vpop.f32.mrf.mxu0
        %v4664 = vadd.f32 0.0, %v4663
        %v4665 = vpop.f32.mrf.mxu0
        %v4666 = vpop.f32.mrf.mxu0
        %v4667 = vpop.f32.mrf.mxu0
        %4668 = vdwg.mxu0
        %v4669 = vadd.f32 %v4484, %v4616
        %v4670 = vadd.f32 %v4485, %v4619
        %v4671 = vadd.f32 %v4486, %v4624
        %v4672 = vadd.f32 %v4487, %v4627
        %v4673 = vadd.f32 %v4488, %v4632
        %v4674 = vadd.f32 %v4489, %v4635
        %v4675 = vadd.f32 %v4490, %v4640
        %v4676 = vadd.f32 %v4491, %v4643
        %v4677 = vadd.f32 %v4492, %v4648
        %v4678 = vadd.f32 %v4493, %v4651
        %v4679 = vadd.f32 %v4494, %v4656
        %v4680 = vadd.f32 %v4495, %v4659
        %v4681 = vadd.f32 %v4496, %v4664
        %v4682 = vld [vmem:[%s309 + $0x129] sm:$0xff]
        %v4683 = vld [vmem:[%s309 + $0x131] sm:$0xff]
        %v4684 = vld [vmem:[%s309 + $0x139] sm:$0xff]
        %v4685 = vld [vmem:[%s309 + $0x141] sm:$0xff]
        %v4686 = vld [vmem:[%s309 + $0x149] sm:$0xff]
        %v4687 = vld [vmem:[%s309 + $0x151] sm:$0xff]
        %v4688 = vld [vmem:[%s309 + $0x159] sm:$0xff]
        %v4689 = vld [vmem:[%s309 + $0x161] sm:$0xff]
        %v4690 = vld [vmem:[%s309 + $0x169] sm:$0xff]
        %v4691 = vld [vmem:[%s309 + $0x171] sm:$0xff]
        %v4692 = vld [vmem:[%s309 + $0x179] sm:$0xff]
        %v4693 = vld [vmem:[%s309 + $0x181] sm:$0xff]
        %v4694 = vld [vmem:[%s309 + $0x189] sm:$0x3f]
        %v4695 = vpack.c.bf16 %v4683, %v4682
        %v4696 = vpack.c.bf16 %v4685, %v4684
        %v4697 = vpack.c.bf16 %v4687, %v4686
        %v4698 = vpack.c.bf16 %v4689, %v4688
        %v4699 = vpack.c.bf16 %v4691, %v4690
        %v4700 = vpack.c.bf16 %v4693, %v4692
        %v4701 = vpack.c.bf16 %v4694, %v4694
        %v4702 = vld [vmem:[%s2485] sm:$0xf]
        %v4703 = vld [vmem:[%s2485 + $0x4] sm:$0xf]
        %v4704 = vld [vmem:[%s2485 + $0x8] sm:$0xf]
        %v4705 = vld [vmem:[%s2485 + $0xc] sm:$0xf]
        %v4706 = vld [vmem:[%s2485 + $0x10] sm:$0xf]
        %v4707 = vld [vmem:[%s2485 + $0x14] sm:$0xf]
        %v4708 = vld [vmem:[%s2485 + $0x18] sm:$0xf]
        %v4709 = vld [vmem:[%s2485 + $0x1c] sm:$0xf]
        %v4710 = vld [vmem:[%s2485 + $0x20] sm:$0xf]
        %v4711 = vld [vmem:[%s2485 + $0x24] sm:$0xf]
        %v4712 = vld [vmem:[%s2485 + $0x28] sm:$0xf]
        %v4713 = vld [vmem:[%s2485 + $0x2c] sm:$0xf]
        %v4714 = vld [vmem:[%s2485 + $0x30] sm:$0xf]
        %v4715 = vld [vmem:[%s2485 + $0x34] sm:$0xf]
        %v4716 = vld [vmem:[%s2485 + $0x38] sm:$0xf]
        %v4717 = vld [vmem:[%s2485 + $0x3c] sm:$0xf]
        %v4734 = vunpack.c.l.b16 %v4702
        %v4735 = vunpack.c.l.b16 %v4703
        %v4736 = vunpack.c.l.b16 %v4704
        %v4737 = vunpack.c.l.b16 %v4705
        %v4738 = vunpack.c.l.b16 %v4706
        %v4739 = vunpack.c.l.b16 %v4707
        %v4740 = vunpack.c.l.b16 %v4708
        %v4741 = vunpack.c.l.b16 %v4709
        %v4742 = vunpack.c.l.b16 %v4710
        %v4743 = vunpack.c.l.b16 %v4711
        %v4744 = vunpack.c.l.b16 %v4712
        %v4745 = vunpack.c.l.b16 %v4713
        %v4746 = vunpack.c.l.b16 %v4714
        %v4747 = vunpack.c.l.b16 %v4715
        %v4748 = vunpack.c.l.b16 %v4716
        %v4749 = vunpack.c.l.b16 %v4717
        %v4750 = vpack.c.b16 %v4735, %v4734
        %v4751 = vpack.c.b16 %v4737, %v4736
        %v4752 = vpack.c.b16 %v4739, %v4738
        %v4753 = vpack.c.b16 %v4741, %v4740
        %v4754 = vpack.c.b16 %v4743, %v4742
        %v4755 = vpack.c.b16 %v4745, %v4744
        %v4756 = vpack.c.b16 %v4747, %v4746
        %v4757 = vpack.c.b16 %v4749, %v4748
        %4766 = vmatprep.subr.bf16.mxu0 0
        %4767 = vmatpush1.bf16.msra.mxu0 %v4757
        %4768 = vmatprep.subr.bf16.mxu0 0
        %4769 = vmatpush1.bf16.msra.mxu0 %v4756
        %4770 = vmatprep.subr.bf16.mxu0 0
        %4771 = vmatpush1.bf16.msra.mxu0 %v4755
        %4772 = vmatprep.subr.bf16.mxu0 0
        %4773 = vmatpush1.bf16.msra.mxu0 %v4754
        %4774 = vmatprep.subr.bf16.mxu0 0
        %4775 = vmatpush1.bf16.msra.mxu0 %v4753
        %4776 = vmatprep.subr.bf16.mxu0 0
        %4777 = vmatpush1.bf16.msra.mxu0 %v4752
        %4778 = vmatprep.subr.bf16.mxu0 0
        %4779 = vmatpush1.bf16.msra.mxu0 %v4751
        %4780 = vmatprep.subr.bf16.mxu0 0
        %4781 = vmatpush1.bf16.msra.mxu0 %v4750
        %4782 = vmatprep.subr.bf16.mxu0 0
        %4783 = vmatpush2.bf16.msra.mxu0 0
        %4784 = vmatprep.subr.bf16.mxu0 0
        %4785 = vmatpush2.bf16.msra.mxu0 0
        %4786 = vmatprep.subr.bf16.mxu0 0
        %4787 = vmatpush2.bf16.msra.mxu0 0
        %4788 = vmatprep.subr.bf16.mxu0 0
        %4789 = vmatpush2.bf16.msra.mxu0 0
        %4790 = vmatprep.subr.bf16.mxu0 0
        %4791 = vmatpush2.bf16.msra.mxu0 0
        %4792 = vmatprep.subr.bf16.mxu0 0
        %4793 = vmatpush2.bf16.msra.mxu0 0
        %4794 = vmatprep.subr.bf16.mxu0 0
        %4795 = vmatpush2.bf16.msra.mxu0 0
        %4796 = vmatprep.subr.bf16.mxu0 0
        %4797 = vmatpush2.bf16.msra.mxu0 0
        %4798 = vmatprep.mubr.bf16.mxu0 0
        %4799 = vmatmul.mubr.bf16.gmra.mxu0 %v4695
        %v4800 = vpop.f32.mrf.mxu0
        %v4801 = vadd.f32 0.0, %v4800
        %v4802 = vpop.f32.mrf.mxu0
        %v4803 = vpop.f32.mrf.mxu0
        %v4804 = vadd.f32 0.0, %v4803
        %v4805 = vpop.f32.mrf.mxu0
        %4806 = vmatprep.mubr.bf16.mxu0 0
        %4807 = vmatmul.mubr.bf16.gmra.mxu0 %v4696
        %v4808 = vpop.f32.mrf.mxu0
        %v4809 = vadd.f32 0.0, %v4808
        %v4810 = vpop.f32.mrf.mxu0
        %v4811 = vpop.f32.mrf.mxu0
        %v4812 = vadd.f32 0.0, %v4811
        %v4813 = vpop.f32.mrf.mxu0
        %4814 = vmatprep.mubr.bf16.mxu0 0
        %4815 = vmatmul.mubr.bf16.gmra.mxu0 %v4697
        %v4816 = vpop.f32.mrf.mxu0
        %v4817 = vadd.f32 0.0, %v4816
        %v4818 = vpop.f32.mrf.mxu0
        %v4819 = vpop.f32.mrf.mxu0
        %v4820 = vadd.f32 0.0, %v4819
        %v4821 = vpop.f32.mrf.mxu0
        %4822 = vmatprep.mubr.bf16.mxu0 0
        %4823 = vmatmul.mubr.bf16.gmra.mxu0 %v4698
        %v4824 = vpop.f32.mrf.mxu0
        %v4825 = vadd.f32 0.0, %v4824
        %v4826 = vpop.f32.mrf.mxu0
        %v4827 = vpop.f32.mrf.mxu0
        %v4828 = vadd.f32 0.0, %v4827
        %v4829 = vpop.f32.mrf.mxu0
        %4830 = vmatprep.mubr.bf16.mxu0 0
        %4831 = vmatmul.mubr.bf16.gmra.mxu0 %v4699
        %v4832 = vpop.f32.mrf.mxu0
        %v4833 = vadd.f32 0.0, %v4832
        %v4834 = vpop.f32.mrf.mxu0
        %v4835 = vpop.f32.mrf.mxu0
        %v4836 = vadd.f32 0.0, %v4835
        %v4837 = vpop.f32.mrf.mxu0
        %4838 = vmatprep.mubr.bf16.mxu0 0
        %4839 = vmatmul.mubr.bf16.gmra.mxu0 %v4700
        %v4840 = vpop.f32.mrf.mxu0
        %v4841 = vadd.f32 0.0, %v4840
        %v4842 = vpop.f32.mrf.mxu0
        %v4843 = vpop.f32.mrf.mxu0
        %v4844 = vadd.f32 0.0, %v4843
        %v4845 = vpop.f32.mrf.mxu0
        %4846 = vmatprep.mubr.bf16.mxu0 0
        %4847 = vmatmul.mubr.bf16.gmra.mxu0 %v4701
        %v4848 = vpop.f32.mrf.mxu0
        %v4849 = vadd.f32 0.0, %v4848
        %v4850 = vpop.f32.mrf.mxu0
        %v4851 = vpop.f32.mrf.mxu0
        %v4852 = vpop.f32.mrf.mxu0
        %4853 = vdwg.mxu0
        %v4854 = vadd.f32 %v4669, %v4801
        %v4855 = vadd.f32 %v4670, %v4804
        %v4856 = vadd.f32 %v4671, %v4809
        %v4857 = vadd.f32 %v4672, %v4812
        %v4858 = vadd.f32 %v4673, %v4817
        %v4859 = vadd.f32 %v4674, %v4820
        %v4860 = vadd.f32 %v4675, %v4825
        %v4861 = vadd.f32 %v4676, %v4828
        %v4862 = vadd.f32 %v4677, %v4833
        %v4863 = vadd.f32 %v4678, %v4836
        %v4864 = vadd.f32 %v4679, %v4841
        %v4865 = vadd.f32 %v4680, %v4844
        %v4866 = vadd.f32 %v4681, %v4849
        %v4867 = vld [vmem:[%s309 + $0x12a] sm:$0xff]
        %v4868 = vld [vmem:[%s309 + $0x132] sm:$0xff]
        %v4869 = vld [vmem:[%s309 + $0x13a] sm:$0xff]
        %v4870 = vld [vmem:[%s309 + $0x142] sm:$0xff]
        %v4871 = vld [vmem:[%s309 + $0x14a] sm:$0xff]
        %v4872 = vld [vmem:[%s309 + $0x152] sm:$0xff]
        %v4873 = vld [vmem:[%s309 + $0x15a] sm:$0xff]
        %v4874 = vld [vmem:[%s309 + $0x162] sm:$0xff]
        %v4875 = vld [vmem:[%s309 + $0x16a] sm:$0xff]
        %v4876 = vld [vmem:[%s309 + $0x172] sm:$0xff]
        %v4877 = vld [vmem:[%s309 + $0x17a] sm:$0xff]
        %v4878 = vld [vmem:[%s309 + $0x182] sm:$0xff]
        %v4879 = vld [vmem:[%s309 + $0x18a] sm:$0x3f]
        %v4880 = vpack.c.bf16 %v4868, %v4867
        %v4881 = vpack.c.bf16 %v4870, %v4869
        %v4882 = vpack.c.bf16 %v4872, %v4871
        %v4883 = vpack.c.bf16 %v4874, %v4873
        %v4884 = vpack.c.bf16 %v4876, %v4875
        %v4885 = vpack.c.bf16 %v4878, %v4877
        %v4886 = vpack.c.bf16 %v4879, %v4879
        %v4887 = vld [vmem:[%s2791] sm:$0xf]
        %v4888 = vld [vmem:[%s2791 + $0x4] sm:$0xf]
        %v4889 = vld [vmem:[%s2791 + $0x8] sm:$0xf]
        %v4890 = vld [vmem:[%s2791 + $0xc] sm:$0xf]
        %v4891 = vld [vmem:[%s2791 + $0x10] sm:$0xf]
        %v4892 = vld [vmem:[%s2791 + $0x14] sm:$0xf]
        %v4893 = vld [vmem:[%s2791 + $0x18] sm:$0xf]
        %v4894 = vld [vmem:[%s2791 + $0x1c] sm:$0xf]
        %v4895 = vld [vmem:[%s2791 + $0x20] sm:$0xf]
        %v4896 = vld [vmem:[%s2791 + $0x24] sm:$0xf]
        %v4897 = vld [vmem:[%s2791 + $0x28] sm:$0xf]
        %v4898 = vld [vmem:[%s2791 + $0x2c] sm:$0xf]
        %v4899 = vld [vmem:[%s2791 + $0x30] sm:$0xf]
        %v4900 = vld [vmem:[%s2791 + $0x34] sm:$0xf]
        %v4901 = vld [vmem:[%s2791 + $0x38] sm:$0xf]
        %v4902 = vld [vmem:[%s2791 + $0x3c] sm:$0xf]
        %v4919 = vunpack.c.l.b16 %v4887
        %v4920 = vunpack.c.l.b16 %v4888
        %v4921 = vunpack.c.l.b16 %v4889
        %v4922 = vunpack.c.l.b16 %v4890
        %v4923 = vunpack.c.l.b16 %v4891
        %v4924 = vunpack.c.l.b16 %v4892
        %v4925 = vunpack.c.l.b16 %v4893
        %v4926 = vunpack.c.l.b16 %v4894
        %v4927 = vunpack.c.l.b16 %v4895
        %v4928 = vunpack.c.l.b16 %v4896
        %v4929 = vunpack.c.l.b16 %v4897
        %v4930 = vunpack.c.l.b16 %v4898
        %v4931 = vunpack.c.l.b16 %v4899
        %v4932 = vunpack.c.l.b16 %v4900
        %v4933 = vunpack.c.l.b16 %v4901
        %v4934 = vunpack.c.l.b16 %v4902
        %v4935 = vpack.c.b16 %v4920, %v4919
        %v4936 = vpack.c.b16 %v4922, %v4921
        %v4937 = vpack.c.b16 %v4924, %v4923
        %v4938 = vpack.c.b16 %v4926, %v4925
        %v4939 = vpack.c.b16 %v4928, %v4927
        %v4940 = vpack.c.b16 %v4930, %v4929
        %v4941 = vpack.c.b16 %v4932, %v4931
        %v4942 = vpack.c.b16 %v4934, %v4933
        %4951 = vmatprep.subr.bf16.mxu0 0
        %4952 = vmatpush1.bf16.msra.mxu0 %v4942
        %4953 = vmatprep.subr.bf16.mxu0 0
        %4954 = vmatpush1.bf16.msra.mxu0 %v4941
        %4955 = vmatprep.subr.bf16.mxu0 0
        %4956 = vmatpush1.bf16.msra.mxu0 %v4940
        %4957 = vmatprep.subr.bf16.mxu0 0
        %4958 = vmatpush1.bf16.msra.mxu0 %v4939
        %4959 = vmatprep.subr.bf16.mxu0 0
        %4960 = vmatpush1.bf16.msra.mxu0 %v4938
        %4961 = vmatprep.subr.bf16.mxu0 0
        %4962 = vmatpush1.bf16.msra.mxu0 %v4937
        %4963 = vmatprep.subr.bf16.mxu0 0
        %4964 = vmatpush1.bf16.msra.mxu0 %v4936
        %4965 = vmatprep.subr.bf16.mxu0 0
        %4966 = vmatpush1.bf16.msra.mxu0 %v4935
        %4967 = vmatprep.subr.bf16.mxu0 0
        %4968 = vmatpush2.bf16.msra.mxu0 0
        %4969 = vmatprep.subr.bf16.mxu0 0
        %4970 = vmatpush2.bf16.msra.mxu0 0
        %4971 = vmatprep.subr.bf16.mxu0 0
        %4972 = vmatpush2.bf16.msra.mxu0 0
        %4973 = vmatprep.subr.bf16.mxu0 0
        %4974 = vmatpush2.bf16.msra.mxu0 0
        %4975 = vmatprep.subr.bf16.mxu0 0
        %4976 = vmatpush2.bf16.msra.mxu0 0
        %4977 = vmatprep.subr.bf16.mxu0 0
        %4978 = vmatpush2.bf16.msra.mxu0 0
        %4979 = vmatprep.subr.bf16.mxu0 0
        %4980 = vmatpush2.bf16.msra.mxu0 0
        %4981 = vmatprep.subr.bf16.mxu0 0
        %4982 = vmatpush2.bf16.msra.mxu0 0
        %4983 = vmatprep.mubr.bf16.mxu0 0
        %4984 = vmatmul.mubr.bf16.gmra.mxu0 %v4880
        %v4985 = vpop.f32.mrf.mxu0
        %v4986 = vadd.f32 0.0, %v4985
        %v4987 = vpop.f32.mrf.mxu0
        %v4988 = vpop.f32.mrf.mxu0
        %v4989 = vadd.f32 0.0, %v4988
        %v4990 = vpop.f32.mrf.mxu0
        %4991 = vmatprep.mubr.bf16.mxu0 0
        %4992 = vmatmul.mubr.bf16.gmra.mxu0 %v4881
        %v4993 = vpop.f32.mrf.mxu0
        %v4994 = vadd.f32 0.0, %v4993
        %v4995 = vpop.f32.mrf.mxu0
        %v4996 = vpop.f32.mrf.mxu0
        %v4997 = vadd.f32 0.0, %v4996
        %v4998 = vpop.f32.mrf.mxu0
        %4999 = vmatprep.mubr.bf16.mxu0 0
        %5000 = vmatmul.mubr.bf16.gmra.mxu0 %v4882
        %v5001 = vpop.f32.mrf.mxu0
        %v5002 = vadd.f32 0.0, %v5001
        %v5003 = vpop.f32.mrf.mxu0
        %v5004 = vpop.f32.mrf.mxu0
        %v5005 = vadd.f32 0.0, %v5004
        %v5006 = vpop.f32.mrf.mxu0
        %5007 = vmatprep.mubr.bf16.mxu0 0
        %5008 = vmatmul.mubr.bf16.gmra.mxu0 %v4883
        %v5009 = vpop.f32.mrf.mxu0
        %v5010 = vadd.f32 0.0, %v5009
        %v5011 = vpop.f32.mrf.mxu0
        %v5012 = vpop.f32.mrf.mxu0
        %v5013 = vadd.f32 0.0, %v5012
        %v5014 = vpop.f32.mrf.mxu0
        %5015 = vmatprep.mubr.bf16.mxu0 0
        %5016 = vmatmul.mubr.bf16.gmra.mxu0 %v4884
        %v5017 = vpop.f32.mrf.mxu0
        %v5018 = vadd.f32 0.0, %v5017
        %v5019 = vpop.f32.mrf.mxu0
        %v5020 = vpop.f32.mrf.mxu0
        %v5021 = vadd.f32 0.0, %v5020
        %v5022 = vpop.f32.mrf.mxu0
        %5023 = vmatprep.mubr.bf16.mxu0 0
        %5024 = vmatmul.mubr.bf16.gmra.mxu0 %v4885
        %v5025 = vpop.f32.mrf.mxu0
        %v5026 = vadd.f32 0.0, %v5025
        %v5027 = vpop.f32.mrf.mxu0
        %v5028 = vpop.f32.mrf.mxu0
        %v5029 = vadd.f32 0.0, %v5028
        %v5030 = vpop.f32.mrf.mxu0
        %5031 = vmatprep.mubr.bf16.mxu0 0
        %5032 = vmatmul.mubr.bf16.gmra.mxu0 %v4886
        %v5033 = vpop.f32.mrf.mxu0
        %v5034 = vadd.f32 0.0, %v5033
        %v5035 = vpop.f32.mrf.mxu0
        %v5036 = vpop.f32.mrf.mxu0
        %v5037 = vpop.f32.mrf.mxu0
        %5038 = vdwg.mxu0
        %v5039 = vadd.f32 %v4854, %v4986
        %v5040 = vadd.f32 %v4855, %v4989
        %v5041 = vadd.f32 %v4856, %v4994
        %v5042 = vadd.f32 %v4857, %v4997
        %v5043 = vadd.f32 %v4858, %v5002
        %v5044 = vadd.f32 %v4859, %v5005
        %v5045 = vadd.f32 %v4860, %v5010
        %v5046 = vadd.f32 %v4861, %v5013
        %v5047 = vadd.f32 %v4862, %v5018
        %v5048 = vadd.f32 %v4863, %v5021
        %v5049 = vadd.f32 %v4864, %v5026
        %v5050 = vadd.f32 %v4865, %v5029
        %v5051 = vadd.f32 %v4866, %v5034
        %v5052 = vmul.f32 %v5039, %v3053
        %v5053 = vmul.f32 %v5040, %v3053
        %v5054 = vmul.f32 %v5041, %v3053
        %v5055 = vmul.f32 %v5042, %v3053
        %v5056 = vmul.f32 %v5043, %v3053
        %v5057 = vmul.f32 %v5044, %v3053
        %v5058 = vmul.f32 %v5045, %v3053
        %v5059 = vmul.f32 %v5046, %v3053
        %v5060 = vmul.f32 %v5047, %v3053
        %v5061 = vmul.f32 %v5048, %v3053
        %v5062 = vmul.f32 %v5049, %v3053
        %v5063 = vmul.f32 %v5050, %v3053
        %v5064 = vmul.f32 %v5051, %v3053
        %v5065 = vadd.f32 %v5052, %v3091
        %v5066 = vadd.f32 %v5053, %v3091
        %v5067 = vadd.f32 %v5054, %v3091
        %v5068 = vadd.f32 %v5055, %v3091
        %v5069 = vadd.f32 %v5056, %v3091
        %v5070 = vadd.f32 %v5057, %v3091
        %v5071 = vadd.f32 %v5058, %v3091
        %v5072 = vadd.f32 %v5059, %v3091
        %v5073 = vadd.f32 %v5060, %v3091
        %v5074 = vadd.f32 %v5061, %v3091
        %v5075 = vadd.f32 %v5062, %v3091
        %v5076 = vadd.f32 %v5063, %v3091
        %v5077 = vadd.f32 %v5064, %v3091
        %v5078 = vmax.f32 %v5065, 0.0
        %v5079 = vmax.f32 %v5066, 0.0
        %v5080 = vmax.f32 %v5067, 0.0
        %v5081 = vmax.f32 %v5068, 0.0
        %v5082 = vmax.f32 %v5069, 0.0
        %v5083 = vmax.f32 %v5070, 0.0
        %v5084 = vmax.f32 %v5071, 0.0
        %v5085 = vmax.f32 %v5072, 0.0
        %v5086 = vmax.f32 %v5073, 0.0
        %v5087 = vmax.f32 %v5074, 0.0
        %v5088 = vmax.f32 %v5075, 0.0
        %v5089 = vmax.f32 %v5076, 0.0
        %v5090 = vmax.f32 %v5077, 0.0
        %v5091 = vld [vmem:[%s7 + $0x100] sm:$0xff]
        %v5092 = vld [vmem:[%s7 + $0x108] sm:$0xff]
        %v5093 = vld [vmem:[%s7 + $0x110] sm:$0xff]
        %v5094 = vld [vmem:[%s7 + $0x118] sm:$0xff]
        %v5095 = vld [vmem:[%s7 + $0x120] sm:$0xff]
        %v5096 = vld [vmem:[%s7 + $0x128] sm:$0xff]
        %v5097 = vld [vmem:[%s7 + $0x130] sm:$0xff]
        %v5098 = vld [vmem:[%s7 + $0x138] sm:$0xff]
        %v5099 = vld [vmem:[%s7 + $0x140] sm:$0xff]
        %v5100 = vld [vmem:[%s7 + $0x148] sm:$0xff]
        %v5101 = vld [vmem:[%s7 + $0x150] sm:$0xff]
        %v5102 = vld [vmem:[%s7 + $0x158] sm:$0xff]
        %v5103 = vld [vmem:[%s7 + $0x160] sm:$0x3f]
        %5105 = vset.pattern.permute.xlu0 0
        %5106 = vperm.xlu0 %5105, %v5091
        %v5107 = vpop.permute.xlu0 %5106
        %5110 = vset.pattern.permute.xlu0 0
        %5111 = vperm.xlu0 %5110, %v5092
        %v5112 = vpop.permute.xlu0 %5111
        %5115 = vset.pattern.permute.xlu0 0
        %5116 = vperm.xlu0 %5115, %v5093
        %v5117 = vpop.permute.xlu0 %5116
        %5120 = vset.pattern.permute.xlu0 0
        %5121 = vperm.xlu0 %5120, %v5094
        %v5122 = vpop.permute.xlu0 %5121
        %5125 = vset.pattern.permute.xlu0 0
        %5126 = vperm.xlu0 %5125, %v5095
        %v5127 = vpop.permute.xlu0 %5126
        %5130 = vset.pattern.permute.xlu0 0
        %5131 = vperm.xlu0 %5130, %v5096
        %v5132 = vpop.permute.xlu0 %5131
        %5135 = vset.pattern.permute.xlu0 0
        %5136 = vperm.xlu0 %5135, %v5097
        %v5137 = vpop.permute.xlu0 %5136
        %5140 = vset.pattern.permute.xlu0 0
        %5141 = vperm.xlu0 %5140, %v5098
        %v5142 = vpop.permute.xlu0 %5141
        %5145 = vset.pattern.permute.xlu0 0
        %5146 = vperm.xlu0 %5145, %v5099
        %v5147 = vpop.permute.xlu0 %5146
        %5150 = vset.pattern.permute.xlu0 0
        %5151 = vperm.xlu0 %5150, %v5100
        %v5152 = vpop.permute.xlu0 %5151
        %5155 = vset.pattern.permute.xlu0 0
        %5156 = vperm.xlu0 %5155, %v5101
        %v5157 = vpop.permute.xlu0 %5156
        %5160 = vset.pattern.permute.xlu0 0
        %5161 = vperm.xlu0 %5160, %v5102
        %v5162 = vpop.permute.xlu0 %5161
        %5165 = vset.pattern.permute.xlu0 0
        %5166 = vperm.xlu0 %5165, %v5103
        %v5167 = vpop.permute.xlu0 %5166
        %v5169 = vmul.f32 %v5078, %v5107
        %v5170 = vmul.f32 %v5079, %v5112
        %v5171 = vmul.f32 %v5080, %v5117
        %v5172 = vmul.f32 %v5081, %v5122
        %v5173 = vmul.f32 %v5082, %v5127
        %v5174 = vmul.f32 %v5083, %v5132
        %v5175 = vmul.f32 %v5084, %v5137
        %v5176 = vmul.f32 %v5085, %v5142
        %v5177 = vmul.f32 %v5086, %v5147
        %v5178 = vmul.f32 %v5087, %v5152
        %v5179 = vmul.f32 %v5088, %v5157
        %v5180 = vmul.f32 %v5089, %v5162
        %v5181 = vmul.f32 %v5090, %v5167
        %5182 = vst [vmem:[#allocation2 + $0x100] sm:$0xff] %v5169
        %5183 = vst [vmem:[#allocation2 + $0x108] sm:$0xff] %v5170
        %5184 = vst [vmem:[#allocation2 + $0x110] sm:$0xff] %v5171
        %5185 = vst [vmem:[#allocation2 + $0x118] sm:$0xff] %v5172
        %5186 = vst [vmem:[#allocation2 + $0x120] sm:$0xff] %v5173
        %5187 = vst [vmem:[#allocation2 + $0x128] sm:$0xff] %v5174
        %5188 = vst [vmem:[#allocation2 + $0x130] sm:$0xff] %v5175
        %5189 = vst [vmem:[#allocation2 + $0x138] sm:$0xff] %v5176
        %5190 = vst [vmem:[#allocation2 + $0x140] sm:$0xff] %v5177
        %5191 = vst [vmem:[#allocation2 + $0x148] sm:$0xff] %v5178
        %5192 = vst [vmem:[#allocation2 + $0x150] sm:$0xff] %v5179
        %5193 = vst [vmem:[#allocation2 + $0x158] sm:$0xff] %v5180
        %5194 = vst [vmem:[#allocation2 + $0x160] sm:$0x3f] %v5181
        %v5195 = vld [vmem:[#allocation2] sm:$0xff]
        %v5196 = vld [vmem:[#allocation2 + $0x8] sm:$0xff]
        %v5197 = vld [vmem:[#allocation2 + $0x10] sm:$0xff]
        %v5198 = vld [vmem:[#allocation2 + $0x18] sm:$0xff]
        %v5199 = vld [vmem:[#allocation2 + $0x20] sm:$0xff]
        %v5200 = vld [vmem:[#allocation2 + $0x28] sm:$0xff]
        %v5201 = vld [vmem:[#allocation2 + $0x30] sm:$0xff]
        %v5202 = vld [vmem:[#allocation2 + $0x38] sm:$0xff]
        %v5203 = vld [vmem:[#allocation2 + $0x40] sm:$0xff]
        %v5204 = vld [vmem:[#allocation2 + $0x48] sm:$0xff]
        %v5205 = vld [vmem:[#allocation2 + $0x50] sm:$0xff]
        %v5206 = vld [vmem:[#allocation2 + $0x58] sm:$0xff]
        %v5207 = vld [vmem:[#allocation2 + $0x60] sm:$0xff]
        %v5208 = vld [vmem:[#allocation2 + $0x68] sm:$0xff]
        %v5209 = vld [vmem:[#allocation2 + $0x70] sm:$0xff]
        %v5210 = vld [vmem:[#allocation2 + $0x78] sm:$0xff]
        %v5211 = vld [vmem:[#allocation2 + $0x80] sm:$0xff]
        %v5212 = vld [vmem:[#allocation2 + $0x88] sm:$0xff]
        %v5213 = vld [vmem:[#allocation2 + $0x90] sm:$0xff]
        %v5214 = vld [vmem:[#allocation2 + $0x98] sm:$0xff]
        %v5215 = vld [vmem:[#allocation2 + $0xa0] sm:$0xff]
        %v5216 = vld [vmem:[#allocation2 + $0xa8] sm:$0xff]
        %v5217 = vld [vmem:[#allocation2 + $0xb0] sm:$0xff]
        %v5218 = vld [vmem:[#allocation2 + $0xb8] sm:$0xff]
        %v5219 = vld [vmem:[#allocation2 + $0xc0] sm:$0xff]
        %v5220 = vld [vmem:[#allocation2 + $0xc8] sm:$0xff]
        %v5221 = vld [vmem:[#allocation2 + $0xd0] sm:$0xff]
        %v5222 = vld [vmem:[#allocation2 + $0xd8] sm:$0xff]
        %v5223 = vld [vmem:[#allocation2 + $0xe0] sm:$0xff]
        %v5224 = vld [vmem:[#allocation2 + $0xe8] sm:$0xff]
        %v5225 = vld [vmem:[#allocation2 + $0xf0] sm:$0xff]
        %v5226 = vld [vmem:[#allocation2 + $0xf8] sm:$0xff]
        %v5227 = vpack.c.bf16 %v5196, %v5195
        %v5228 = vpack.c.bf16 %v5198, %v5197
        %v5229 = vpack.c.bf16 %v5200, %v5199
        %v5230 = vpack.c.bf16 %v5202, %v5201
        %v5231 = vpack.c.bf16 %v5204, %v5203
        %v5232 = vpack.c.bf16 %v5206, %v5205
        %v5233 = vpack.c.bf16 %v5208, %v5207
        %v5234 = vpack.c.bf16 %v5210, %v5209
        %v5235 = vpack.c.bf16 %v5212, %v5211
        %v5236 = vpack.c.bf16 %v5214, %v5213
        %v5237 = vpack.c.bf16 %v5216, %v5215
        %v5238 = vpack.c.bf16 %v5218, %v5217
        %v5239 = vpack.c.bf16 %v5220, %v5219
        %v5240 = vpack.c.bf16 %v5222, %v5221
        %v5241 = vpack.c.bf16 %v5224, %v5223
        %v5242 = vpack.c.bf16 %v5226, %v5225
        %v5243 = vld [vmem:[#allocation7] sm:$0xf]
        %v5244 = vld [vmem:[#allocation7 + $0x4] sm:$0xf]
        %v5245 = vld [vmem:[#allocation7 + $0x8] sm:$0xf]
        %v5246 = vld [vmem:[#allocation7 + $0xc] sm:$0xf]
        %v5247 = vld [vmem:[#allocation7 + $0x10] sm:$0xf]
        %v5248 = vld [vmem:[#allocation7 + $0x14] sm:$0xf]
        %v5249 = vld [vmem:[#allocation7 + $0x18] sm:$0xf]
        %v5250 = vld [vmem:[#allocation7 + $0x1c] sm:$0xf]
        %v5251 = vld [vmem:[#allocation7 + $0x20] sm:$0xf]
        %v5252 = vld [vmem:[#allocation7 + $0x24] sm:$0xf]
        %v5253 = vld [vmem:[#allocation7 + $0x28] sm:$0xf]
        %v5254 = vld [vmem:[#allocation7 + $0x2c] sm:$0xf]
        %v5255 = vld [vmem:[#allocation7 + $0x30] sm:$0xf]
        %v5256 = vld [vmem:[#allocation7 + $0x34] sm:$0xf]
        %v5257 = vld [vmem:[#allocation7 + $0x38] sm:$0xf]
        %v5258 = vld [vmem:[#allocation7 + $0x3c] sm:$0xf]
        %v5259 = vld [vmem:[#allocation2 + $0x1] sm:$0xff]
        %v5260 = vld [vmem:[#allocation2 + $0x9] sm:$0xff]
        %v5261 = vld [vmem:[#allocation2 + $0x11] sm:$0xff]
        %v5262 = vld [vmem:[#allocation2 + $0x19] sm:$0xff]
        %v5263 = vld [vmem:[#allocation2 + $0x21] sm:$0xff]
        %v5264 = vld [vmem:[#allocation2 + $0x29] sm:$0xff]
        %v5265 = vld [vmem:[#allocation2 + $0x31] sm:$0xff]
        %v5266 = vld [vmem:[#allocation2 + $0x39] sm:$0xff]
        %v5267 = vld [vmem:[#allocation2 + $0x41] sm:$0xff]
        %v5268 = vld [vmem:[#allocation2 + $0x49] sm:$0xff]
        %v5269 = vld [vmem:[#allocation2 + $0x51] sm:$0xff]
        %v5270 = vld [vmem:[#allocation2 + $0x59] sm:$0xff]
        %v5271 = vld [vmem:[#allocation2 + $0x61] sm:$0xff]
        %v5272 = vld [vmem:[#allocation2 + $0x69] sm:$0xff]
        %v5273 = vld [vmem:[#allocation2 + $0x71] sm:$0xff]
        %v5274 = vld [vmem:[#allocation2 + $0x79] sm:$0xff]
        %v5275 = vld [vmem:[#allocation2 + $0x81] sm:$0xff]
        %v5276 = vld [vmem:[#allocation2 + $0x89] sm:$0xff]
        %v5277 = vld [vmem:[#allocation2 + $0x91] sm:$0xff]
        %v5278 = vld [vmem:[#allocation2 + $0x99] sm:$0xff]
        %v5279 = vld [vmem:[#allocation2 + $0xa1] sm:$0xff]
        %v5280 = vld [vmem:[#allocation2 + $0xa9] sm:$0xff]
        %v5281 = vld [vmem:[#allocation2 + $0xb1] sm:$0xff]
        %v5282 = vld [vmem:[#allocation2 + $0xb9] sm:$0xff]
        %v5283 = vld [vmem:[#allocation2 + $0xc1] sm:$0xff]
        %v5284 = vld [vmem:[#allocation2 + $0xc9] sm:$0xff]
        %v5285 = vld [vmem:[#allocation2 + $0xd1] sm:$0xff]
        %v5286 = vld [vmem:[#allocation2 + $0xd9] sm:$0xff]
        %v5287 = vld [vmem:[#allocation2 + $0xe1] sm:$0xff]
        %v5288 = vld [vmem:[#allocation2 + $0xe9] sm:$0xff]
        %v5289 = vld [vmem:[#allocation2 + $0xf1] sm:$0xff]
        %v5290 = vld [vmem:[#allocation2 + $0xf9] sm:$0xff]
        %v5291 = vpack.c.bf16 %v5260, %v5259
        %v5292 = vpack.c.bf16 %v5262, %v5261
        %v5293 = vpack.c.bf16 %v5264, %v5263
        %v5294 = vpack.c.bf16 %v5266, %v5265
        %v5295 = vpack.c.bf16 %v5268, %v5267
        %v5296 = vpack.c.bf16 %v5270, %v5269
        %v5297 = vpack.c.bf16 %v5272, %v5271
        %v5298 = vpack.c.bf16 %v5274, %v5273
        %v5299 = vpack.c.bf16 %v5276, %v5275
        %v5300 = vpack.c.bf16 %v5278, %v5277
        %v5301 = vpack.c.bf16 %v5280, %v5279
        %v5302 = vpack.c.bf16 %v5282, %v5281
        %v5303 = vpack.c.bf16 %v5284, %v5283
        %v5304 = vpack.c.bf16 %v5286, %v5285
        %v5305 = vpack.c.bf16 %v5288, %v5287
        %v5306 = vpack.c.bf16 %v5290, %v5289
        %s5307 = scalar_lea.vmem [#allocation7], 64
        %v5308 = vld [vmem:[%s5307] sm:$0xf]
        %v5309 = vld [vmem:[%s5307 + $0x4] sm:$0xf]
        %v5310 = vld [vmem:[%s5307 + $0x8] sm:$0xf]
        %v5311 = vld [vmem:[%s5307 + $0xc] sm:$0xf]
        %v5312 = vld [vmem:[%s5307 + $0x10] sm:$0xf]
        %v5313 = vld [vmem:[%s5307 + $0x14] sm:$0xf]
        %v5314 = vld [vmem:[%s5307 + $0x18] sm:$0xf]
        %v5315 = vld [vmem:[%s5307 + $0x1c] sm:$0xf]
        %v5316 = vld [vmem:[%s5307 + $0x20] sm:$0xf]
        %v5317 = vld [vmem:[%s5307 + $0x24] sm:$0xf]
        %v5318 = vld [vmem:[%s5307 + $0x28] sm:$0xf]
        %v5319 = vld [vmem:[%s5307 + $0x2c] sm:$0xf]
        %v5320 = vld [vmem:[%s5307 + $0x30] sm:$0xf]
        %v5321 = vld [vmem:[%s5307 + $0x34] sm:$0xf]
        %v5322 = vld [vmem:[%s5307 + $0x38] sm:$0xf]
        %v5323 = vld [vmem:[%s5307 + $0x3c] sm:$0xf]
        %v5340 = vunpack.c.l.b16 %v5308
        %v5341 = vunpack.c.l.b16 %v5309
        %v5342 = vunpack.c.l.b16 %v5310
        %v5343 = vunpack.c.l.b16 %v5311
        %v5344 = vunpack.c.l.b16 %v5312
        %v5345 = vunpack.c.l.b16 %v5313
        %v5346 = vunpack.c.l.b16 %v5314
        %v5347 = vunpack.c.l.b16 %v5315
        %v5348 = vunpack.c.l.b16 %v5316
        %v5349 = vunpack.c.l.b16 %v5317
        %v5350 = vunpack.c.l.b16 %v5318
        %v5351 = vunpack.c.l.b16 %v5319
        %v5352 = vunpack.c.l.b16 %v5320
        %v5353 = vunpack.c.l.b16 %v5321
        %v5354 = vunpack.c.l.b16 %v5322
        %v5355 = vunpack.c.l.b16 %v5323
        %v5356 = vpack.c.b16 %v5341, %v5340
        %v5357 = vpack.c.b16 %v5343, %v5342
        %v5358 = vpack.c.b16 %v5345, %v5344
        %v5359 = vpack.c.b16 %v5347, %v5346
        %v5360 = vpack.c.b16 %v5349, %v5348
        %v5361 = vpack.c.b16 %v5351, %v5350
        %v5362 = vpack.c.b16 %v5353, %v5352
        %v5363 = vpack.c.b16 %v5355, %v5354
        %5372 = vmatprep.subr.bf16.mxu0 0
        %5373 = vmatpush1.bf16.msra.mxu0 %v5363
        %5374 = vmatprep.subr.bf16.mxu0 0
        %5375 = vmatpush1.bf16.msra.mxu0 %v5362
        %5376 = vmatprep.subr.bf16.mxu0 0
        %5377 = vmatpush1.bf16.msra.mxu0 %v5361
        %5378 = vmatprep.subr.bf16.mxu0 0
        %5379 = vmatpush1.bf16.msra.mxu0 %v5360
        %5380 = vmatprep.subr.bf16.mxu0 0
        %5381 = vmatpush1.bf16.msra.mxu0 %v5359
        %5382 = vmatprep.subr.bf16.mxu0 0
        %5383 = vmatpush1.bf16.msra.mxu0 %v5358
        %5384 = vmatprep.subr.bf16.mxu0 0
        %5385 = vmatpush1.bf16.msra.mxu0 %v5357
        %5386 = vmatprep.subr.bf16.mxu0 0
        %5387 = vmatpush1.bf16.msra.mxu0 %v5356
        %5388 = vmatprep.subr.bf16.mxu0 0
        %5389 = vmatpush2.bf16.msra.mxu0 0
        %5390 = vmatprep.subr.bf16.mxu0 0
        %5391 = vmatpush2.bf16.msra.mxu0 0
        %5392 = vmatprep.subr.bf16.mxu0 0
        %5393 = vmatpush2.bf16.msra.mxu0 0
        %5394 = vmatprep.subr.bf16.mxu0 0
        %5395 = vmatpush2.bf16.msra.mxu0 0
        %5396 = vmatprep.subr.bf16.mxu0 0
        %5397 = vmatpush2.bf16.msra.mxu0 0
        %5398 = vmatprep.subr.bf16.mxu0 0
        %5399 = vmatpush2.bf16.msra.mxu0 0
        %5400 = vmatprep.subr.bf16.mxu0 0
        %5401 = vmatpush2.bf16.msra.mxu0 0
        %5402 = vmatprep.subr.bf16.mxu0 0
        %5403 = vmatpush2.bf16.msra.mxu0 0
        %5404 = vmatprep.mubr.bf16.mxu0 0
        %5405 = vmatmul.mubr.bf16.gmra.mxu0 %v5291
        %v5406 = vpop.f32.mrf.mxu0
        %v5407 = vadd.f32 0.0, %v5406
        %v5408 = vpop.f32.mrf.mxu0
        %v5409 = vpop.f32.mrf.mxu0
        %v5410 = vadd.f32 0.0, %v5409
        %v5411 = vpop.f32.mrf.mxu0
        %5412 = vmatprep.mubr.bf16.mxu0 0
        %5413 = vmatmul.mubr.bf16.gmra.mxu0 %v5292
        %v5414 = vpop.f32.mrf.mxu0
        %v5415 = vadd.f32 0.0, %v5414
        %v5416 = vpop.f32.mrf.mxu0
        %v5417 = vpop.f32.mrf.mxu0
        %v5418 = vadd.f32 0.0, %v5417
        %v5419 = vpop.f32.mrf.mxu0
        %5420 = vmatprep.mubr.bf16.mxu0 0
        %5421 = vmatmul.mubr.bf16.gmra.mxu0 %v5293
        %v5422 = vpop.f32.mrf.mxu0
        %v5423 = vadd.f32 0.0, %v5422
        %v5424 = vpop.f32.mrf.mxu0
        %v5425 = vpop.f32.mrf.mxu0
        %v5426 = vadd.f32 0.0, %v5425
        %v5427 = vpop.f32.mrf.mxu0
        %5428 = vmatprep.mubr.bf16.mxu0 0
        %5429 = vmatmul.mubr.bf16.gmra.mxu0 %v5294
        %v5430 = vpop.f32.mrf.mxu0
        %v5431 = vadd.f32 0.0, %v5430
        %v5432 = vpop.f32.mrf.mxu0
        %v5433 = vpop.f32.mrf.mxu0
        %v5434 = vadd.f32 0.0, %v5433
        %v5435 = vpop.f32.mrf.mxu0
        %5436 = vmatprep.mubr.bf16.mxu0 0
        %5437 = vmatmul.mubr.bf16.gmra.mxu0 %v5295
        %v5438 = vpop.f32.mrf.mxu0
        %v5439 = vadd.f32 0.0, %v5438
        %v5440 = vpop.f32.mrf.mxu0
        %v5441 = vpop.f32.mrf.mxu0
        %v5442 = vadd.f32 0.0, %v5441
        %v5443 = vpop.f32.mrf.mxu0
        %5444 = vmatprep.mubr.bf16.mxu0 0
        %5445 = vmatmul.mubr.bf16.gmra.mxu0 %v5296
        %v5446 = vpop.f32.mrf.mxu0
        %v5447 = vadd.f32 0.0, %v5446
        %v5448 = vpop.f32.mrf.mxu0
        %v5449 = vpop.f32.mrf.mxu0
        %v5450 = vadd.f32 0.0, %v5449
        %v5451 = vpop.f32.mrf.mxu0
        %5452 = vmatprep.mubr.bf16.mxu0 0
        %5453 = vmatmul.mubr.bf16.gmra.mxu0 %v5297
        %v5454 = vpop.f32.mrf.mxu0
        %v5455 = vadd.f32 0.0, %v5454
        %v5456 = vpop.f32.mrf.mxu0
        %v5457 = vpop.f32.mrf.mxu0
        %v5458 = vadd.f32 0.0, %v5457
        %v5459 = vpop.f32.mrf.mxu0
        %5460 = vmatprep.mubr.bf16.mxu0 0
        %5461 = vmatmul.mubr.bf16.gmra.mxu0 %v5298
        %v5462 = vpop.f32.mrf.mxu0
        %v5463 = vadd.f32 0.0, %v5462
        %v5464 = vpop.f32.mrf.mxu0
        %v5465 = vpop.f32.mrf.mxu0
        %v5466 = vadd.f32 0.0, %v5465
        %v5467 = vpop.f32.mrf.mxu0
        %5468 = vmatprep.mubr.bf16.mxu0 0
        %5469 = vmatmul.mubr.bf16.gmra.mxu0 %v5299
        %v5470 = vpop.f32.mrf.mxu0
        %v5471 = vadd.f32 0.0, %v5470
        %v5472 = vpop.f32.mrf.mxu0
        %v5473 = vpop.f32.mrf.mxu0
        %v5474 = vadd.f32 0.0, %v5473
        %v5475 = vpop.f32.mrf.mxu0
        %5476 = vmatprep.mubr.bf16.mxu0 0
        %5477 = vmatmul.mubr.bf16.gmra.mxu0 %v5300
        %v5478 = vpop.f32.mrf.mxu0
        %v5479 = vadd.f32 0.0, %v5478
        %v5480 = vpop.f32.mrf.mxu0
        %v5481 = vpop.f32.mrf.mxu0
        %v5482 = vadd.f32 0.0, %v5481
        %v5483 = vpop.f32.mrf.mxu0
        %5484 = vmatprep.mubr.bf16.mxu0 0
        %5485 = vmatmul.mubr.bf16.gmra.mxu0 %v5301
        %v5486 = vpop.f32.mrf.mxu0
        %v5487 = vadd.f32 0.0, %v5486
        %v5488 = vpop.f32.mrf.mxu0
        %v5489 = vpop.f32.mrf.mxu0
        %v5490 = vadd.f32 0.0, %v5489
        %v5491 = vpop.f32.mrf.mxu0
        %5492 = vmatprep.mubr.bf16.mxu0 0
        %5493 = vmatmul.mubr.bf16.gmra.mxu0 %v5302
        %v5494 = vpop.f32.mrf.mxu0
        %v5495 = vadd.f32 0.0, %v5494
        %v5496 = vpop.f32.mrf.mxu0
        %v5497 = vpop.f32.mrf.mxu0
        %v5498 = vadd.f32 0.0, %v5497
        %v5499 = vpop.f32.mrf.mxu0
        %5500 = vmatprep.mubr.bf16.mxu0 0
        %5501 = vmatmul.mubr.bf16.gmra.mxu0 %v5303
        %v5502 = vpop.f32.mrf.mxu0
        %v5503 = vadd.f32 0.0, %v5502
        %v5504 = vpop.f32.mrf.mxu0
        %v5505 = vpop.f32.mrf.mxu0
        %v5506 = vadd.f32 0.0, %v5505
        %v5507 = vpop.f32.mrf.mxu0
        %5508 = vmatprep.mubr.bf16.mxu0 0
        %5509 = vmatmul.mubr.bf16.gmra.mxu0 %v5304
        %v5510 = vpop.f32.mrf.mxu0
        %v5511 = vadd.f32 0.0, %v5510
        %v5512 = vpop.f32.mrf.mxu0
        %v5513 = vpop.f32.mrf.mxu0
        %v5514 = vadd.f32 0.0, %v5513
        %v5515 = vpop.f32.mrf.mxu0
        %5516 = vmatprep.mubr.bf16.mxu0 0
        %5517 = vmatmul.mubr.bf16.gmra.mxu0 %v5305
        %v5518 = vpop.f32.mrf.mxu0
        %v5519 = vadd.f32 0.0, %v5518
        %v5520 = vpop.f32.mrf.mxu0
        %v5521 = vpop.f32.mrf.mxu0
        %v5522 = vadd.f32 0.0, %v5521
        %v5523 = vpop.f32.mrf.mxu0
        %5524 = vmatprep.mubr.bf16.mxu0 0
        %5525 = vmatmul.mubr.bf16.gmra.mxu0 %v5306
        %v5526 = vpop.f32.mrf.mxu0
        %v5527 = vadd.f32 0.0, %v5526
        %v5528 = vpop.f32.mrf.mxu0
        %v5529 = vpop.f32.mrf.mxu0
        %v5530 = vadd.f32 0.0, %v5529
        %v5531 = vpop.f32.mrf.mxu0
        %5532 = vdwg.mxu0
        %v5549 = vunpack.c.l.b16 %v5243
        %v5550 = vunpack.c.l.b16 %v5244
        %v5551 = vunpack.c.l.b16 %v5245
        %v5552 = vunpack.c.l.b16 %v5246
        %v5553 = vunpack.c.l.b16 %v5247
        %v5554 = vunpack.c.l.b16 %v5248
        %v5555 = vunpack.c.l.b16 %v5249
        %v5556 = vunpack.c.l.b16 %v5250
        %v5557 = vunpack.c.l.b16 %v5251
        %v5558 = vunpack.c.l.b16 %v5252
        %v5559 = vunpack.c.l.b16 %v5253
        %v5560 = vunpack.c.l.b16 %v5254
        %v5561 = vunpack.c.l.b16 %v5255
        %v5562 = vunpack.c.l.b16 %v5256
        %v5563 = vunpack.c.l.b16 %v5257
        %v5564 = vunpack.c.l.b16 %v5258
        %v5565 = vpack.c.b16 %v5550, %v5549
        %v5566 = vpack.c.b16 %v5552, %v5551
        %v5567 = vpack.c.b16 %v5554, %v5553
        %v5568 = vpack.c.b16 %v5556, %v5555
        %v5569 = vpack.c.b16 %v5558, %v5557
        %v5570 = vpack.c.b16 %v5560, %v5559
        %v5571 = vpack.c.b16 %v5562, %v5561
        %v5572 = vpack.c.b16 %v5564, %v5563
        %5581 = vmatprep.subr.bf16.mxu0 0
        %5582 = vmatpush1.bf16.msra.mxu0 %v5572
        %5583 = vmatprep.subr.bf16.mxu0 0
        %5584 = vmatpush1.bf16.msra.mxu0 %v5571
        %5585 = vmatprep.subr.bf16.mxu0 0
        %5586 = vmatpush1.bf16.msra.mxu0 %v5570
        %5587 = vmatprep.subr.bf16.mxu0 0
        %5588 = vmatpush1.bf16.msra.mxu0 %v5569
        %5589 = vmatprep.subr.bf16.mxu0 0
        %5590 = vmatpush1.bf16.msra.mxu0 %v5568
        %5591 = vmatprep.subr.bf16.mxu0 0
        %5592 = vmatpush1.bf16.msra.mxu0 %v5567
        %5593 = vmatprep.subr.bf16.mxu0 0
        %5594 = vmatpush1.bf16.msra.mxu0 %v5566
        %5595 = vmatprep.subr.bf16.mxu0 0
        %5596 = vmatpush1.bf16.msra.mxu0 %v5565
        %5597 = vmatprep.subr.bf16.mxu0 0
        %5598 = vmatpush2.bf16.msra.mxu0 0
        %5599 = vmatprep.subr.bf16.mxu0 0
        %5600 = vmatpush2.bf16.msra.mxu0 0
        %5601 = vmatprep.subr.bf16.mxu0 0
        %5602 = vmatpush2.bf16.msra.mxu0 0
        %5603 = vmatprep.subr.bf16.mxu0 0
        %5604 = vmatpush2.bf16.msra.mxu0 0
        %5605 = vmatprep.subr.bf16.mxu0 0
        %5606 = vmatpush2.bf16.msra.mxu0 0
        %5607 = vmatprep.subr.bf16.mxu0 0
        %5608 = vmatpush2.bf16.msra.mxu0 0
        %5609 = vmatprep.subr.bf16.mxu0 0
        %5610 = vmatpush2.bf16.msra.mxu0 0
        %5611 = vmatprep.subr.bf16.mxu0 0
        %5612 = vmatpush2.bf16.msra.mxu0 0
        %5613 = vmatprep.mubr.bf16.mxu0 0
        %5614 = vmatmul.mubr.bf16.gmra.mxu0 %v5227
        %v5615 = vpop.f32.mrf.mxu0
        %v5616 = vadd.f32 %v5407, %v5615
        %v5617 = vpop.f32.mrf.mxu0
        %v5618 = vpop.f32.mrf.mxu0
        %v5619 = vadd.f32 %v5410, %v5618
        %v5620 = vpop.f32.mrf.mxu0
        %5621 = vmatprep.mubr.bf16.mxu0 0
        %5622 = vmatmul.mubr.bf16.gmra.mxu0 %v5228
        %v5623 = vpop.f32.mrf.mxu0
        %v5624 = vadd.f32 %v5415, %v5623
        %v5625 = vpop.f32.mrf.mxu0
        %v5626 = vpop.f32.mrf.mxu0
        %v5627 = vadd.f32 %v5418, %v5626
        %v5628 = vpop.f32.mrf.mxu0
        %5629 = vmatprep.mubr.bf16.mxu0 0
        %5630 = vmatmul.mubr.bf16.gmra.mxu0 %v5229
        %v5631 = vpop.f32.mrf.mxu0
        %v5632 = vadd.f32 %v5423, %v5631
        %v5633 = vpop.f32.mrf.mxu0
        %v5634 = vpop.f32.mrf.mxu0
        %v5635 = vadd.f32 %v5426, %v5634
        %v5636 = vpop.f32.mrf.mxu0
        %5637 = vmatprep.mubr.bf16.mxu0 0
        %5638 = vmatmul.mubr.bf16.gmra.mxu0 %v5230
        %v5639 = vpop.f32.mrf.mxu0
        %v5640 = vadd.f32 %v5431, %v5639
        %v5641 = vpop.f32.mrf.mxu0
        %v5642 = vpop.f32.mrf.mxu0
        %v5643 = vadd.f32 %v5434, %v5642
        %v5644 = vpop.f32.mrf.mxu0
        %5645 = vmatprep.mubr.bf16.mxu0 0
        %5646 = vmatmul.mubr.bf16.gmra.mxu0 %v5231
        %v5647 = vpop.f32.mrf.mxu0
        %v5648 = vadd.f32 %v5439, %v5647
        %v5649 = vpop.f32.mrf.mxu0
        %v5650 = vpop.f32.mrf.mxu0
        %v5651 = vadd.f32 %v5442, %v5650
        %v5652 = vpop.f32.mrf.mxu0
        %5653 = vmatprep.mubr.bf16.mxu0 0
        %5654 = vmatmul.mubr.bf16.gmra.mxu0 %v5232
        %v5655 = vpop.f32.mrf.mxu0
        %v5656 = vadd.f32 %v5447, %v5655
        %v5657 = vpop.f32.mrf.mxu0
        %v5658 = vpop.f32.mrf.mxu0
        %v5659 = vadd.f32 %v5450, %v5658
        %v5660 = vpop.f32.mrf.mxu0
        %5661 = vmatprep.mubr.bf16.mxu0 0
        %5662 = vmatmul.mubr.bf16.gmra.mxu0 %v5233
        %v5663 = vpop.f32.mrf.mxu0
        %v5664 = vadd.f32 %v5455, %v5663
        %v5665 = vpop.f32.mrf.mxu0
        %v5666 = vpop.f32.mrf.mxu0
        %v5667 = vadd.f32 %v5458, %v5666
        %v5668 = vpop.f32.mrf.mxu0
        %5669 = vmatprep.mubr.bf16.mxu0 0
        %5670 = vmatmul.mubr.bf16.gmra.mxu0 %v5234
        %v5671 = vpop.f32.mrf.mxu0
        %v5672 = vadd.f32 %v5463, %v5671
        %v5673 = vpop.f32.mrf.mxu0
        %v5674 = vpop.f32.mrf.mxu0
        %v5675 = vadd.f32 %v5466, %v5674
        %v5676 = vpop.f32.mrf.mxu0
        %5677 = vmatprep.mubr.bf16.mxu0 0
        %5678 = vmatmul.mubr.bf16.gmra.mxu0 %v5235
        %v5679 = vpop.f32.mrf.mxu0
        %v5680 = vadd.f32 %v5471, %v5679
        %v5681 = vpop.f32.mrf.mxu0
        %v5682 = vpop.f32.mrf.mxu0
        %v5683 = vadd.f32 %v5474, %v5682
        %v5684 = vpop.f32.mrf.mxu0
        %5685 = vmatprep.mubr.bf16.mxu0 0
        %5686 = vmatmul.mubr.bf16.gmra.mxu0 %v5236
        %v5687 = vpop.f32.mrf.mxu0
        %v5688 = vadd.f32 %v5479, %v5687
        %v5689 = vpop.f32.mrf.mxu0
        %v5690 = vpop.f32.mrf.mxu0
        %v5691 = vadd.f32 %v5482, %v5690
        %v5692 = vpop.f32.mrf.mxu0
        %5693 = vmatprep.mubr.bf16.mxu0 0
        %5694 = vmatmul.mubr.bf16.gmra.mxu0 %v5237
        %v5695 = vpop.f32.mrf.mxu0
        %v5696 = vadd.f32 %v5487, %v5695
        %v5697 = vpop.f32.mrf.mxu0
        %v5698 = vpop.f32.mrf.mxu0
        %v5699 = vadd.f32 %v5490, %v5698
        %v5700 = vpop.f32.mrf.mxu0
        %5701 = vmatprep.mubr.bf16.mxu0 0
        %5702 = vmatmul.mubr.bf16.gmra.mxu0 %v5238
        %v5703 = vpop.f32.mrf.mxu0
        %v5704 = vadd.f32 %v5495, %v5703
        %v5705 = vpop.f32.mrf.mxu0
        %v5706 = vpop.f32.mrf.mxu0
        %v5707 = vadd.f32 %v5498, %v5706
        %v5708 = vpop.f32.mrf.mxu0
        %5709 = vmatprep.mubr.bf16.mxu0 0
        %5710 = vmatmul.mubr.bf16.gmra.mxu0 %v5239
        %v5711 = vpop.f32.mrf.mxu0
        %v5712 = vadd.f32 %v5503, %v5711
        %v5713 = vpop.f32.mrf.mxu0
        %v5714 = vpop.f32.mrf.mxu0
        %v5715 = vadd.f32 %v5506, %v5714
        %v5716 = vpop.f32.mrf.mxu0
        %5717 = vmatprep.mubr.bf16.mxu0 0
        %5718 = vmatmul.mubr.bf16.gmra.mxu0 %v5240
        %v5719 = vpop.f32.mrf.mxu0
        %v5720 = vadd.f32 %v5511, %v5719
        %v5721 = vpop.f32.mrf.mxu0
        %v5722 = vpop.f32.mrf.mxu0
        %v5723 = vadd.f32 %v5514, %v5722
        %v5724 = vpop.f32.mrf.mxu0
        %5725 = vmatprep.mubr.bf16.mxu0 0
        %5726 = vmatmul.mubr.bf16.gmra.mxu0 %v5241
        %v5727 = vpop.f32.mrf.mxu0
        %v5728 = vadd.f32 %v5519, %v5727
        %v5729 = vpop.f32.mrf.mxu0
        %v5730 = vpop.f32.mrf.mxu0
        %v5731 = vadd.f32 %v5522, %v5730
        %v5732 = vpop.f32.mrf.mxu0
        %5733 = vmatprep.mubr.bf16.mxu0 0
        %5734 = vmatmul.mubr.bf16.gmra.mxu0 %v5242
        %v5735 = vpop.f32.mrf.mxu0
        %v5736 = vadd.f32 %v5527, %v5735
        %v5737 = vpop.f32.mrf.mxu0
        %v5738 = vpop.f32.mrf.mxu0
        %v5739 = vadd.f32 %v5530, %v5738
        %v5740 = vpop.f32.mrf.mxu0
        %5741 = vdwg.mxu0
        %v5742 = vld [vmem:[#allocation2 + $0x2] sm:$0xff]
        %v5743 = vld [vmem:[#allocation2 + $0xa] sm:$0xff]
        %v5744 = vld [vmem:[#allocation2 + $0x12] sm:$0xff]
        %v5745 = vld [vmem:[#allocation2 + $0x1a] sm:$0xff]
        %v5746 = vld [vmem:[#allocation2 + $0x22] sm:$0xff]
        %v5747 = vld [vmem:[#allocation2 + $0x2a] sm:$0xff]
        %v5748 = vld [vmem:[#allocation2 + $0x32] sm:$0xff]
        %v5749 = vld [vmem:[#allocation2 + $0x3a] sm:$0xff]
        %v5750 = vld [vmem:[#allocation2 + $0x42] sm:$0xff]
        %v5751 = vld [vmem:[#allocation2 + $0x4a] sm:$0xff]
        %v5752 = vld [vmem:[#allocation2 + $0x52] sm:$0xff]
        %v5753 = vld [vmem:[#allocation2 + $0x5a] sm:$0xff]
        %v5754 = vld [vmem:[#allocation2 + $0x62] sm:$0xff]
        %v5755 = vld [vmem:[#allocation2 + $0x6a] sm:$0xff]
        %v5756 = vld [vmem:[#allocation2 + $0x72] sm:$0xff]
        %v5757 = vld [vmem:[#allocation2 + $0x7a] sm:$0xff]
        %v5758 = vld [vmem:[#allocation2 + $0x82] sm:$0xff]
        %v5759 = vld [vmem:[#allocation2 + $0x8a] sm:$0xff]
        %v5760 = vld [vmem:[#allocation2 + $0x92] sm:$0xff]
        %v5761 = vld [vmem:[#allocation2 + $0x9a] sm:$0xff]
        %v5762 = vld [vmem:[#allocation2 + $0xa2] sm:$0xff]
        %v5763 = vld [vmem:[#allocation2 + $0xaa] sm:$0xff]
        %v5764 = vld [vmem:[#allocation2 + $0xb2] sm:$0xff]
        %v5765 = vld [vmem:[#allocation2 + $0xba] sm:$0xff]
        %v5766 = vld [vmem:[#allocation2 + $0xc2] sm:$0xff]
        %v5767 = vld [vmem:[#allocation2 + $0xca] sm:$0xff]
        %v5768 = vld [vmem:[#allocation2 + $0xd2] sm:$0xff]
        %v5769 = vld [vmem:[#allocation2 + $0xda] sm:$0xff]
        %v5770 = vld [vmem:[#allocation2 + $0xe2] sm:$0xff]
        %v5771 = vld [vmem:[#allocation2 + $0xea] sm:$0xff]
        %v5772 = vld [vmem:[#allocation2 + $0xf2] sm:$0xff]
        %v5773 = vld [vmem:[#allocation2 + $0xfa] sm:$0xff]
        %v5774 = vpack.c.bf16 %v5743, %v5742
        %v5775 = vpack.c.bf16 %v5745, %v5744
        %v5776 = vpack.c.bf16 %v5747, %v5746
        %v5777 = vpack.c.bf16 %v5749, %v5748
        %v5778 = vpack.c.bf16 %v5751, %v5750
        %v5779 = vpack.c.bf16 %v5753, %v5752
        %v5780 = vpack.c.bf16 %v5755, %v5754
        %v5781 = vpack.c.bf16 %v5757, %v5756
        %v5782 = vpack.c.bf16 %v5759, %v5758
        %v5783 = vpack.c.bf16 %v5761, %v5760
        %v5784 = vpack.c.bf16 %v5763, %v5762
        %v5785 = vpack.c.bf16 %v5765, %v5764
        %v5786 = vpack.c.bf16 %v5767, %v5766
        %v5787 = vpack.c.bf16 %v5769, %v5768
        %v5788 = vpack.c.bf16 %v5771, %v5770
        %v5789 = vpack.c.bf16 %v5773, %v5772
        %s5790 = scalar_lea.vmem [#allocation7], 128
        %v5791 = vld [vmem:[%s5790] sm:$0xf]
        %v5792 = vld [vmem:[%s5790 + $0x4] sm:$0xf]
        %v5793 = vld [vmem:[%s5790 + $0x8] sm:$0xf]
        %v5794 = vld [vmem:[%s5790 + $0xc] sm:$0xf]
        %v5795 = vld [vmem:[%s5790 + $0x10] sm:$0xf]
        %v5796 = vld [vmem:[%s5790 + $0x14] sm:$0xf]
        %v5797 = vld [vmem:[%s5790 + $0x18] sm:$0xf]
        %v5798 = vld [vmem:[%s5790 + $0x1c] sm:$0xf]
        %v5799 = vld [vmem:[%s5790 + $0x20] sm:$0xf]
        %v5800 = vld [vmem:[%s5790 + $0x24] sm:$0xf]
        %v5801 = vld [vmem:[%s5790 + $0x28] sm:$0xf]
        %v5802 = vld [vmem:[%s5790 + $0x2c] sm:$0xf]
        %v5803 = vld [vmem:[%s5790 + $0x30] sm:$0xf]
        %v5804 = vld [vmem:[%s5790 + $0x34] sm:$0xf]
        %v5805 = vld [vmem:[%s5790 + $0x38] sm:$0xf]
        %v5806 = vld [vmem:[%s5790 + $0x3c] sm:$0xf]
        %v5823 = vunpack.c.l.b16 %v5791
        %v5824 = vunpack.c.l.b16 %v5792
        %v5825 = vunpack.c.l.b16 %v5793
        %v5826 = vunpack.c.l.b16 %v5794
        %v5827 = vunpack.c.l.b16 %v5795
        %v5828 = vunpack.c.l.b16 %v5796
        %v5829 = vunpack.c.l.b16 %v5797
        %v5830 = vunpack.c.l.b16 %v5798
        %v5831 = vunpack.c.l.b16 %v5799
        %v5832 = vunpack.c.l.b16 %v5800
        %v5833 = vunpack.c.l.b16 %v5801
        %v5834 = vunpack.c.l.b16 %v5802
        %v5835 = vunpack.c.l.b16 %v5803
        %v5836 = vunpack.c.l.b16 %v5804
        %v5837 = vunpack.c.l.b16 %v5805
        %v5838 = vunpack.c.l.b16 %v5806
        %v5839 = vpack.c.b16 %v5824, %v5823
        %v5840 = vpack.c.b16 %v5826, %v5825
        %v5841 = vpack.c.b16 %v5828, %v5827
        %v5842 = vpack.c.b16 %v5830, %v5829
        %v5843 = vpack.c.b16 %v5832, %v5831
        %v5844 = vpack.c.b16 %v5834, %v5833
        %v5845 = vpack.c.b16 %v5836, %v5835
        %v5846 = vpack.c.b16 %v5838, %v5837
        %5855 = vmatprep.subr.bf16.mxu0 0
        %5856 = vmatpush1.bf16.msra.mxu0 %v5846
        %5857 = vmatprep.subr.bf16.mxu0 0
        %5858 = vmatpush1.bf16.msra.mxu0 %v5845
        %5859 = vmatprep.subr.bf16.mxu0 0
        %5860 = vmatpush1.bf16.msra.mxu0 %v5844
        %5861 = vmatprep.subr.bf16.mxu0 0
        %5862 = vmatpush1.bf16.msra.mxu0 %v5843
        %5863 = vmatprep.subr.bf16.mxu0 0
        %5864 = vmatpush1.bf16.msra.mxu0 %v5842
        %5865 = vmatprep.subr.bf16.mxu0 0
        %5866 = vmatpush1.bf16.msra.mxu0 %v5841
        %5867 = vmatprep.subr.bf16.mxu0 0
        %5868 = vmatpush1.bf16.msra.mxu0 %v5840
        %5869 = vmatprep.subr.bf16.mxu0 0
        %5870 = vmatpush1.bf16.msra.mxu0 %v5839
        %5871 = vmatprep.subr.bf16.mxu0 0
        %5872 = vmatpush2.bf16.msra.mxu0 0
        %5873 = vmatprep.subr.bf16.mxu0 0
        %5874 = vmatpush2.bf16.msra.mxu0 0
        %5875 = vmatprep.subr.bf16.mxu0 0
        %5876 = vmatpush2.bf16.msra.mxu0 0
        %5877 = vmatprep.subr.bf16.mxu0 0
        %5878 = vmatpush2.bf16.msra.mxu0 0
        %5879 = vmatprep.subr.bf16.mxu0 0
        %5880 = vmatpush2.bf16.msra.mxu0 0
        %5881 = vmatprep.subr.bf16.mxu0 0
        %5882 = vmatpush2.bf16.msra.mxu0 0
        %5883 = vmatprep.subr.bf16.mxu0 0
        %5884 = vmatpush2.bf16.msra.mxu0 0
        %5885 = vmatprep.subr.bf16.mxu0 0
        %5886 = vmatpush2.bf16.msra.mxu0 0
        %5887 = vmatprep.mubr.bf16.mxu0 0
        %5888 = vmatmul.mubr.bf16.gmra.mxu0 %v5774
        %v5889 = vpop.f32.mrf.mxu0
        %v5890 = vadd.f32 0.0, %v5889
        %v5891 = vpop.f32.mrf.mxu0
        %v5892 = vpop.f32.mrf.mxu0
        %v5893 = vadd.f32 0.0, %v5892
        %v5894 = vpop.f32.mrf.mxu0
        %5895 = vmatprep.mubr.bf16.mxu0 0
        %5896 = vmatmul.mubr.bf16.gmra.mxu0 %v5775
        %v5897 = vpop.f32.mrf.mxu0
        %v5898 = vadd.f32 0.0, %v5897
        %v5899 = vpop.f32.mrf.mxu0
        %v5900 = vpop.f32.mrf.mxu0
        %v5901 = vadd.f32 0.0, %v5900
        %v5902 = vpop.f32.mrf.mxu0
        %5903 = vmatprep.mubr.bf16.mxu0 0
        %5904 = vmatmul.mubr.bf16.gmra.mxu0 %v5776
        %v5905 = vpop.f32.mrf.mxu0
        %v5906 = vadd.f32 0.0, %v5905
        %v5907 = vpop.f32.mrf.mxu0
        %v5908 = vpop.f32.mrf.mxu0
        %v5909 = vadd.f32 0.0, %v5908
        %v5910 = vpop.f32.mrf.mxu0
        %5911 = vmatprep.mubr.bf16.mxu0 0
        %5912 = vmatmul.mubr.bf16.gmra.mxu0 %v5777
        %v5913 = vpop.f32.mrf.mxu0
        %v5914 = vadd.f32 0.0, %v5913
        %v5915 = vpop.f32.mrf.mxu0
        %v5916 = vpop.f32.mrf.mxu0
        %v5917 = vadd.f32 0.0, %v5916
        %v5918 = vpop.f32.mrf.mxu0
        %5919 = vmatprep.mubr.bf16.mxu0 0
        %5920 = vmatmul.mubr.bf16.gmra.mxu0 %v5778
        %v5921 = vpop.f32.mrf.mxu0
        %v5922 = vadd.f32 0.0, %v5921
        %v5923 = vpop.f32.mrf.mxu0
        %v5924 = vpop.f32.mrf.mxu0
        %v5925 = vadd.f32 0.0, %v5924
        %v5926 = vpop.f32.mrf.mxu0
        %5927 = vmatprep.mubr.bf16.mxu0 0
        %5928 = vmatmul.mubr.bf16.gmra.mxu0 %v5779
        %v5929 = vpop.f32.mrf.mxu0
        %v5930 = vadd.f32 0.0, %v5929
        %v5931 = vpop.f32.mrf.mxu0
        %v5932 = vpop.f32.mrf.mxu0
        %v5933 = vadd.f32 0.0, %v5932
        %v5934 = vpop.f32.mrf.mxu0
        %5935 = vmatprep.mubr.bf16.mxu0 0
        %5936 = vmatmul.mubr.bf16.gmra.mxu0 %v5780
        %v5937 = vpop.f32.mrf.mxu0
        %v5938 = vadd.f32 0.0, %v5937
        %v5939 = vpop.f32.mrf.mxu0
        %v5940 = vpop.f32.mrf.mxu0
        %v5941 = vadd.f32 0.0, %v5940
        %v5942 = vpop.f32.mrf.mxu0
        %5943 = vmatprep.mubr.bf16.mxu0 0
        %5944 = vmatmul.mubr.bf16.gmra.mxu0 %v5781
        %v5945 = vpop.f32.mrf.mxu0
        %v5946 = vadd.f32 0.0, %v5945
        %v5947 = vpop.f32.mrf.mxu0
        %v5948 = vpop.f32.mrf.mxu0
        %v5949 = vadd.f32 0.0, %v5948
        %v5950 = vpop.f32.mrf.mxu0
        %5951 = vmatprep.mubr.bf16.mxu0 0
        %5952 = vmatmul.mubr.bf16.gmra.mxu0 %v5782
        %v5953 = vpop.f32.mrf.mxu0
        %v5954 = vadd.f32 0.0, %v5953
        %v5955 = vpop.f32.mrf.mxu0
        %v5956 = vpop.f32.mrf.mxu0
        %v5957 = vadd.f32 0.0, %v5956
        %v5958 = vpop.f32.mrf.mxu0
        %5959 = vmatprep.mubr.bf16.mxu0 0
        %5960 = vmatmul.mubr.bf16.gmra.mxu0 %v5783
        %v5961 = vpop.f32.mrf.mxu0
        %v5962 = vadd.f32 0.0, %v5961
        %v5963 = vpop.f32.mrf.mxu0
        %v5964 = vpop.f32.mrf.mxu0
        %v5965 = vadd.f32 0.0, %v5964
        %v5966 = vpop.f32.mrf.mxu0
        %5967 = vmatprep.mubr.bf16.mxu0 0
        %5968 = vmatmul.mubr.bf16.gmra.mxu0 %v5784
        %v5969 = vpop.f32.mrf.mxu0
        %v5970 = vadd.f32 0.0, %v5969
        %v5971 = vpop.f32.mrf.mxu0
        %v5972 = vpop.f32.mrf.mxu0
        %v5973 = vadd.f32 0.0, %v5972
        %v5974 = vpop.f32.mrf.mxu0
        %5975 = vmatprep.mubr.bf16.mxu0 0
        %5976 = vmatmul.mubr.bf16.gmra.mxu0 %v5785
        %v5977 = vpop.f32.mrf.mxu0
        %v5978 = vadd.f32 0.0, %v5977
        %v5979 = vpop.f32.mrf.mxu0
        %v5980 = vpop.f32.mrf.mxu0
        %v5981 = vadd.f32 0.0, %v5980
        %v5982 = vpop.f32.mrf.mxu0
        %5983 = vmatprep.mubr.bf16.mxu0 0
        %5984 = vmatmul.mubr.bf16.gmra.mxu0 %v5786
        %v5985 = vpop.f32.mrf.mxu0
        %v5986 = vadd.f32 0.0, %v5985
        %v5987 = vpop.f32.mrf.mxu0
        %v5988 = vpop.f32.mrf.mxu0
        %v5989 = vadd.f32 0.0, %v5988
        %v5990 = vpop.f32.mrf.mxu0
        %5991 = vmatprep.mubr.bf16.mxu0 0
        %5992 = vmatmul.mubr.bf16.gmra.mxu0 %v5787
        %v5993 = vpop.f32.mrf.mxu0
        %v5994 = vadd.f32 0.0, %v5993
        %v5995 = vpop.f32.mrf.mxu0
        %v5996 = vpop.f32.mrf.mxu0
        %v5997 = vadd.f32 0.0, %v5996
        %v5998 = vpop.f32.mrf.mxu0
        %5999 = vmatprep.mubr.bf16.mxu0 0
        %6000 = vmatmul.mubr.bf16.gmra.mxu0 %v5788
        %v6001 = vpop.f32.mrf.mxu0
        %v6002 = vadd.f32 0.0, %v6001
        %v6003 = vpop.f32.mrf.mxu0
        %v6004 = vpop.f32.mrf.mxu0
        %v6005 = vadd.f32 0.0, %v6004
        %v6006 = vpop.f32.mrf.mxu0
        %6007 = vmatprep.mubr.bf16.mxu0 0
        %6008 = vmatmul.mubr.bf16.gmra.mxu0 %v5789
        %v6009 = vpop.f32.mrf.mxu0
        %v6010 = vadd.f32 0.0, %v6009
        %v6011 = vpop.f32.mrf.mxu0
        %v6012 = vpop.f32.mrf.mxu0
        %v6013 = vadd.f32 0.0, %v6012
        %v6014 = vpop.f32.mrf.mxu0
        %6015 = vdwg.mxu0
        %v6016 = vadd.f32 %v5616, %v5890
        %v6017 = vadd.f32 %v5619, %v5893
        %v6018 = vadd.f32 %v5624, %v5898
        %v6019 = vadd.f32 %v5627, %v5901
        %v6020 = vadd.f32 %v5632, %v5906
        %v6021 = vadd.f32 %v5635, %v5909
        %v6022 = vadd.f32 %v5640, %v5914
        %v6023 = vadd.f32 %v5643, %v5917
        %v6024 = vadd.f32 %v5648, %v5922
        %v6025 = vadd.f32 %v5651, %v5925
        %v6026 = vadd.f32 %v5656, %v5930
        %v6027 = vadd.f32 %v5659, %v5933
        %v6028 = vadd.f32 %v5664, %v5938
        %v6029 = vadd.f32 %v5667, %v5941
        %v6030 = vadd.f32 %v5672, %v5946
        %v6031 = vadd.f32 %v5675, %v5949
        %v6032 = vadd.f32 %v5680, %v5954
        %v6033 = vadd.f32 %v5683, %v5957
        %v6034 = vadd.f32 %v5688, %v5962
        %v6035 = vadd.f32 %v5691, %v5965
        %v6036 = vadd.f32 %v5696, %v5970
        %v6037 = vadd.f32 %v5699, %v5973
        %v6038 = vadd.f32 %v5704, %v5978
        %v6039 = vadd.f32 %v5707, %v5981
        %v6040 = vadd.f32 %v5712, %v5986
        %v6041 = vadd.f32 %v5715, %v5989
        %v6042 = vadd.f32 %v5720, %v5994
        %v6043 = vadd.f32 %v5723, %v5997
        %v6044 = vadd.f32 %v5728, %v6002
        %v6045 = vadd.f32 %v5731, %v6005
        %v6046 = vadd.f32 %v5736, %v6010
        %v6047 = vadd.f32 %v5739, %v6013
        %v6048 = vld [vmem:[#allocation2 + $0x14] sm:$0xff]
        %v6049 = vld [vmem:[#allocation2 + $0x1c] sm:$0xff]
        %v6050 = vld [vmem:[#allocation2 + $0x24] sm:$0xff]
        %v6051 = vld [vmem:[#allocation2 + $0x2c] sm:$0xff]
        %v6052 = vld [vmem:[#allocation2 + $0x34] sm:$0xff]
        %v6053 = vld [vmem:[#allocation2 + $0x3c] sm:$0xff]
        %v6054 = vld [vmem:[#allocation2 + $0x44] sm:$0xff]
        %v6055 = vld [vmem:[#allocation2 + $0x4c] sm:$0xff]
        %v6056 = vld [vmem:[#allocation2 + $0x54] sm:$0xff]
        %v6057 = vld [vmem:[#allocation2 + $0x5c] sm:$0xff]
        %v6058 = vld [vmem:[#allocation2 + $0x64] sm:$0xff]
        %v6059 = vld [vmem:[#allocation2 + $0x6c] sm:$0xff]
        %v6060 = vld [vmem:[#allocation2 + $0x74] sm:$0xff]
        %v6061 = vld [vmem:[#allocation2 + $0x7c] sm:$0xff]
        %v6062 = vld [vmem:[#allocation2 + $0x84] sm:$0xff]
        %v6063 = vld [vmem:[#allocation2 + $0x8c] sm:$0xff]
        %v6064 = vld [vmem:[#allocation2 + $0x94] sm:$0xff]
        %v6065 = vld [vmem:[#allocation2 + $0x9c] sm:$0xff]
        %v6066 = vld [vmem:[#allocation2 + $0xa4] sm:$0xff]
        %v6067 = vld [vmem:[#allocation2 + $0xac] sm:$0xff]
        %v6068 = vld [vmem:[#allocation2 + $0xb4] sm:$0xff]
        %v6069 = vld [vmem:[#allocation2 + $0xbc] sm:$0xff]
        %v6070 = vld [vmem:[#allocation2 + $0xc4] sm:$0xff]
        %v6071 = vld [vmem:[#allocation2 + $0xcc] sm:$0xff]
        %v6072 = vld [vmem:[#allocation2 + $0xd4] sm:$0xff]
        %v6073 = vld [vmem:[#allocation2 + $0xdc] sm:$0xff]
        %v6074 = vld [vmem:[#allocation2 + $0xe4] sm:$0xff]
        %v6075 = vld [vmem:[#allocation2 + $0xec] sm:$0xff]
        %v6076 = vld [vmem:[#allocation2 + $0xf4] sm:$0xff]
        %v6077 = vld [vmem:[#allocation2 + $0xfc] sm:$0xff]
        %v6078 = vld [vmem:[#allocation2 + $0x104] sm:$0xff]
        %v6079 = vld [vmem:[#allocation2 + $0x10c] sm:$0xff]
        %v6080 = vpack.c.bf16 %v6049, %v6048
        %v6081 = vpack.c.bf16 %v6051, %v6050
        %v6082 = vpack.c.bf16 %v6053, %v6052
        %v6083 = vpack.c.bf16 %v6055, %v6054
        %v6084 = vpack.c.bf16 %v6057, %v6056
        %v6085 = vpack.c.bf16 %v6059, %v6058
        %v6086 = vpack.c.bf16 %v6061, %v6060
        %v6087 = vpack.c.bf16 %v6063, %v6062
        %v6088 = vpack.c.bf16 %v6065, %v6064
        %v6089 = vpack.c.bf16 %v6067, %v6066
        %v6090 = vpack.c.bf16 %v6069, %v6068
        %v6091 = vpack.c.bf16 %v6071, %v6070
        %v6092 = vpack.c.bf16 %v6073, %v6072
        %v6093 = vpack.c.bf16 %v6075, %v6074
        %v6094 = vpack.c.bf16 %v6077, %v6076
        %v6095 = vpack.c.bf16 %v6079, %v6078
        %s6096 = scalar_lea.vmem [#allocation7], 192
        %v6097 = vld [vmem:[%s6096] sm:$0xf]
        %v6098 = vld [vmem:[%s6096 + $0x4] sm:$0xf]
        %v6099 = vld [vmem:[%s6096 + $0x8] sm:$0xf]
        %v6100 = vld [vmem:[%s6096 + $0xc] sm:$0xf]
        %v6101 = vld [vmem:[%s6096 + $0x10] sm:$0xf]
        %v6102 = vld [vmem:[%s6096 + $0x14] sm:$0xf]
        %v6103 = vld [vmem:[%s6096 + $0x18] sm:$0xf]
        %v6104 = vld [vmem:[%s6096 + $0x1c] sm:$0xf]
        %v6105 = vld [vmem:[%s6096 + $0x20] sm:$0xf]
        %v6106 = vld [vmem:[%s6096 + $0x24] sm:$0xf]
        %v6107 = vld [vmem:[%s6096 + $0x28] sm:$0xf]
        %v6108 = vld [vmem:[%s6096 + $0x2c] sm:$0xf]
        %v6109 = vld [vmem:[%s6096 + $0x30] sm:$0xf]
        %v6110 = vld [vmem:[%s6096 + $0x34] sm:$0xf]
        %v6111 = vld [vmem:[%s6096 + $0x38] sm:$0xf]
        %v6112 = vld [vmem:[%s6096 + $0x3c] sm:$0xf]
        %v6129 = vunpack.c.l.b16 %v6097
        %v6130 = vunpack.c.l.b16 %v6098
        %v6131 = vunpack.c.l.b16 %v6099
        %v6132 = vunpack.c.l.b16 %v6100
        %v6133 = vunpack.c.l.b16 %v6101
        %v6134 = vunpack.c.l.b16 %v6102
        %v6135 = vunpack.c.l.b16 %v6103
        %v6136 = vunpack.c.l.b16 %v6104
        %v6137 = vunpack.c.l.b16 %v6105
        %v6138 = vunpack.c.l.b16 %v6106
        %v6139 = vunpack.c.l.b16 %v6107
        %v6140 = vunpack.c.l.b16 %v6108
        %v6141 = vunpack.c.l.b16 %v6109
        %v6142 = vunpack.c.l.b16 %v6110
        %v6143 = vunpack.c.l.b16 %v6111
        %v6144 = vunpack.c.l.b16 %v6112
        %v6145 = vpack.c.b16 %v6130, %v6129
        %v6146 = vpack.c.b16 %v6132, %v6131
        %v6147 = vpack.c.b16 %v6134, %v6133
        %v6148 = vpack.c.b16 %v6136, %v6135
        %v6149 = vpack.c.b16 %v6138, %v6137
        %v6150 = vpack.c.b16 %v6140, %v6139
        %v6151 = vpack.c.b16 %v6142, %v6141
        %v6152 = vpack.c.b16 %v6144, %v6143
        %6161 = vmatprep.subr.bf16.mxu0 0
        %6162 = vmatpush1.bf16.msra.mxu0 %v6152
        %6163 = vmatprep.subr.bf16.mxu0 0
        %6164 = vmatpush1.bf16.msra.mxu0 %v6151
        %6165 = vmatprep.subr.bf16.mxu0 0
        %6166 = vmatpush1.bf16.msra.mxu0 %v6150
        %6167 = vmatprep.subr.bf16.mxu0 0
        %6168 = vmatpush1.bf16.msra.mxu0 %v6149
        %6169 = vmatprep.subr.bf16.mxu0 0
        %6170 = vmatpush1.bf16.msra.mxu0 %v6148
        %6171 = vmatprep.subr.bf16.mxu0 0
        %6172 = vmatpush1.bf16.msra.mxu0 %v6147
        %6173 = vmatprep.subr.bf16.mxu0 0
        %6174 = vmatpush1.bf16.msra.mxu0 %v6146
        %6175 = vmatprep.subr.bf16.mxu0 0
        %6176 = vmatpush1.bf16.msra.mxu0 %v6145
        %6177 = vmatprep.subr.bf16.mxu0 0
        %6178 = vmatpush2.bf16.msra.mxu0 0
        %6179 = vmatprep.subr.bf16.mxu0 0
        %6180 = vmatpush2.bf16.msra.mxu0 0
        %6181 = vmatprep.subr.bf16.mxu0 0
        %6182 = vmatpush2.bf16.msra.mxu0 0
        %6183 = vmatprep.subr.bf16.mxu0 0
        %6184 = vmatpush2.bf16.msra.mxu0 0
        %6185 = vmatprep.subr.bf16.mxu0 0
        %6186 = vmatpush2.bf16.msra.mxu0 0
        %6187 = vmatprep.subr.bf16.mxu0 0
        %6188 = vmatpush2.bf16.msra.mxu0 0
        %6189 = vmatprep.subr.bf16.mxu0 0
        %6190 = vmatpush2.bf16.msra.mxu0 0
        %6191 = vmatprep.subr.bf16.mxu0 0
        %6192 = vmatpush2.bf16.msra.mxu0 0
        %6193 = vmatprep.mubr.bf16.mxu0 0
        %6194 = vmatmul.mubr.bf16.gmra.mxu0 %v6080
        %v6195 = vpop.f32.mrf.mxu0
        %v6196 = vadd.f32 0.0, %v6195
        %v6197 = vpop.f32.mrf.mxu0
        %v6198 = vpop.f32.mrf.mxu0
        %v6199 = vadd.f32 0.0, %v6198
        %v6200 = vpop.f32.mrf.mxu0
        %6201 = vmatprep.mubr.bf16.mxu0 0
        %6202 = vmatmul.mubr.bf16.gmra.mxu0 %v6081
        %v6203 = vpop.f32.mrf.mxu0
        %v6204 = vadd.f32 0.0, %v6203
        %v6205 = vpop.f32.mrf.mxu0
        %v6206 = vpop.f32.mrf.mxu0
        %v6207 = vadd.f32 0.0, %v6206
        %v6208 = vpop.f32.mrf.mxu0
        %6209 = vmatprep.mubr.bf16.mxu0 0
        %6210 = vmatmul.mubr.bf16.gmra.mxu0 %v6082
        %v6211 = vpop.f32.mrf.mxu0
        %v6212 = vadd.f32 0.0, %v6211
        %v6213 = vpop.f32.mrf.mxu0
        %v6214 = vpop.f32.mrf.mxu0
        %v6215 = vadd.f32 0.0, %v6214
        %v6216 = vpop.f32.mrf.mxu0
        %6217 = vmatprep.mubr.bf16.mxu0 0
        %6218 = vmatmul.mubr.bf16.gmra.mxu0 %v6083
        %v6219 = vpop.f32.mrf.mxu0
        %v6220 = vadd.f32 0.0, %v6219
        %v6221 = vpop.f32.mrf.mxu0
        %v6222 = vpop.f32.mrf.mxu0
        %v6223 = vadd.f32 0.0, %v6222
        %v6224 = vpop.f32.mrf.mxu0
        %6225 = vmatprep.mubr.bf16.mxu0 0
        %6226 = vmatmul.mubr.bf16.gmra.mxu0 %v6084
        %v6227 = vpop.f32.mrf.mxu0
        %v6228 = vadd.f32 0.0, %v6227
        %v6229 = vpop.f32.mrf.mxu0
        %v6230 = vpop.f32.mrf.mxu0
        %v6231 = vadd.f32 0.0, %v6230
        %v6232 = vpop.f32.mrf.mxu0
        %6233 = vmatprep.mubr.bf16.mxu0 0
        %6234 = vmatmul.mubr.bf16.gmra.mxu0 %v6085
        %v6235 = vpop.f32.mrf.mxu0
        %v6236 = vadd.f32 0.0, %v6235
        %v6237 = vpop.f32.mrf.mxu0
        %v6238 = vpop.f32.mrf.mxu0
        %v6239 = vadd.f32 0.0, %v6238
        %v6240 = vpop.f32.mrf.mxu0
        %6241 = vmatprep.mubr.bf16.mxu0 0
        %6242 = vmatmul.mubr.bf16.gmra.mxu0 %v6086
        %v6243 = vpop.f32.mrf.mxu0
        %v6244 = vadd.f32 0.0, %v6243
        %v6245 = vpop.f32.mrf.mxu0
        %v6246 = vpop.f32.mrf.mxu0
        %v6247 = vadd.f32 0.0, %v6246
        %v6248 = vpop.f32.mrf.mxu0
        %6249 = vmatprep.mubr.bf16.mxu0 0
        %6250 = vmatmul.mubr.bf16.gmra.mxu0 %v6087
        %v6251 = vpop.f32.mrf.mxu0
        %v6252 = vadd.f32 0.0, %v6251
        %v6253 = vpop.f32.mrf.mxu0
        %v6254 = vpop.f32.mrf.mxu0
        %v6255 = vadd.f32 0.0, %v6254
        %v6256 = vpop.f32.mrf.mxu0
        %6257 = vmatprep.mubr.bf16.mxu0 0
        %6258 = vmatmul.mubr.bf16.gmra.mxu0 %v6088
        %v6259 = vpop.f32.mrf.mxu0
        %v6260 = vadd.f32 0.0, %v6259
        %v6261 = vpop.f32.mrf.mxu0
        %v6262 = vpop.f32.mrf.mxu0
        %v6263 = vadd.f32 0.0, %v6262
        %v6264 = vpop.f32.mrf.mxu0
        %6265 = vmatprep.mubr.bf16.mxu0 0
        %6266 = vmatmul.mubr.bf16.gmra.mxu0 %v6089
        %v6267 = vpop.f32.mrf.mxu0
        %v6268 = vadd.f32 0.0, %v6267
        %v6269 = vpop.f32.mrf.mxu0
        %v6270 = vpop.f32.mrf.mxu0
        %v6271 = vadd.f32 0.0, %v6270
        %v6272 = vpop.f32.mrf.mxu0
        %6273 = vmatprep.mubr.bf16.mxu0 0
        %6274 = vmatmul.mubr.bf16.gmra.mxu0 %v6090
        %v6275 = vpop.f32.mrf.mxu0
        %v6276 = vadd.f32 0.0, %v6275
        %v6277 = vpop.f32.mrf.mxu0
        %v6278 = vpop.f32.mrf.mxu0
        %v6279 = vadd.f32 0.0, %v6278
        %v6280 = vpop.f32.mrf.mxu0
        %6281 = vmatprep.mubr.bf16.mxu0 0
        %6282 = vmatmul.mubr.bf16.gmra.mxu0 %v6091
        %v6283 = vpop.f32.mrf.mxu0
        %v6284 = vadd.f32 0.0, %v6283
        %v6285 = vpop.f32.mrf.mxu0
        %v6286 = vpop.f32.mrf.mxu0
        %v6287 = vadd.f32 0.0, %v6286
        %v6288 = vpop.f32.mrf.mxu0
        %6289 = vmatprep.mubr.bf16.mxu0 0
        %6290 = vmatmul.mubr.bf16.gmra.mxu0 %v6092
        %v6291 = vpop.f32.mrf.mxu0
        %v6292 = vadd.f32 0.0, %v6291
        %v6293 = vpop.f32.mrf.mxu0
        %v6294 = vpop.f32.mrf.mxu0
        %v6295 = vadd.f32 0.0, %v6294
        %v6296 = vpop.f32.mrf.mxu0
        %6297 = vmatprep.mubr.bf16.mxu0 0
        %6298 = vmatmul.mubr.bf16.gmra.mxu0 %v6093
        %v6299 = vpop.f32.mrf.mxu0
        %v6300 = vadd.f32 0.0, %v6299
        %v6301 = vpop.f32.mrf.mxu0
        %v6302 = vpop.f32.mrf.mxu0
        %v6303 = vadd.f32 0.0, %v6302
        %v6304 = vpop.f32.mrf.mxu0
        %6305 = vmatprep.mubr.bf16.mxu0 0
        %6306 = vmatmul.mubr.bf16.gmra.mxu0 %v6094
        %v6307 = vpop.f32.mrf.mxu0
        %v6308 = vadd.f32 0.0, %v6307
        %v6309 = vpop.f32.mrf.mxu0
        %v6310 = vpop.f32.mrf.mxu0
        %v6311 = vadd.f32 0.0, %v6310
        %v6312 = vpop.f32.mrf.mxu0
        %6313 = vmatprep.mubr.bf16.mxu0 0
        %6314 = vmatmul.mubr.bf16.gmra.mxu0 %v6095
        %v6315 = vpop.f32.mrf.mxu0
        %v6316 = vadd.f32 0.0, %v6315
        %v6317 = vpop.f32.mrf.mxu0
        %v6318 = vpop.f32.mrf.mxu0
        %v6319 = vadd.f32 0.0, %v6318
        %v6320 = vpop.f32.mrf.mxu0
        %6321 = vdwg.mxu0
        %v6322 = vadd.f32 %v6016, %v6196
        %v6323 = vadd.f32 %v6017, %v6199
        %v6324 = vadd.f32 %v6018, %v6204
        %v6325 = vadd.f32 %v6019, %v6207
        %v6326 = vadd.f32 %v6020, %v6212
        %v6327 = vadd.f32 %v6021, %v6215
        %v6328 = vadd.f32 %v6022, %v6220
        %v6329 = vadd.f32 %v6023, %v6223
        %v6330 = vadd.f32 %v6024, %v6228
        %v6331 = vadd.f32 %v6025, %v6231
        %v6332 = vadd.f32 %v6026, %v6236
        %v6333 = vadd.f32 %v6027, %v6239
        %v6334 = vadd.f32 %v6028, %v6244
        %v6335 = vadd.f32 %v6029, %v6247
        %v6336 = vadd.f32 %v6030, %v6252
        %v6337 = vadd.f32 %v6031, %v6255
        %v6338 = vadd.f32 %v6032, %v6260
        %v6339 = vadd.f32 %v6033, %v6263
        %v6340 = vadd.f32 %v6034, %v6268
        %v6341 = vadd.f32 %v6035, %v6271
        %v6342 = vadd.f32 %v6036, %v6276
        %v6343 = vadd.f32 %v6037, %v6279
        %v6344 = vadd.f32 %v6038, %v6284
        %v6345 = vadd.f32 %v6039, %v6287
        %v6346 = vadd.f32 %v6040, %v6292
        %v6347 = vadd.f32 %v6041, %v6295
        %v6348 = vadd.f32 %v6042, %v6300
        %v6349 = vadd.f32 %v6043, %v6303
        %v6350 = vadd.f32 %v6044, %v6308
        %v6351 = vadd.f32 %v6045, %v6311
        %v6352 = vadd.f32 %v6046, %v6316
        %v6353 = vadd.f32 %v6047, %v6319
        %v6354 = vld [vmem:[#allocation2 + $0x15] sm:$0xff]
        %v6355 = vld [vmem:[#allocation2 + $0x1d] sm:$0xff]
        %v6356 = vld [vmem:[#allocation2 + $0x25] sm:$0xff]
        %v6357 = vld [vmem:[#allocation2 + $0x2d] sm:$0xff]
        %v6358 = vld [vmem:[#allocation2 + $0x35] sm:$0xff]
        %v6359 = vld [vmem:[#allocation2 + $0x3d] sm:$0xff]
        %v6360 = vld [vmem:[#allocation2 + $0x45] sm:$0xff]
        %v6361 = vld [vmem:[#allocation2 + $0x4d] sm:$0xff]
        %v6362 = vld [vmem:[#allocation2 + $0x55] sm:$0xff]
        %v6363 = vld [vmem:[#allocation2 + $0x5d] sm:$0xff]
        %v6364 = vld [vmem:[#allocation2 + $0x65] sm:$0xff]
        %v6365 = vld [vmem:[#allocation2 + $0x6d] sm:$0xff]
        %v6366 = vld [vmem:[#allocation2 + $0x75] sm:$0xff]
        %v6367 = vld [vmem:[#allocation2 + $0x7d] sm:$0xff]
        %v6368 = vld [vmem:[#allocation2 + $0x85] sm:$0xff]
        %v6369 = vld [vmem:[#allocation2 + $0x8d] sm:$0xff]
        %v6370 = vld [vmem:[#allocation2 + $0x95] sm:$0xff]
        %v6371 = vld [vmem:[#allocation2 + $0x9d] sm:$0xff]
        %v6372 = vld [vmem:[#allocation2 + $0xa5] sm:$0xff]
        %v6373 = vld [vmem:[#allocation2 + $0xad] sm:$0xff]
        %v6374 = vld [vmem:[#allocation2 + $0xb5] sm:$0xff]
        %v6375 = vld [vmem:[#allocation2 + $0xbd] sm:$0xff]
        %v6376 = vld [vmem:[#allocation2 + $0xc5] sm:$0xff]
        %v6377 = vld [vmem:[#allocation2 + $0xcd] sm:$0xff]
        %v6378 = vld [vmem:[#allocation2 + $0xd5] sm:$0xff]
        %v6379 = vld [vmem:[#allocation2 + $0xdd] sm:$0xff]
        %v6380 = vld [vmem:[#allocation2 + $0xe5] sm:$0xff]
        %v6381 = vld [vmem:[#allocation2 + $0xed] sm:$0xff]
        %v6382 = vld [vmem:[#allocation2 + $0xf5] sm:$0xff]
        %v6383 = vld [vmem:[#allocation2 + $0xfd] sm:$0xff]
        %v6384 = vld [vmem:[#allocation2 + $0x105] sm:$0xff]
        %v6385 = vld [vmem:[#allocation2 + $0x10d] sm:$0xff]
        %v6386 = vpack.c.bf16 %v6355, %v6354
        %v6387 = vpack.c.bf16 %v6357, %v6356
        %v6388 = vpack.c.bf16 %v6359, %v6358
        %v6389 = vpack.c.bf16 %v6361, %v6360
        %v6390 = vpack.c.bf16 %v6363, %v6362
        %v6391 = vpack.c.bf16 %v6365, %v6364
        %v6392 = vpack.c.bf16 %v6367, %v6366
        %v6393 = vpack.c.bf16 %v6369, %v6368
        %v6394 = vpack.c.bf16 %v6371, %v6370
        %v6395 = vpack.c.bf16 %v6373, %v6372
        %v6396 = vpack.c.bf16 %v6375, %v6374
        %v6397 = vpack.c.bf16 %v6377, %v6376
        %v6398 = vpack.c.bf16 %v6379, %v6378
        %v6399 = vpack.c.bf16 %v6381, %v6380
        %v6400 = vpack.c.bf16 %v6383, %v6382
        %v6401 = vpack.c.bf16 %v6385, %v6384
        %s6402 = scalar_lea.vmem [#allocation7], 256
        %v6403 = vld [vmem:[%s6402] sm:$0xf]
        %v6404 = vld [vmem:[%s6402 + $0x4] sm:$0xf]
        %v6405 = vld [vmem:[%s6402 + $0x8] sm:$0xf]
        %v6406 = vld [vmem:[%s6402 + $0xc] sm:$0xf]
        %v6407 = vld [vmem:[%s6402 + $0x10] sm:$0xf]
        %v6408 = vld [vmem:[%s6402 + $0x14] sm:$0xf]
        %v6409 = vld [vmem:[%s6402 + $0x18] sm:$0xf]
        %v6410 = vld [vmem:[%s6402 + $0x1c] sm:$0xf]
        %v6411 = vld [vmem:[%s6402 + $0x20] sm:$0xf]
        %v6412 = vld [vmem:[%s6402 + $0x24] sm:$0xf]
        %v6413 = vld [vmem:[%s6402 + $0x28] sm:$0xf]
        %v6414 = vld [vmem:[%s6402 + $0x2c] sm:$0xf]
        %v6415 = vld [vmem:[%s6402 + $0x30] sm:$0xf]
        %v6416 = vld [vmem:[%s6402 + $0x34] sm:$0xf]
        %v6417 = vld [vmem:[%s6402 + $0x38] sm:$0xf]
        %v6418 = vld [vmem:[%s6402 + $0x3c] sm:$0xf]
        %v6435 = vunpack.c.l.b16 %v6403
        %v6436 = vunpack.c.l.b16 %v6404
        %v6437 = vunpack.c.l.b16 %v6405
        %v6438 = vunpack.c.l.b16 %v6406
        %v6439 = vunpack.c.l.b16 %v6407
        %v6440 = vunpack.c.l.b16 %v6408
        %v6441 = vunpack.c.l.b16 %v6409
        %v6442 = vunpack.c.l.b16 %v6410
        %v6443 = vunpack.c.l.b16 %v6411
        %v6444 = vunpack.c.l.b16 %v6412
        %v6445 = vunpack.c.l.b16 %v6413
        %v6446 = vunpack.c.l.b16 %v6414
        %v6447 = vunpack.c.l.b16 %v6415
        %v6448 = vunpack.c.l.b16 %v6416
        %v6449 = vunpack.c.l.b16 %v6417
        %v6450 = vunpack.c.l.b16 %v6418
        %v6451 = vpack.c.b16 %v6436, %v6435
        %v6452 = vpack.c.b16 %v6438, %v6437
        %v6453 = vpack.c.b16 %v6440, %v6439
        %v6454 = vpack.c.b16 %v6442, %v6441
        %v6455 = vpack.c.b16 %v6444, %v6443
        %v6456 = vpack.c.b16 %v6446, %v6445
        %v6457 = vpack.c.b16 %v6448, %v6447
        %v6458 = vpack.c.b16 %v6450, %v6449
        %6467 = vmatprep.subr.bf16.mxu0 0
        %6468 = vmatpush1.bf16.msra.mxu0 %v6458
        %6469 = vmatprep.subr.bf16.mxu0 0
        %6470 = vmatpush1.bf16.msra.mxu0 %v6457
        %6471 = vmatprep.subr.bf16.mxu0 0
        %6472 = vmatpush1.bf16.msra.mxu0 %v6456
        %6473 = vmatprep.subr.bf16.mxu0 0
        %6474 = vmatpush1.bf16.msra.mxu0 %v6455
        %6475 = vmatprep.subr.bf16.mxu0 0
        %6476 = vmatpush1.bf16.msra.mxu0 %v6454
        %6477 = vmatprep.subr.bf16.mxu0 0
        %6478 = vmatpush1.bf16.msra.mxu0 %v6453
        %6479 = vmatprep.subr.bf16.mxu0 0
        %6480 = vmatpush1.bf16.msra.mxu0 %v6452
        %6481 = vmatprep.subr.bf16.mxu0 0
        %6482 = vmatpush1.bf16.msra.mxu0 %v6451
        %6483 = vmatprep.subr.bf16.mxu0 0
        %6484 = vmatpush2.bf16.msra.mxu0 0
        %6485 = vmatprep.subr.bf16.mxu0 0
        %6486 = vmatpush2.bf16.msra.mxu0 0
        %6487 = vmatprep.subr.bf16.mxu0 0
        %6488 = vmatpush2.bf16.msra.mxu0 0
        %6489 = vmatprep.subr.bf16.mxu0 0
        %6490 = vmatpush2.bf16.msra.mxu0 0
        %6491 = vmatprep.subr.bf16.mxu0 0
        %6492 = vmatpush2.bf16.msra.mxu0 0
        %6493 = vmatprep.subr.bf16.mxu0 0
        %6494 = vmatpush2.bf16.msra.mxu0 0
        %6495 = vmatprep.subr.bf16.mxu0 0
        %6496 = vmatpush2.bf16.msra.mxu0 0
        %6497 = vmatprep.subr.bf16.mxu0 0
        %6498 = vmatpush2.bf16.msra.mxu0 0
        %6499 = vmatprep.mubr.bf16.mxu0 0
        %6500 = vmatmul.mubr.bf16.gmra.mxu0 %v6386
        %v6501 = vpop.f32.mrf.mxu0
        %v6502 = vadd.f32 0.0, %v6501
        %v6503 = vpop.f32.mrf.mxu0
        %v6504 = vpop.f32.mrf.mxu0
        %v6505 = vadd.f32 0.0, %v6504
        %v6506 = vpop.f32.mrf.mxu0
        %6507 = vmatprep.mubr.bf16.mxu0 0
        %6508 = vmatmul.mubr.bf16.gmra.mxu0 %v6387
        %v6509 = vpop.f32.mrf.mxu0
        %v6510 = vadd.f32 0.0, %v6509
        %v6511 = vpop.f32.mrf.mxu0
        %v6512 = vpop.f32.mrf.mxu0
        %v6513 = vadd.f32 0.0, %v6512
        %v6514 = vpop.f32.mrf.mxu0
        %6515 = vmatprep.mubr.bf16.mxu0 0
        %6516 = vmatmul.mubr.bf16.gmra.mxu0 %v6388
        %v6517 = vpop.f32.mrf.mxu0
        %v6518 = vadd.f32 0.0, %v6517
        %v6519 = vpop.f32.mrf.mxu0
        %v6520 = vpop.f32.mrf.mxu0
        %v6521 = vadd.f32 0.0, %v6520
        %v6522 = vpop.f32.mrf.mxu0
        %6523 = vmatprep.mubr.bf16.mxu0 0
        %6524 = vmatmul.mubr.bf16.gmra.mxu0 %v6389
        %v6525 = vpop.f32.mrf.mxu0
        %v6526 = vadd.f32 0.0, %v6525
        %v6527 = vpop.f32.mrf.mxu0
        %v6528 = vpop.f32.mrf.mxu0
        %v6529 = vadd.f32 0.0, %v6528
        %v6530 = vpop.f32.mrf.mxu0
        %6531 = vmatprep.mubr.bf16.mxu0 0
        %6532 = vmatmul.mubr.bf16.gmra.mxu0 %v6390
        %v6533 = vpop.f32.mrf.mxu0
        %v6534 = vadd.f32 0.0, %v6533
        %v6535 = vpop.f32.mrf.mxu0
        %v6536 = vpop.f32.mrf.mxu0
        %v6537 = vadd.f32 0.0, %v6536
        %v6538 = vpop.f32.mrf.mxu0
        %6539 = vmatprep.mubr.bf16.mxu0 0
        %6540 = vmatmul.mubr.bf16.gmra.mxu0 %v6391
        %v6541 = vpop.f32.mrf.mxu0
        %v6542 = vadd.f32 0.0, %v6541
        %v6543 = vpop.f32.mrf.mxu0
        %v6544 = vpop.f32.mrf.mxu0
        %v6545 = vadd.f32 0.0, %v6544
        %v6546 = vpop.f32.mrf.mxu0
        %6547 = vmatprep.mubr.bf16.mxu0 0
        %6548 = vmatmul.mubr.bf16.gmra.mxu0 %v6392
        %v6549 = vpop.f32.mrf.mxu0
        %v6550 = vadd.f32 0.0, %v6549
        %v6551 = vpop.f32.mrf.mxu0
        %v6552 = vpop.f32.mrf.mxu0
        %v6553 = vadd.f32 0.0, %v6552
        %v6554 = vpop.f32.mrf.mxu0
        %6555 = vmatprep.mubr.bf16.mxu0 0
        %6556 = vmatmul.mubr.bf16.gmra.mxu0 %v6393
        %v6557 = vpop.f32.mrf.mxu0
        %v6558 = vadd.f32 0.0, %v6557
        %v6559 = vpop.f32.mrf.mxu0
        %v6560 = vpop.f32.mrf.mxu0
        %v6561 = vadd.f32 0.0, %v6560
        %v6562 = vpop.f32.mrf.mxu0
        %6563 = vmatprep.mubr.bf16.mxu0 0
        %6564 = vmatmul.mubr.bf16.gmra.mxu0 %v6394
        %v6565 = vpop.f32.mrf.mxu0
        %v6566 = vadd.f32 0.0, %v6565
        %v6567 = vpop.f32.mrf.mxu0
        %v6568 = vpop.f32.mrf.mxu0
        %v6569 = vadd.f32 0.0, %v6568
        %v6570 = vpop.f32.mrf.mxu0
        %6571 = vmatprep.mubr.bf16.mxu0 0
        %6572 = vmatmul.mubr.bf16.gmra.mxu0 %v6395
        %v6573 = vpop.f32.mrf.mxu0
        %v6574 = vadd.f32 0.0, %v6573
        %v6575 = vpop.f32.mrf.mxu0
        %v6576 = vpop.f32.mrf.mxu0
        %v6577 = vadd.f32 0.0, %v6576
        %v6578 = vpop.f32.mrf.mxu0
        %6579 = vmatprep.mubr.bf16.mxu0 0
        %6580 = vmatmul.mubr.bf16.gmra.mxu0 %v6396
        %v6581 = vpop.f32.mrf.mxu0
        %v6582 = vadd.f32 0.0, %v6581
        %v6583 = vpop.f32.mrf.mxu0
        %v6584 = vpop.f32.mrf.mxu0
        %v6585 = vadd.f32 0.0, %v6584
        %v6586 = vpop.f32.mrf.mxu0
        %6587 = vmatprep.mubr.bf16.mxu0 0
        %6588 = vmatmul.mubr.bf16.gmra.mxu0 %v6397
        %v6589 = vpop.f32.mrf.mxu0
        %v6590 = vadd.f32 0.0, %v6589
        %v6591 = vpop.f32.mrf.mxu0
        %v6592 = vpop.f32.mrf.mxu0
        %v6593 = vadd.f32 0.0, %v6592
        %v6594 = vpop.f32.mrf.mxu0
        %6595 = vmatprep.mubr.bf16.mxu0 0
        %6596 = vmatmul.mubr.bf16.gmra.mxu0 %v6398
        %v6597 = vpop.f32.mrf.mxu0
        %v6598 = vadd.f32 0.0, %v6597
        %v6599 = vpop.f32.mrf.mxu0
        %v6600 = vpop.f32.mrf.mxu0
        %v6601 = vadd.f32 0.0, %v6600
        %v6602 = vpop.f32.mrf.mxu0
        %6603 = vmatprep.mubr.bf16.mxu0 0
        %6604 = vmatmul.mubr.bf16.gmra.mxu0 %v6399
        %v6605 = vpop.f32.mrf.mxu0
        %v6606 = vadd.f32 0.0, %v6605
        %v6607 = vpop.f32.mrf.mxu0
        %v6608 = vpop.f32.mrf.mxu0
        %v6609 = vadd.f32 0.0, %v6608
        %v6610 = vpop.f32.mrf.mxu0
        %6611 = vmatprep.mubr.bf16.mxu0 0
        %6612 = vmatmul.mubr.bf16.gmra.mxu0 %v6400
        %v6613 = vpop.f32.mrf.mxu0
        %v6614 = vadd.f32 0.0, %v6613
        %v6615 = vpop.f32.mrf.mxu0
        %v6616 = vpop.f32.mrf.mxu0
        %v6617 = vadd.f32 0.0, %v6616
        %v6618 = vpop.f32.mrf.mxu0
        %6619 = vmatprep.mubr.bf16.mxu0 0
        %6620 = vmatmul.mubr.bf16.gmra.mxu0 %v6401
        %v6621 = vpop.f32.mrf.mxu0
        %v6622 = vadd.f32 0.0, %v6621
        %v6623 = vpop.f32.mrf.mxu0
        %v6624 = vpop.f32.mrf.mxu0
        %v6625 = vadd.f32 0.0, %v6624
        %v6626 = vpop.f32.mrf.mxu0
        %6627 = vdwg.mxu0
        %v6628 = vadd.f32 %v6322, %v6502
        %v6629 = vadd.f32 %v6323, %v6505
        %v6630 = vadd.f32 %v6324, %v6510
        %v6631 = vadd.f32 %v6325, %v6513
        %v6632 = vadd.f32 %v6326, %v6518
        %v6633 = vadd.f32 %v6327, %v6521
        %v6634 = vadd.f32 %v6328, %v6526
        %v6635 = vadd.f32 %v6329, %v6529
        %v6636 = vadd.f32 %v6330, %v6534
        %v6637 = vadd.f32 %v6331, %v6537
        %v6638 = vadd.f32 %v6332, %v6542
        %v6639 = vadd.f32 %v6333, %v6545
        %v6640 = vadd.f32 %v6334, %v6550
        %v6641 = vadd.f32 %v6335, %v6553
        %v6642 = vadd.f32 %v6336, %v6558
        %v6643 = vadd.f32 %v6337, %v6561
        %v6644 = vadd.f32 %v6338, %v6566
        %v6645 = vadd.f32 %v6339, %v6569
        %v6646 = vadd.f32 %v6340, %v6574
        %v6647 = vadd.f32 %v6341, %v6577
        %v6648 = vadd.f32 %v6342, %v6582
        %v6649 = vadd.f32 %v6343, %v6585
        %v6650 = vadd.f32 %v6344, %v6590
        %v6651 = vadd.f32 %v6345, %v6593
        %v6652 = vadd.f32 %v6346, %v6598
        %v6653 = vadd.f32 %v6347, %v6601
        %v6654 = vadd.f32 %v6348, %v6606
        %v6655 = vadd.f32 %v6349, %v6609
        %v6656 = vadd.f32 %v6350, %v6614
        %v6657 = vadd.f32 %v6351, %v6617
        %v6658 = vadd.f32 %v6352, %v6622
        %v6659 = vadd.f32 %v6353, %v6625
        %v6660 = vld [vmem:[#allocation2 + $0x16] sm:$0xff]
        %v6661 = vld [vmem:[#allocation2 + $0x1e] sm:$0xff]
        %v6662 = vld [vmem:[#allocation2 + $0x26] sm:$0xff]
        %v6663 = vld [vmem:[#allocation2 + $0x2e] sm:$0xff]
        %v6664 = vld [vmem:[#allocation2 + $0x36] sm:$0xff]
        %v6665 = vld [vmem:[#allocation2 + $0x3e] sm:$0xff]
        %v6666 = vld [vmem:[#allocation2 + $0x46] sm:$0xff]
        %v6667 = vld [vmem:[#allocation2 + $0x4e] sm:$0xff]
        %v6668 = vld [vmem:[#allocation2 + $0x56] sm:$0xff]
        %v6669 = vld [vmem:[#allocation2 + $0x5e] sm:$0xff]
        %v6670 = vld [vmem:[#allocation2 + $0x66] sm:$0xff]
        %v6671 = vld [vmem:[#allocation2 + $0x6e] sm:$0xff]
        %v6672 = vld [vmem:[#allocation2 + $0x76] sm:$0xff]
        %v6673 = vld [vmem:[#allocation2 + $0x7e] sm:$0xff]
        %v6674 = vld [vmem:[#allocation2 + $0x86] sm:$0xff]
        %v6675 = vld [vmem:[#allocation2 + $0x8e] sm:$0xff]
        %v6676 = vld [vmem:[#allocation2 + $0x96] sm:$0xff]
        %v6677 = vld [vmem:[#allocation2 + $0x9e] sm:$0xff]
        %v6678 = vld [vmem:[#allocation2 + $0xa6] sm:$0xff]
        %v6679 = vld [vmem:[#allocation2 + $0xae] sm:$0xff]
        %v6680 = vld [vmem:[#allocation2 + $0xb6] sm:$0xff]
        %v6681 = vld [vmem:[#allocation2 + $0xbe] sm:$0xff]
        %v6682 = vld [vmem:[#allocation2 + $0xc6] sm:$0xff]
        %v6683 = vld [vmem:[#allocation2 + $0xce] sm:$0xff]
        %v6684 = vld [vmem:[#allocation2 + $0xd6] sm:$0xff]
        %v6685 = vld [vmem:[#allocation2 + $0xde] sm:$0xff]
        %v6686 = vld [vmem:[#allocation2 + $0xe6] sm:$0xff]
        %v6687 = vld [vmem:[#allocation2 + $0xee] sm:$0xff]
        %v6688 = vld [vmem:[#allocation2 + $0xf6] sm:$0xff]
        %v6689 = vld [vmem:[#allocation2 + $0xfe] sm:$0xff]
        %v6690 = vld [vmem:[#allocation2 + $0x106] sm:$0xff]
        %v6691 = vld [vmem:[#allocation2 + $0x10e] sm:$0xff]
        %v6692 = vpack.c.bf16 %v6661, %v6660
        %v6693 = vpack.c.bf16 %v6663, %v6662
        %v6694 = vpack.c.bf16 %v6665, %v6664
        %v6695 = vpack.c.bf16 %v6667, %v6666
        %v6696 = vpack.c.bf16 %v6669, %v6668
        %v6697 = vpack.c.bf16 %v6671, %v6670
        %v6698 = vpack.c.bf16 %v6673, %v6672
        %v6699 = vpack.c.bf16 %v6675, %v6674
        %v6700 = vpack.c.bf16 %v6677, %v6676
        %v6701 = vpack.c.bf16 %v6679, %v6678
        %v6702 = vpack.c.bf16 %v6681, %v6680
        %v6703 = vpack.c.bf16 %v6683, %v6682
        %v6704 = vpack.c.bf16 %v6685, %v6684
        %v6705 = vpack.c.bf16 %v6687, %v6686
        %v6706 = vpack.c.bf16 %v6689, %v6688
        %v6707 = vpack.c.bf16 %v6691, %v6690
        %s6708 = scalar_lea.vmem [#allocation7], 320
        %v6709 = vld [vmem:[%s6708] sm:$0xf]
        %v6710 = vld [vmem:[%s6708 + $0x4] sm:$0xf]
        %v6711 = vld [vmem:[%s6708 + $0x8] sm:$0xf]
        %v6712 = vld [vmem:[%s6708 + $0xc] sm:$0xf]
        %v6713 = vld [vmem:[%s6708 + $0x10] sm:$0xf]
        %v6714 = vld [vmem:[%s6708 + $0x14] sm:$0xf]
        %v6715 = vld [vmem:[%s6708 + $0x18] sm:$0xf]
        %v6716 = vld [vmem:[%s6708 + $0x1c] sm:$0xf]
        %v6717 = vld [vmem:[%s6708 + $0x20] sm:$0xf]
        %v6718 = vld [vmem:[%s6708 + $0x24] sm:$0xf]
        %v6719 = vld [vmem:[%s6708 + $0x28] sm:$0xf]
        %v6720 = vld [vmem:[%s6708 + $0x2c] sm:$0xf]
        %v6721 = vld [vmem:[%s6708 + $0x30] sm:$0xf]
        %v6722 = vld [vmem:[%s6708 + $0x34] sm:$0xf]
        %v6723 = vld [vmem:[%s6708 + $0x38] sm:$0xf]
        %v6724 = vld [vmem:[%s6708 + $0x3c] sm:$0xf]
        %v6741 = vunpack.c.l.b16 %v6709
        %v6742 = vunpack.c.l.b16 %v6710
        %v6743 = vunpack.c.l.b16 %v6711
        %v6744 = vunpack.c.l.b16 %v6712
        %v6745 = vunpack.c.l.b16 %v6713
        %v6746 = vunpack.c.l.b16 %v6714
        %v6747 = vunpack.c.l.b16 %v6715
        %v6748 = vunpack.c.l.b16 %v6716
        %v6749 = vunpack.c.l.b16 %v6717
        %v6750 = vunpack.c.l.b16 %v6718
        %v6751 = vunpack.c.l.b16 %v6719
        %v6752 = vunpack.c.l.b16 %v6720
        %v6753 = vunpack.c.l.b16 %v6721
        %v6754 = vunpack.c.l.b16 %v6722
        %v6755 = vunpack.c.l.b16 %v6723
        %v6756 = vunpack.c.l.b16 %v6724
        %v6757 = vpack.c.b16 %v6742, %v6741
        %v6758 = vpack.c.b16 %v6744, %v6743
        %v6759 = vpack.c.b16 %v6746, %v6745
        %v6760 = vpack.c.b16 %v6748, %v6747
        %v6761 = vpack.c.b16 %v6750, %v6749
        %v6762 = vpack.c.b16 %v6752, %v6751
        %v6763 = vpack.c.b16 %v6754, %v6753
        %v6764 = vpack.c.b16 %v6756, %v6755
        %6773 = vmatprep.subr.bf16.mxu0 0
        %6774 = vmatpush1.bf16.msra.mxu0 %v6764
        %6775 = vmatprep.subr.bf16.mxu0 0
        %6776 = vmatpush1.bf16.msra.mxu0 %v6763
        %6777 = vmatprep.subr.bf16.mxu0 0
        %6778 = vmatpush1.bf16.msra.mxu0 %v6762
        %6779 = vmatprep.subr.bf16.mxu0 0
        %6780 = vmatpush1.bf16.msra.mxu0 %v6761
        %6781 = vmatprep.subr.bf16.mxu0 0
        %6782 = vmatpush1.bf16.msra.mxu0 %v6760
        %6783 = vmatprep.subr.bf16.mxu0 0
        %6784 = vmatpush1.bf16.msra.mxu0 %v6759
        %6785 = vmatprep.subr.bf16.mxu0 0
        %6786 = vmatpush1.bf16.msra.mxu0 %v6758
        %6787 = vmatprep.subr.bf16.mxu0 0
        %6788 = vmatpush1.bf16.msra.mxu0 %v6757
        %6789 = vmatprep.subr.bf16.mxu0 0
        %6790 = vmatpush2.bf16.msra.mxu0 0
        %6791 = vmatprep.subr.bf16.mxu0 0
        %6792 = vmatpush2.bf16.msra.mxu0 0
        %6793 = vmatprep.subr.bf16.mxu0 0
        %6794 = vmatpush2.bf16.msra.mxu0 0
        %6795 = vmatprep.subr.bf16.mxu0 0
        %6796 = vmatpush2.bf16.msra.mxu0 0
        %6797 = vmatprep.subr.bf16.mxu0 0
        %6798 = vmatpush2.bf16.msra.mxu0 0
        %6799 = vmatprep.subr.bf16.mxu0 0
        %6800 = vmatpush2.bf16.msra.mxu0 0
        %6801 = vmatprep.subr.bf16.mxu0 0
        %6802 = vmatpush2.bf16.msra.mxu0 0
        %6803 = vmatprep.subr.bf16.mxu0 0
        %6804 = vmatpush2.bf16.msra.mxu0 0
        %6805 = vmatprep.mubr.bf16.mxu0 0
        %6806 = vmatmul.mubr.bf16.gmra.mxu0 %v6692
        %v6807 = vpop.f32.mrf.mxu0
        %v6808 = vadd.f32 0.0, %v6807
        %v6809 = vpop.f32.mrf.mxu0
        %v6810 = vpop.f32.mrf.mxu0
        %v6811 = vadd.f32 0.0, %v6810
        %v6812 = vpop.f32.mrf.mxu0
        %6813 = vmatprep.mubr.bf16.mxu0 0
        %6814 = vmatmul.mubr.bf16.gmra.mxu0 %v6693
        %v6815 = vpop.f32.mrf.mxu0
        %v6816 = vadd.f32 0.0, %v6815
        %v6817 = vpop.f32.mrf.mxu0
        %v6818 = vpop.f32.mrf.mxu0
        %v6819 = vadd.f32 0.0, %v6818
        %v6820 = vpop.f32.mrf.mxu0
        %6821 = vmatprep.mubr.bf16.mxu0 0
        %6822 = vmatmul.mubr.bf16.gmra.mxu0 %v6694
        %v6823 = vpop.f32.mrf.mxu0
        %v6824 = vadd.f32 0.0, %v6823
        %v6825 = vpop.f32.mrf.mxu0
        %v6826 = vpop.f32.mrf.mxu0
        %v6827 = vadd.f32 0.0, %v6826
        %v6828 = vpop.f32.mrf.mxu0
        %6829 = vmatprep.mubr.bf16.mxu0 0
        %6830 = vmatmul.mubr.bf16.gmra.mxu0 %v6695
        %v6831 = vpop.f32.mrf.mxu0
        %v6832 = vadd.f32 0.0, %v6831
        %v6833 = vpop.f32.mrf.mxu0
        %v6834 = vpop.f32.mrf.mxu0
        %v6835 = vadd.f32 0.0, %v6834
        %v6836 = vpop.f32.mrf.mxu0
        %6837 = vmatprep.mubr.bf16.mxu0 0
        %6838 = vmatmul.mubr.bf16.gmra.mxu0 %v6696
        %v6839 = vpop.f32.mrf.mxu0
        %v6840 = vadd.f32 0.0, %v6839
        %v6841 = vpop.f32.mrf.mxu0
        %v6842 = vpop.f32.mrf.mxu0
        %v6843 = vadd.f32 0.0, %v6842
        %v6844 = vpop.f32.mrf.mxu0
        %6845 = vmatprep.mubr.bf16.mxu0 0
        %6846 = vmatmul.mubr.bf16.gmra.mxu0 %v6697
        %v6847 = vpop.f32.mrf.mxu0
        %v6848 = vadd.f32 0.0, %v6847
        %v6849 = vpop.f32.mrf.mxu0
        %v6850 = vpop.f32.mrf.mxu0
        %v6851 = vadd.f32 0.0, %v6850
        %v6852 = vpop.f32.mrf.mxu0
        %6853 = vmatprep.mubr.bf16.mxu0 0
        %6854 = vmatmul.mubr.bf16.gmra.mxu0 %v6698
        %v6855 = vpop.f32.mrf.mxu0
        %v6856 = vadd.f32 0.0, %v6855
        %v6857 = vpop.f32.mrf.mxu0
        %v6858 = vpop.f32.mrf.mxu0
        %v6859 = vadd.f32 0.0, %v6858
        %v6860 = vpop.f32.mrf.mxu0
        %6861 = vmatprep.mubr.bf16.mxu0 0
        %6862 = vmatmul.mubr.bf16.gmra.mxu0 %v6699
        %v6863 = vpop.f32.mrf.mxu0
        %v6864 = vadd.f32 0.0, %v6863
        %v6865 = vpop.f32.mrf.mxu0
        %v6866 = vpop.f32.mrf.mxu0
        %v6867 = vadd.f32 0.0, %v6866
        %v6868 = vpop.f32.mrf.mxu0
        %6869 = vmatprep.mubr.bf16.mxu0 0
        %6870 = vmatmul.mubr.bf16.gmra.mxu0 %v6700
        %v6871 = vpop.f32.mrf.mxu0
        %v6872 = vadd.f32 0.0, %v6871
        %v6873 = vpop.f32.mrf.mxu0
        %v6874 = vpop.f32.mrf.mxu0
        %v6875 = vadd.f32 0.0, %v6874
        %v6876 = vpop.f32.mrf.mxu0
        %6877 = vmatprep.mubr.bf16.mxu0 0
        %6878 = vmatmul.mubr.bf16.gmra.mxu0 %v6701
        %v6879 = vpop.f32.mrf.mxu0
        %v6880 = vadd.f32 0.0, %v6879
        %v6881 = vpop.f32.mrf.mxu0
        %v6882 = vpop.f32.mrf.mxu0
        %v6883 = vadd.f32 0.0, %v6882
        %v6884 = vpop.f32.mrf.mxu0
        %6885 = vmatprep.mubr.bf16.mxu0 0
        %6886 = vmatmul.mubr.bf16.gmra.mxu0 %v6702
        %v6887 = vpop.f32.mrf.mxu0
        %v6888 = vadd.f32 0.0, %v6887
        %v6889 = vpop.f32.mrf.mxu0
        %v6890 = vpop.f32.mrf.mxu0
        %v6891 = vadd.f32 0.0, %v6890
        %v6892 = vpop.f32.mrf.mxu0
        %6893 = vmatprep.mubr.bf16.mxu0 0
        %6894 = vmatmul.mubr.bf16.gmra.mxu0 %v6703
        %v6895 = vpop.f32.mrf.mxu0
        %v6896 = vadd.f32 0.0, %v6895
        %v6897 = vpop.f32.mrf.mxu0
        %v6898 = vpop.f32.mrf.mxu0
        %v6899 = vadd.f32 0.0, %v6898
        %v6900 = vpop.f32.mrf.mxu0
        %6901 = vmatprep.mubr.bf16.mxu0 0
        %6902 = vmatmul.mubr.bf16.gmra.mxu0 %v6704
        %v6903 = vpop.f32.mrf.mxu0
        %v6904 = vadd.f32 0.0, %v6903
        %v6905 = vpop.f32.mrf.mxu0
        %v6906 = vpop.f32.mrf.mxu0
        %v6907 = vadd.f32 0.0, %v6906
        %v6908 = vpop.f32.mrf.mxu0
        %6909 = vmatprep.mubr.bf16.mxu0 0
        %6910 = vmatmul.mubr.bf16.gmra.mxu0 %v6705
        %v6911 = vpop.f32.mrf.mxu0
        %v6912 = vadd.f32 0.0, %v6911
        %v6913 = vpop.f32.mrf.mxu0
        %v6914 = vpop.f32.mrf.mxu0
        %v6915 = vadd.f32 0.0, %v6914
        %v6916 = vpop.f32.mrf.mxu0
        %6917 = vmatprep.mubr.bf16.mxu0 0
        %6918 = vmatmul.mubr.bf16.gmra.mxu0 %v6706
        %v6919 = vpop.f32.mrf.mxu0
        %v6920 = vadd.f32 0.0, %v6919
        %v6921 = vpop.f32.mrf.mxu0
        %v6922 = vpop.f32.mrf.mxu0
        %v6923 = vadd.f32 0.0, %v6922
        %v6924 = vpop.f32.mrf.mxu0
        %6925 = vmatprep.mubr.bf16.mxu0 0
        %6926 = vmatmul.mubr.bf16.gmra.mxu0 %v6707
        %v6927 = vpop.f32.mrf.mxu0
        %v6928 = vadd.f32 0.0, %v6927
        %v6929 = vpop.f32.mrf.mxu0
        %v6930 = vpop.f32.mrf.mxu0
        %v6931 = vadd.f32 0.0, %v6930
        %v6932 = vpop.f32.mrf.mxu0
        %6933 = vdwg.mxu0
        %v6934 = vadd.f32 %v6628, %v6808
        %v6935 = vadd.f32 %v6629, %v6811
        %v6936 = vadd.f32 %v6630, %v6816
        %v6937 = vadd.f32 %v6631, %v6819
        %v6938 = vadd.f32 %v6632, %v6824
        %v6939 = vadd.f32 %v6633, %v6827
        %v6940 = vadd.f32 %v6634, %v6832
        %v6941 = vadd.f32 %v6635, %v6835
        %v6942 = vadd.f32 %v6636, %v6840
        %v6943 = vadd.f32 %v6637, %v6843
        %v6944 = vadd.f32 %v6638, %v6848
        %v6945 = vadd.f32 %v6639, %v6851
        %v6946 = vadd.f32 %v6640, %v6856
        %v6947 = vadd.f32 %v6641, %v6859
        %v6948 = vadd.f32 %v6642, %v6864
        %v6949 = vadd.f32 %v6643, %v6867
        %v6950 = vadd.f32 %v6644, %v6872
        %v6951 = vadd.f32 %v6645, %v6875
        %v6952 = vadd.f32 %v6646, %v6880
        %v6953 = vadd.f32 %v6647, %v6883
        %v6954 = vadd.f32 %v6648, %v6888
        %v6955 = vadd.f32 %v6649, %v6891
        %v6956 = vadd.f32 %v6650, %v6896
        %v6957 = vadd.f32 %v6651, %v6899
        %v6958 = vadd.f32 %v6652, %v6904
        %v6959 = vadd.f32 %v6653, %v6907
        %v6960 = vadd.f32 %v6654, %v6912
        %v6961 = vadd.f32 %v6655, %v6915
        %v6962 = vadd.f32 %v6656, %v6920
        %v6963 = vadd.f32 %v6657, %v6923
        %v6964 = vadd.f32 %v6658, %v6928
        %v6965 = vadd.f32 %v6659, %v6931
        %v6966 = vld [vmem:[#allocation2 + $0x28] sm:$0xff]
        %v6967 = vld [vmem:[#allocation2 + $0x30] sm:$0xff]
        %v6968 = vld [vmem:[#allocation2 + $0x38] sm:$0xff]
        %v6969 = vld [vmem:[#allocation2 + $0x40] sm:$0xff]
        %v6970 = vld [vmem:[#allocation2 + $0x48] sm:$0xff]
        %v6971 = vld [vmem:[#allocation2 + $0x50] sm:$0xff]
        %v6972 = vld [vmem:[#allocation2 + $0x58] sm:$0xff]
        %v6973 = vld [vmem:[#allocation2 + $0x60] sm:$0xff]
        %v6974 = vld [vmem:[#allocation2 + $0x68] sm:$0xff]
        %v6975 = vld [vmem:[#allocation2 + $0x70] sm:$0xff]
        %v6976 = vld [vmem:[#allocation2 + $0x78] sm:$0xff]
        %v6977 = vld [vmem:[#allocation2 + $0x80] sm:$0xff]
        %v6978 = vld [vmem:[#allocation2 + $0x88] sm:$0xff]
        %v6979 = vld [vmem:[#allocation2 + $0x90] sm:$0xff]
        %v6980 = vld [vmem:[#allocation2 + $0x98] sm:$0xff]
        %v6981 = vld [vmem:[#allocation2 + $0xa0] sm:$0xff]
        %v6982 = vld [vmem:[#allocation2 + $0xa8] sm:$0xff]
        %v6983 = vld [vmem:[#allocation2 + $0xb0] sm:$0xff]
        %v6984 = vld [vmem:[#allocation2 + $0xb8] sm:$0xff]
        %v6985 = vld [vmem:[#allocation2 + $0xc0] sm:$0xff]
        %v6986 = vld [vmem:[#allocation2 + $0xc8] sm:$0xff]
        %v6987 = vld [vmem:[#allocation2 + $0xd0] sm:$0xff]
        %v6988 = vld [vmem:[#allocation2 + $0xd8] sm:$0xff]
        %v6989 = vld [vmem:[#allocation2 + $0xe0] sm:$0xff]
        %v6990 = vld [vmem:[#allocation2 + $0xe8] sm:$0xff]
        %v6991 = vld [vmem:[#allocation2 + $0xf0] sm:$0xff]
        %v6992 = vld [vmem:[#allocation2 + $0xf8] sm:$0xff]
        %v6993 = vld [vmem:[#allocation2 + $0x100] sm:$0xff]
        %v6994 = vld [vmem:[#allocation2 + $0x108] sm:$0xff]
        %v6995 = vld [vmem:[#allocation2 + $0x110] sm:$0xff]
        %v6996 = vld [vmem:[#allocation2 + $0x118] sm:$0xff]
        %v6997 = vld [vmem:[#allocation2 + $0x120] sm:$0xff]
        %v6998 = vpack.c.bf16 %v6967, %v6966
        %v6999 = vpack.c.bf16 %v6969, %v6968
        %v7000 = vpack.c.bf16 %v6971, %v6970
        %v7001 = vpack.c.bf16 %v6973, %v6972
        %v7002 = vpack.c.bf16 %v6975, %v6974
        %v7003 = vpack.c.bf16 %v6977, %v6976
        %v7004 = vpack.c.bf16 %v6979, %v6978
        %v7005 = vpack.c.bf16 %v6981, %v6980
        %v7006 = vpack.c.bf16 %v6983, %v6982
        %v7007 = vpack.c.bf16 %v6985, %v6984
        %v7008 = vpack.c.bf16 %v6987, %v6986
        %v7009 = vpack.c.bf16 %v6989, %v6988
        %v7010 = vpack.c.bf16 %v6991, %v6990
        %v7011 = vpack.c.bf16 %v6993, %v6992
        %v7012 = vpack.c.bf16 %v6995, %v6994
        %v7013 = vpack.c.bf16 %v6997, %v6996
        %s7014 = scalar_lea.vmem [#allocation7], 384
        %v7015 = vld [vmem:[%s7014] sm:$0xf]
        %v7016 = vld [vmem:[%s7014 + $0x4] sm:$0xf]
        %v7017 = vld [vmem:[%s7014 + $0x8] sm:$0xf]
        %v7018 = vld [vmem:[%s7014 + $0xc] sm:$0xf]
        %v7019 = vld [vmem:[%s7014 + $0x10] sm:$0xf]
        %v7020 = vld [vmem:[%s7014 + $0x14] sm:$0xf]
        %v7021 = vld [vmem:[%s7014 + $0x18] sm:$0xf]
        %v7022 = vld [vmem:[%s7014 + $0x1c] sm:$0xf]
        %v7023 = vld [vmem:[%s7014 + $0x20] sm:$0xf]
        %v7024 = vld [vmem:[%s7014 + $0x24] sm:$0xf]
        %v7025 = vld [vmem:[%s7014 + $0x28] sm:$0xf]
        %v7026 = vld [vmem:[%s7014 + $0x2c] sm:$0xf]
        %v7027 = vld [vmem:[%s7014 + $0x30] sm:$0xf]
        %v7028 = vld [vmem:[%s7014 + $0x34] sm:$0xf]
        %v7029 = vld [vmem:[%s7014 + $0x38] sm:$0xf]
        %v7030 = vld [vmem:[%s7014 + $0x3c] sm:$0xf]
        %v7047 = vunpack.c.l.b16 %v7015
        %v7048 = vunpack.c.l.b16 %v7016
        %v7049 = vunpack.c.l.b16 %v7017
        %v7050 = vunpack.c.l.b16 %v7018
        %v7051 = vunpack.c.l.b16 %v7019
        %v7052 = vunpack.c.l.b16 %v7020
        %v7053 = vunpack.c.l.b16 %v7021
        %v7054 = vunpack.c.l.b16 %v7022
        %v7055 = vunpack.c.l.b16 %v7023
        %v7056 = vunpack.c.l.b16 %v7024
        %v7057 = vunpack.c.l.b16 %v7025
        %v7058 = vunpack.c.l.b16 %v7026
        %v7059 = vunpack.c.l.b16 %v7027
        %v7060 = vunpack.c.l.b16 %v7028
        %v7061 = vunpack.c.l.b16 %v7029
        %v7062 = vunpack.c.l.b16 %v7030
        %v7063 = vpack.c.b16 %v7048, %v7047
        %v7064 = vpack.c.b16 %v7050, %v7049
        %v7065 = vpack.c.b16 %v7052, %v7051
        %v7066 = vpack.c.b16 %v7054, %v7053
        %v7067 = vpack.c.b16 %v7056, %v7055
        %v7068 = vpack.c.b16 %v7058, %v7057
        %v7069 = vpack.c.b16 %v7060, %v7059
        %v7070 = vpack.c.b16 %v7062, %v7061
        %7079 = vmatprep.subr.bf16.mxu0 0
        %7080 = vmatpush1.bf16.msra.mxu0 %v7070
        %7081 = vmatprep.subr.bf16.mxu0 0
        %7082 = vmatpush1.bf16.msra.mxu0 %v7069
        %7083 = vmatprep.subr.bf16.mxu0 0
        %7084 = vmatpush1.bf16.msra.mxu0 %v7068
        %7085 = vmatprep.subr.bf16.mxu0 0
        %7086 = vmatpush1.bf16.msra.mxu0 %v7067
        %7087 = vmatprep.subr.bf16.mxu0 0
        %7088 = vmatpush1.bf16.msra.mxu0 %v7066
        %7089 = vmatprep.subr.bf16.mxu0 0
        %7090 = vmatpush1.bf16.msra.mxu0 %v7065
        %7091 = vmatprep.subr.bf16.mxu0 0
        %7092 = vmatpush1.bf16.msra.mxu0 %v7064
        %7093 = vmatprep.subr.bf16.mxu0 0
        %7094 = vmatpush1.bf16.msra.mxu0 %v7063
        %7095 = vmatprep.subr.bf16.mxu0 0
        %7096 = vmatpush2.bf16.msra.mxu0 0
        %7097 = vmatprep.subr.bf16.mxu0 0
        %7098 = vmatpush2.bf16.msra.mxu0 0
        %7099 = vmatprep.subr.bf16.mxu0 0
        %7100 = vmatpush2.bf16.msra.mxu0 0
        %7101 = vmatprep.subr.bf16.mxu0 0
        %7102 = vmatpush2.bf16.msra.mxu0 0
        %7103 = vmatprep.subr.bf16.mxu0 0
        %7104 = vmatpush2.bf16.msra.mxu0 0
        %7105 = vmatprep.subr.bf16.mxu0 0
        %7106 = vmatpush2.bf16.msra.mxu0 0
        %7107 = vmatprep.subr.bf16.mxu0 0
        %7108 = vmatpush2.bf16.msra.mxu0 0
        %7109 = vmatprep.subr.bf16.mxu0 0
        %7110 = vmatpush2.bf16.msra.mxu0 0
        %7111 = vmatprep.mubr.bf16.mxu0 0
        %7112 = vmatmul.mubr.bf16.gmra.mxu0 %v6998
        %v7113 = vpop.f32.mrf.mxu0
        %v7114 = vadd.f32 0.0, %v7113
        %v7115 = vpop.f32.mrf.mxu0
        %v7116 = vpop.f32.mrf.mxu0
        %v7117 = vadd.f32 0.0, %v7116
        %v7118 = vpop.f32.mrf.mxu0
        %7119 = vmatprep.mubr.bf16.mxu0 0
        %7120 = vmatmul.mubr.bf16.gmra.mxu0 %v6999
        %v7121 = vpop.f32.mrf.mxu0
        %v7122 = vadd.f32 0.0, %v7121
        %v7123 = vpop.f32.mrf.mxu0
        %v7124 = vpop.f32.mrf.mxu0
        %v7125 = vadd.f32 0.0, %v7124
        %v7126 = vpop.f32.mrf.mxu0
        %7127 = vmatprep.mubr.bf16.mxu0 0
        %7128 = vmatmul.mubr.bf16.gmra.mxu0 %v7000
        %v7129 = vpop.f32.mrf.mxu0
        %v7130 = vadd.f32 0.0, %v7129
        %v7131 = vpop.f32.mrf.mxu0
        %v7132 = vpop.f32.mrf.mxu0
        %v7133 = vadd.f32 0.0, %v7132
        %v7134 = vpop.f32.mrf.mxu0
        %7135 = vmatprep.mubr.bf16.mxu0 0
        %7136 = vmatmul.mubr.bf16.gmra.mxu0 %v7001
        %v7137 = vpop.f32.mrf.mxu0
        %v7138 = vadd.f32 0.0, %v7137
        %v7139 = vpop.f32.mrf.mxu0
        %v7140 = vpop.f32.mrf.mxu0
        %v7141 = vadd.f32 0.0, %v7140
        %v7142 = vpop.f32.mrf.mxu0
        %7143 = vmatprep.mubr.bf16.mxu0 0
        %7144 = vmatmul.mubr.bf16.gmra.mxu0 %v7002
        %v7145 = vpop.f32.mrf.mxu0
        %v7146 = vadd.f32 0.0, %v7145
        %v7147 = vpop.f32.mrf.mxu0
        %v7148 = vpop.f32.mrf.mxu0
        %v7149 = vadd.f32 0.0, %v7148
        %v7150 = vpop.f32.mrf.mxu0
        %7151 = vmatprep.mubr.bf16.mxu0 0
        %7152 = vmatmul.mubr.bf16.gmra.mxu0 %v7003
        %v7153 = vpop.f32.mrf.mxu0
        %v7154 = vadd.f32 0.0, %v7153
        %v7155 = vpop.f32.mrf.mxu0
        %v7156 = vpop.f32.mrf.mxu0
        %v7157 = vadd.f32 0.0, %v7156
        %v7158 = vpop.f32.mrf.mxu0
        %7159 = vmatprep.mubr.bf16.mxu0 0
        %7160 = vmatmul.mubr.bf16.gmra.mxu0 %v7004
        %v7161 = vpop.f32.mrf.mxu0
        %v7162 = vadd.f32 0.0, %v7161
        %v7163 = vpop.f32.mrf.mxu0
        %v7164 = vpop.f32.mrf.mxu0
        %v7165 = vadd.f32 0.0, %v7164
        %v7166 = vpop.f32.mrf.mxu0
        %7167 = vmatprep.mubr.bf16.mxu0 0
        %7168 = vmatmul.mubr.bf16.gmra.mxu0 %v7005
        %v7169 = vpop.f32.mrf.mxu0
        %v7170 = vadd.f32 0.0, %v7169
        %v7171 = vpop.f32.mrf.mxu0
        %v7172 = vpop.f32.mrf.mxu0
        %v7173 = vadd.f32 0.0, %v7172
        %v7174 = vpop.f32.mrf.mxu0
        %7175 = vmatprep.mubr.bf16.mxu0 0
        %7176 = vmatmul.mubr.bf16.gmra.mxu0 %v7006
        %v7177 = vpop.f32.mrf.mxu0
        %v7178 = vadd.f32 0.0, %v7177
        %v7179 = vpop.f32.mrf.mxu0
        %v7180 = vpop.f32.mrf.mxu0
        %v7181 = vadd.f32 0.0, %v7180
        %v7182 = vpop.f32.mrf.mxu0
        %7183 = vmatprep.mubr.bf16.mxu0 0
        %7184 = vmatmul.mubr.bf16.gmra.mxu0 %v7007
        %v7185 = vpop.f32.mrf.mxu0
        %v7186 = vadd.f32 0.0, %v7185
        %v7187 = vpop.f32.mrf.mxu0
        %v7188 = vpop.f32.mrf.mxu0
        %v7189 = vadd.f32 0.0, %v7188
        %v7190 = vpop.f32.mrf.mxu0
        %7191 = vmatprep.mubr.bf16.mxu0 0
        %7192 = vmatmul.mubr.bf16.gmra.mxu0 %v7008
        %v7193 = vpop.f32.mrf.mxu0
        %v7194 = vadd.f32 0.0, %v7193
        %v7195 = vpop.f32.mrf.mxu0
        %v7196 = vpop.f32.mrf.mxu0
        %v7197 = vadd.f32 0.0, %v7196
        %v7198 = vpop.f32.mrf.mxu0
        %7199 = vmatprep.mubr.bf16.mxu0 0
        %7200 = vmatmul.mubr.bf16.gmra.mxu0 %v7009
        %v7201 = vpop.f32.mrf.mxu0
        %v7202 = vadd.f32 0.0, %v7201
        %v7203 = vpop.f32.mrf.mxu0
        %v7204 = vpop.f32.mrf.mxu0
        %v7205 = vadd.f32 0.0, %v7204
        %v7206 = vpop.f32.mrf.mxu0
        %7207 = vmatprep.mubr.bf16.mxu0 0
        %7208 = vmatmul.mubr.bf16.gmra.mxu0 %v7010
        %v7209 = vpop.f32.mrf.mxu0
        %v7210 = vadd.f32 0.0, %v7209
        %v7211 = vpop.f32.mrf.mxu0
        %v7212 = vpop.f32.mrf.mxu0
        %v7213 = vadd.f32 0.0, %v7212
        %v7214 = vpop.f32.mrf.mxu0
        %7215 = vmatprep.mubr.bf16.mxu0 0
        %7216 = vmatmul.mubr.bf16.gmra.mxu0 %v7011
        %v7217 = vpop.f32.mrf.mxu0
        %v7218 = vadd.f32 0.0, %v7217
        %v7219 = vpop.f32.mrf.mxu0
        %v7220 = vpop.f32.mrf.mxu0
        %v7221 = vadd.f32 0.0, %v7220
        %v7222 = vpop.f32.mrf.mxu0
        %7223 = vmatprep.mubr.bf16.mxu0 0
        %7224 = vmatmul.mubr.bf16.gmra.mxu0 %v7012
        %v7225 = vpop.f32.mrf.mxu0
        %v7226 = vadd.f32 0.0, %v7225
        %v7227 = vpop.f32.mrf.mxu0
        %v7228 = vpop.f32.mrf.mxu0
        %v7229 = vadd.f32 0.0, %v7228
        %v7230 = vpop.f32.mrf.mxu0
        %7231 = vmatprep.mubr.bf16.mxu0 0
        %7232 = vmatmul.mubr.bf16.gmra.mxu0 %v7013
        %v7233 = vpop.f32.mrf.mxu0
        %v7234 = vadd.f32 0.0, %v7233
        %v7235 = vpop.f32.mrf.mxu0
        %v7236 = vpop.f32.mrf.mxu0
        %v7237 = vadd.f32 0.0, %v7236
        %v7238 = vpop.f32.mrf.mxu0
        %7239 = vdwg.mxu0
        %v7240 = vadd.f32 %v6934, %v7114
        %v7241 = vadd.f32 %v6935, %v7117
        %v7242 = vadd.f32 %v6936, %v7122
        %v7243 = vadd.f32 %v6937, %v7125
        %v7244 = vadd.f32 %v6938, %v7130
        %v7245 = vadd.f32 %v6939, %v7133
        %v7246 = vadd.f32 %v6940, %v7138
        %v7247 = vadd.f32 %v6941, %v7141
        %v7248 = vadd.f32 %v6942, %v7146
        %v7249 = vadd.f32 %v6943, %v7149
        %v7250 = vadd.f32 %v6944, %v7154
        %v7251 = vadd.f32 %v6945, %v7157
        %v7252 = vadd.f32 %v6946, %v7162
        %v7253 = vadd.f32 %v6947, %v7165
        %v7254 = vadd.f32 %v6948, %v7170
        %v7255 = vadd.f32 %v6949, %v7173
        %v7256 = vadd.f32 %v6950, %v7178
        %v7257 = vadd.f32 %v6951, %v7181
        %v7258 = vadd.f32 %v6952, %v7186
        %v7259 = vadd.f32 %v6953, %v7189
        %v7260 = vadd.f32 %v6954, %v7194
        %v7261 = vadd.f32 %v6955, %v7197
        %v7262 = vadd.f32 %v6956, %v7202
        %v7263 = vadd.f32 %v6957, %v7205
        %v7264 = vadd.f32 %v6958, %v7210
        %v7265 = vadd.f32 %v6959, %v7213
        %v7266 = vadd.f32 %v6960, %v7218
        %v7267 = vadd.f32 %v6961, %v7221
        %v7268 = vadd.f32 %v6962, %v7226
        %v7269 = vadd.f32 %v6963, %v7229
        %v7270 = vadd.f32 %v6964, %v7234
        %v7271 = vadd.f32 %v6965, %v7237
        %v7272 = vld [vmem:[#allocation2 + $0x29] sm:$0xff]
        %v7273 = vld [vmem:[#allocation2 + $0x31] sm:$0xff]
        %v7274 = vld [vmem:[#allocation2 + $0x39] sm:$0xff]
        %v7275 = vld [vmem:[#allocation2 + $0x41] sm:$0xff]
        %v7276 = vld [vmem:[#allocation2 + $0x49] sm:$0xff]
        %v7277 = vld [vmem:[#allocation2 + $0x51] sm:$0xff]
        %v7278 = vld [vmem:[#allocation2 + $0x59] sm:$0xff]
        %v7279 = vld [vmem:[#allocation2 + $0x61] sm:$0xff]
        %v7280 = vld [vmem:[#allocation2 + $0x69] sm:$0xff]
        %v7281 = vld [vmem:[#allocation2 + $0x71] sm:$0xff]
        %v7282 = vld [vmem:[#allocation2 + $0x79] sm:$0xff]
        %v7283 = vld [vmem:[#allocation2 + $0x81] sm:$0xff]
        %v7284 = vld [vmem:[#allocation2 + $0x89] sm:$0xff]
        %v7285 = vld [vmem:[#allocation2 + $0x91] sm:$0xff]
        %v7286 = vld [vmem:[#allocation2 + $0x99] sm:$0xff]
        %v7287 = vld [vmem:[#allocation2 + $0xa1] sm:$0xff]
        %v7288 = vld [vmem:[#allocation2 + $0xa9] sm:$0xff]
        %v7289 = vld [vmem:[#allocation2 + $0xb1] sm:$0xff]
        %v7290 = vld [vmem:[#allocation2 + $0xb9] sm:$0xff]
        %v7291 = vld [vmem:[#allocation2 + $0xc1] sm:$0xff]
        %v7292 = vld [vmem:[#allocation2 + $0xc9] sm:$0xff]
        %v7293 = vld [vmem:[#allocation2 + $0xd1] sm:$0xff]
        %v7294 = vld [vmem:[#allocation2 + $0xd9] sm:$0xff]
        %v7295 = vld [vmem:[#allocation2 + $0xe1] sm:$0xff]
        %v7296 = vld [vmem:[#allocation2 + $0xe9] sm:$0xff]
        %v7297 = vld [vmem:[#allocation2 + $0xf1] sm:$0xff]
        %v7298 = vld [vmem:[#allocation2 + $0xf9] sm:$0xff]
        %v7299 = vld [vmem:[#allocation2 + $0x101] sm:$0xff]
        %v7300 = vld [vmem:[#allocation2 + $0x109] sm:$0xff]
        %v7301 = vld [vmem:[#allocation2 + $0x111] sm:$0xff]
        %v7302 = vld [vmem:[#allocation2 + $0x119] sm:$0xff]
        %v7303 = vld [vmem:[#allocation2 + $0x121] sm:$0xff]
        %v7304 = vpack.c.bf16 %v7273, %v7272
        %v7305 = vpack.c.bf16 %v7275, %v7274
        %v7306 = vpack.c.bf16 %v7277, %v7276
        %v7307 = vpack.c.bf16 %v7279, %v7278
        %v7308 = vpack.c.bf16 %v7281, %v7280
        %v7309 = vpack.c.bf16 %v7283, %v7282
        %v7310 = vpack.c.bf16 %v7285, %v7284
        %v7311 = vpack.c.bf16 %v7287, %v7286
        %v7312 = vpack.c.bf16 %v7289, %v7288
        %v7313 = vpack.c.bf16 %v7291, %v7290
        %v7314 = vpack.c.bf16 %v7293, %v7292
        %v7315 = vpack.c.bf16 %v7295, %v7294
        %v7316 = vpack.c.bf16 %v7297, %v7296
        %v7317 = vpack.c.bf16 %v7299, %v7298
        %v7318 = vpack.c.bf16 %v7301, %v7300
        %v7319 = vpack.c.bf16 %v7303, %v7302
        %s7320 = scalar_lea.vmem [#allocation7], 448
        %v7321 = vld [vmem:[%s7320] sm:$0xf]
        %v7322 = vld [vmem:[%s7320 + $0x4] sm:$0xf]
        %v7323 = vld [vmem:[%s7320 + $0x8] sm:$0xf]
        %v7324 = vld [vmem:[%s7320 + $0xc] sm:$0xf]
        %v7325 = vld [vmem:[%s7320 + $0x10] sm:$0xf]
        %v7326 = vld [vmem:[%s7320 + $0x14] sm:$0xf]
        %v7327 = vld [vmem:[%s7320 + $0x18] sm:$0xf]
        %v7328 = vld [vmem:[%s7320 + $0x1c] sm:$0xf]
        %v7329 = vld [vmem:[%s7320 + $0x20] sm:$0xf]
        %v7330 = vld [vmem:[%s7320 + $0x24] sm:$0xf]
        %v7331 = vld [vmem:[%s7320 + $0x28] sm:$0xf]
        %v7332 = vld [vmem:[%s7320 + $0x2c] sm:$0xf]
        %v7333 = vld [vmem:[%s7320 + $0x30] sm:$0xf]
        %v7334 = vld [vmem:[%s7320 + $0x34] sm:$0xf]
        %v7335 = vld [vmem:[%s7320 + $0x38] sm:$0xf]
        %v7336 = vld [vmem:[%s7320 + $0x3c] sm:$0xf]
        %v7353 = vunpack.c.l.b16 %v7321
        %v7354 = vunpack.c.l.b16 %v7322
        %v7355 = vunpack.c.l.b16 %v7323
        %v7356 = vunpack.c.l.b16 %v7324
        %v7357 = vunpack.c.l.b16 %v7325
        %v7358 = vunpack.c.l.b16 %v7326
        %v7359 = vunpack.c.l.b16 %v7327
        %v7360 = vunpack.c.l.b16 %v7328
        %v7361 = vunpack.c.l.b16 %v7329
        %v7362 = vunpack.c.l.b16 %v7330
        %v7363 = vunpack.c.l.b16 %v7331
        %v7364 = vunpack.c.l.b16 %v7332
        %v7365 = vunpack.c.l.b16 %v7333
        %v7366 = vunpack.c.l.b16 %v7334
        %v7367 = vunpack.c.l.b16 %v7335
        %v7368 = vunpack.c.l.b16 %v7336
        %v7369 = vpack.c.b16 %v7354, %v7353
        %v7370 = vpack.c.b16 %v7356, %v7355
        %v7371 = vpack.c.b16 %v7358, %v7357
        %v7372 = vpack.c.b16 %v7360, %v7359
        %v7373 = vpack.c.b16 %v7362, %v7361
        %v7374 = vpack.c.b16 %v7364, %v7363
        %v7375 = vpack.c.b16 %v7366, %v7365
        %v7376 = vpack.c.b16 %v7368, %v7367
        %7385 = vmatprep.subr.bf16.mxu0 0
        %7386 = vmatpush1.bf16.msra.mxu0 %v7376
        %7387 = vmatprep.subr.bf16.mxu0 0
        %7388 = vmatpush1.bf16.msra.mxu0 %v7375
        %7389 = vmatprep.subr.bf16.mxu0 0
        %7390 = vmatpush1.bf16.msra.mxu0 %v7374
        %7391 = vmatprep.subr.bf16.mxu0 0
        %7392 = vmatpush1.bf16.msra.mxu0 %v7373
        %7393 = vmatprep.subr.bf16.mxu0 0
        %7394 = vmatpush1.bf16.msra.mxu0 %v7372
        %7395 = vmatprep.subr.bf16.mxu0 0
        %7396 = vmatpush1.bf16.msra.mxu0 %v7371
        %7397 = vmatprep.subr.bf16.mxu0 0
        %7398 = vmatpush1.bf16.msra.mxu0 %v7370
        %7399 = vmatprep.subr.bf16.mxu0 0
        %7400 = vmatpush1.bf16.msra.mxu0 %v7369
        %7401 = vmatprep.subr.bf16.mxu0 0
        %7402 = vmatpush2.bf16.msra.mxu0 0
        %7403 = vmatprep.subr.bf16.mxu0 0
        %7404 = vmatpush2.bf16.msra.mxu0 0
        %7405 = vmatprep.subr.bf16.mxu0 0
        %7406 = vmatpush2.bf16.msra.mxu0 0
        %7407 = vmatprep.subr.bf16.mxu0 0
        %7408 = vmatpush2.bf16.msra.mxu0 0
        %7409 = vmatprep.subr.bf16.mxu0 0
        %7410 = vmatpush2.bf16.msra.mxu0 0
        %7411 = vmatprep.subr.bf16.mxu0 0
        %7412 = vmatpush2.bf16.msra.mxu0 0
        %7413 = vmatprep.subr.bf16.mxu0 0
        %7414 = vmatpush2.bf16.msra.mxu0 0
        %7415 = vmatprep.subr.bf16.mxu0 0
        %7416 = vmatpush2.bf16.msra.mxu0 0
        %7417 = vmatprep.mubr.bf16.mxu0 0
        %7418 = vmatmul.mubr.bf16.gmra.mxu0 %v7304
        %v7419 = vpop.f32.mrf.mxu0
        %v7420 = vadd.f32 0.0, %v7419
        %v7421 = vpop.f32.mrf.mxu0
        %v7422 = vpop.f32.mrf.mxu0
        %v7423 = vadd.f32 0.0, %v7422
        %v7424 = vpop.f32.mrf.mxu0
        %7425 = vmatprep.mubr.bf16.mxu0 0
        %7426 = vmatmul.mubr.bf16.gmra.mxu0 %v7305
        %v7427 = vpop.f32.mrf.mxu0
        %v7428 = vadd.f32 0.0, %v7427
        %v7429 = vpop.f32.mrf.mxu0
        %v7430 = vpop.f32.mrf.mxu0
        %v7431 = vadd.f32 0.0, %v7430
        %v7432 = vpop.f32.mrf.mxu0
        %7433 = vmatprep.mubr.bf16.mxu0 0
        %7434 = vmatmul.mubr.bf16.gmra.mxu0 %v7306
        %v7435 = vpop.f32.mrf.mxu0
        %v7436 = vadd.f32 0.0, %v7435
        %v7437 = vpop.f32.mrf.mxu0
        %v7438 = vpop.f32.mrf.mxu0
        %v7439 = vadd.f32 0.0, %v7438
        %v7440 = vpop.f32.mrf.mxu0
        %7441 = vmatprep.mubr.bf16.mxu0 0
        %7442 = vmatmul.mubr.bf16.gmra.mxu0 %v7307
        %v7443 = vpop.f32.mrf.mxu0
        %v7444 = vadd.f32 0.0, %v7443
        %v7445 = vpop.f32.mrf.mxu0
        %v7446 = vpop.f32.mrf.mxu0
        %v7447 = vadd.f32 0.0, %v7446
        %v7448 = vpop.f32.mrf.mxu0
        %7449 = vmatprep.mubr.bf16.mxu0 0
        %7450 = vmatmul.mubr.bf16.gmra.mxu0 %v7308
        %v7451 = vpop.f32.mrf.mxu0
        %v7452 = vadd.f32 0.0, %v7451
        %v7453 = vpop.f32.mrf.mxu0
        %v7454 = vpop.f32.mrf.mxu0
        %v7455 = vadd.f32 0.0, %v7454
        %v7456 = vpop.f32.mrf.mxu0
        %7457 = vmatprep.mubr.bf16.mxu0 0
        %7458 = vmatmul.mubr.bf16.gmra.mxu0 %v7309
        %v7459 = vpop.f32.mrf.mxu0
        %v7460 = vadd.f32 0.0, %v7459
        %v7461 = vpop.f32.mrf.mxu0
        %v7462 = vpop.f32.mrf.mxu0
        %v7463 = vadd.f32 0.0, %v7462
        %v7464 = vpop.f32.mrf.mxu0
        %7465 = vmatprep.mubr.bf16.mxu0 0
        %7466 = vmatmul.mubr.bf16.gmra.mxu0 %v7310
        %v7467 = vpop.f32.mrf.mxu0
        %v7468 = vadd.f32 0.0, %v7467
        %v7469 = vpop.f32.mrf.mxu0
        %v7470 = vpop.f32.mrf.mxu0
        %v7471 = vadd.f32 0.0, %v7470
        %v7472 = vpop.f32.mrf.mxu0
        %7473 = vmatprep.mubr.bf16.mxu0 0
        %7474 = vmatmul.mubr.bf16.gmra.mxu0 %v7311
        %v7475 = vpop.f32.mrf.mxu0
        %v7476 = vadd.f32 0.0, %v7475
        %v7477 = vpop.f32.mrf.mxu0
        %v7478 = vpop.f32.mrf.mxu0
        %v7479 = vadd.f32 0.0, %v7478
        %v7480 = vpop.f32.mrf.mxu0
        %7481 = vmatprep.mubr.bf16.mxu0 0
        %7482 = vmatmul.mubr.bf16.gmra.mxu0 %v7312
        %v7483 = vpop.f32.mrf.mxu0
        %v7484 = vadd.f32 0.0, %v7483
        %v7485 = vpop.f32.mrf.mxu0
        %v7486 = vpop.f32.mrf.mxu0
        %v7487 = vadd.f32 0.0, %v7486
        %v7488 = vpop.f32.mrf.mxu0
        %7489 = vmatprep.mubr.bf16.mxu0 0
        %7490 = vmatmul.mubr.bf16.gmra.mxu0 %v7313
        %v7491 = vpop.f32.mrf.mxu0
        %v7492 = vadd.f32 0.0, %v7491
        %v7493 = vpop.f32.mrf.mxu0
        %v7494 = vpop.f32.mrf.mxu0
        %v7495 = vadd.f32 0.0, %v7494
        %v7496 = vpop.f32.mrf.mxu0
        %7497 = vmatprep.mubr.bf16.mxu0 0
        %7498 = vmatmul.mubr.bf16.gmra.mxu0 %v7314
        %v7499 = vpop.f32.mrf.mxu0
        %v7500 = vadd.f32 0.0, %v7499
        %v7501 = vpop.f32.mrf.mxu0
        %v7502 = vpop.f32.mrf.mxu0
        %v7503 = vadd.f32 0.0, %v7502
        %v7504 = vpop.f32.mrf.mxu0
        %7505 = vmatprep.mubr.bf16.mxu0 0
        %7506 = vmatmul.mubr.bf16.gmra.mxu0 %v7315
        %v7507 = vpop.f32.mrf.mxu0
        %v7508 = vadd.f32 0.0, %v7507
        %v7509 = vpop.f32.mrf.mxu0
        %v7510 = vpop.f32.mrf.mxu0
        %v7511 = vadd.f32 0.0, %v7510
        %v7512 = vpop.f32.mrf.mxu0
        %7513 = vmatprep.mubr.bf16.mxu0 0
        %7514 = vmatmul.mubr.bf16.gmra.mxu0 %v7316
        %v7515 = vpop.f32.mrf.mxu0
        %v7516 = vadd.f32 0.0, %v7515
        %v7517 = vpop.f32.mrf.mxu0
        %v7518 = vpop.f32.mrf.mxu0
        %v7519 = vadd.f32 0.0, %v7518
        %v7520 = vpop.f32.mrf.mxu0
        %7521 = vmatprep.mubr.bf16.mxu0 0
        %7522 = vmatmul.mubr.bf16.gmra.mxu0 %v7317
        %v7523 = vpop.f32.mrf.mxu0
        %v7524 = vadd.f32 0.0, %v7523
        %v7525 = vpop.f32.mrf.mxu0
        %v7526 = vpop.f32.mrf.mxu0
        %v7527 = vadd.f32 0.0, %v7526
        %v7528 = vpop.f32.mrf.mxu0
        %7529 = vmatprep.mubr.bf16.mxu0 0
        %7530 = vmatmul.mubr.bf16.gmra.mxu0 %v7318
        %v7531 = vpop.f32.mrf.mxu0
        %v7532 = vadd.f32 0.0, %v7531
        %v7533 = vpop.f32.mrf.mxu0
        %v7534 = vpop.f32.mrf.mxu0
        %v7535 = vadd.f32 0.0, %v7534
        %v7536 = vpop.f32.mrf.mxu0
        %7537 = vmatprep.mubr.bf16.mxu0 0
        %7538 = vmatmul.mubr.bf16.gmra.mxu0 %v7319
        %v7539 = vpop.f32.mrf.mxu0
        %v7540 = vadd.f32 0.0, %v7539
        %v7541 = vpop.f32.mrf.mxu0
        %v7542 = vpop.f32.mrf.mxu0
        %v7543 = vadd.f32 0.0, %v7542
        %v7544 = vpop.f32.mrf.mxu0
        %7545 = vdwg.mxu0
        %v7546 = vadd.f32 %v7240, %v7420
        %v7547 = vadd.f32 %v7241, %v7423
        %v7548 = vadd.f32 %v7242, %v7428
        %v7549 = vadd.f32 %v7243, %v7431
        %v7550 = vadd.f32 %v7244, %v7436
        %v7551 = vadd.f32 %v7245, %v7439
        %v7552 = vadd.f32 %v7246, %v7444
        %v7553 = vadd.f32 %v7247, %v7447
        %v7554 = vadd.f32 %v7248, %v7452
        %v7555 = vadd.f32 %v7249, %v7455
        %v7556 = vadd.f32 %v7250, %v7460
        %v7557 = vadd.f32 %v7251, %v7463
        %v7558 = vadd.f32 %v7252, %v7468
        %v7559 = vadd.f32 %v7253, %v7471
        %v7560 = vadd.f32 %v7254, %v7476
        %v7561 = vadd.f32 %v7255, %v7479
        %v7562 = vadd.f32 %v7256, %v7484
        %v7563 = vadd.f32 %v7257, %v7487
        %v7564 = vadd.f32 %v7258, %v7492
        %v7565 = vadd.f32 %v7259, %v7495
        %v7566 = vadd.f32 %v7260, %v7500
        %v7567 = vadd.f32 %v7261, %v7503
        %v7568 = vadd.f32 %v7262, %v7508
        %v7569 = vadd.f32 %v7263, %v7511
        %v7570 = vadd.f32 %v7264, %v7516
        %v7571 = vadd.f32 %v7265, %v7519
        %v7572 = vadd.f32 %v7266, %v7524
        %v7573 = vadd.f32 %v7267, %v7527
        %v7574 = vadd.f32 %v7268, %v7532
        %v7575 = vadd.f32 %v7269, %v7535
        %v7576 = vadd.f32 %v7270, %v7540
        %v7577 = vadd.f32 %v7271, %v7543
        %v7578 = vld [vmem:[#allocation2 + $0x2a] sm:$0xff]
        %v7579 = vld [vmem:[#allocation2 + $0x32] sm:$0xff]
        %v7580 = vld [vmem:[#allocation2 + $0x3a] sm:$0xff]
        %v7581 = vld [vmem:[#allocation2 + $0x42] sm:$0xff]
        %v7582 = vld [vmem:[#allocation2 + $0x4a] sm:$0xff]
        %v7583 = vld [vmem:[#allocation2 + $0x52] sm:$0xff]
        %v7584 = vld [vmem:[#allocation2 + $0x5a] sm:$0xff]
        %v7585 = vld [vmem:[#allocation2 + $0x62] sm:$0xff]
        %v7586 = vld [vmem:[#allocation2 + $0x6a] sm:$0xff]
        %v7587 = vld [vmem:[#allocation2 + $0x72] sm:$0xff]
        %v7588 = vld [vmem:[#allocation2 + $0x7a] sm:$0xff]
        %v7589 = vld [vmem:[#allocation2 + $0x82] sm:$0xff]
        %v7590 = vld [vmem:[#allocation2 + $0x8a] sm:$0xff]
        %v7591 = vld [vmem:[#allocation2 + $0x92] sm:$0xff]
        %v7592 = vld [vmem:[#allocation2 + $0x9a] sm:$0xff]
        %v7593 = vld [vmem:[#allocation2 + $0xa2] sm:$0xff]
        %v7594 = vld [vmem:[#allocation2 + $0xaa] sm:$0xff]
        %v7595 = vld [vmem:[#allocation2 + $0xb2] sm:$0xff]
        %v7596 = vld [vmem:[#allocation2 + $0xba] sm:$0xff]
        %v7597 = vld [vmem:[#allocation2 + $0xc2] sm:$0xff]
        %v7598 = vld [vmem:[#allocation2 + $0xca] sm:$0xff]
        %v7599 = vld [vmem:[#allocation2 + $0xd2] sm:$0xff]
        %v7600 = vld [vmem:[#allocation2 + $0xda] sm:$0xff]
        %v7601 = vld [vmem:[#allocation2 + $0xe2] sm:$0xff]
        %v7602 = vld [vmem:[#allocation2 + $0xea] sm:$0xff]
        %v7603 = vld [vmem:[#allocation2 + $0xf2] sm:$0xff]
        %v7604 = vld [vmem:[#allocation2 + $0xfa] sm:$0xff]
        %v7605 = vld [vmem:[#allocation2 + $0x102] sm:$0xff]
        %v7606 = vld [vmem:[#allocation2 + $0x10a] sm:$0xff]
        %v7607 = vld [vmem:[#allocation2 + $0x112] sm:$0xff]
        %v7608 = vld [vmem:[#allocation2 + $0x11a] sm:$0xff]
        %v7609 = vld [vmem:[#allocation2 + $0x122] sm:$0xff]
        %v7610 = vpack.c.bf16 %v7579, %v7578
        %v7611 = vpack.c.bf16 %v7581, %v7580
        %v7612 = vpack.c.bf16 %v7583, %v7582
        %v7613 = vpack.c.bf16 %v7585, %v7584
        %v7614 = vpack.c.bf16 %v7587, %v7586
        %v7615 = vpack.c.bf16 %v7589, %v7588
        %v7616 = vpack.c.bf16 %v7591, %v7590
        %v7617 = vpack.c.bf16 %v7593, %v7592
        %v7618 = vpack.c.bf16 %v7595, %v7594
        %v7619 = vpack.c.bf16 %v7597, %v7596
        %v7620 = vpack.c.bf16 %v7599, %v7598
        %v7621 = vpack.c.bf16 %v7601, %v7600
        %v7622 = vpack.c.bf16 %v7603, %v7602
        %v7623 = vpack.c.bf16 %v7605, %v7604
        %v7624 = vpack.c.bf16 %v7607, %v7606
        %v7625 = vpack.c.bf16 %v7609, %v7608
        %s7626 = scalar_lea.vmem [#allocation7], 512
        %v7627 = vld [vmem:[%s7626] sm:$0xf]
        %v7628 = vld [vmem:[%s7626 + $0x4] sm:$0xf]
        %v7629 = vld [vmem:[%s7626 + $0x8] sm:$0xf]
        %v7630 = vld [vmem:[%s7626 + $0xc] sm:$0xf]
        %v7631 = vld [vmem:[%s7626 + $0x10] sm:$0xf]
        %v7632 = vld [vmem:[%s7626 + $0x14] sm:$0xf]
        %v7633 = vld [vmem:[%s7626 + $0x18] sm:$0xf]
        %v7634 = vld [vmem:[%s7626 + $0x1c] sm:$0xf]
        %v7635 = vld [vmem:[%s7626 + $0x20] sm:$0xf]
        %v7636 = vld [vmem:[%s7626 + $0x24] sm:$0xf]
        %v7637 = vld [vmem:[%s7626 + $0x28] sm:$0xf]
        %v7638 = vld [vmem:[%s7626 + $0x2c] sm:$0xf]
        %v7639 = vld [vmem:[%s7626 + $0x30] sm:$0xf]
        %v7640 = vld [vmem:[%s7626 + $0x34] sm:$0xf]
        %v7641 = vld [vmem:[%s7626 + $0x38] sm:$0xf]
        %v7642 = vld [vmem:[%s7626 + $0x3c] sm:$0xf]
        %v7659 = vunpack.c.l.b16 %v7627
        %v7660 = vunpack.c.l.b16 %v7628
        %v7661 = vunpack.c.l.b16 %v7629
        %v7662 = vunpack.c.l.b16 %v7630
        %v7663 = vunpack.c.l.b16 %v7631
        %v7664 = vunpack.c.l.b16 %v7632
        %v7665 = vunpack.c.l.b16 %v7633
        %v7666 = vunpack.c.l.b16 %v7634
        %v7667 = vunpack.c.l.b16 %v7635
        %v7668 = vunpack.c.l.b16 %v7636
        %v7669 = vunpack.c.l.b16 %v7637
        %v7670 = vunpack.c.l.b16 %v7638
        %v7671 = vunpack.c.l.b16 %v7639
        %v7672 = vunpack.c.l.b16 %v7640
        %v7673 = vunpack.c.l.b16 %v7641
        %v7674 = vunpack.c.l.b16 %v7642
        %v7675 = vpack.c.b16 %v7660, %v7659
        %v7676 = vpack.c.b16 %v7662, %v7661
        %v7677 = vpack.c.b16 %v7664, %v7663
        %v7678 = vpack.c.b16 %v7666, %v7665
        %v7679 = vpack.c.b16 %v7668, %v7667
        %v7680 = vpack.c.b16 %v7670, %v7669
        %v7681 = vpack.c.b16 %v7672, %v7671
        %v7682 = vpack.c.b16 %v7674, %v7673
        %7691 = vmatprep.subr.bf16.mxu0 0
        %7692 = vmatpush1.bf16.msra.mxu0 %v7682
        %7693 = vmatprep.subr.bf16.mxu0 0
        %7694 = vmatpush1.bf16.msra.mxu0 %v7681
        %7695 = vmatprep.subr.bf16.mxu0 0
        %7696 = vmatpush1.bf16.msra.mxu0 %v7680
        %7697 = vmatprep.subr.bf16.mxu0 0
        %7698 = vmatpush1.bf16.msra.mxu0 %v7679
        %7699 = vmatprep.subr.bf16.mxu0 0
        %7700 = vmatpush1.bf16.msra.mxu0 %v7678
        %7701 = vmatprep.subr.bf16.mxu0 0
        %7702 = vmatpush1.bf16.msra.mxu0 %v7677
        %7703 = vmatprep.subr.bf16.mxu0 0
        %7704 = vmatpush1.bf16.msra.mxu0 %v7676
        %7705 = vmatprep.subr.bf16.mxu0 0
        %7706 = vmatpush1.bf16.msra.mxu0 %v7675
        %7707 = vmatprep.subr.bf16.mxu0 0
        %7708 = vmatpush2.bf16.msra.mxu0 0
        %7709 = vmatprep.subr.bf16.mxu0 0
        %7710 = vmatpush2.bf16.msra.mxu0 0
        %7711 = vmatprep.subr.bf16.mxu0 0
        %7712 = vmatpush2.bf16.msra.mxu0 0
        %7713 = vmatprep.subr.bf16.mxu0 0
        %7714 = vmatpush2.bf16.msra.mxu0 0
        %7715 = vmatprep.subr.bf16.mxu0 0
        %7716 = vmatpush2.bf16.msra.mxu0 0
        %7717 = vmatprep.subr.bf16.mxu0 0
        %7718 = vmatpush2.bf16.msra.mxu0 0
        %7719 = vmatprep.subr.bf16.mxu0 0
        %7720 = vmatpush2.bf16.msra.mxu0 0
        %7721 = vmatprep.subr.bf16.mxu0 0
        %7722 = vmatpush2.bf16.msra.mxu0 0
        %7723 = vmatprep.mubr.bf16.mxu0 0
        %7724 = vmatmul.mubr.bf16.gmra.mxu0 %v7610
        %v7725 = vpop.f32.mrf.mxu0
        %v7726 = vadd.f32 0.0, %v7725
        %v7727 = vpop.f32.mrf.mxu0
        %v7728 = vpop.f32.mrf.mxu0
        %v7729 = vadd.f32 0.0, %v7728
        %v7730 = vpop.f32.mrf.mxu0
        %7731 = vmatprep.mubr.bf16.mxu0 0
        %7732 = vmatmul.mubr.bf16.gmra.mxu0 %v7611
        %v7733 = vpop.f32.mrf.mxu0
        %v7734 = vadd.f32 0.0, %v7733
        %v7735 = vpop.f32.mrf.mxu0
        %v7736 = vpop.f32.mrf.mxu0
        %v7737 = vadd.f32 0.0, %v7736
        %v7738 = vpop.f32.mrf.mxu0
        %7739 = vmatprep.mubr.bf16.mxu0 0
        %7740 = vmatmul.mubr.bf16.gmra.mxu0 %v7612
        %v7741 = vpop.f32.mrf.mxu0
        %v7742 = vadd.f32 0.0, %v7741
        %v7743 = vpop.f32.mrf.mxu0
        %v7744 = vpop.f32.mrf.mxu0
        %v7745 = vadd.f32 0.0, %v7744
        %v7746 = vpop.f32.mrf.mxu0
        %7747 = vmatprep.mubr.bf16.mxu0 0
        %7748 = vmatmul.mubr.bf16.gmra.mxu0 %v7613
        %v7749 = vpop.f32.mrf.mxu0
        %v7750 = vadd.f32 0.0, %v7749
        %v7751 = vpop.f32.mrf.mxu0
        %v7752 = vpop.f32.mrf.mxu0
        %v7753 = vadd.f32 0.0, %v7752
        %v7754 = vpop.f32.mrf.mxu0
        %7755 = vmatprep.mubr.bf16.mxu0 0
        %7756 = vmatmul.mubr.bf16.gmra.mxu0 %v7614
        %v7757 = vpop.f32.mrf.mxu0
        %v7758 = vadd.f32 0.0, %v7757
        %v7759 = vpop.f32.mrf.mxu0
        %v7760 = vpop.f32.mrf.mxu0
        %v7761 = vadd.f32 0.0, %v7760
        %v7762 = vpop.f32.mrf.mxu0
        %7763 = vmatprep.mubr.bf16.mxu0 0
        %7764 = vmatmul.mubr.bf16.gmra.mxu0 %v7615
        %v7765 = vpop.f32.mrf.mxu0
        %v7766 = vadd.f32 0.0, %v7765
        %v7767 = vpop.f32.mrf.mxu0
        %v7768 = vpop.f32.mrf.mxu0
        %v7769 = vadd.f32 0.0, %v7768
        %v7770 = vpop.f32.mrf.mxu0
        %7771 = vmatprep.mubr.bf16.mxu0 0
        %7772 = vmatmul.mubr.bf16.gmra.mxu0 %v7616
        %v7773 = vpop.f32.mrf.mxu0
        %v7774 = vadd.f32 0.0, %v7773
        %v7775 = vpop.f32.mrf.mxu0
        %v7776 = vpop.f32.mrf.mxu0
        %v7777 = vadd.f32 0.0, %v7776
        %v7778 = vpop.f32.mrf.mxu0
        %7779 = vmatprep.mubr.bf16.mxu0 0
        %7780 = vmatmul.mubr.bf16.gmra.mxu0 %v7617
        %v7781 = vpop.f32.mrf.mxu0
        %v7782 = vadd.f32 0.0, %v7781
        %v7783 = vpop.f32.mrf.mxu0
        %v7784 = vpop.f32.mrf.mxu0
        %v7785 = vadd.f32 0.0, %v7784
        %v7786 = vpop.f32.mrf.mxu0
        %7787 = vmatprep.mubr.bf16.mxu0 0
        %7788 = vmatmul.mubr.bf16.gmra.mxu0 %v7618
        %v7789 = vpop.f32.mrf.mxu0
        %v7790 = vadd.f32 0.0, %v7789
        %v7791 = vpop.f32.mrf.mxu0
        %v7792 = vpop.f32.mrf.mxu0
        %v7793 = vadd.f32 0.0, %v7792
        %v7794 = vpop.f32.mrf.mxu0
        %7795 = vmatprep.mubr.bf16.mxu0 0
        %7796 = vmatmul.mubr.bf16.gmra.mxu0 %v7619
        %v7797 = vpop.f32.mrf.mxu0
        %v7798 = vadd.f32 0.0, %v7797
        %v7799 = vpop.f32.mrf.mxu0
        %v7800 = vpop.f32.mrf.mxu0
        %v7801 = vadd.f32 0.0, %v7800
        %v7802 = vpop.f32.mrf.mxu0
        %7803 = vmatprep.mubr.bf16.mxu0 0
        %7804 = vmatmul.mubr.bf16.gmra.mxu0 %v7620
        %v7805 = vpop.f32.mrf.mxu0
        %v7806 = vadd.f32 0.0, %v7805
        %v7807 = vpop.f32.mrf.mxu0
        %v7808 = vpop.f32.mrf.mxu0
        %v7809 = vadd.f32 0.0, %v7808
        %v7810 = vpop.f32.mrf.mxu0
        %7811 = vmatprep.mubr.bf16.mxu0 0
        %7812 = vmatmul.mubr.bf16.gmra.mxu0 %v7621
        %v7813 = vpop.f32.mrf.mxu0
        %v7814 = vadd.f32 0.0, %v7813
        %v7815 = vpop.f32.mrf.mxu0
        %v7816 = vpop.f32.mrf.mxu0
        %v7817 = vadd.f32 0.0, %v7816
        %v7818 = vpop.f32.mrf.mxu0
        %7819 = vmatprep.mubr.bf16.mxu0 0
        %7820 = vmatmul.mubr.bf16.gmra.mxu0 %v7622
        %v7821 = vpop.f32.mrf.mxu0
        %v7822 = vadd.f32 0.0, %v7821
        %v7823 = vpop.f32.mrf.mxu0
        %v7824 = vpop.f32.mrf.mxu0
        %v7825 = vadd.f32 0.0, %v7824
        %v7826 = vpop.f32.mrf.mxu0
        %7827 = vmatprep.mubr.bf16.mxu0 0
        %7828 = vmatmul.mubr.bf16.gmra.mxu0 %v7623
        %v7829 = vpop.f32.mrf.mxu0
        %v7830 = vadd.f32 0.0, %v7829
        %v7831 = vpop.f32.mrf.mxu0
        %v7832 = vpop.f32.mrf.mxu0
        %v7833 = vadd.f32 0.0, %v7832
        %v7834 = vpop.f32.mrf.mxu0
        %7835 = vmatprep.mubr.bf16.mxu0 0
        %7836 = vmatmul.mubr.bf16.gmra.mxu0 %v7624
        %v7837 = vpop.f32.mrf.mxu0
        %v7838 = vadd.f32 0.0, %v7837
        %v7839 = vpop.f32.mrf.mxu0
        %v7840 = vpop.f32.mrf.mxu0
        %v7841 = vadd.f32 0.0, %v7840
        %v7842 = vpop.f32.mrf.mxu0
        %7843 = vmatprep.mubr.bf16.mxu0 0
        %7844 = vmatmul.mubr.bf16.gmra.mxu0 %v7625
        %v7845 = vpop.f32.mrf.mxu0
        %v7846 = vadd.f32 0.0, %v7845
        %v7847 = vpop.f32.mrf.mxu0
        %v7848 = vpop.f32.mrf.mxu0
        %v7849 = vadd.f32 0.0, %v7848
        %v7850 = vpop.f32.mrf.mxu0
        %7851 = vdwg.mxu0
        %v7852 = vadd.f32 %v7546, %v7726
        %v7853 = vadd.f32 %v7547, %v7729
        %v7854 = vadd.f32 %v7548, %v7734
        %v7855 = vadd.f32 %v7549, %v7737
        %v7856 = vadd.f32 %v7550, %v7742
        %v7857 = vadd.f32 %v7551, %v7745
        %v7858 = vadd.f32 %v7552, %v7750
        %v7859 = vadd.f32 %v7553, %v7753
        %v7860 = vadd.f32 %v7554, %v7758
        %v7861 = vadd.f32 %v7555, %v7761
        %v7862 = vadd.f32 %v7556, %v7766
        %v7863 = vadd.f32 %v7557, %v7769
        %v7864 = vadd.f32 %v7558, %v7774
        %v7865 = vadd.f32 %v7559, %v7777
        %v7866 = vadd.f32 %v7560, %v7782
        %v7867 = vadd.f32 %v7561, %v7785
        %v7868 = vadd.f32 %v7562, %v7790
        %v7869 = vadd.f32 %v7563, %v7793
        %v7870 = vadd.f32 %v7564, %v7798
        %v7871 = vadd.f32 %v7565, %v7801
        %v7872 = vadd.f32 %v7566, %v7806
        %v7873 = vadd.f32 %v7567, %v7809
        %v7874 = vadd.f32 %v7568, %v7814
        %v7875 = vadd.f32 %v7569, %v7817
        %v7876 = vadd.f32 %v7570, %v7822
        %v7877 = vadd.f32 %v7571, %v7825
        %v7878 = vadd.f32 %v7572, %v7830
        %v7879 = vadd.f32 %v7573, %v7833
        %v7880 = vadd.f32 %v7574, %v7838
        %v7881 = vadd.f32 %v7575, %v7841
        %v7882 = vadd.f32 %v7576, %v7846
        %v7883 = vadd.f32 %v7577, %v7849
        %v7884 = vld [vmem:[%s309 + $0x2a] sm:$0xff]
        %v7885 = vld [vmem:[%s309 + $0x32] sm:$0xff]
        %v7886 = vld [vmem:[%s309 + $0x3a] sm:$0xff]
        %v7887 = vld [vmem:[%s309 + $0x42] sm:$0xff]
        %v7888 = vld [vmem:[%s309 + $0x4a] sm:$0xff]
        %v7889 = vld [vmem:[%s309 + $0x52] sm:$0xff]
        %v7890 = vld [vmem:[%s309 + $0x5a] sm:$0xff]
        %v7891 = vld [vmem:[%s309 + $0x62] sm:$0xff]
        %v7892 = vld [vmem:[%s309 + $0x6a] sm:$0xff]
        %v7893 = vld [vmem:[%s309 + $0x72] sm:$0xff]
        %v7894 = vld [vmem:[%s309 + $0x7a] sm:$0xff]
        %v7895 = vld [vmem:[%s309 + $0x82] sm:$0xff]
        %v7896 = vld [vmem:[%s309 + $0x8a] sm:$0xff]
        %v7897 = vld [vmem:[%s309 + $0x92] sm:$0xff]
        %v7898 = vld [vmem:[%s309 + $0x9a] sm:$0xff]
        %v7899 = vld [vmem:[%s309 + $0xa2] sm:$0xff]
        %v7900 = vld [vmem:[%s309 + $0xaa] sm:$0xff]
        %v7901 = vld [vmem:[%s309 + $0xb2] sm:$0xff]
        %v7902 = vld [vmem:[%s309 + $0xba] sm:$0xff]
        %v7903 = vld [vmem:[%s309 + $0xc2] sm:$0xff]
        %v7904 = vld [vmem:[%s309 + $0xca] sm:$0xff]
        %v7905 = vld [vmem:[%s309 + $0xd2] sm:$0xff]
        %v7906 = vld [vmem:[%s309 + $0xda] sm:$0xff]
        %v7907 = vld [vmem:[%s309 + $0xe2] sm:$0xff]
        %v7908 = vld [vmem:[%s309 + $0xea] sm:$0xff]
        %v7909 = vld [vmem:[%s309 + $0xf2] sm:$0xff]
        %v7910 = vld [vmem:[%s309 + $0xfa] sm:$0xff]
        %v7911 = vld [vmem:[%s309 + $0x102] sm:$0xff]
        %v7912 = vld [vmem:[%s309 + $0x10a] sm:$0xff]
        %v7913 = vld [vmem:[%s309 + $0x112] sm:$0xff]
        %v7914 = vld [vmem:[%s309 + $0x11a] sm:$0xff]
        %v7915 = vld [vmem:[%s309 + $0x122] sm:$0xff]
        %v7917 = vlaneseq
        %v7918 = vshrl.u32 %v7917, 7
        %v7919 = vsub.s32 0, %v7918
        %v7920 = vrot.slane %v358, %v7919
        %v7922 = vmul.f32 %v7852, %v7920
        %v7923 = vmul.f32 %v7853, %v7920
        %v7924 = vmul.f32 %v7854, %v7920
        %v7925 = vmul.f32 %v7855, %v7920
        %v7926 = vmul.f32 %v7856, %v7920
        %v7927 = vmul.f32 %v7857, %v7920
        %v7928 = vmul.f32 %v7858, %v7920
        %v7929 = vmul.f32 %v7859, %v7920
        %v7930 = vmul.f32 %v7860, %v7920
        %v7931 = vmul.f32 %v7861, %v7920
        %v7932 = vmul.f32 %v7862, %v7920
        %v7933 = vmul.f32 %v7863, %v7920
        %v7934 = vmul.f32 %v7864, %v7920
        %v7935 = vmul.f32 %v7865, %v7920
        %v7936 = vmul.f32 %v7866, %v7920
        %v7937 = vmul.f32 %v7867, %v7920
        %v7938 = vmul.f32 %v7868, %v7920
        %v7939 = vmul.f32 %v7869, %v7920
        %v7940 = vmul.f32 %v7870, %v7920
        %v7941 = vmul.f32 %v7871, %v7920
        %v7942 = vmul.f32 %v7872, %v7920
        %v7943 = vmul.f32 %v7873, %v7920
        %v7944 = vmul.f32 %v7874, %v7920
        %v7945 = vmul.f32 %v7875, %v7920
        %v7946 = vmul.f32 %v7876, %v7920
        %v7947 = vmul.f32 %v7877, %v7920
        %v7948 = vmul.f32 %v7878, %v7920
        %v7949 = vmul.f32 %v7879, %v7920
        %v7950 = vmul.f32 %v7880, %v7920
        %v7951 = vmul.f32 %v7881, %v7920
        %v7952 = vmul.f32 %v7882, %v7920
        %v7953 = vmul.f32 %v7883, %v7920
        %v7955 = vlaneseq
        %v7956 = vshrl.u32 %v7955, 7
        %v7957 = vsub.s32 0, %v7956
        %v7958 = vrot.slane %v359, %v7957
        %v7960 = vadd.f32 %v7922, %v7958
        %v7961 = vadd.f32 %v7923, %v7958
        %v7962 = vadd.f32 %v7924, %v7958
        %v7963 = vadd.f32 %v7925, %v7958
        %v7964 = vadd.f32 %v7926, %v7958
        %v7965 = vadd.f32 %v7927, %v7958
        %v7966 = vadd.f32 %v7928, %v7958
        %v7967 = vadd.f32 %v7929, %v7958
        %v7968 = vadd.f32 %v7930, %v7958
        %v7969 = vadd.f32 %v7931, %v7958
        %v7970 = vadd.f32 %v7932, %v7958
        %v7971 = vadd.f32 %v7933, %v7958
        %v7972 = vadd.f32 %v7934, %v7958
        %v7973 = vadd.f32 %v7935, %v7958
        %v7974 = vadd.f32 %v7936, %v7958
        %v7975 = vadd.f32 %v7937, %v7958
        %v7976 = vadd.f32 %v7938, %v7958
        %v7977 = vadd.f32 %v7939, %v7958
        %v7978 = vadd.f32 %v7940, %v7958
        %v7979 = vadd.f32 %v7941, %v7958
        %v7980 = vadd.f32 %v7942, %v7958
        %v7981 = vadd.f32 %v7943, %v7958
        %v7982 = vadd.f32 %v7944, %v7958
        %v7983 = vadd.f32 %v7945, %v7958
        %v7984 = vadd.f32 %v7946, %v7958
        %v7985 = vadd.f32 %v7947, %v7958
        %v7986 = vadd.f32 %v7948, %v7958
        %v7987 = vadd.f32 %v7949, %v7958
        %v7988 = vadd.f32 %v7950, %v7958
        %v7989 = vadd.f32 %v7951, %v7958
        %v7990 = vadd.f32 %v7952, %v7958
        %v7991 = vadd.f32 %v7953, %v7958
        %v7992 = vadd.f32 %v7960, %v7884
        %v7993 = vadd.f32 %v7961, %v7885
        %v7994 = vadd.f32 %v7962, %v7886
        %v7995 = vadd.f32 %v7963, %v7887
        %v7996 = vadd.f32 %v7964, %v7888
        %v7997 = vadd.f32 %v7965, %v7889
        %v7998 = vadd.f32 %v7966, %v7890
        %v7999 = vadd.f32 %v7967, %v7891
        %v8000 = vadd.f32 %v7968, %v7892
        %v8001 = vadd.f32 %v7969, %v7893
        %v8002 = vadd.f32 %v7970, %v7894
        %v8003 = vadd.f32 %v7971, %v7895
        %v8004 = vadd.f32 %v7972, %v7896
        %v8005 = vadd.f32 %v7973, %v7897
        %v8006 = vadd.f32 %v7974, %v7898
        %v8007 = vadd.f32 %v7975, %v7899
        %v8008 = vadd.f32 %v7976, %v7900
        %v8009 = vadd.f32 %v7977, %v7901
        %v8010 = vadd.f32 %v7978, %v7902
        %v8011 = vadd.f32 %v7979, %v7903
        %v8012 = vadd.f32 %v7980, %v7904
        %v8013 = vadd.f32 %v7981, %v7905
        %v8014 = vadd.f32 %v7982, %v7906
        %v8015 = vadd.f32 %v7983, %v7907
        %v8016 = vadd.f32 %v7984, %v7908
        %v8017 = vadd.f32 %v7985, %v7909
        %v8018 = vadd.f32 %v7986, %v7910
        %v8019 = vadd.f32 %v7987, %v7911
        %v8020 = vadd.f32 %v7988, %v7912
        %v8021 = vadd.f32 %v7989, %v7913
        %v8022 = vadd.f32 %v7990, %v7914
        %v8023 = vadd.f32 %v7991, %v7915
        %v8024 = vmax.f32 %v7992, 0.0
        %v8025 = vmax.f32 %v7993, 0.0
        %v8026 = vmax.f32 %v7994, 0.0
        %v8027 = vmax.f32 %v7995, 0.0
        %v8028 = vmax.f32 %v7996, 0.0
        %v8029 = vmax.f32 %v7997, 0.0
        %v8030 = vmax.f32 %v7998, 0.0
        %v8031 = vmax.f32 %v7999, 0.0
        %v8032 = vmax.f32 %v8000, 0.0
        %v8033 = vmax.f32 %v8001, 0.0
        %v8034 = vmax.f32 %v8002, 0.0
        %v8035 = vmax.f32 %v8003, 0.0
        %v8036 = vmax.f32 %v8004, 0.0
        %v8037 = vmax.f32 %v8005, 0.0
        %v8038 = vmax.f32 %v8006, 0.0
        %v8039 = vmax.f32 %v8007, 0.0
        %v8040 = vmax.f32 %v8008, 0.0
        %v8041 = vmax.f32 %v8009, 0.0
        %v8042 = vmax.f32 %v8010, 0.0
        %v8043 = vmax.f32 %v8011, 0.0
        %v8044 = vmax.f32 %v8012, 0.0
        %v8045 = vmax.f32 %v8013, 0.0
        %v8046 = vmax.f32 %v8014, 0.0
        %v8047 = vmax.f32 %v8015, 0.0
        %v8048 = vmax.f32 %v8016, 0.0
        %v8049 = vmax.f32 %v8017, 0.0
        %v8050 = vmax.f32 %v8018, 0.0
        %v8051 = vmax.f32 %v8019, 0.0
        %v8052 = vmax.f32 %v8020, 0.0
        %v8053 = vmax.f32 %v8021, 0.0
        %v8054 = vmax.f32 %v8022, 0.0
        %v8055 = vmax.f32 %v8023, 0.0
        %8056 = vst [vmem:[%s354] sm:$0xff] %v8024
        %8057 = vst [vmem:[%s354 + $0x8] sm:$0xff] %v8025
        %8058 = vst [vmem:[%s354 + $0x10] sm:$0xff] %v8026
        %8059 = vst [vmem:[%s354 + $0x18] sm:$0xff] %v8027
        %8060 = vst [vmem:[%s354 + $0x20] sm:$0xff] %v8028
        %8061 = vst [vmem:[%s354 + $0x28] sm:$0xff] %v8029
        %8062 = vst [vmem:[%s354 + $0x30] sm:$0xff] %v8030
        %8063 = vst [vmem:[%s354 + $0x38] sm:$0xff] %v8031
        %8064 = vst [vmem:[%s354 + $0x40] sm:$0xff] %v8032
        %8065 = vst [vmem:[%s354 + $0x48] sm:$0xff] %v8033
        %8066 = vst [vmem:[%s354 + $0x50] sm:$0xff] %v8034
        %8067 = vst [vmem:[%s354 + $0x58] sm:$0xff] %v8035
        %8068 = vst [vmem:[%s354 + $0x60] sm:$0xff] %v8036
        %8069 = vst [vmem:[%s354 + $0x68] sm:$0xff] %v8037
        %8070 = vst [vmem:[%s354 + $0x70] sm:$0xff] %v8038
        %8071 = vst [vmem:[%s354 + $0x78] sm:$0xff] %v8039
        %8072 = vst [vmem:[%s354 + $0x80] sm:$0xff] %v8040
        %8073 = vst [vmem:[%s354 + $0x88] sm:$0xff] %v8041
        %8074 = vst [vmem:[%s354 + $0x90] sm:$0xff] %v8042
        %8075 = vst [vmem:[%s354 + $0x98] sm:$0xff] %v8043
        %8076 = vst [vmem:[%s354 + $0xa0] sm:$0xff] %v8044
        %8077 = vst [vmem:[%s354 + $0xa8] sm:$0xff] %v8045
        %8078 = vst [vmem:[%s354 + $0xb0] sm:$0xff] %v8046
        %8079 = vst [vmem:[%s354 + $0xb8] sm:$0xff] %v8047
        %8080 = vst [vmem:[%s354 + $0xc0] sm:$0xff] %v8048
        %8081 = vst [vmem:[%s354 + $0xc8] sm:$0xff] %v8049
        %8082 = vst [vmem:[%s354 + $0xd0] sm:$0xff] %v8050
        %8083 = vst [vmem:[%s354 + $0xd8] sm:$0xff] %v8051
        %8084 = vst [vmem:[%s354 + $0xe0] sm:$0xff] %v8052
        %8085 = vst [vmem:[%s354 + $0xe8] sm:$0xff] %v8053
        %8086 = vst [vmem:[%s354 + $0xf0] sm:$0xff] %v8054
        %8087 = vst [vmem:[%s354 + $0xf8] sm:$0xff] %v8055
        %v8088 = vld [vmem:[#allocation2 + $0x100] sm:$0xff]
        %v8089 = vld [vmem:[#allocation2 + $0x108] sm:$0xff]
        %v8090 = vld [vmem:[#allocation2 + $0x110] sm:$0xff]
        %v8091 = vld [vmem:[#allocation2 + $0x118] sm:$0xff]
        %v8092 = vld [vmem:[#allocation2 + $0x120] sm:$0xff]
        %v8093 = vld [vmem:[#allocation2 + $0x128] sm:$0xff]
        %v8094 = vld [vmem:[#allocation2 + $0x130] sm:$0xff]
        %v8095 = vld [vmem:[#allocation2 + $0x138] sm:$0xf]
        %v8096 = vpack.c.bf16 %v8089, %v8088
        %v8097 = vpack.c.bf16 %v8091, %v8090
        %v8098 = vpack.c.bf16 %v8093, %v8092
        %v8099 = vpack.c.bf16 %v8095, %v8094
        %v8100 = vld [vmem:[#allocation7] sm:$0xf]
        %v8101 = vld [vmem:[#allocation7 + $0x4] sm:$0xf]
        %v8102 = vld [vmem:[#allocation7 + $0x8] sm:$0xf]
        %v8103 = vld [vmem:[#allocation7 + $0xc] sm:$0xf]
        %v8104 = vld [vmem:[#allocation7 + $0x10] sm:$0xf]
        %v8105 = vld [vmem:[#allocation7 + $0x14] sm:$0xf]
        %v8106 = vld [vmem:[#allocation7 + $0x18] sm:$0xf]
        %v8107 = vld [vmem:[#allocation7 + $0x1c] sm:$0xf]
        %v8108 = vld [vmem:[#allocation7 + $0x20] sm:$0xf]
        %v8109 = vld [vmem:[#allocation7 + $0x24] sm:$0xf]
        %v8110 = vld [vmem:[#allocation7 + $0x28] sm:$0xf]
        %v8111 = vld [vmem:[#allocation7 + $0x2c] sm:$0xf]
        %v8112 = vld [vmem:[#allocation7 + $0x30] sm:$0xf]
        %v8113 = vld [vmem:[#allocation7 + $0x34] sm:$0xf]
        %v8114 = vld [vmem:[#allocation7 + $0x38] sm:$0xf]
        %v8115 = vld [vmem:[#allocation7 + $0x3c] sm:$0xf]
        %v8116 = vld [vmem:[#allocation2 + $0x101] sm:$0xff]
        %v8117 = vld [vmem:[#allocation2 + $0x109] sm:$0xff]
        %v8118 = vld [vmem:[#allocation2 + $0x111] sm:$0xff]
        %v8119 = vld [vmem:[#allocation2 + $0x119] sm:$0xff]
        %v8120 = vld [vmem:[#allocation2 + $0x121] sm:$0xff]
        %v8121 = vld [vmem:[#allocation2 + $0x129] sm:$0xff]
        %v8122 = vld [vmem:[#allocation2 + $0x131] sm:$0xff]
        %v8123 = vld [vmem:[#allocation2 + $0x139] sm:$0xf]
        %v8124 = vpack.c.bf16 %v8117, %v8116
        %v8125 = vpack.c.bf16 %v8119, %v8118
        %v8126 = vpack.c.bf16 %v8121, %v8120
        %v8127 = vpack.c.bf16 %v8123, %v8122
        %v8128 = vld [vmem:[%s5307] sm:$0xf]
        %v8129 = vld [vmem:[%s5307 + $0x4] sm:$0xf]
        %v8130 = vld [vmem:[%s5307 + $0x8] sm:$0xf]
        %v8131 = vld [vmem:[%s5307 + $0xc] sm:$0xf]
        %v8132 = vld [vmem:[%s5307 + $0x10] sm:$0xf]
        %v8133 = vld [vmem:[%s5307 + $0x14] sm:$0xf]
        %v8134 = vld [vmem:[%s5307 + $0x18] sm:$0xf]
        %v8135 = vld [vmem:[%s5307 + $0x1c] sm:$0xf]
        %v8136 = vld [vmem:[%s5307 + $0x20] sm:$0xf]
        %v8137 = vld [vmem:[%s5307 + $0x24] sm:$0xf]
        %v8138 = vld [vmem:[%s5307 + $0x28] sm:$0xf]
        %v8139 = vld [vmem:[%s5307 + $0x2c] sm:$0xf]
        %v8140 = vld [vmem:[%s5307 + $0x30] sm:$0xf]
        %v8141 = vld [vmem:[%s5307 + $0x34] sm:$0xf]
        %v8142 = vld [vmem:[%s5307 + $0x38] sm:$0xf]
        %v8143 = vld [vmem:[%s5307 + $0x3c] sm:$0xf]
        %v8160 = vunpack.c.l.b16 %v8128
        %v8161 = vunpack.c.l.b16 %v8129
        %v8162 = vunpack.c.l.b16 %v8130
        %v8163 = vunpack.c.l.b16 %v8131
        %v8164 = vunpack.c.l.b16 %v8132
        %v8165 = vunpack.c.l.b16 %v8133
        %v8166 = vunpack.c.l.b16 %v8134
        %v8167 = vunpack.c.l.b16 %v8135
        %v8168 = vunpack.c.l.b16 %v8136
        %v8169 = vunpack.c.l.b16 %v8137
        %v8170 = vunpack.c.l.b16 %v8138
        %v8171 = vunpack.c.l.b16 %v8139
        %v8172 = vunpack.c.l.b16 %v8140
        %v8173 = vunpack.c.l.b16 %v8141
        %v8174 = vunpack.c.l.b16 %v8142
        %v8175 = vunpack.c.l.b16 %v8143
        %v8176 = vpack.c.b16 %v8161, %v8160
        %v8177 = vpack.c.b16 %v8163, %v8162
        %v8178 = vpack.c.b16 %v8165, %v8164
        %v8179 = vpack.c.b16 %v8167, %v8166
        %v8180 = vpack.c.b16 %v8169, %v8168
        %v8181 = vpack.c.b16 %v8171, %v8170
        %v8182 = vpack.c.b16 %v8173, %v8172
        %v8183 = vpack.c.b16 %v8175, %v8174
        %8192 = vmatprep.subr.bf16.mxu0 0
        %8193 = vmatpush1.bf16.msra.mxu0 %v8183
        %8194 = vmatprep.subr.bf16.mxu0 0
        %8195 = vmatpush1.bf16.msra.mxu0 %v8182
        %8196 = vmatprep.subr.bf16.mxu0 0
        %8197 = vmatpush1.bf16.msra.mxu0 %v8181
        %8198 = vmatprep.subr.bf16.mxu0 0
        %8199 = vmatpush1.bf16.msra.mxu0 %v8180
        %8200 = vmatprep.subr.bf16.mxu0 0
        %8201 = vmatpush1.bf16.msra.mxu0 %v8179
        %8202 = vmatprep.subr.bf16.mxu0 0
        %8203 = vmatpush1.bf16.msra.mxu0 %v8178
        %8204 = vmatprep.subr.bf16.mxu0 0
        %8205 = vmatpush1.bf16.msra.mxu0 %v8177
        %8206 = vmatprep.subr.bf16.mxu0 0
        %8207 = vmatpush1.bf16.msra.mxu0 %v8176
        %8208 = vmatprep.subr.bf16.mxu0 0
        %8209 = vmatpush2.bf16.msra.mxu0 0
        %8210 = vmatprep.subr.bf16.mxu0 0
        %8211 = vmatpush2.bf16.msra.mxu0 0
        %8212 = vmatprep.subr.bf16.mxu0 0
        %8213 = vmatpush2.bf16.msra.mxu0 0
        %8214 = vmatprep.subr.bf16.mxu0 0
        %8215 = vmatpush2.bf16.msra.mxu0 0
        %8216 = vmatprep.subr.bf16.mxu0 0
        %8217 = vmatpush2.bf16.msra.mxu0 0
        %8218 = vmatprep.subr.bf16.mxu0 0
        %8219 = vmatpush2.bf16.msra.mxu0 0
        %8220 = vmatprep.subr.bf16.mxu0 0
        %8221 = vmatpush2.bf16.msra.mxu0 0
        %8222 = vmatprep.subr.bf16.mxu0 0
        %8223 = vmatpush2.bf16.msra.mxu0 0
        %8224 = vmatprep.mubr.bf16.mxu0 0
        %8225 = vmatmul.mubr.bf16.gmra.mxu0 %v8124
        %v8226 = vpop.f32.mrf.mxu0
        %v8227 = vadd.f32 0.0, %v8226
        %v8228 = vpop.f32.mrf.mxu0
        %v8229 = vpop.f32.mrf.mxu0
        %v8230 = vadd.f32 0.0, %v8229
        %v8231 = vpop.f32.mrf.mxu0
        %8232 = vmatprep.mubr.bf16.mxu0 0
        %8233 = vmatmul.mubr.bf16.gmra.mxu0 %v8125
        %v8234 = vpop.f32.mrf.mxu0
        %v8235 = vadd.f32 0.0, %v8234
        %v8236 = vpop.f32.mrf.mxu0
        %v8237 = vpop.f32.mrf.mxu0
        %v8238 = vadd.f32 0.0, %v8237
        %v8239 = vpop.f32.mrf.mxu0
        %8240 = vmatprep.mubr.bf16.mxu0 0
        %8241 = vmatmul.mubr.bf16.gmra.mxu0 %v8126
        %v8242 = vpop.f32.mrf.mxu0
        %v8243 = vadd.f32 0.0, %v8242
        %v8244 = vpop.f32.mrf.mxu0
        %v8245 = vpop.f32.mrf.mxu0
        %v8246 = vadd.f32 0.0, %v8245
        %v8247 = vpop.f32.mrf.mxu0
        %8248 = vmatprep.mubr.bf16.mxu0 0
        %8249 = vmatmul.mubr.bf16.gmra.mxu0 %v8127
        %v8250 = vpop.f32.mrf.mxu0
        %v8251 = vadd.f32 0.0, %v8250
        %v8252 = vpop.f32.mrf.mxu0
        %v8253 = vpop.f32.mrf.mxu0
        %v8254 = vadd.f32 0.0, %v8253
        %v8255 = vpop.f32.mrf.mxu0
        %8256 = vdwg.mxu0
        %v8273 = vunpack.c.l.b16 %v8100
        %v8274 = vunpack.c.l.b16 %v8101
        %v8275 = vunpack.c.l.b16 %v8102
        %v8276 = vunpack.c.l.b16 %v8103
        %v8277 = vunpack.c.l.b16 %v8104
        %v8278 = vunpack.c.l.b16 %v8105
        %v8279 = vunpack.c.l.b16 %v8106
        %v8280 = vunpack.c.l.b16 %v8107
        %v8281 = vunpack.c.l.b16 %v8108
        %v8282 = vunpack.c.l.b16 %v8109
        %v8283 = vunpack.c.l.b16 %v8110
        %v8284 = vunpack.c.l.b16 %v8111
        %v8285 = vunpack.c.l.b16 %v8112
        %v8286 = vunpack.c.l.b16 %v8113
        %v8287 = vunpack.c.l.b16 %v8114
        %v8288 = vunpack.c.l.b16 %v8115
        %v8289 = vpack.c.b16 %v8274, %v8273
        %v8290 = vpack.c.b16 %v8276, %v8275
        %v8291 = vpack.c.b16 %v8278, %v8277
        %v8292 = vpack.c.b16 %v8280, %v8279
        %v8293 = vpack.c.b16 %v8282, %v8281
        %v8294 = vpack.c.b16 %v8284, %v8283
        %v8295 = vpack.c.b16 %v8286, %v8285
        %v8296 = vpack.c.b16 %v8288, %v8287
        %8305 = vmatprep.subr.bf16.mxu0 0
        %8306 = vmatpush1.bf16.msra.mxu0 %v8296
        %8307 = vmatprep.subr.bf16.mxu0 0
        %8308 = vmatpush1.bf16.msra.mxu0 %v8295
        %8309 = vmatprep.subr.bf16.mxu0 0
        %8310 = vmatpush1.bf16.msra.mxu0 %v8294
        %8311 = vmatprep.subr.bf16.mxu0 0
        %8312 = vmatpush1.bf16.msra.mxu0 %v8293
        %8313 = vmatprep.subr.bf16.mxu0 0
        %8314 = vmatpush1.bf16.msra.mxu0 %v8292
        %8315 = vmatprep.subr.bf16.mxu0 0
        %8316 = vmatpush1.bf16.msra.mxu0 %v8291
        %8317 = vmatprep.subr.bf16.mxu0 0
        %8318 = vmatpush1.bf16.msra.mxu0 %v8290
        %8319 = vmatprep.subr.bf16.mxu0 0
        %8320 = vmatpush1.bf16.msra.mxu0 %v8289
        %8321 = vmatprep.subr.bf16.mxu0 0
        %8322 = vmatpush2.bf16.msra.mxu0 0
        %8323 = vmatprep.subr.bf16.mxu0 0
        %8324 = vmatpush2.bf16.msra.mxu0 0
        %8325 = vmatprep.subr.bf16.mxu0 0
        %8326 = vmatpush2.bf16.msra.mxu0 0
        %8327 = vmatprep.subr.bf16.mxu0 0
        %8328 = vmatpush2.bf16.msra.mxu0 0
        %8329 = vmatprep.subr.bf16.mxu0 0
        %8330 = vmatpush2.bf16.msra.mxu0 0
        %8331 = vmatprep.subr.bf16.mxu0 0
        %8332 = vmatpush2.bf16.msra.mxu0 0
        %8333 = vmatprep.subr.bf16.mxu0 0
        %8334 = vmatpush2.bf16.msra.mxu0 0
        %8335 = vmatprep.subr.bf16.mxu0 0
        %8336 = vmatpush2.bf16.msra.mxu0 0
        %8337 = vmatprep.mubr.bf16.mxu0 0
        %8338 = vmatmul.mubr.bf16.gmra.mxu0 %v8096
        %v8339 = vpop.f32.mrf.mxu0
        %v8340 = vadd.f32 %v8227, %v8339
        %v8341 = vpop.f32.mrf.mxu0
        %v8342 = vpop.f32.mrf.mxu0
        %v8343 = vadd.f32 %v8230, %v8342
        %v8344 = vpop.f32.mrf.mxu0
        %8345 = vmatprep.mubr.bf16.mxu0 0
        %8346 = vmatmul.mubr.bf16.gmra.mxu0 %v8097
        %v8347 = vpop.f32.mrf.mxu0
        %v8348 = vadd.f32 %v8235, %v8347
        %v8349 = vpop.f32.mrf.mxu0
        %v8350 = vpop.f32.mrf.mxu0
        %v8351 = vadd.f32 %v8238, %v8350
        %v8352 = vpop.f32.mrf.mxu0
        %8353 = vmatprep.mubr.bf16.mxu0 0
        %8354 = vmatmul.mubr.bf16.gmra.mxu0 %v8098
        %v8355 = vpop.f32.mrf.mxu0
        %v8356 = vadd.f32 %v8243, %v8355
        %v8357 = vpop.f32.mrf.mxu0
        %v8358 = vpop.f32.mrf.mxu0
        %v8359 = vadd.f32 %v8246, %v8358
        %v8360 = vpop.f32.mrf.mxu0
        %8361 = vmatprep.mubr.bf16.mxu0 0
        %8362 = vmatmul.mubr.bf16.gmra.mxu0 %v8099
        %v8363 = vpop.f32.mrf.mxu0
        %v8364 = vadd.f32 %v8251, %v8363
        %v8365 = vpop.f32.mrf.mxu0
        %v8366 = vpop.f32.mrf.mxu0
        %v8367 = vadd.f32 %v8254, %v8366
        %v8368 = vpop.f32.mrf.mxu0
        %8369 = vdwg.mxu0
        %v8370 = vld [vmem:[#allocation2 + $0x102] sm:$0xff]
        %v8371 = vld [vmem:[#allocation2 + $0x10a] sm:$0xff]
        %v8372 = vld [vmem:[#allocation2 + $0x112] sm:$0xff]
        %v8373 = vld [vmem:[#allocation2 + $0x11a] sm:$0xff]
        %v8374 = vld [vmem:[#allocation2 + $0x122] sm:$0xff]
        %v8375 = vld [vmem:[#allocation2 + $0x12a] sm:$0xff]
        %v8376 = vld [vmem:[#allocation2 + $0x132] sm:$0xff]
        %v8377 = vld [vmem:[#allocation2 + $0x13a] sm:$0xf]
        %v8378 = vpack.c.bf16 %v8371, %v8370
        %v8379 = vpack.c.bf16 %v8373, %v8372
        %v8380 = vpack.c.bf16 %v8375, %v8374
        %v8381 = vpack.c.bf16 %v8377, %v8376
        %v8382 = vld [vmem:[%s5790] sm:$0xf]
        %v8383 = vld [vmem:[%s5790 + $0x4] sm:$0xf]
        %v8384 = vld [vmem:[%s5790 + $0x8] sm:$0xf]
        %v8385 = vld [vmem:[%s5790 + $0xc] sm:$0xf]
        %v8386 = vld [vmem:[%s5790 + $0x10] sm:$0xf]
        %v8387 = vld [vmem:[%s5790 + $0x14] sm:$0xf]
        %v8388 = vld [vmem:[%s5790 + $0x18] sm:$0xf]
        %v8389 = vld [vmem:[%s5790 + $0x1c] sm:$0xf]
        %v8390 = vld [vmem:[%s5790 + $0x20] sm:$0xf]
        %v8391 = vld [vmem:[%s5790 + $0x24] sm:$0xf]
        %v8392 = vld [vmem:[%s5790 + $0x28] sm:$0xf]
        %v8393 = vld [vmem:[%s5790 + $0x2c] sm:$0xf]
        %v8394 = vld [vmem:[%s5790 + $0x30] sm:$0xf]
        %v8395 = vld [vmem:[%s5790 + $0x34] sm:$0xf]
        %v8396 = vld [vmem:[%s5790 + $0x38] sm:$0xf]
        %v8397 = vld [vmem:[%s5790 + $0x3c] sm:$0xf]
        %v8414 = vunpack.c.l.b16 %v8382
        %v8415 = vunpack.c.l.b16 %v8383
        %v8416 = vunpack.c.l.b16 %v8384
        %v8417 = vunpack.c.l.b16 %v8385
        %v8418 = vunpack.c.l.b16 %v8386
        %v8419 = vunpack.c.l.b16 %v8387
        %v8420 = vunpack.c.l.b16 %v8388
        %v8421 = vunpack.c.l.b16 %v8389
        %v8422 = vunpack.c.l.b16 %v8390
        %v8423 = vunpack.c.l.b16 %v8391
        %v8424 = vunpack.c.l.b16 %v8392
        %v8425 = vunpack.c.l.b16 %v8393
        %v8426 = vunpack.c.l.b16 %v8394
        %v8427 = vunpack.c.l.b16 %v8395
        %v8428 = vunpack.c.l.b16 %v8396
        %v8429 = vunpack.c.l.b16 %v8397
        %v8430 = vpack.c.b16 %v8415, %v8414
        %v8431 = vpack.c.b16 %v8417, %v8416
        %v8432 = vpack.c.b16 %v8419, %v8418
        %v8433 = vpack.c.b16 %v8421, %v8420
        %v8434 = vpack.c.b16 %v8423, %v8422
        %v8435 = vpack.c.b16 %v8425, %v8424
        %v8436 = vpack.c.b16 %v8427, %v8426
        %v8437 = vpack.c.b16 %v8429, %v8428
        %8446 = vmatprep.subr.bf16.mxu0 0
        %8447 = vmatpush1.bf16.msra.mxu0 %v8437
        %8448 = vmatprep.subr.bf16.mxu0 0
        %8449 = vmatpush1.bf16.msra.mxu0 %v8436
        %8450 = vmatprep.subr.bf16.mxu0 0
        %8451 = vmatpush1.bf16.msra.mxu0 %v8435
        %8452 = vmatprep.subr.bf16.mxu0 0
        %8453 = vmatpush1.bf16.msra.mxu0 %v8434
        %8454 = vmatprep.subr.bf16.mxu0 0
        %8455 = vmatpush1.bf16.msra.mxu0 %v8433
        %8456 = vmatprep.subr.bf16.mxu0 0
        %8457 = vmatpush1.bf16.msra.mxu0 %v8432
        %8458 = vmatprep.subr.bf16.mxu0 0
        %8459 = vmatpush1.bf16.msra.mxu0 %v8431
        %8460 = vmatprep.subr.bf16.mxu0 0
        %8461 = vmatpush1.bf16.msra.mxu0 %v8430
        %8462 = vmatprep.subr.bf16.mxu0 0
        %8463 = vmatpush2.bf16.msra.mxu0 0
        %8464 = vmatprep.subr.bf16.mxu0 0
        %8465 = vmatpush2.bf16.msra.mxu0 0
        %8466 = vmatprep.subr.bf16.mxu0 0
        %8467 = vmatpush2.bf16.msra.mxu0 0
        %8468 = vmatprep.subr.bf16.mxu0 0
        %8469 = vmatpush2.bf16.msra.mxu0 0
        %8470 = vmatprep.subr.bf16.mxu0 0
        %8471 = vmatpush2.bf16.msra.mxu0 0
        %8472 = vmatprep.subr.bf16.mxu0 0
        %8473 = vmatpush2.bf16.msra.mxu0 0
        %8474 = vmatprep.subr.bf16.mxu0 0
        %8475 = vmatpush2.bf16.msra.mxu0 0
        %8476 = vmatprep.subr.bf16.mxu0 0
        %8477 = vmatpush2.bf16.msra.mxu0 0
        %8478 = vmatprep.mubr.bf16.mxu0 0
        %8479 = vmatmul.mubr.bf16.gmra.mxu0 %v8378
        %v8480 = vpop.f32.mrf.mxu0
        %v8481 = vadd.f32 0.0, %v8480
        %v8482 = vpop.f32.mrf.mxu0
        %v8483 = vpop.f32.mrf.mxu0
        %v8484 = vadd.f32 0.0, %v8483
        %v8485 = vpop.f32.mrf.mxu0
        %8486 = vmatprep.mubr.bf16.mxu0 0
        %8487 = vmatmul.mubr.bf16.gmra.mxu0 %v8379
        %v8488 = vpop.f32.mrf.mxu0
        %v8489 = vadd.f32 0.0, %v8488
        %v8490 = vpop.f32.mrf.mxu0
        %v8491 = vpop.f32.mrf.mxu0
        %v8492 = vadd.f32 0.0, %v8491
        %v8493 = vpop.f32.mrf.mxu0
        %8494 = vmatprep.mubr.bf16.mxu0 0
        %8495 = vmatmul.mubr.bf16.gmra.mxu0 %v8380
        %v8496 = vpop.f32.mrf.mxu0
        %v8497 = vadd.f32 0.0, %v8496
        %v8498 = vpop.f32.mrf.mxu0
        %v8499 = vpop.f32.mrf.mxu0
        %v8500 = vadd.f32 0.0, %v8499
        %v8501 = vpop.f32.mrf.mxu0
        %8502 = vmatprep.mubr.bf16.mxu0 0
        %8503 = vmatmul.mubr.bf16.gmra.mxu0 %v8381
        %v8504 = vpop.f32.mrf.mxu0
        %v8505 = vadd.f32 0.0, %v8504
        %v8506 = vpop.f32.mrf.mxu0
        %v8507 = vpop.f32.mrf.mxu0
        %v8508 = vadd.f32 0.0, %v8507
        %v8509 = vpop.f32.mrf.mxu0
        %8510 = vdwg.mxu0
        %v8511 = vadd.f32 %v8340, %v8481
        %v8512 = vadd.f32 %v8343, %v8484
        %v8513 = vadd.f32 %v8348, %v8489
        %v8514 = vadd.f32 %v8351, %v8492
        %v8515 = vadd.f32 %v8356, %v8497
        %v8516 = vadd.f32 %v8359, %v8500
        %v8517 = vadd.f32 %v8364, %v8505
        %v8518 = vadd.f32 %v8367, %v8508
        %v8519 = vld [vmem:[#allocation2 + $0x114] sm:$0xff]
        %v8520 = vld [vmem:[#allocation2 + $0x11c] sm:$0xff]
        %v8521 = vld [vmem:[#allocation2 + $0x124] sm:$0xff]
        %v8522 = vld [vmem:[#allocation2 + $0x12c] sm:$0xff]
        %v8523 = vld [vmem:[#allocation2 + $0x134] sm:$0xff]
        %v8524 = vld [vmem:[#allocation2 + $0x13c] sm:$0xff]
        %v8525 = vld [vmem:[#allocation2 + $0x144] sm:$0xff]
        %v8526 = vld [vmem:[#allocation2 + $0x14c] sm:$0xf]
        %v8527 = vpack.c.bf16 %v8520, %v8519
        %v8528 = vpack.c.bf16 %v8522, %v8521
        %v8529 = vpack.c.bf16 %v8524, %v8523
        %v8530 = vpack.c.bf16 %v8526, %v8525
        %v8531 = vld [vmem:[%s6096] sm:$0xf]
        %v8532 = vld [vmem:[%s6096 + $0x4] sm:$0xf]
        %v8533 = vld [vmem:[%s6096 + $0x8] sm:$0xf]
        %v8534 = vld [vmem:[%s6096 + $0xc] sm:$0xf]
        %v8535 = vld [vmem:[%s6096 + $0x10] sm:$0xf]
        %v8536 = vld [vmem:[%s6096 + $0x14] sm:$0xf]
        %v8537 = vld [vmem:[%s6096 + $0x18] sm:$0xf]
        %v8538 = vld [vmem:[%s6096 + $0x1c] sm:$0xf]
        %v8539 = vld [vmem:[%s6096 + $0x20] sm:$0xf]
        %v8540 = vld [vmem:[%s6096 + $0x24] sm:$0xf]
        %v8541 = vld [vmem:[%s6096 + $0x28] sm:$0xf]
        %v8542 = vld [vmem:[%s6096 + $0x2c] sm:$0xf]
        %v8543 = vld [vmem:[%s6096 + $0x30] sm:$0xf]
        %v8544 = vld [vmem:[%s6096 + $0x34] sm:$0xf]
        %v8545 = vld [vmem:[%s6096 + $0x38] sm:$0xf]
        %v8546 = vld [vmem:[%s6096 + $0x3c] sm:$0xf]
        %v8563 = vunpack.c.l.b16 %v8531
        %v8564 = vunpack.c.l.b16 %v8532
        %v8565 = vunpack.c.l.b16 %v8533
        %v8566 = vunpack.c.l.b16 %v8534
        %v8567 = vunpack.c.l.b16 %v8535
        %v8568 = vunpack.c.l.b16 %v8536
        %v8569 = vunpack.c.l.b16 %v8537
        %v8570 = vunpack.c.l.b16 %v8538
        %v8571 = vunpack.c.l.b16 %v8539
        %v8572 = vunpack.c.l.b16 %v8540
        %v8573 = vunpack.c.l.b16 %v8541
        %v8574 = vunpack.c.l.b16 %v8542
        %v8575 = vunpack.c.l.b16 %v8543
        %v8576 = vunpack.c.l.b16 %v8544
        %v8577 = vunpack.c.l.b16 %v8545
        %v8578 = vunpack.c.l.b16 %v8546
        %v8579 = vpack.c.b16 %v8564, %v8563
        %v8580 = vpack.c.b16 %v8566, %v8565
        %v8581 = vpack.c.b16 %v8568, %v8567
        %v8582 = vpack.c.b16 %v8570, %v8569
        %v8583 = vpack.c.b16 %v8572, %v8571
        %v8584 = vpack.c.b16 %v8574, %v8573
        %v8585 = vpack.c.b16 %v8576, %v8575
        %v8586 = vpack.c.b16 %v8578, %v8577
        %8595 = vmatprep.subr.bf16.mxu0 0
        %8596 = vmatpush1.bf16.msra.mxu0 %v8586
        %8597 = vmatprep.subr.bf16.mxu0 0
        %8598 = vmatpush1.bf16.msra.mxu0 %v8585
        %8599 = vmatprep.subr.bf16.mxu0 0
        %8600 = vmatpush1.bf16.msra.mxu0 %v8584
        %8601 = vmatprep.subr.bf16.mxu0 0
        %8602 = vmatpush1.bf16.msra.mxu0 %v8583
        %8603 = vmatprep.subr.bf16.mxu0 0
        %8604 = vmatpush1.bf16.msra.mxu0 %v8582
        %8605 = vmatprep.subr.bf16.mxu0 0
        %8606 = vmatpush1.bf16.msra.mxu0 %v8581
        %8607 = vmatprep.subr.bf16.mxu0 0
        %8608 = vmatpush1.bf16.msra.mxu0 %v8580
        %8609 = vmatprep.subr.bf16.mxu0 0
        %8610 = vmatpush1.bf16.msra.mxu0 %v8579
        %8611 = vmatprep.subr.bf16.mxu0 0
        %8612 = vmatpush2.bf16.msra.mxu0 0
        %8613 = vmatprep.subr.bf16.mxu0 0
        %8614 = vmatpush2.bf16.msra.mxu0 0
        %8615 = vmatprep.subr.bf16.mxu0 0
        %8616 = vmatpush2.bf16.msra.mxu0 0
        %8617 = vmatprep.subr.bf16.mxu0 0
        %8618 = vmatpush2.bf16.msra.mxu0 0
        %8619 = vmatprep.subr.bf16.mxu0 0
        %8620 = vmatpush2.bf16.msra.mxu0 0
        %8621 = vmatprep.subr.bf16.mxu0 0
        %8622 = vmatpush2.bf16.msra.mxu0 0
        %8623 = vmatprep.subr.bf16.mxu0 0
        %8624 = vmatpush2.bf16.msra.mxu0 0
        %8625 = vmatprep.subr.bf16.mxu0 0
        %8626 = vmatpush2.bf16.msra.mxu0 0
        %8627 = vmatprep.mubr.bf16.mxu0 0
        %8628 = vmatmul.mubr.bf16.gmra.mxu0 %v8527
        %v8629 = vpop.f32.mrf.mxu0
        %v8630 = vadd.f32 0.0, %v8629
        %v8631 = vpop.f32.mrf.mxu0
        %v8632 = vpop.f32.mrf.mxu0
        %v8633 = vadd.f32 0.0, %v8632
        %v8634 = vpop.f32.mrf.mxu0
        %8635 = vmatprep.mubr.bf16.mxu0 0
        %8636 = vmatmul.mubr.bf16.gmra.mxu0 %v8528
        %v8637 = vpop.f32.mrf.mxu0
        %v8638 = vadd.f32 0.0, %v8637
        %v8639 = vpop.f32.mrf.mxu0
        %v8640 = vpop.f32.mrf.mxu0
        %v8641 = vadd.f32 0.0, %v8640
        %v8642 = vpop.f32.mrf.mxu0
        %8643 = vmatprep.mubr.bf16.mxu0 0
        %8644 = vmatmul.mubr.bf16.gmra.mxu0 %v8529
        %v8645 = vpop.f32.mrf.mxu0
        %v8646 = vadd.f32 0.0, %v8645
        %v8647 = vpop.f32.mrf.mxu0
        %v8648 = vpop.f32.mrf.mxu0
        %v8649 = vadd.f32 0.0, %v8648
        %v8650 = vpop.f32.mrf.mxu0
        %8651 = vmatprep.mubr.bf16.mxu0 0
        %8652 = vmatmul.mubr.bf16.gmra.mxu0 %v8530
        %v8653 = vpop.f32.mrf.mxu0
        %v8654 = vadd.f32 0.0, %v8653
        %v8655 = vpop.f32.mrf.mxu0
        %v8656 = vpop.f32.mrf.mxu0
        %v8657 = vadd.f32 0.0, %v8656
        %v8658 = vpop.f32.mrf.mxu0
        %8659 = vdwg.mxu0
        %v8660 = vadd.f32 %v8511, %v8630
        %v8661 = vadd.f32 %v8512, %v8633
        %v8662 = vadd.f32 %v8513, %v8638
        %v8663 = vadd.f32 %v8514, %v8641
        %v8664 = vadd.f32 %v8515, %v8646
        %v8665 = vadd.f32 %v8516, %v8649
        %v8666 = vadd.f32 %v8517, %v8654
        %v8667 = vadd.f32 %v8518, %v8657
        %v8668 = vld [vmem:[#allocation2 + $0x115] sm:$0xff]
        %v8669 = vld [vmem:[#allocation2 + $0x11d] sm:$0xff]
        %v8670 = vld [vmem:[#allocation2 + $0x125] sm:$0xff]
        %v8671 = vld [vmem:[#allocation2 + $0x12d] sm:$0xff]
        %v8672 = vld [vmem:[#allocation2 + $0x135] sm:$0xff]
        %v8673 = vld [vmem:[#allocation2 + $0x13d] sm:$0xff]
        %v8674 = vld [vmem:[#allocation2 + $0x145] sm:$0xff]
        %v8675 = vld [vmem:[#allocation2 + $0x14d] sm:$0xf]
        %v8676 = vpack.c.bf16 %v8669, %v8668
        %v8677 = vpack.c.bf16 %v8671, %v8670
        %v8678 = vpack.c.bf16 %v8673, %v8672
        %v8679 = vpack.c.bf16 %v8675, %v8674
        %v8680 = vld [vmem:[%s6402] sm:$0xf]
        %v8681 = vld [vmem:[%s6402 + $0x4] sm:$0xf]
        %v8682 = vld [vmem:[%s6402 + $0x8] sm:$0xf]
        %v8683 = vld [vmem:[%s6402 + $0xc] sm:$0xf]
        %v8684 = vld [vmem:[%s6402 + $0x10] sm:$0xf]
        %v8685 = vld [vmem:[%s6402 + $0x14] sm:$0xf]
        %v8686 = vld [vmem:[%s6402 + $0x18] sm:$0xf]
        %v8687 = vld [vmem:[%s6402 + $0x1c] sm:$0xf]
        %v8688 = vld [vmem:[%s6402 + $0x20] sm:$0xf]
        %v8689 = vld [vmem:[%s6402 + $0x24] sm:$0xf]
        %v8690 = vld [vmem:[%s6402 + $0x28] sm:$0xf]
        %v8691 = vld [vmem:[%s6402 + $0x2c] sm:$0xf]
        %v8692 = vld [vmem:[%s6402 + $0x30] sm:$0xf]
        %v8693 = vld [vmem:[%s6402 + $0x34] sm:$0xf]
        %v8694 = vld [vmem:[%s6402 + $0x38] sm:$0xf]
        %v8695 = vld [vmem:[%s6402 + $0x3c] sm:$0xf]
        %v8712 = vunpack.c.l.b16 %v8680
        %v8713 = vunpack.c.l.b16 %v8681
        %v8714 = vunpack.c.l.b16 %v8682
        %v8715 = vunpack.c.l.b16 %v8683
        %v8716 = vunpack.c.l.b16 %v8684
        %v8717 = vunpack.c.l.b16 %v8685
        %v8718 = vunpack.c.l.b16 %v8686
        %v8719 = vunpack.c.l.b16 %v8687
        %v8720 = vunpack.c.l.b16 %v8688
        %v8721 = vunpack.c.l.b16 %v8689
        %v8722 = vunpack.c.l.b16 %v8690
        %v8723 = vunpack.c.l.b16 %v8691
        %v8724 = vunpack.c.l.b16 %v8692
        %v8725 = vunpack.c.l.b16 %v8693
        %v8726 = vunpack.c.l.b16 %v8694
        %v8727 = vunpack.c.l.b16 %v8695
        %v8728 = vpack.c.b16 %v8713, %v8712
        %v8729 = vpack.c.b16 %v8715, %v8714
        %v8730 = vpack.c.b16 %v8717, %v8716
        %v8731 = vpack.c.b16 %v8719, %v8718
        %v8732 = vpack.c.b16 %v8721, %v8720
        %v8733 = vpack.c.b16 %v8723, %v8722
        %v8734 = vpack.c.b16 %v8725, %v8724
        %v8735 = vpack.c.b16 %v8727, %v8726
        %8744 = vmatprep.subr.bf16.mxu0 0
        %8745 = vmatpush1.bf16.msra.mxu0 %v8735
        %8746 = vmatprep.subr.bf16.mxu0 0
        %8747 = vmatpush1.bf16.msra.mxu0 %v8734
        %8748 = vmatprep.subr.bf16.mxu0 0
        %8749 = vmatpush1.bf16.msra.mxu0 %v8733
        %8750 = vmatprep.subr.bf16.mxu0 0
        %8751 = vmatpush1.bf16.msra.mxu0 %v8732
        %8752 = vmatprep.subr.bf16.mxu0 0
        %8753 = vmatpush1.bf16.msra.mxu0 %v8731
        %8754 = vmatprep.subr.bf16.mxu0 0
        %8755 = vmatpush1.bf16.msra.mxu0 %v8730
        %8756 = vmatprep.subr.bf16.mxu0 0
        %8757 = vmatpush1.bf16.msra.mxu0 %v8729
        %8758 = vmatprep.subr.bf16.mxu0 0
        %8759 = vmatpush1.bf16.msra.mxu0 %v8728
        %8760 = vmatprep.subr.bf16.mxu0 0
        %8761 = vmatpush2.bf16.msra.mxu0 0
        %8762 = vmatprep.subr.bf16.mxu0 0
        %8763 = vmatpush2.bf16.msra.mxu0 0
        %8764 = vmatprep.subr.bf16.mxu0 0
        %8765 = vmatpush2.bf16.msra.mxu0 0
        %8766 = vmatprep.subr.bf16.mxu0 0
        %8767 = vmatpush2.bf16.msra.mxu0 0
        %8768 = vmatprep.subr.bf16.mxu0 0
        %8769 = vmatpush2.bf16.msra.mxu0 0
        %8770 = vmatprep.subr.bf16.mxu0 0
        %8771 = vmatpush2.bf16.msra.mxu0 0
        %8772 = vmatprep.subr.bf16.mxu0 0
        %8773 = vmatpush2.bf16.msra.mxu0 0
        %8774 = vmatprep.subr.bf16.mxu0 0
        %8775 = vmatpush2.bf16.msra.mxu0 0
        %8776 = vmatprep.mubr.bf16.mxu0 0
        %8777 = vmatmul.mubr.bf16.gmra.mxu0 %v8676
        %v8778 = vpop.f32.mrf.mxu0
        %v8779 = vadd.f32 0.0, %v8778
        %v8780 = vpop.f32.mrf.mxu0
        %v8781 = vpop.f32.mrf.mxu0
        %v8782 = vadd.f32 0.0, %v8781
        %v8783 = vpop.f32.mrf.mxu0
        %8784 = vmatprep.mubr.bf16.mxu0 0
        %8785 = vmatmul.mubr.bf16.gmra.mxu0 %v8677
        %v8786 = vpop.f32.mrf.mxu0
        %v8787 = vadd.f32 0.0, %v8786
        %v8788 = vpop.f32.mrf.mxu0
        %v8789 = vpop.f32.mrf.mxu0
        %v8790 = vadd.f32 0.0, %v8789
        %v8791 = vpop.f32.mrf.mxu0
        %8792 = vmatprep.mubr.bf16.mxu0 0
        %8793 = vmatmul.mubr.bf16.gmra.mxu0 %v8678
        %v8794 = vpop.f32.mrf.mxu0
        %v8795 = vadd.f32 0.0, %v8794
        %v8796 = vpop.f32.mrf.mxu0
        %v8797 = vpop.f32.mrf.mxu0
        %v8798 = vadd.f32 0.0, %v8797
        %v8799 = vpop.f32.mrf.mxu0
        %8800 = vmatprep.mubr.bf16.mxu0 0
        %8801 = vmatmul.mubr.bf16.gmra.mxu0 %v8679
        %v8802 = vpop.f32.mrf.mxu0
        %v8803 = vadd.f32 0.0, %v8802
        %v8804 = vpop.f32.mrf.mxu0
        %v8805 = vpop.f32.mrf.mxu0
        %v8806 = vadd.f32 0.0, %v8805
        %v8807 = vpop.f32.mrf.mxu0
        %8808 = vdwg.mxu0
        %v8809 = vadd.f32 %v8660, %v8779
        %v8810 = vadd.f32 %v8661, %v8782
        %v8811 = vadd.f32 %v8662, %v8787
        %v8812 = vadd.f32 %v8663, %v8790
        %v8813 = vadd.f32 %v8664, %v8795
        %v8814 = vadd.f32 %v8665, %v8798
        %v8815 = vadd.f32 %v8666, %v8803
        %v8816 = vadd.f32 %v8667, %v8806
        %v8817 = vld [vmem:[#allocation2 + $0x116] sm:$0xff]
        %v8818 = vld [vmem:[#allocation2 + $0x11e] sm:$0xff]
        %v8819 = vld [vmem:[#allocation2 + $0x126] sm:$0xff]
        %v8820 = vld [vmem:[#allocation2 + $0x12e] sm:$0xff]
        %v8821 = vld [vmem:[#allocation2 + $0x136] sm:$0xff]
        %v8822 = vld [vmem:[#allocation2 + $0x13e] sm:$0xff]
        %v8823 = vld [vmem:[#allocation2 + $0x146] sm:$0xff]
        %v8824 = vld [vmem:[#allocation2 + $0x14e] sm:$0xf]
        %v8825 = vpack.c.bf16 %v8818, %v8817
        %v8826 = vpack.c.bf16 %v8820, %v8819
        %v8827 = vpack.c.bf16 %v8822, %v8821
        %v8828 = vpack.c.bf16 %v8824, %v8823
        %v8829 = vld [vmem:[%s6708] sm:$0xf]
        %v8830 = vld [vmem:[%s6708 + $0x4] sm:$0xf]
        %v8831 = vld [vmem:[%s6708 + $0x8] sm:$0xf]
        %v8832 = vld [vmem:[%s6708 + $0xc] sm:$0xf]
        %v8833 = vld [vmem:[%s6708 + $0x10] sm:$0xf]
        %v8834 = vld [vmem:[%s6708 + $0x14] sm:$0xf]
        %v8835 = vld [vmem:[%s6708 + $0x18] sm:$0xf]
        %v8836 = vld [vmem:[%s6708 + $0x1c] sm:$0xf]
        %v8837 = vld [vmem:[%s6708 + $0x20] sm:$0xf]
        %v8838 = vld [vmem:[%s6708 + $0x24] sm:$0xf]
        %v8839 = vld [vmem:[%s6708 + $0x28] sm:$0xf]
        %v8840 = vld [vmem:[%s6708 + $0x2c] sm:$0xf]
        %v8841 = vld [vmem:[%s6708 + $0x30] sm:$0xf]
        %v8842 = vld [vmem:[%s6708 + $0x34] sm:$0xf]
        %v8843 = vld [vmem:[%s6708 + $0x38] sm:$0xf]
        %v8844 = vld [vmem:[%s6708 + $0x3c] sm:$0xf]
        %v8861 = vunpack.c.l.b16 %v8829
        %v8862 = vunpack.c.l.b16 %v8830
        %v8863 = vunpack.c.l.b16 %v8831
        %v8864 = vunpack.c.l.b16 %v8832
        %v8865 = vunpack.c.l.b16 %v8833
        %v8866 = vunpack.c.l.b16 %v8834
        %v8867 = vunpack.c.l.b16 %v8835
        %v8868 = vunpack.c.l.b16 %v8836
        %v8869 = vunpack.c.l.b16 %v8837
        %v8870 = vunpack.c.l.b16 %v8838
        %v8871 = vunpack.c.l.b16 %v8839
        %v8872 = vunpack.c.l.b16 %v8840
        %v8873 = vunpack.c.l.b16 %v8841
        %v8874 = vunpack.c.l.b16 %v8842
        %v8875 = vunpack.c.l.b16 %v8843
        %v8876 = vunpack.c.l.b16 %v8844
        %v8877 = vpack.c.b16 %v8862, %v8861
        %v8878 = vpack.c.b16 %v8864, %v8863
        %v8879 = vpack.c.b16 %v8866, %v8865
        %v8880 = vpack.c.b16 %v8868, %v8867
        %v8881 = vpack.c.b16 %v8870, %v8869
        %v8882 = vpack.c.b16 %v8872, %v8871
        %v8883 = vpack.c.b16 %v8874, %v8873
        %v8884 = vpack.c.b16 %v8876, %v8875
        %8893 = vmatprep.subr.bf16.mxu0 0
        %8894 = vmatpush1.bf16.msra.mxu0 %v8884
        %8895 = vmatprep.subr.bf16.mxu0 0
        %8896 = vmatpush1.bf16.msra.mxu0 %v8883
        %8897 = vmatprep.subr.bf16.mxu0 0
        %8898 = vmatpush1.bf16.msra.mxu0 %v8882
        %8899 = vmatprep.subr.bf16.mxu0 0
        %8900 = vmatpush1.bf16.msra.mxu0 %v8881
        %8901 = vmatprep.subr.bf16.mxu0 0
        %8902 = vmatpush1.bf16.msra.mxu0 %v8880
        %8903 = vmatprep.subr.bf16.mxu0 0
        %8904 = vmatpush1.bf16.msra.mxu0 %v8879
        %8905 = vmatprep.subr.bf16.mxu0 0
        %8906 = vmatpush1.bf16.msra.mxu0 %v8878
        %8907 = vmatprep.subr.bf16.mxu0 0
        %8908 = vmatpush1.bf16.msra.mxu0 %v8877
        %8909 = vmatprep.subr.bf16.mxu0 0
        %8910 = vmatpush2.bf16.msra.mxu0 0
        %8911 = vmatprep.subr.bf16.mxu0 0
        %8912 = vmatpush2.bf16.msra.mxu0 0
        %8913 = vmatprep.subr.bf16.mxu0 0
        %8914 = vmatpush2.bf16.msra.mxu0 0
        %8915 = vmatprep.subr.bf16.mxu0 0
        %8916 = vmatpush2.bf16.msra.mxu0 0
        %8917 = vmatprep.subr.bf16.mxu0 0
        %8918 = vmatpush2.bf16.msra.mxu0 0
        %8919 = vmatprep.subr.bf16.mxu0 0
        %8920 = vmatpush2.bf16.msra.mxu0 0
        %8921 = vmatprep.subr.bf16.mxu0 0
        %8922 = vmatpush2.bf16.msra.mxu0 0
        %8923 = vmatprep.subr.bf16.mxu0 0
        %8924 = vmatpush2.bf16.msra.mxu0 0
        %8925 = vmatprep.mubr.bf16.mxu0 0
        %8926 = vmatmul.mubr.bf16.gmra.mxu0 %v8825
        %v8927 = vpop.f32.mrf.mxu0
        %v8928 = vadd.f32 0.0, %v8927
        %v8929 = vpop.f32.mrf.mxu0
        %v8930 = vpop.f32.mrf.mxu0
        %v8931 = vadd.f32 0.0, %v8930
        %v8932 = vpop.f32.mrf.mxu0
        %8933 = vmatprep.mubr.bf16.mxu0 0
        %8934 = vmatmul.mubr.bf16.gmra.mxu0 %v8826
        %v8935 = vpop.f32.mrf.mxu0
        %v8936 = vadd.f32 0.0, %v8935
        %v8937 = vpop.f32.mrf.mxu0
        %v8938 = vpop.f32.mrf.mxu0
        %v8939 = vadd.f32 0.0, %v8938
        %v8940 = vpop.f32.mrf.mxu0
        %8941 = vmatprep.mubr.bf16.mxu0 0
        %8942 = vmatmul.mubr.bf16.gmra.mxu0 %v8827
        %v8943 = vpop.f32.mrf.mxu0
        %v8944 = vadd.f32 0.0, %v8943
        %v8945 = vpop.f32.mrf.mxu0
        %v8946 = vpop.f32.mrf.mxu0
        %v8947 = vadd.f32 0.0, %v8946
        %v8948 = vpop.f32.mrf.mxu0
        %8949 = vmatprep.mubr.bf16.mxu0 0
        %8950 = vmatmul.mubr.bf16.gmra.mxu0 %v8828
        %v8951 = vpop.f32.mrf.mxu0
        %v8952 = vadd.f32 0.0, %v8951
        %v8953 = vpop.f32.mrf.mxu0
        %v8954 = vpop.f32.mrf.mxu0
        %v8955 = vadd.f32 0.0, %v8954
        %v8956 = vpop.f32.mrf.mxu0
        %8957 = vdwg.mxu0
        %v8958 = vadd.f32 %v8809, %v8928
        %v8959 = vadd.f32 %v8810, %v8931
        %v8960 = vadd.f32 %v8811, %v8936
        %v8961 = vadd.f32 %v8812, %v8939
        %v8962 = vadd.f32 %v8813, %v8944
        %v8963 = vadd.f32 %v8814, %v8947
        %v8964 = vadd.f32 %v8815, %v8952
        %v8965 = vadd.f32 %v8816, %v8955
        %v8966 = vld [vmem:[#allocation2 + $0x128] sm:$0xff]
        %v8967 = vld [vmem:[#allocation2 + $0x130] sm:$0xff]
        %v8968 = vld [vmem:[#allocation2 + $0x138] sm:$0xff]
        %v8969 = vld [vmem:[#allocation2 + $0x140] sm:$0xff]
        %v8970 = vld [vmem:[#allocation2 + $0x148] sm:$0xff]
        %v8971 = vld [vmem:[#allocation2 + $0x150] sm:$0xff]
        %v8972 = vld [vmem:[#allocation2 + $0x158] sm:$0xff]
        %v8973 = vld [vmem:[#allocation2 + $0x160] sm:$0xf]
        %v8974 = vpack.c.bf16 %v8967, %v8966
        %v8975 = vpack.c.bf16 %v8969, %v8968
        %v8976 = vpack.c.bf16 %v8971, %v8970
        %v8977 = vpack.c.bf16 %v8973, %v8972
        %v8978 = vld [vmem:[%s7014] sm:$0xf]
        %v8979 = vld [vmem:[%s7014 + $0x4] sm:$0xf]
        %v8980 = vld [vmem:[%s7014 + $0x8] sm:$0xf]
        %v8981 = vld [vmem:[%s7014 + $0xc] sm:$0xf]
        %v8982 = vld [vmem:[%s7014 + $0x10] sm:$0xf]
        %v8983 = vld [vmem:[%s7014 + $0x14] sm:$0xf]
        %v8984 = vld [vmem:[%s7014 + $0x18] sm:$0xf]
        %v8985 = vld [vmem:[%s7014 + $0x1c] sm:$0xf]
        %v8986 = vld [vmem:[%s7014 + $0x20] sm:$0xf]
        %v8987 = vld [vmem:[%s7014 + $0x24] sm:$0xf]
        %v8988 = vld [vmem:[%s7014 + $0x28] sm:$0xf]
        %v8989 = vld [vmem:[%s7014 + $0x2c] sm:$0xf]
        %v8990 = vld [vmem:[%s7014 + $0x30] sm:$0xf]
        %v8991 = vld [vmem:[%s7014 + $0x34] sm:$0xf]
        %v8992 = vld [vmem:[%s7014 + $0x38] sm:$0xf]
        %v8993 = vld [vmem:[%s7014 + $0x3c] sm:$0xf]
        %v9010 = vunpack.c.l.b16 %v8978
        %v9011 = vunpack.c.l.b16 %v8979
        %v9012 = vunpack.c.l.b16 %v8980
        %v9013 = vunpack.c.l.b16 %v8981
        %v9014 = vunpack.c.l.b16 %v8982
        %v9015 = vunpack.c.l.b16 %v8983
        %v9016 = vunpack.c.l.b16 %v8984
        %v9017 = vunpack.c.l.b16 %v8985
        %v9018 = vunpack.c.l.b16 %v8986
        %v9019 = vunpack.c.l.b16 %v8987
        %v9020 = vunpack.c.l.b16 %v8988
        %v9021 = vunpack.c.l.b16 %v8989
        %v9022 = vunpack.c.l.b16 %v8990
        %v9023 = vunpack.c.l.b16 %v8991
        %v9024 = vunpack.c.l.b16 %v8992
        %v9025 = vunpack.c.l.b16 %v8993
        %v9026 = vpack.c.b16 %v9011, %v9010
        %v9027 = vpack.c.b16 %v9013, %v9012
        %v9028 = vpack.c.b16 %v9015, %v9014
        %v9029 = vpack.c.b16 %v9017, %v9016
        %v9030 = vpack.c.b16 %v9019, %v9018
        %v9031 = vpack.c.b16 %v9021, %v9020
        %v9032 = vpack.c.b16 %v9023, %v9022
        %v9033 = vpack.c.b16 %v9025, %v9024
        %9042 = vmatprep.subr.bf16.mxu0 0
        %9043 = vmatpush1.bf16.msra.mxu0 %v9033
        %9044 = vmatprep.subr.bf16.mxu0 0
        %9045 = vmatpush1.bf16.msra.mxu0 %v9032
        %9046 = vmatprep.subr.bf16.mxu0 0
        %9047 = vmatpush1.bf16.msra.mxu0 %v9031
        %9048 = vmatprep.subr.bf16.mxu0 0
        %9049 = vmatpush1.bf16.msra.mxu0 %v9030
        %9050 = vmatprep.subr.bf16.mxu0 0
        %9051 = vmatpush1.bf16.msra.mxu0 %v9029
        %9052 = vmatprep.subr.bf16.mxu0 0
        %9053 = vmatpush1.bf16.msra.mxu0 %v9028
        %9054 = vmatprep.subr.bf16.mxu0 0
        %9055 = vmatpush1.bf16.msra.mxu0 %v9027
        %9056 = vmatprep.subr.bf16.mxu0 0
        %9057 = vmatpush1.bf16.msra.mxu0 %v9026
        %9058 = vmatprep.subr.bf16.mxu0 0
        %9059 = vmatpush2.bf16.msra.mxu0 0
        %9060 = vmatprep.subr.bf16.mxu0 0
        %9061 = vmatpush2.bf16.msra.mxu0 0
        %9062 = vmatprep.subr.bf16.mxu0 0
        %9063 = vmatpush2.bf16.msra.mxu0 0
        %9064 = vmatprep.subr.bf16.mxu0 0
        %9065 = vmatpush2.bf16.msra.mxu0 0
        %9066 = vmatprep.subr.bf16.mxu0 0
        %9067 = vmatpush2.bf16.msra.mxu0 0
        %9068 = vmatprep.subr.bf16.mxu0 0
        %9069 = vmatpush2.bf16.msra.mxu0 0
        %9070 = vmatprep.subr.bf16.mxu0 0
        %9071 = vmatpush2.bf16.msra.mxu0 0
        %9072 = vmatprep.subr.bf16.mxu0 0
        %9073 = vmatpush2.bf16.msra.mxu0 0
        %9074 = vmatprep.mubr.bf16.mxu0 0
        %9075 = vmatmul.mubr.bf16.gmra.mxu0 %v8974
        %v9076 = vpop.f32.mrf.mxu0
        %v9077 = vadd.f32 0.0, %v9076
        %v9078 = vpop.f32.mrf.mxu0
        %v9079 = vpop.f32.mrf.mxu0
        %v9080 = vadd.f32 0.0, %v9079
        %v9081 = vpop.f32.mrf.mxu0
        %9082 = vmatprep.mubr.bf16.mxu0 0
        %9083 = vmatmul.mubr.bf16.gmra.mxu0 %v8975
        %v9084 = vpop.f32.mrf.mxu0
        %v9085 = vadd.f32 0.0, %v9084
        %v9086 = vpop.f32.mrf.mxu0
        %v9087 = vpop.f32.mrf.mxu0
        %v9088 = vadd.f32 0.0, %v9087
        %v9089 = vpop.f32.mrf.mxu0
        %9090 = vmatprep.mubr.bf16.mxu0 0
        %9091 = vmatmul.mubr.bf16.gmra.mxu0 %v8976
        %v9092 = vpop.f32.mrf.mxu0
        %v9093 = vadd.f32 0.0, %v9092
        %v9094 = vpop.f32.mrf.mxu0
        %v9095 = vpop.f32.mrf.mxu0
        %v9096 = vadd.f32 0.0, %v9095
        %v9097 = vpop.f32.mrf.mxu0
        %9098 = vmatprep.mubr.bf16.mxu0 0
        %9099 = vmatmul.mubr.bf16.gmra.mxu0 %v8977
        %v9100 = vpop.f32.mrf.mxu0
        %v9101 = vadd.f32 0.0, %v9100
        %v9102 = vpop.f32.mrf.mxu0
        %v9103 = vpop.f32.mrf.mxu0
        %v9104 = vadd.f32 0.0, %v9103
        %v9105 = vpop.f32.mrf.mxu0
        %9106 = vdwg.mxu0
        %v9107 = vadd.f32 %v8958, %v9077
        %v9108 = vadd.f32 %v8959, %v9080
        %v9109 = vadd.f32 %v8960, %v9085
        %v9110 = vadd.f32 %v8961, %v9088
        %v9111 = vadd.f32 %v8962, %v9093
        %v9112 = vadd.f32 %v8963, %v9096
        %v9113 = vadd.f32 %v8964, %v9101
        %v9114 = vadd.f32 %v8965, %v9104
        %v9115 = vld [vmem:[#allocation2 + $0x129] sm:$0xff]
        %v9116 = vld [vmem:[#allocation2 + $0x131] sm:$0xff]
        %v9117 = vld [vmem:[#allocation2 + $0x139] sm:$0xff]
        %v9118 = vld [vmem:[#allocation2 + $0x141] sm:$0xff]
        %v9119 = vld [vmem:[#allocation2 + $0x149] sm:$0xff]
        %v9120 = vld [vmem:[#allocation2 + $0x151] sm:$0xff]
        %v9121 = vld [vmem:[#allocation2 + $0x159] sm:$0xff]
        %v9122 = vld [vmem:[#allocation2 + $0x161] sm:$0xf]
        %v9123 = vpack.c.bf16 %v9116, %v9115
        %v9124 = vpack.c.bf16 %v9118, %v9117
        %v9125 = vpack.c.bf16 %v9120, %v9119
        %v9126 = vpack.c.bf16 %v9122, %v9121
        %v9127 = vld [vmem:[%s7320] sm:$0xf]
        %v9128 = vld [vmem:[%s7320 + $0x4] sm:$0xf]
        %v9129 = vld [vmem:[%s7320 + $0x8] sm:$0xf]
        %v9130 = vld [vmem:[%s7320 + $0xc] sm:$0xf]
        %v9131 = vld [vmem:[%s7320 + $0x10] sm:$0xf]
        %v9132 = vld [vmem:[%s7320 + $0x14] sm:$0xf]
        %v9133 = vld [vmem:[%s7320 + $0x18] sm:$0xf]
        %v9134 = vld [vmem:[%s7320 + $0x1c] sm:$0xf]
        %v9135 = vld [vmem:[%s7320 + $0x20] sm:$0xf]
        %v9136 = vld [vmem:[%s7320 + $0x24] sm:$0xf]
        %v9137 = vld [vmem:[%s7320 + $0x28] sm:$0xf]
        %v9138 = vld [vmem:[%s7320 + $0x2c] sm:$0xf]
        %v9139 = vld [vmem:[%s7320 + $0x30] sm:$0xf]
        %v9140 = vld [vmem:[%s7320 + $0x34] sm:$0xf]
        %v9141 = vld [vmem:[%s7320 + $0x38] sm:$0xf]
        %v9142 = vld [vmem:[%s7320 + $0x3c] sm:$0xf]
        %v9159 = vunpack.c.l.b16 %v9127
        %v9160 = vunpack.c.l.b16 %v9128
        %v9161 = vunpack.c.l.b16 %v9129
        %v9162 = vunpack.c.l.b16 %v9130
        %v9163 = vunpack.c.l.b16 %v9131
        %v9164 = vunpack.c.l.b16 %v9132
        %v9165 = vunpack.c.l.b16 %v9133
        %v9166 = vunpack.c.l.b16 %v9134
        %v9167 = vunpack.c.l.b16 %v9135
        %v9168 = vunpack.c.l.b16 %v9136
        %v9169 = vunpack.c.l.b16 %v9137
        %v9170 = vunpack.c.l.b16 %v9138
        %v9171 = vunpack.c.l.b16 %v9139
        %v9172 = vunpack.c.l.b16 %v9140
        %v9173 = vunpack.c.l.b16 %v9141
        %v9174 = vunpack.c.l.b16 %v9142
        %v9175 = vpack.c.b16 %v9160, %v9159
        %v9176 = vpack.c.b16 %v9162, %v9161
        %v9177 = vpack.c.b16 %v9164, %v9163
        %v9178 = vpack.c.b16 %v9166, %v9165
        %v9179 = vpack.c.b16 %v9168, %v9167
        %v9180 = vpack.c.b16 %v9170, %v9169
        %v9181 = vpack.c.b16 %v9172, %v9171
        %v9182 = vpack.c.b16 %v9174, %v9173
        %9191 = vmatprep.subr.bf16.mxu0 0
        %9192 = vmatpush1.bf16.msra.mxu0 %v9182
        %9193 = vmatprep.subr.bf16.mxu0 0
        %9194 = vmatpush1.bf16.msra.mxu0 %v9181
        %9195 = vmatprep.subr.bf16.mxu0 0
        %9196 = vmatpush1.bf16.msra.mxu0 %v9180
        %9197 = vmatprep.subr.bf16.mxu0 0
        %9198 = vmatpush1.bf16.msra.mxu0 %v9179
        %9199 = vmatprep.subr.bf16.mxu0 0
        %9200 = vmatpush1.bf16.msra.mxu0 %v9178
        %9201 = vmatprep.subr.bf16.mxu0 0
        %9202 = vmatpush1.bf16.msra.mxu0 %v9177
        %9203 = vmatprep.subr.bf16.mxu0 0
        %9204 = vmatpush1.bf16.msra.mxu0 %v9176
        %9205 = vmatprep.subr.bf16.mxu0 0
        %9206 = vmatpush1.bf16.msra.mxu0 %v9175
        %9207 = vmatprep.subr.bf16.mxu0 0
        %9208 = vmatpush2.bf16.msra.mxu0 0
        %9209 = vmatprep.subr.bf16.mxu0 0
        %9210 = vmatpush2.bf16.msra.mxu0 0
        %9211 = vmatprep.subr.bf16.mxu0 0
        %9212 = vmatpush2.bf16.msra.mxu0 0
        %9213 = vmatprep.subr.bf16.mxu0 0
        %9214 = vmatpush2.bf16.msra.mxu0 0
        %9215 = vmatprep.subr.bf16.mxu0 0
        %9216 = vmatpush2.bf16.msra.mxu0 0
        %9217 = vmatprep.subr.bf16.mxu0 0
        %9218 = vmatpush2.bf16.msra.mxu0 0
        %9219 = vmatprep.subr.bf16.mxu0 0
        %9220 = vmatpush2.bf16.msra.mxu0 0
        %9221 = vmatprep.subr.bf16.mxu0 0
        %9222 = vmatpush2.bf16.msra.mxu0 0
        %9223 = vmatprep.mubr.bf16.mxu0 0
        %9224 = vmatmul.mubr.bf16.gmra.mxu0 %v9123
        %v9225 = vpop.f32.mrf.mxu0
        %v9226 = vadd.f32 0.0, %v9225
        %v9227 = vpop.f32.mrf.mxu0
        %v9228 = vpop.f32.mrf.mxu0
        %v9229 = vadd.f32 0.0, %v9228
        %v9230 = vpop.f32.mrf.mxu0
        %9231 = vmatprep.mubr.bf16.mxu0 0
        %9232 = vmatmul.mubr.bf16.gmra.mxu0 %v9124
        %v9233 = vpop.f32.mrf.mxu0
        %v9234 = vadd.f32 0.0, %v9233
        %v9235 = vpop.f32.mrf.mxu0
        %v9236 = vpop.f32.mrf.mxu0
        %v9237 = vadd.f32 0.0, %v9236
        %v9238 = vpop.f32.mrf.mxu0
        %9239 = vmatprep.mubr.bf16.mxu0 0
        %9240 = vmatmul.mubr.bf16.gmra.mxu0 %v9125
        %v9241 = vpop.f32.mrf.mxu0
        %v9242 = vadd.f32 0.0, %v9241
        %v9243 = vpop.f32.mrf.mxu0
        %v9244 = vpop.f32.mrf.mxu0
        %v9245 = vadd.f32 0.0, %v9244
        %v9246 = vpop.f32.mrf.mxu0
        %9247 = vmatprep.mubr.bf16.mxu0 0
        %9248 = vmatmul.mubr.bf16.gmra.mxu0 %v9126
        %v9249 = vpop.f32.mrf.mxu0
        %v9250 = vadd.f32 0.0, %v9249
        %v9251 = vpop.f32.mrf.mxu0
        %v9252 = vpop.f32.mrf.mxu0
        %v9253 = vadd.f32 0.0, %v9252
        %v9254 = vpop.f32.mrf.mxu0
        %9255 = vdwg.mxu0
        %v9256 = vadd.f32 %v9107, %v9226
        %v9257 = vadd.f32 %v9108, %v9229
        %v9258 = vadd.f32 %v9109, %v9234
        %v9259 = vadd.f32 %v9110, %v9237
        %v9260 = vadd.f32 %v9111, %v9242
        %v9261 = vadd.f32 %v9112, %v9245
        %v9262 = vadd.f32 %v9113, %v9250
        %v9263 = vadd.f32 %v9114, %v9253
        %v9264 = vld [vmem:[#allocation2 + $0x12a] sm:$0xff]
        %v9265 = vld [vmem:[#allocation2 + $0x132] sm:$0xff]
        %v9266 = vld [vmem:[#allocation2 + $0x13a] sm:$0xff]
        %v9267 = vld [vmem:[#allocation2 + $0x142] sm:$0xff]
        %v9268 = vld [vmem:[#allocation2 + $0x14a] sm:$0xff]
        %v9269 = vld [vmem:[#allocation2 + $0x152] sm:$0xff]
        %v9270 = vld [vmem:[#allocation2 + $0x15a] sm:$0xff]
        %v9271 = vld [vmem:[#allocation2 + $0x162] sm:$0xf]
        %v9272 = vpack.c.bf16 %v9265, %v9264
        %v9273 = vpack.c.bf16 %v9267, %v9266
        %v9274 = vpack.c.bf16 %v9269, %v9268
        %v9275 = vpack.c.bf16 %v9271, %v9270
        %v9276 = vld [vmem:[%s7626] sm:$0xf]
        %v9277 = vld [vmem:[%s7626 + $0x4] sm:$0xf]
        %v9278 = vld [vmem:[%s7626 + $0x8] sm:$0xf]
        %v9279 = vld [vmem:[%s7626 + $0xc] sm:$0xf]
        %v9280 = vld [vmem:[%s7626 + $0x10] sm:$0xf]
        %v9281 = vld [vmem:[%s7626 + $0x14] sm:$0xf]
        %v9282 = vld [vmem:[%s7626 + $0x18] sm:$0xf]
        %v9283 = vld [vmem:[%s7626 + $0x1c] sm:$0xf]
        %v9284 = vld [vmem:[%s7626 + $0x20] sm:$0xf]
        %v9285 = vld [vmem:[%s7626 + $0x24] sm:$0xf]
        %v9286 = vld [vmem:[%s7626 + $0x28] sm:$0xf]
        %v9287 = vld [vmem:[%s7626 + $0x2c] sm:$0xf]
        %v9288 = vld [vmem:[%s7626 + $0x30] sm:$0xf]
        %v9289 = vld [vmem:[%s7626 + $0x34] sm:$0xf]
        %v9290 = vld [vmem:[%s7626 + $0x38] sm:$0xf]
        %v9291 = vld [vmem:[%s7626 + $0x3c] sm:$0xf]
        %v9308 = vunpack.c.l.b16 %v9276
        %v9309 = vunpack.c.l.b16 %v9277
        %v9310 = vunpack.c.l.b16 %v9278
        %v9311 = vunpack.c.l.b16 %v9279
        %v9312 = vunpack.c.l.b16 %v9280
        %v9313 = vunpack.c.l.b16 %v9281
        %v9314 = vunpack.c.l.b16 %v9282
        %v9315 = vunpack.c.l.b16 %v9283
        %v9316 = vunpack.c.l.b16 %v9284
        %v9317 = vunpack.c.l.b16 %v9285
        %v9318 = vunpack.c.l.b16 %v9286
        %v9319 = vunpack.c.l.b16 %v9287
        %v9320 = vunpack.c.l.b16 %v9288
        %v9321 = vunpack.c.l.b16 %v9289
        %v9322 = vunpack.c.l.b16 %v9290
        %v9323 = vunpack.c.l.b16 %v9291
        %v9324 = vpack.c.b16 %v9309, %v9308
        %v9325 = vpack.c.b16 %v9311, %v9310
        %v9326 = vpack.c.b16 %v9313, %v9312
        %v9327 = vpack.c.b16 %v9315, %v9314
        %v9328 = vpack.c.b16 %v9317, %v9316
        %v9329 = vpack.c.b16 %v9319, %v9318
        %v9330 = vpack.c.b16 %v9321, %v9320
        %v9331 = vpack.c.b16 %v9323, %v9322
        %9340 = vmatprep.subr.bf16.mxu0 0
        %9341 = vmatpush1.bf16.msra.mxu0 %v9331
        %9342 = vmatprep.subr.bf16.mxu0 0
        %9343 = vmatpush1.bf16.msra.mxu0 %v9330
        %9344 = vmatprep.subr.bf16.mxu0 0
        %9345 = vmatpush1.bf16.msra.mxu0 %v9329
        %9346 = vmatprep.subr.bf16.mxu0 0
        %9347 = vmatpush1.bf16.msra.mxu0 %v9328
        %9348 = vmatprep.subr.bf16.mxu0 0
        %9349 = vmatpush1.bf16.msra.mxu0 %v9327
        %9350 = vmatprep.subr.bf16.mxu0 0
        %9351 = vmatpush1.bf16.msra.mxu0 %v9326
        %9352 = vmatprep.subr.bf16.mxu0 0
        %9353 = vmatpush1.bf16.msra.mxu0 %v9325
        %9354 = vmatprep.subr.bf16.mxu0 0
        %9355 = vmatpush1.bf16.msra.mxu0 %v9324
        %9356 = vmatprep.subr.bf16.mxu0 0
        %9357 = vmatpush2.bf16.msra.mxu0 0
        %9358 = vmatprep.subr.bf16.mxu0 0
        %9359 = vmatpush2.bf16.msra.mxu0 0
        %9360 = vmatprep.subr.bf16.mxu0 0
        %9361 = vmatpush2.bf16.msra.mxu0 0
        %9362 = vmatprep.subr.bf16.mxu0 0
        %9363 = vmatpush2.bf16.msra.mxu0 0
        %9364 = vmatprep.subr.bf16.mxu0 0
        %9365 = vmatpush2.bf16.msra.mxu0 0
        %9366 = vmatprep.subr.bf16.mxu0 0
        %9367 = vmatpush2.bf16.msra.mxu0 0
        %9368 = vmatprep.subr.bf16.mxu0 0
        %9369 = vmatpush2.bf16.msra.mxu0 0
        %9370 = vmatprep.subr.bf16.mxu0 0
        %9371 = vmatpush2.bf16.msra.mxu0 0
        %9372 = vmatprep.mubr.bf16.mxu0 0
        %9373 = vmatmul.mubr.bf16.gmra.mxu0 %v9272
        %v9374 = vpop.f32.mrf.mxu0
        %v9375 = vadd.f32 0.0, %v9374
        %v9376 = vpop.f32.mrf.mxu0
        %v9377 = vpop.f32.mrf.mxu0
        %v9378 = vadd.f32 0.0, %v9377
        %v9379 = vpop.f32.mrf.mxu0
        %9380 = vmatprep.mubr.bf16.mxu0 0
        %9381 = vmatmul.mubr.bf16.gmra.mxu0 %v9273
        %v9382 = vpop.f32.mrf.mxu0
        %v9383 = vadd.f32 0.0, %v9382
        %v9384 = vpop.f32.mrf.mxu0
        %v9385 = vpop.f32.mrf.mxu0
        %v9386 = vadd.f32 0.0, %v9385
        %v9387 = vpop.f32.mrf.mxu0
        %9388 = vmatprep.mubr.bf16.mxu0 0
        %9389 = vmatmul.mubr.bf16.gmra.mxu0 %v9274
        %v9390 = vpop.f32.mrf.mxu0
        %v9391 = vadd.f32 0.0, %v9390
        %v9392 = vpop.f32.mrf.mxu0
        %v9393 = vpop.f32.mrf.mxu0
        %v9394 = vadd.f32 0.0, %v9393
        %v9395 = vpop.f32.mrf.mxu0
        %9396 = vmatprep.mubr.bf16.mxu0 0
        %9397 = vmatmul.mubr.bf16.gmra.mxu0 %v9275
        %v9398 = vpop.f32.mrf.mxu0
        %v9399 = vadd.f32 0.0, %v9398
        %v9400 = vpop.f32.mrf.mxu0
        %v9401 = vpop.f32.mrf.mxu0
        %v9402 = vadd.f32 0.0, %v9401
        %v9403 = vpop.f32.mrf.mxu0
        %9404 = vdwg.mxu0
        %v9405 = vadd.f32 %v9256, %v9375
        %v9406 = vadd.f32 %v9257, %v9378
        %v9407 = vadd.f32 %v9258, %v9383
        %v9408 = vadd.f32 %v9259, %v9386
        %v9409 = vadd.f32 %v9260, %v9391
        %v9410 = vadd.f32 %v9261, %v9394
        %v9411 = vadd.f32 %v9262, %v9399
        %v9412 = vadd.f32 %v9263, %v9402
        %v9413 = vld [vmem:[%s309 + $0x12a] sm:$0xff]
        %v9414 = vld [vmem:[%s309 + $0x132] sm:$0xff]
        %v9415 = vld [vmem:[%s309 + $0x13a] sm:$0xff]
        %v9416 = vld [vmem:[%s309 + $0x142] sm:$0xff]
        %v9417 = vld [vmem:[%s309 + $0x14a] sm:$0xff]
        %v9418 = vld [vmem:[%s309 + $0x152] sm:$0xff]
        %v9419 = vld [vmem:[%s309 + $0x15a] sm:$0xff]
        %v9420 = vld [vmem:[%s309 + $0x162] sm:$0xf]
        %v9421 = vmul.f32 %v9405, %v7920
        %v9422 = vmul.f32 %v9406, %v7920
        %v9423 = vmul.f32 %v9407, %v7920
        %v9424 = vmul.f32 %v9408, %v7920
        %v9425 = vmul.f32 %v9409, %v7920
        %v9426 = vmul.f32 %v9410, %v7920
        %v9427 = vmul.f32 %v9411, %v7920
        %v9428 = vmul.f32 %v9412, %v7920
        %v9429 = vadd.f32 %v9421, %v7958
        %v9430 = vadd.f32 %v9422, %v7958
        %v9431 = vadd.f32 %v9423, %v7958
        %v9432 = vadd.f32 %v9424, %v7958
        %v9433 = vadd.f32 %v9425, %v7958
        %v9434 = vadd.f32 %v9426, %v7958
        %v9435 = vadd.f32 %v9427, %v7958
        %v9436 = vadd.f32 %v9428, %v7958
        %v9437 = vadd.f32 %v9429, %v9413
        %v9438 = vadd.f32 %v9430, %v9414
        %v9439 = vadd.f32 %v9431, %v9415
        %v9440 = vadd.f32 %v9432, %v9416
        %v9441 = vadd.f32 %v9433, %v9417
        %v9442 = vadd.f32 %v9434, %v9418
        %v9443 = vadd.f32 %v9435, %v9419
        %v9444 = vadd.f32 %v9436, %v9420
        %v9445 = vmax.f32 %v9437, 0.0
        %v9446 = vmax.f32 %v9438, 0.0
        %v9447 = vmax.f32 %v9439, 0.0
        %v9448 = vmax.f32 %v9440, 0.0
        %v9449 = vmax.f32 %v9441, 0.0
        %v9450 = vmax.f32 %v9442, 0.0
        %v9451 = vmax.f32 %v9443, 0.0
        %v9452 = vmax.f32 %v9444, 0.0
        %9453 = vst [vmem:[%s354 + $0x100] sm:$0xff] %v9445
        %9454 = vst [vmem:[%s354 + $0x108] sm:$0xff] %v9446
        %9455 = vst [vmem:[%s354 + $0x110] sm:$0xff] %v9447
        %9456 = vst [vmem:[%s354 + $0x118] sm:$0xff] %v9448
        %9457 = vst [vmem:[%s354 + $0x120] sm:$0xff] %v9449
        %9458 = vst [vmem:[%s354 + $0x128] sm:$0xff] %v9450
        %9459 = vst [vmem:[%s354 + $0x130] sm:$0xff] %v9451
        %9460 = vst [vmem:[%s354 + $0x138] sm:$0xf] %v9452
        %p9461 = scmp.lt.s32.totalorder %s23, 1
        %s9462 = scalar_select %p9461, %s23, 1
        %s9463 = smul.addr %s9462, 40
        %s9464 = smul.addr %s9463, 8
        %s9465 = scalar_lea.vmem %s8, %s9464
        // Predicated region
        $region65: #{tpu_custom_call.1} parent=51 // pred_check
          %p9466 = pneg %p214
        $region66: #{tpu_custom_call.1} parent=51 // pred_check_branch
          %9468 = sbr.rel (%p9466) target = $region68
        $region67: #{tpu_custom_call.1} parent=51 // pred_region
          _
        $region68: #{tpu_custom_call.1} parent=51 // pred_fallthru
          _
      $region52: #{tpu_custom_call.1} parent=5 // pred_fallthru
        _
      %p9469 = scmp.le.s32.totalorder 2, %s18
      // Predicated region
      $region69: #{tpu_custom_call.1} parent=5 // pred_check
        %p9470 = pneg %p9469
      $region70: #{tpu_custom_call.1} parent=5 // pred_check_branch
        %9472 = sbr.rel (%p9470) target = $region72
      $region71: #{tpu_custom_call.1} parent=5 // pred_region
        %s9473 = ssub.s32 %s18, 2
        // Predicated region
        $region73: #{tpu_custom_call.1} parent=71 // pred_check
          %p9474 = pneg %p220
        $region74: #{tpu_custom_call.1} parent=71 // pred_check_branch
          %9476 = sbr.rel (%p9474) target = $region76
        $region75: #{tpu_custom_call.1} parent=71 // pred_region
          %p9477 = scmp.lt.s32.totalorder %s24, 1
          %s9478 = scalar_select %p9477, %s24, 1
          %s9479 = smul.addr %s9478, 40
          %s9480 = smul.addr %s9479, 8
          %s9481 = scalar_lea.vmem %s8, %s9480
        $region76: #{tpu_custom_call.1} parent=71 // pred_fallthru
          _
      $region72: #{tpu_custom_call.1} parent=5 // pred_fallthru
        _
    $region6: #{tpu_custom_call.1} parent=1 // loop_footer
      %s22 = sadd.s32 1, %s18
    $region7: #{tpu_custom_call.1} parent=1 // loop_footer_branch
      %17 = sbr.rel target = $region3
    $region8: #{tpu_custom_call.1} parent=1 // loop_exit
      _
    %9482 = vsyncpa [#allocation4], 1
    %s9483 = scalar_lea.sflag [#allocation4], 1
    %9484 = vsyncpa %s9483, 1
    %9485 = vsyncpa [#allocation6], 1

</llo_original>
